<compile_context>
chip_gen: v7x
topology: tpu7x:2x2x1
jax: 0.10.0
libtpu: 0.0.40
codegen_flags: <defaults>
</compile_context>

<pallas_src>
import functools

import jax
import jax.numpy as jnp
from jax.experimental import pallas as pl
from jax.experimental.pallas import tpu as pltpu


HEAD_PAD = 128  # lane-dense fused output width: [policy | value | zero padding]


# ----------------------------------------------------------------------------
# Fused kernel: conv stack + ReLU + global max-pool + fused heads + softmax
# ----------------------------------------------------------------------------
def _a2c_fused_kernel(x_ref, *refs, kernel_sizes, n_actions):
    """refs = [(w, b) per conv ..., w_head, b_head, out_ref]."""
    n_conv = len(kernel_sizes)
    conv_refs = refs[:2 * n_conv]        # w: (k, k, Cin, Cout) bf16, b: (1, Cout) f32
    wh_ref = refs[2 * n_conv]            # (C_last, HEAD_PAD) bf16
    bh_ref = refs[2 * n_conv + 1]        # (1, HEAD_PAD) f32
    out_ref = refs[-1]                   # (Btile, 1, HEAD_PAD) f32

    bt = x_ref.shape[0]
    # Cast once to bf16 (MXU-native) BEFORE any window extraction; halves the
    # bytes pushed through the slice/relayout path.
    h = x_ref[...].astype(jnp.bfloat16)                       # (Btile, H, W, Cin)

    for li, k in enumerate(kernel_sizes):
        w_ref = conv_refs[2 * li]
        b_ref = conv_refs[2 * li + 1]
        _, H, W, C = h.shape
        Ho, Wo = H - k + 1, W - k + 1
        cout = w_ref.shape[-1]
        M = bt * Ho * Wo

        # k*k accumulated per-tap matmuls (no lane-misaligned concat).  The
        # MXU has huge slack at these shapes, so extra small pushes are free.
        acc = jnp.zeros((M, cout), jnp.float32)
        for dy in range(k):
            for dx in range(k):
                patch = h[:, dy:dy + Ho, dx:dx + Wo, :].reshape(M, C)
                acc += jnp.dot(patch, w_ref[dy, dx],
                               preferred_element_type=jnp.float32)

        # Conv2d bias + ReLU in f32, then back to bf16 once for the next layer.
        h = jnp.maximum(acc + b_ref[...], 0.0).astype(jnp.bfloat16)
        h = h.reshape(bt, Ho, Wo, cout)

    # adaptive_max_pool2d(x, (1,1)).view(B, -1): global max over spatial dims.
    pooled = jnp.max(h.reshape(bt, -1, h.shape[-1]), axis=1)   # (Btile, C_last) bf16

    # Fused [policy | value | pad] projection -> one lane-dense (Btile, 128) slab.
    z = jnp.dot(pooled, wh_ref[...],
                preferred_element_type=jnp.float32) + bh_ref[...]

    col = jax.lax.broadcasted_iota(jnp.int32, z.shape, 1)
    is_logit = col < n_actions
    masked = jnp.where(is_logit, z, -1e30)                     # only policy cols
    m = jnp.max(masked, axis=-1, keepdims=True)
    e = jnp.exp(masked - m)                                    # 0 in non-policy cols
    probs = e / jnp.sum(e, axis=-1, keepdims=True)             # exact reciprocal
    out = jnp.where(is_logit, probs, z)                        # value stays at col n_actions

    out_ref[...] = out.reshape(out_ref.shape)


# ----------------------------------------------------------------------------
# Wrapper
# ----------------------------------------------------------------------------
def _full_spec(arr):
    """Whole-array block, same block for every grid step (weights)."""
    nd = arr.ndim
    return pl.BlockSpec(arr.shape, lambda b, _nd=nd: (0,) * _nd)


def _pick_batch_tile(B, cap=64):
    """Largest divisor of B that is <= cap (v7x 64 MiB VMEM safety) and, when
    B >= 2, leaves >= 2 grid steps so both v7x TensorCores get work."""
    best = 1
    for t in range(1, min(cap, B) + 1):
        if B % t == 0 and (B < 2 or B // t >= 2):
            best = t
    return best


def a2c_forward(params, x_nchw, *, kernel_sizes, n_actions, batch_tile=None):
    # NCHW (PyTorch convention) -> NHWC once at the boundary.
    x = jnp.transpose(x_nchw, (0, 2, 3, 1)).astype(jnp.float32)
    B, H, W, Cin = x.shape
    bt = batch_tile if batch_tile is not None else _pick_batch_tile(B)
    assert B % bt == 0

    flat = []
    for w, b in params["convs"]:
        flat += [w, b]
    wh, bh = params["wh"], params["bh"]

    in_specs = [pl.BlockSpec((bt, H, W, Cin), lambda b: (b, 0, 0, 0))]
    in_specs += [_full_spec(p) for p in flat + [wh, bh]]
    out_specs = pl.BlockSpec((bt, 1, HEAD_PAD), lambda b: (b, 0, 0))
    out_shape = jax.ShapeDtypeStruct((B, 1, HEAD_PAD), jnp.float32)

    out = pl.pallas_call(
        functools.partial(_a2c_fused_kernel,
                          kernel_sizes=tuple(kernel_sizes),
                          n_actions=n_actions),
        grid=(B // bt,),
        in_specs=in_specs,
        out_specs=out_specs,
        out_shape=out_shape,
        compiler_params=pltpu.CompilerParams(
            dimension_semantics=("parallel",)),
    )(x, *flat, wh, bh)

    out = out.reshape(B, HEAD_PAD)
    probs = out[:, :n_actions]
    values = out[:, n_actions:n_actions + 1]
    return probs, values


# ----------------------------------------------------------------------------
# Parameter construction (deterministic, synthetic), pre-laid-out for the kernel
# ----------------------------------------------------------------------------
def init_params(key, *, in_channels, conv_channels, kernel_sizes, n_actions):
    assert len(conv_channels) == len(kernel_sizes)
    assert n_actions + 1 <= HEAD_PAD
    keys = iter(jax.random.split(key, 2 * len(conv_channels) + 4))

    convs = []
    cin = in_channels
    for cout, k in zip(conv_channels, kernel_sizes):
        # Per-tap layout (k, k, Cin, Cout), bf16 for the MXU.
        # (PyTorch Conv2d weight (Cout, Cin, k, k) -> w.transpose(2, 3, 1, 0).)
        w = 0.1 * jax.random.normal(next(keys), (k, k, cin, cout), jnp.float32)
        b = 0.01 * jax.random.normal(next(keys), (1, cout), jnp.float32)
        convs.append((w.astype(jnp.bfloat16), b))
        cin = cout

    # Fused, lane-padded head: cols [0, n_actions) policy, col n_actions value,
    # rest zero padding.  (PyTorch Linear weight (out, in) -> transpose.)
    wp = 0.1 * jax.random.normal(next(keys), (cin, n_actions), jnp.float32)
    wv = 0.1 * jax.random.normal(next(keys), (cin, 1), jnp.float32)
    bp = 0.01 * jax.random.normal(next(keys), (1, n_actions), jnp.float32)
    bv = 0.01 * jax.random.normal(next(keys), (1, 1), jnp.float32)
    wh = jnp.zeros((cin, HEAD_PAD), jnp.float32)
    wh = wh.at[:, :n_actions].set(wp).at[:, n_actions:n_actions + 1].set(wv)
    bh = jnp.zeros((1, HEAD_PAD), jnp.float32)
    bh = bh.at[:, :n_actions].set(bp).at[:, n_actions:n_actions + 1].set(bv)

    return {"convs": convs, "wh": wh.astype(jnp.bfloat16), "bh": bh}


if __name__ == "__main__":
    # Shapes implied by the module defaults: in_channels=3, n_actions=4,
    # conv_channels=[32, 32], kernel_sizes=[2, 3]; batch=2, spatial=16.
    B, IN_CH, HW = 2, 3, 16
    CONV_CHANNELS = [32, 32]
    KERNEL_SIZES = [2, 3]
    N_ACTIONS = 4

    root = jax.random.PRNGKey(0)
    k_x, k_p = jax.random.split(root)

    x = jax.random.normal(k_x, (B, IN_CH, HW, HW), jnp.float32)   # NCHW input
    params = init_params(k_p, in_channels=IN_CH, conv_channels=CONV_CHANNELS,
                         kernel_sizes=KERNEL_SIZES, n_actions=N_ACTIONS)

    fwd = jax.jit(functools.partial(a2c_forward,
                                    kernel_sizes=tuple(KERNEL_SIZES),
                                    n_actions=N_ACTIONS))
    probs, values = fwd(params, x)
    jax.block_until_ready((probs, values))

    assert probs.shape == (B, N_ACTIONS)
    assert values.shape == (B, 1)
    # Exact-division softmax: probabilities should sum to 1 tightly.
    assert bool(jnp.all(jnp.abs(jnp.sum(probs, axis=-1) - 1.0) < 1e-3))
    assert bool(jnp.all(probs >= 0.0))
    assert bool(jnp.all(jnp.isfinite(values)))
    print("KERNEL_OK")
</pallas_src>

<mosaic_0001>
module attributes {stable_mosaic.version = 11 : i64} {
  func.func @_a2c_fused_kernel(%arg0: i32, %arg1: memref<1x16x16x3xf32, #tpu.memory_space<vmem>>, %arg2: memref<2x2x3x32xbf16, #tpu.memory_space<vmem>>, %arg3: memref<1x32xf32, #tpu.memory_space<vmem>>, %arg4: memref<3x3x32x32xbf16, #tpu.memory_space<vmem>>, %arg5: memref<1x32xf32, #tpu.memory_space<vmem>>, %arg6: memref<32x128xbf16, #tpu.memory_space<vmem>>, %arg7: memref<1x128xf32, #tpu.memory_space<vmem>>, %arg8: memref<1x1x128xf32, #tpu.memory_space<vmem>>) attributes {dimension_semantics = [#tpu.dimension_semantics<parallel>], iteration_bounds = array<i64: 2>, scalar_prefetch = 0 : i64, scratch_operands = 0 : i64, tpu.core_type = #tpu.core_type<tc>, window_params = [{transform_indices = @transform_0, window_bounds = array<i64: 1, 16, 16, 3>}, {pipeline_mode = #tpu.pipeline_mode<synchronous>, transform_indices = @transform_1, window_bounds = array<i64: 2, 2, 3, 32>}, {pipeline_mode = #tpu.pipeline_mode<synchronous>, transform_indices = @transform_2, window_bounds = array<i64: 1, 32>}, {pipeline_mode = #tpu.pipeline_mode<synchronous>, transform_indices = @transform_3, window_bounds = array<i64: 3, 3, 32, 32>}, {pipeline_mode = #tpu.pipeline_mode<synchronous>, transform_indices = @transform_4, window_bounds = array<i64: 1, 32>}, {pipeline_mode = #tpu.pipeline_mode<synchronous>, transform_indices = @transform_5, window_bounds = array<i64: 32, 128>}, {pipeline_mode = #tpu.pipeline_mode<synchronous>, transform_indices = @transform_6, window_bounds = array<i64: 1, 128>}, {transform_indices = @transform_7, window_bounds = array<i64: 1, 1, 128>}]} {
    %c0 = arith.constant 0 : index
    %c0_0 = arith.constant 0 : index
    %c0_1 = arith.constant 0 : index
    %c0_2 = arith.constant 0 : index
    %0 = vector.load %arg1[%c0, %c0_0, %c0_1, %c0_2] : memref<1x16x16x3xf32, #tpu.memory_space<vmem>>, vector<1x16x16x3xf32>
    %1 = arith.truncf %0 : vector<1x16x16x3xf32> to vector<1x16x16x3xbf16>
    %cst = arith.constant 0.000000e+00 : f32
    %2 = vector.broadcast %cst : f32 to vector<225x32xf32>
    %3 = vector.extract_strided_slice %1 {offsets = [0, 0, 0, 0], sizes = [1, 15, 15, 3], strides = [1, 1, 1, 1]} : vector<1x16x16x3xbf16> to vector<1x15x15x3xbf16>
    %4 = vector.shape_cast %3 : vector<1x15x15x3xbf16> to vector<225x3xbf16>
    %c0_3 = arith.constant 0 : index
    %c0_4 = arith.constant 0 : index
    %c0_5 = arith.constant 0 : index
    %c0_6 = arith.constant 0 : index
    %5 = vector.load %arg2[%c0_3, %c0_4, %c0_5, %c0_6] : memref<2x2x3x32xbf16, #tpu.memory_space<vmem>>, vector<1x1x3x32xbf16>
    %6 = vector.shape_cast %5 : vector<1x1x3x32xbf16> to vector<3x32xbf16>
    %cst_7 = arith.constant dense<0.000000e+00> : vector<225x32xf32>
    %7 = tpu.matmul %4, %6, %cst_7 {dimension_numbers = #tpu.dot_dimension_numbers<[1], [0], [0], [1], [0, 0, 1, 1], [], []>} : vector<225x3xbf16>, vector<3x32xbf16>, vector<225x32xf32> -> vector<225x32xf32>
    %8 = arith.addf %2, %7 : vector<225x32xf32>
    %9 = vector.extract_strided_slice %1 {offsets = [0, 0, 1, 0], sizes = [1, 15, 15, 3], strides = [1, 1, 1, 1]} : vector<1x16x16x3xbf16> to vector<1x15x15x3xbf16>
    %10 = vector.shape_cast %9 : vector<1x15x15x3xbf16> to vector<225x3xbf16>
    %c0_8 = arith.constant 0 : index
    %c1 = arith.constant 1 : index
    %c0_9 = arith.constant 0 : index
    %c0_10 = arith.constant 0 : index
    %11 = vector.load %arg2[%c0_8, %c1, %c0_9, %c0_10] : memref<2x2x3x32xbf16, #tpu.memory_space<vmem>>, vector<1x1x3x32xbf16>
    %12 = vector.shape_cast %11 : vector<1x1x3x32xbf16> to vector<3x32xbf16>
    %cst_11 = arith.constant dense<0.000000e+00> : vector<225x32xf32>
    %13 = tpu.matmul %10, %12, %cst_11 {dimension_numbers = #tpu.dot_dimension_numbers<[1], [0], [0], [1], [0, 0, 1, 1], [], []>} : vector<225x3xbf16>, vector<3x32xbf16>, vector<225x32xf32> -> vector<225x32xf32>
    %14 = arith.addf %8, %13 : vector<225x32xf32>
    %15 = vector.extract_strided_slice %1 {offsets = [0, 1, 0, 0], sizes = [1, 15, 15, 3], strides = [1, 1, 1, 1]} : vector<1x16x16x3xbf16> to vector<1x15x15x3xbf16>
    %16 = vector.shape_cast %15 : vector<1x15x15x3xbf16> to vector<225x3xbf16>
    %c1_12 = arith.constant 1 : index
    %c0_13 = arith.constant 0 : index
    %c0_14 = arith.constant 0 : index
    %c0_15 = arith.constant 0 : index
    %17 = vector.load %arg2[%c1_12, %c0_13, %c0_14, %c0_15] : memref<2x2x3x32xbf16, #tpu.memory_space<vmem>>, vector<1x1x3x32xbf16>
    %18 = vector.shape_cast %17 : vector<1x1x3x32xbf16> to vector<3x32xbf16>
    %cst_16 = arith.constant dense<0.000000e+00> : vector<225x32xf32>
    %19 = tpu.matmul %16, %18, %cst_16 {dimension_numbers = #tpu.dot_dimension_numbers<[1], [0], [0], [1], [0, 0, 1, 1], [], []>} : vector<225x3xbf16>, vector<3x32xbf16>, vector<225x32xf32> -> vector<225x32xf32>
    %20 = arith.addf %14, %19 : vector<225x32xf32>
    %21 = vector.extract_strided_slice %1 {offsets = [0, 1, 1, 0], sizes = [1, 15, 15, 3], strides = [1, 1, 1, 1]} : vector<1x16x16x3xbf16> to vector<1x15x15x3xbf16>
    %22 = vector.shape_cast %21 : vector<1x15x15x3xbf16> to vector<225x3xbf16>
    %c1_17 = arith.constant 1 : index
    %c1_18 = arith.constant 1 : index
    %c0_19 = arith.constant 0 : index
    %c0_20 = arith.constant 0 : index
    %23 = vector.load %arg2[%c1_17, %c1_18, %c0_19, %c0_20] : memref<2x2x3x32xbf16, #tpu.memory_space<vmem>>, vector<1x1x3x32xbf16>
    %24 = vector.shape_cast %23 : vector<1x1x3x32xbf16> to vector<3x32xbf16>
    %cst_21 = arith.constant dense<0.000000e+00> : vector<225x32xf32>
    %25 = tpu.matmul %22, %24, %cst_21 {dimension_numbers = #tpu.dot_dimension_numbers<[1], [0], [0], [1], [0, 0, 1, 1], [], []>} : vector<225x3xbf16>, vector<3x32xbf16>, vector<225x32xf32> -> vector<225x32xf32>
    %26 = arith.addf %20, %25 : vector<225x32xf32>
    %c0_22 = arith.constant 0 : index
    %c0_23 = arith.constant 0 : index
    %27 = vector.load %arg3[%c0_22, %c0_23] : memref<1x32xf32, #tpu.memory_space<vmem>>, vector<1x32xf32>
    %28 = vector.broadcast %27 : vector<1x32xf32> to vector<225x32xf32>
    %29 = arith.addf %26, %28 : vector<225x32xf32>
    %cst_24 = arith.constant 0.000000e+00 : f32
    %30 = vector.broadcast %cst_24 : f32 to vector<225x32xf32>
    %31 = arith.maximumf %29, %30 : vector<225x32xf32>
    %32 = arith.truncf %31 : vector<225x32xf32> to vector<225x32xbf16>
    %33 = vector.shape_cast %32 : vector<225x32xbf16> to vector<1x15x15x32xbf16>
    %cst_25 = arith.constant 0.000000e+00 : f32
    %34 = vector.broadcast %cst_25 : f32 to vector<169x32xf32>
    %35 = vector.extract_strided_slice %33 {offsets = [0, 0, 0, 0], sizes = [1, 13, 13, 32], strides = [1, 1, 1, 1]} : vector<1x15x15x32xbf16> to vector<1x13x13x32xbf16>
    %36 = vector.shape_cast %35 : vector<1x13x13x32xbf16> to vector<169x32xbf16>
    %c0_26 = arith.constant 0 : index
    %c0_27 = arith.constant 0 : index
    %c0_28 = arith.constant 0 : index
    %c0_29 = arith.constant 0 : index
    %37 = vector.load %arg4[%c0_26, %c0_27, %c0_28, %c0_29] : memref<3x3x32x32xbf16, #tpu.memory_space<vmem>>, vector<1x1x32x32xbf16>
    %38 = vector.shape_cast %37 : vector<1x1x32x32xbf16> to vector<32x32xbf16>
    %cst_30 = arith.constant dense<0.000000e+00> : vector<169x32xf32>
    %39 = tpu.matmul %36, %38, %cst_30 {dimension_numbers = #tpu.dot_dimension_numbers<[1], [0], [0], [1], [0, 0, 1, 1], [], []>} : vector<169x32xbf16>, vector<32x32xbf16>, vector<169x32xf32> -> vector<169x32xf32>
    %40 = arith.addf %34, %39 : vector<169x32xf32>
    %41 = vector.extract_strided_slice %33 {offsets = [0, 0, 1, 0], sizes = [1, 13, 13, 32], strides = [1, 1, 1, 1]} : vector<1x15x15x32xbf16> to vector<1x13x13x32xbf16>
    %42 = vector.shape_cast %41 : vector<1x13x13x32xbf16> to vector<169x32xbf16>
    %c0_31 = arith.constant 0 : index
    %c1_32 = arith.constant 1 : index
    %c0_33 = arith.constant 0 : index
    %c0_34 = arith.constant 0 : index
    %43 = vector.load %arg4[%c0_31, %c1_32, %c0_33, %c0_34] : memref<3x3x32x32xbf16, #tpu.memory_space<vmem>>, vector<1x1x32x32xbf16>
    %44 = vector.shape_cast %43 : vector<1x1x32x32xbf16> to vector<32x32xbf16>
    %cst_35 = arith.constant dense<0.000000e+00> : vector<169x32xf32>
    %45 = tpu.matmul %42, %44, %cst_35 {dimension_numbers = #tpu.dot_dimension_numbers<[1], [0], [0], [1], [0, 0, 1, 1], [], []>} : vector<169x32xbf16>, vector<32x32xbf16>, vector<169x32xf32> -> vector<169x32xf32>
    %46 = arith.addf %40, %45 : vector<169x32xf32>
    %47 = vector.extract_strided_slice %33 {offsets = [0, 0, 2, 0], sizes = [1, 13, 13, 32], strides = [1, 1, 1, 1]} : vector<1x15x15x32xbf16> to vector<1x13x13x32xbf16>
    %48 = vector.shape_cast %47 : vector<1x13x13x32xbf16> to vector<169x32xbf16>
    %c0_36 = arith.constant 0 : index
    %c2 = arith.constant 2 : index
    %c0_37 = arith.constant 0 : index
    %c0_38 = arith.constant 0 : index
    %49 = vector.load %arg4[%c0_36, %c2, %c0_37, %c0_38] : memref<3x3x32x32xbf16, #tpu.memory_space<vmem>>, vector<1x1x32x32xbf16>
    %50 = vector.shape_cast %49 : vector<1x1x32x32xbf16> to vector<32x32xbf16>
    %cst_39 = arith.constant dense<0.000000e+00> : vector<169x32xf32>
    %51 = tpu.matmul %48, %50, %cst_39 {dimension_numbers = #tpu.dot_dimension_numbers<[1], [0], [0], [1], [0, 0, 1, 1], [], []>} : vector<169x32xbf16>, vector<32x32xbf16>, vector<169x32xf32> -> vector<169x32xf32>
    %52 = arith.addf %46, %51 : vector<169x32xf32>
    %53 = vector.extract_strided_slice %33 {offsets = [0, 1, 0, 0], sizes = [1, 13, 13, 32], strides = [1, 1, 1, 1]} : vector<1x15x15x32xbf16> to vector<1x13x13x32xbf16>
    %54 = vector.shape_cast %53 : vector<1x13x13x32xbf16> to vector<169x32xbf16>
    %c1_40 = arith.constant 1 : index
    %c0_41 = arith.constant 0 : index
    %c0_42 = arith.constant 0 : index
    %c0_43 = arith.constant 0 : index
    %55 = vector.load %arg4[%c1_40, %c0_41, %c0_42, %c0_43] : memref<3x3x32x32xbf16, #tpu.memory_space<vmem>>, vector<1x1x32x32xbf16>
    %56 = vector.shape_cast %55 : vector<1x1x32x32xbf16> to vector<32x32xbf16>
    %cst_44 = arith.constant dense<0.000000e+00> : vector<169x32xf32>
    %57 = tpu.matmul %54, %56, %cst_44 {dimension_numbers = #tpu.dot_dimension_numbers<[1], [0], [0], [1], [0, 0, 1, 1], [], []>} : vector<169x32xbf16>, vector<32x32xbf16>, vector<169x32xf32> -> vector<169x32xf32>
    %58 = arith.addf %52, %57 : vector<169x32xf32>
    %59 = vector.extract_strided_slice %33 {offsets = [0, 1, 1, 0], sizes = [1, 13, 13, 32], strides = [1, 1, 1, 1]} : vector<1x15x15x32xbf16> to vector<1x13x13x32xbf16>
    %60 = vector.shape_cast %59 : vector<1x13x13x32xbf16> to vector<169x32xbf16>
    %c1_45 = arith.constant 1 : index
    %c1_46 = arith.constant 1 : index
    %c0_47 = arith.constant 0 : index
    %c0_48 = arith.constant 0 : index
    %61 = vector.load %arg4[%c1_45, %c1_46, %c0_47, %c0_48] : memref<3x3x32x32xbf16, #tpu.memory_space<vmem>>, vector<1x1x32x32xbf16>
    %62 = vector.shape_cast %61 : vector<1x1x32x32xbf16> to vector<32x32xbf16>
    %cst_49 = arith.constant dense<0.000000e+00> : vector<169x32xf32>
    %63 = tpu.matmul %60, %62, %cst_49 {dimension_numbers = #tpu.dot_dimension_numbers<[1], [0], [0], [1], [0, 0, 1, 1], [], []>} : vector<169x32xbf16>, vector<32x32xbf16>, vector<169x32xf32> -> vector<169x32xf32>
    %64 = arith.addf %58, %63 : vector<169x32xf32>
    %65 = vector.extract_strided_slice %33 {offsets = [0, 1, 2, 0], sizes = [1, 13, 13, 32], strides = [1, 1, 1, 1]} : vector<1x15x15x32xbf16> to vector<1x13x13x32xbf16>
    %66 = vector.shape_cast %65 : vector<1x13x13x32xbf16> to vector<169x32xbf16>
    %c1_50 = arith.constant 1 : index
    %c2_51 = arith.constant 2 : index
    %c0_52 = arith.constant 0 : index
    %c0_53 = arith.constant 0 : index
    %67 = vector.load %arg4[%c1_50, %c2_51, %c0_52, %c0_53] : memref<3x3x32x32xbf16, #tpu.memory_space<vmem>>, vector<1x1x32x32xbf16>
    %68 = vector.shape_cast %67 : vector<1x1x32x32xbf16> to vector<32x32xbf16>
    %cst_54 = arith.constant dense<0.000000e+00> : vector<169x32xf32>
    %69 = tpu.matmul %66, %68, %cst_54 {dimension_numbers = #tpu.dot_dimension_numbers<[1], [0], [0], [1], [0, 0, 1, 1], [], []>} : vector<169x32xbf16>, vector<32x32xbf16>, vector<169x32xf32> -> vector<169x32xf32>
    %70 = arith.addf %64, %69 : vector<169x32xf32>
    %71 = vector.extract_strided_slice %33 {offsets = [0, 2, 0, 0], sizes = [1, 13, 13, 32], strides = [1, 1, 1, 1]} : vector<1x15x15x32xbf16> to vector<1x13x13x32xbf16>
    %72 = vector.shape_cast %71 : vector<1x13x13x32xbf16> to vector<169x32xbf16>
    %c2_55 = arith.constant 2 : index
    %c0_56 = arith.constant 0 : index
    %c0_57 = arith.constant 0 : index
    %c0_58 = arith.constant 0 : index
    %73 = vector.load %arg4[%c2_55, %c0_56, %c0_57, %c0_58] : memref<3x3x32x32xbf16, #tpu.memory_space<vmem>>, vector<1x1x32x32xbf16>
    %74 = vector.shape_cast %73 : vector<1x1x32x32xbf16> to vector<32x32xbf16>
    %cst_59 = arith.constant dense<0.000000e+00> : vector<169x32xf32>
    %75 = tpu.matmul %72, %74, %cst_59 {dimension_numbers = #tpu.dot_dimension_numbers<[1], [0], [0], [1], [0, 0, 1, 1], [], []>} : vector<169x32xbf16>, vector<32x32xbf16>, vector<169x32xf32> -> vector<169x32xf32>
    %76 = arith.addf %70, %75 : vector<169x32xf32>
    %77 = vector.extract_strided_slice %33 {offsets = [0, 2, 1, 0], sizes = [1, 13, 13, 32], strides = [1, 1, 1, 1]} : vector<1x15x15x32xbf16> to vector<1x13x13x32xbf16>
    %78 = vector.shape_cast %77 : vector<1x13x13x32xbf16> to vector<169x32xbf16>
    %c2_60 = arith.constant 2 : index
    %c1_61 = arith.constant 1 : index
    %c0_62 = arith.constant 0 : index
    %c0_63 = arith.constant 0 : index
    %79 = vector.load %arg4[%c2_60, %c1_61, %c0_62, %c0_63] : memref<3x3x32x32xbf16, #tpu.memory_space<vmem>>, vector<1x1x32x32xbf16>
    %80 = vector.shape_cast %79 : vector<1x1x32x32xbf16> to vector<32x32xbf16>
    %cst_64 = arith.constant dense<0.000000e+00> : vector<169x32xf32>
    %81 = tpu.matmul %78, %80, %cst_64 {dimension_numbers = #tpu.dot_dimension_numbers<[1], [0], [0], [1], [0, 0, 1, 1], [], []>} : vector<169x32xbf16>, vector<32x32xbf16>, vector<169x32xf32> -> vector<169x32xf32>
    %82 = arith.addf %76, %81 : vector<169x32xf32>
    %83 = vector.extract_strided_slice %33 {offsets = [0, 2, 2, 0], sizes = [1, 13, 13, 32], strides = [1, 1, 1, 1]} : vector<1x15x15x32xbf16> to vector<1x13x13x32xbf16>
    %84 = vector.shape_cast %83 : vector<1x13x13x32xbf16> to vector<169x32xbf16>
    %c2_65 = arith.constant 2 : index
    %c2_66 = arith.constant 2 : index
    %c0_67 = arith.constant 0 : index
    %c0_68 = arith.constant 0 : index
    %85 = vector.load %arg4[%c2_65, %c2_66, %c0_67, %c0_68] : memref<3x3x32x32xbf16, #tpu.memory_space<vmem>>, vector<1x1x32x32xbf16>
    %86 = vector.shape_cast %85 : vector<1x1x32x32xbf16> to vector<32x32xbf16>
    %cst_69 = arith.constant dense<0.000000e+00> : vector<169x32xf32>
    %87 = tpu.matmul %84, %86, %cst_69 {dimension_numbers = #tpu.dot_dimension_numbers<[1], [0], [0], [1], [0, 0, 1, 1], [], []>} : vector<169x32xbf16>, vector<32x32xbf16>, vector<169x32xf32> -> vector<169x32xf32>
    %88 = arith.addf %82, %87 : vector<169x32xf32>
    %c0_70 = arith.constant 0 : index
    %c0_71 = arith.constant 0 : index
    %89 = vector.load %arg5[%c0_70, %c0_71] : memref<1x32xf32, #tpu.memory_space<vmem>>, vector<1x32xf32>
    %90 = vector.broadcast %89 : vector<1x32xf32> to vector<169x32xf32>
    %91 = arith.addf %88, %90 : vector<169x32xf32>
    %cst_72 = arith.constant 0.000000e+00 : f32
    %92 = vector.broadcast %cst_72 : f32 to vector<169x32xf32>
    %93 = arith.maximumf %91, %92 : vector<169x32xf32>
    %94 = arith.truncf %93 : vector<169x32xf32> to vector<169x32xbf16>
    %95 = vector.shape_cast %94 : vector<169x32xbf16> to vector<1x13x13x32xbf16>
    %96 = vector.shape_cast %95 : vector<1x13x13x32xbf16> to vector<1x169x32xbf16>
    %cst_73 = arith.constant dense<0xFF80> : vector<1x32xbf16>
    %97 = vector.multi_reduction <maximumf>, %96, %cst_73 [1] : vector<1x169x32xbf16> to vector<1x32xbf16>
    %c0_74 = arith.constant 0 : index
    %c0_75 = arith.constant 0 : index
    %98 = vector.load %arg6[%c0_74, %c0_75] : memref<32x128xbf16, #tpu.memory_space<vmem>>, vector<32x128xbf16>
    %cst_76 = arith.constant dense<0.000000e+00> : vector<1x128xf32>
    %99 = tpu.matmul %97, %98, %cst_76 {dimension_numbers = #tpu.dot_dimension_numbers<[1], [0], [0], [1], [0, 0, 1, 1], [], []>} : vector<1x32xbf16>, vector<32x128xbf16>, vector<1x128xf32> -> vector<1x128xf32>
    %c0_77 = arith.constant 0 : index
    %c0_78 = arith.constant 0 : index
    %100 = vector.load %arg7[%c0_77, %c0_78] : memref<1x128xf32, #tpu.memory_space<vmem>>, vector<1x128xf32>
    %101 = arith.addf %99, %100 : vector<1x128xf32>
    %102 = tpu.iota {dimensions = array<i32: 1>} : vector<1x128xi32>
    %c4_i32 = arith.constant 4 : i32
    %103 = vector.broadcast %c4_i32 : i32 to vector<1x128xi32>
    %104 = arith.cmpi slt, %102, %103 : vector<1x128xi32>
    %cst_79 = arith.constant -1.000000e+30 : f32
    %105 = vector.broadcast %cst_79 : f32 to vector<1x128xf32>
    %106 = arith.select %104, %101, %105 : vector<1x128xi1>, vector<1x128xf32>
    %cst_80 = arith.constant dense<0xFF800000> : vector<1xf32>
    %107 = vector.multi_reduction <maximumf>, %106, %cst_80 [1] : vector<1x128xf32> to vector<1xf32>
    %108 = vector.shape_cast %107 : vector<1xf32> to vector<1x1xf32>
    %109 = vector.broadcast %108 : vector<1x1xf32> to vector<1x128xf32>
    %110 = arith.subf %106, %109 : vector<1x128xf32>
    %111 = math.exp %110 : vector<1x128xf32>
    %cst_81 = arith.constant dense<0.000000e+00> : vector<1xf32>
    %112 = vector.multi_reduction <add>, %111, %cst_81 [1] : vector<1x128xf32> to vector<1xf32>
    %113 = vector.shape_cast %112 : vector<1xf32> to vector<1x1xf32>
    %114 = vector.broadcast %113 : vector<1x1xf32> to vector<1x128xf32>
    %115 = arith.divf %111, %114 : vector<1x128xf32>
    %116 = arith.select %104, %115, %101 : vector<1x128xi1>, vector<1x128xf32>
    %117 = vector.shape_cast %116 : vector<1x128xf32> to vector<1x1x128xf32>
    %c0_82 = arith.constant 0 : index
    %c0_83 = arith.constant 0 : index
    %c0_84 = arith.constant 0 : index
    %118 = vector.load %arg8[%c0_82, %c0_83, %c0_84] : memref<1x1x128xf32, #tpu.memory_space<vmem>>, vector<1x1x128xf32>
    tpu.vector_store %arg8[%c0_82, %c0_83, %c0_84], %117 {strides = array<i32>} : memref<1x1x128xf32, #tpu.memory_space<vmem>>, vector<1x1x128xf32>,
    return
  }
  func.func @transform_0(%arg0: i32) -> (i32, i32, i32, i32) {
    %c0_i32 = arith.constant 0 : i32
    %c0_i32_0 = arith.constant 0 : i32
    %c0_i32_1 = arith.constant 0 : i32
    %c0_i32_2 = arith.constant 0 : i32
    return %arg0, %c0_i32, %c0_i32_0, %c0_i32_1 : i32, i32, i32, i32
  }
  func.func @transform_1(%arg0: i32) -> (i32, i32, i32, i32) {
    %c0_i32 = arith.constant 0 : i32
    %c0_i32_0 = arith.constant 0 : i32
    %c0_i32_1 = arith.constant 0 : i32
    %c0_i32_2 = arith.constant 0 : i32
    %c0_i32_3 = arith.constant 0 : i32
    return %c0_i32, %c0_i32_0, %c0_i32_1, %c0_i32_2 : i32, i32, i32, i32
  }
  func.func @transform_2(%arg0: i32) -> (i32, i32) {
    %c0_i32 = arith.constant 0 : i32
    %c0_i32_0 = arith.constant 0 : i32
    %c0_i32_1 = arith.constant 0 : i32
    return %c0_i32, %c0_i32_0 : i32, i32
  }
  func.func @transform_3(%arg0: i32) -> (i32, i32, i32, i32) {
    %c0_i32 = arith.constant 0 : i32
    %c0_i32_0 = arith.constant 0 : i32
    %c0_i32_1 = arith.constant 0 : i32
    %c0_i32_2 = arith.constant 0 : i32
    %c0_i32_3 = arith.constant 0 : i32
    return %c0_i32, %c0_i32_0, %c0_i32_1, %c0_i32_2 : i32, i32, i32, i32
  }
  func.func @transform_4(%arg0: i32) -> (i32, i32) {
    %c0_i32 = arith.constant 0 : i32
    %c0_i32_0 = arith.constant 0 : i32
    %c0_i32_1 = arith.constant 0 : i32
    return %c0_i32, %c0_i32_0 : i32, i32
  }
  func.func @transform_5(%arg0: i32) -> (i32, i32) {
    %c0_i32 = arith.constant 0 : i32
    %c0_i32_0 = arith.constant 0 : i32
    %c0_i32_1 = arith.constant 0 : i32
    return %c0_i32, %c0_i32_0 : i32, i32
  }
  func.func @transform_6(%arg0: i32) -> (i32, i32) {
    %c0_i32 = arith.constant 0 : i32
    %c0_i32_0 = arith.constant 0 : i32
    %c0_i32_1 = arith.constant 0 : i32
    return %c0_i32, %c0_i32_0 : i32, i32
  }
  func.func @transform_7(%arg0: i32) -> (i32, i32, i32) {
    %c0_i32 = arith.constant 0 : i32
    %c0_i32_0 = arith.constant 0 : i32
    %c0_i32_1 = arith.constant 0 : i32
    return %arg0, %c0_i32, %c0_i32_0 : i32, i32, i32
  }
}

</mosaic_0001>

<llo_original>
// kernel: a2c_forward.1
$region0: #{a2c_forward.1}
  #allocation0 [shape = 'u32[]', space=smem, size = 0x4, offset = 0x4, fixed_abs, tag = 'smem constant byte address 0x4 - core index']
  #allocation1 [shape = 'u32[144,128]{1,0:T(1,128)}', space=vmem, size = 0x12000, scoped, tag = 'internal scratch']
  %s0 = inlined_call_operand.vmem [shape: f32[2,16,16,3], index: 0, kind: input, shape index: {}]
  %s1 = inlined_call_operand.vmem [shape: bf16[2,2,3,32], index: 1, kind: input, shape index: {}]
  %s2 = inlined_call_operand.vmem [shape: f32[1,32], index: 2, kind: input, shape index: {}]
  %s3 = inlined_call_operand.vmem [shape: bf16[3,3,32,32], index: 3, kind: input, shape index: {}]
  %s4 = inlined_call_operand.vmem [shape: f32[1,32], index: 4, kind: input, shape index: {}]
  %s5 = inlined_call_operand.vmem [shape: bf16[32,128], index: 5, kind: input, shape index: {}]
  %s6 = inlined_call_operand.vmem [shape: f32[1,128], index: 6, kind: input, shape index: {}]
  %s7 = inlined_call_operand.vmem [shape: f32[2,1,128], index: 7, kind: output, shape index: {}]
  %s8 = sld [smem:[#allocation0]]
  $region61: #{a2c_forward.1} parent=0
    _
  %s10 = ssub.s32 1, %s8
  %s11 = scalar_select 0, %s10, %s8
  loop: start=0, step=1, limit=4
  $region2: #{a2c_forward.1} parent=0 // loop_pre_header
    _
  $region3: #{a2c_forward.1} parent=0 // loop_header
    %s13 = sphi 0, %s17
    %p14 = scmp.ge.s32.totalorder %s13, 4
    %s23 = sphi 0, %s25
    %s26 = sphi 0, %s23
    %s27 = sphi 0, %s26
    %s43 = sphi 0, %s27
    %s47 = sphi 0, %s47
    %s49 = sphi 0, %s47
    %s50 = sphi 0, %s49
    %s64 = sphi 0, %s50
    %s68 = sphi 0, %s68
    %s70 = sphi 0, %s68
    %s71 = sphi 0, %s70
    %s85 = sphi 0, %s71
    %s89 = sphi 0, %s89
    %s91 = sphi 0, %s89
    %s92 = sphi 0, %s91
    %s106 = sphi 0, %s92
    %s110 = sphi 0, %s110
    %s112 = sphi 0, %s110
    %s113 = sphi 0, %s112
    %s127 = sphi 0, %s113
    %s131 = sphi 0, %s131
    %s133 = sphi 0, %s131
    %s134 = sphi 0, %s133
    %s148 = sphi 0, %s134
    %s152 = sphi 0, %s152
    %s154 = sphi 0, %s152
    %s155 = sphi 0, %s154
    %s169 = sphi 0, %s155
    %s175 = sphi 0, %s177
    %s178 = sphi 0, %s175
    %s179 = sphi 0, %s178
    %s195 = sphi 0, %s179
  $region4: #{a2c_forward.1} parent=0 // loop_header_branch
    %16 = sbr.rel (%p14) target = $region8
  $region5: #{a2c_forward.1} parent=0 // loop_body
    %s18 = ssub.s32 %s13, 1
    %s19 = ssub.s32 %s13, 2
    %s20 = sadd.s32 %s13, 1
    %s21 = ssub.s32 %s13, %s20
    %p22 = scmp.eq.s32.totalorder %s21, 0
    %s24 = sadd.s32 %s23, 1
    %s25 = scalar_select %p22, %s23, %s24
    %p28 = pneg %p22
    %p29 = scmp.eq.s32.totalorder %s13, 1
    %p30 = por %p28, %p29
    %p31 = scmp.ne.s32.totalorder %s23, %s26
    %p32 = scmp.eq.s32.totalorder %s13, 0
    %p33 = por %p31, %p32
    %p34 = scmp.ne.s32.totalorder %s23, %s26
    %p35 = scmp.eq.s32.totalorder %s18, 1
    %p36 = por %p34, %p35
    %p37 = scmp.ne.s32.totalorder %s26, %s27
    %p38 = scmp.eq.s32.totalorder %s18, 0
    %p39 = por %p37, %p38
    %p40 = scmp.ne.s32.totalorder %s26, %s27
    %p41 = scmp.eq.s32.totalorder %s19, 1
    %p42 = por %p40, %p41
    %p44 = scmp.ne.s32.totalorder %s27, %s43
    %p45 = scmp.eq.s32.totalorder %s19, 0
    %p46 = por %p44, %p45
    %s48 = sadd.s32 %s47, 1
    %p51 = scmp.eq.s32.totalorder %s13, 1
    %p52 = scmp.ne.s32.totalorder %s47, %s49
    %p53 = scmp.eq.s32.totalorder %s13, 0
    %p54 = por %p52, %p53
    %p55 = scmp.ne.s32.totalorder %s47, %s49
    %p56 = scmp.eq.s32.totalorder %s18, 1
    %p57 = por %p55, %p56
    %p58 = scmp.ne.s32.totalorder %s49, %s50
    %p59 = scmp.eq.s32.totalorder %s18, 0
    %p60 = por %p58, %p59
    %p61 = scmp.ne.s32.totalorder %s49, %s50
    %p62 = scmp.eq.s32.totalorder %s19, 1
    %p63 = por %p61, %p62
    %p65 = scmp.ne.s32.totalorder %s50, %s64
    %p66 = scmp.eq.s32.totalorder %s19, 0
    %p67 = por %p65, %p66
    %s69 = sadd.s32 %s68, 1
    %p72 = scmp.eq.s32.totalorder %s13, 1
    %p73 = scmp.ne.s32.totalorder %s68, %s70
    %p74 = scmp.eq.s32.totalorder %s13, 0
    %p75 = por %p73, %p74
    %p76 = scmp.ne.s32.totalorder %s68, %s70
    %p77 = scmp.eq.s32.totalorder %s18, 1
    %p78 = por %p76, %p77
    %p79 = scmp.ne.s32.totalorder %s70, %s71
    %p80 = scmp.eq.s32.totalorder %s18, 0
    %p81 = por %p79, %p80
    %p82 = scmp.ne.s32.totalorder %s70, %s71
    %p83 = scmp.eq.s32.totalorder %s19, 1
    %p84 = por %p82, %p83
    %p86 = scmp.ne.s32.totalorder %s71, %s85
    %p87 = scmp.eq.s32.totalorder %s19, 0
    %p88 = por %p86, %p87
    %s90 = sadd.s32 %s89, 1
    %p93 = scmp.eq.s32.totalorder %s13, 1
    %p94 = scmp.ne.s32.totalorder %s89, %s91
    %p95 = scmp.eq.s32.totalorder %s13, 0
    %p96 = por %p94, %p95
    %p97 = scmp.ne.s32.totalorder %s89, %s91
    %p98 = scmp.eq.s32.totalorder %s18, 1
    %p99 = por %p97, %p98
    %p100 = scmp.ne.s32.totalorder %s91, %s92
    %p101 = scmp.eq.s32.totalorder %s18, 0
    %p102 = por %p100, %p101
    %p103 = scmp.ne.s32.totalorder %s91, %s92
    %p104 = scmp.eq.s32.totalorder %s19, 1
    %p105 = por %p103, %p104
    %p107 = scmp.ne.s32.totalorder %s92, %s106
    %p108 = scmp.eq.s32.totalorder %s19, 0
    %p109 = por %p107, %p108
    %s111 = sadd.s32 %s110, 1
    %p114 = scmp.eq.s32.totalorder %s13, 1
    %p115 = scmp.ne.s32.totalorder %s110, %s112
    %p116 = scmp.eq.s32.totalorder %s13, 0
    %p117 = por %p115, %p116
    %p118 = scmp.ne.s32.totalorder %s110, %s112
    %p119 = scmp.eq.s32.totalorder %s18, 1
    %p120 = por %p118, %p119
    %p121 = scmp.ne.s32.totalorder %s112, %s113
    %p122 = scmp.eq.s32.totalorder %s18, 0
    %p123 = por %p121, %p122
    %p124 = scmp.ne.s32.totalorder %s112, %s113
    %p125 = scmp.eq.s32.totalorder %s19, 1
    %p126 = por %p124, %p125
    %p128 = scmp.ne.s32.totalorder %s113, %s127
    %p129 = scmp.eq.s32.totalorder %s19, 0
    %p130 = por %p128, %p129
    %s132 = sadd.s32 %s131, 1
    %p135 = scmp.eq.s32.totalorder %s13, 1
    %p136 = scmp.ne.s32.totalorder %s131, %s133
    %p137 = scmp.eq.s32.totalorder %s13, 0
    %p138 = por %p136, %p137
    %p139 = scmp.ne.s32.totalorder %s131, %s133
    %p140 = scmp.eq.s32.totalorder %s18, 1
    %p141 = por %p139, %p140
    %p142 = scmp.ne.s32.totalorder %s133, %s134
    %p143 = scmp.eq.s32.totalorder %s18, 0
    %p144 = por %p142, %p143
    %p145 = scmp.ne.s32.totalorder %s133, %s134
    %p146 = scmp.eq.s32.totalorder %s19, 1
    %p147 = por %p145, %p146
    %p149 = scmp.ne.s32.totalorder %s134, %s148
    %p150 = scmp.eq.s32.totalorder %s19, 0
    %p151 = por %p149, %p150
    %s153 = sadd.s32 %s152, 1
    %p156 = scmp.eq.s32.totalorder %s13, 1
    %p157 = scmp.ne.s32.totalorder %s152, %s154
    %p158 = scmp.eq.s32.totalorder %s13, 0
    %p159 = por %p157, %p158
    %p160 = scmp.ne.s32.totalorder %s152, %s154
    %p161 = scmp.eq.s32.totalorder %s18, 1
    %p162 = por %p160, %p161
    %p163 = scmp.ne.s32.totalorder %s154, %s155
    %p164 = scmp.eq.s32.totalorder %s18, 0
    %p165 = por %p163, %p164
    %p166 = scmp.ne.s32.totalorder %s154, %s155
    %p167 = scmp.eq.s32.totalorder %s19, 1
    %p168 = por %p166, %p167
    %p170 = scmp.ne.s32.totalorder %s155, %s169
    %p171 = scmp.eq.s32.totalorder %s19, 0
    %p172 = por %p170, %p171
    %s173 = ssub.s32 %s13, %s20
    %p174 = scmp.eq.s32.totalorder %s173, 0
    %s176 = sadd.s32 %s175, 1
    %s177 = scalar_select %p174, %s175, %s176
    %p180 = pneg %p174
    %p181 = scmp.eq.s32.totalorder %s13, 1
    %p182 = por %p180, %p181
    %p183 = scmp.ne.s32.totalorder %s175, %s178
    %p184 = scmp.eq.s32.totalorder %s13, 0
    %p185 = por %p183, %p184
    %p186 = scmp.ne.s32.totalorder %s175, %s178
    %p187 = scmp.eq.s32.totalorder %s18, 1
    %p188 = por %p186, %p187
    %p189 = scmp.ne.s32.totalorder %s178, %s179
    %p190 = scmp.eq.s32.totalorder %s18, 0
    %p191 = por %p189, %p190
    %p192 = scmp.ne.s32.totalorder %s178, %s179
    %p193 = scmp.eq.s32.totalorder %s19, 1
    %p194 = por %p192, %p193
    %p196 = scmp.ne.s32.totalorder %s179, %s195
    %p197 = scmp.eq.s32.totalorder %s19, 0
    %p198 = por %p196, %p197
    %p199 = scmp.le.s32.totalorder 1, %s13
    %p200 = scmp.lt.s32.totalorder %s13, 3
    %p201 = pnand %p199, %p200
    %p202 = pneg %p201
    // Predicated region
    $region9: #{a2c_forward.1} parent=5 // pred_check
      _
    $region10: #{a2c_forward.1} parent=5 // pred_check_branch
      %204 = sbr.rel (%p201) target = $region12
    $region11: #{a2c_forward.1} parent=5 // pred_region
      %s205 = ssub.s32 %s13, 1
      // Predicated region
      $region13: #{a2c_forward.1} parent=11 // pred_check
        %p206 = pneg %p60
      $region14: #{a2c_forward.1} parent=11 // pred_check_branch
        %208 = sbr.rel (%p206) target = $region16
      $region15: #{a2c_forward.1} parent=11 // pred_region
        _
      $region16: #{a2c_forward.1} parent=11 // pred_fallthru
        _
      // Predicated region
      $region17: #{a2c_forward.1} parent=11 // pred_check
        %p209 = pneg %p81
      $region18: #{a2c_forward.1} parent=11 // pred_check_branch
        %211 = sbr.rel (%p209) target = $region20
      $region19: #{a2c_forward.1} parent=11 // pred_region
        _
      $region20: #{a2c_forward.1} parent=11 // pred_fallthru
        _
      // Predicated region
      $region21: #{a2c_forward.1} parent=11 // pred_check
        %p212 = pneg %p102
      $region22: #{a2c_forward.1} parent=11 // pred_check_branch
        %214 = sbr.rel (%p212) target = $region24
      $region23: #{a2c_forward.1} parent=11 // pred_region
        _
      $region24: #{a2c_forward.1} parent=11 // pred_fallthru
        _
      // Predicated region
      $region25: #{a2c_forward.1} parent=11 // pred_check
        %p215 = pneg %p123
      $region26: #{a2c_forward.1} parent=11 // pred_check_branch
        %217 = sbr.rel (%p215) target = $region28
      $region27: #{a2c_forward.1} parent=11 // pred_region
        _
      $region28: #{a2c_forward.1} parent=11 // pred_fallthru
        _
      // Predicated region
      $region29: #{a2c_forward.1} parent=11 // pred_check
        %p218 = pneg %p144
      $region30: #{a2c_forward.1} parent=11 // pred_check_branch
        %220 = sbr.rel (%p218) target = $region32
      $region31: #{a2c_forward.1} parent=11 // pred_region
        _
      $region32: #{a2c_forward.1} parent=11 // pred_fallthru
        _
      // Predicated region
      $region33: #{a2c_forward.1} parent=11 // pred_check
        %p221 = pneg %p165
      $region34: #{a2c_forward.1} parent=11 // pred_check_branch
        %223 = sbr.rel (%p221) target = $region36
      $region35: #{a2c_forward.1} parent=11 // pred_region
        _
      $region36: #{a2c_forward.1} parent=11 // pred_fallthru
        _
    $region12: #{a2c_forward.1} parent=5 // pred_fallthru
      _
    %p224 = scmp.lt.s32.totalorder %s13, 2
    // Predicated region
    $region37: #{a2c_forward.1} parent=5 // pred_check
      %p225 = pneg %p224
    $region38: #{a2c_forward.1} parent=5 // pred_check_branch
      %227 = sbr.rel (%p225) target = $region40
    $region39: #{a2c_forward.1} parent=5 // pred_region
      // Predicated region
      $region41: #{a2c_forward.1} parent=39 // pred_check
        %p228 = pneg %p33
      $region42: #{a2c_forward.1} parent=39 // pred_check_branch
        %230 = sbr.rel (%p228) target = $region44
      $region43: #{a2c_forward.1} parent=39 // pred_region
        %p231 = scmp.lt.s32.totalorder %s13, 1
        %s232 = scalar_select %p231, %s13, 1
        %s233 = smul.addr %s232, 32
        %s234 = smul.addr %s233, 8
        %s235 = scalar_lea.vmem %s0, %s234
      $region44: #{a2c_forward.1} parent=39 // pred_fallthru
        _
    $region40: #{a2c_forward.1} parent=5 // pred_fallthru
      _
    %p236 = scmp.le.s32.totalorder 1, %s13
    %p237 = scmp.lt.s32.totalorder %s13, 3
    %p238 = pnand %p236, %p237
    %p239 = pneg %p238
    // Predicated region
    $region45: #{a2c_forward.1} parent=5 // pred_check
      _
    $region46: #{a2c_forward.1} parent=5 // pred_check_branch
      %241 = sbr.rel (%p238) target = $region48
    $region47: #{a2c_forward.1} parent=5 // pred_region
      %s242 = ssub.s32 %s13, 1
      %p243 = scmp.lt.s32.totalorder %s18, 1
      %s244 = scalar_select %p243, %s18, 1
      %s245 = smul.addr %s244, 32
      %s246 = smul.addr %s245, 8
      %s247 = scalar_lea.vmem %s0, %s246
      %p248 = pneg %p39
      %p249 = pneg %p36
      %p250 = pneg %p60
      %p251 = pneg %p57
      %p252 = pneg %p81
      %p253 = pneg %p78
      %p254 = pneg %p102
      %p255 = pneg %p99
      %p256 = pneg %p123
      %p257 = pneg %p120
      %p258 = pneg %p144
      %p259 = pneg %p141
      %p260 = pneg %p165
      %p261 = pneg %p162
      %p262 = pneg %p191
      %p263 = pneg %p188
      %p264 = scmp.lt.s32.totalorder %s18, 1
      %s265 = scalar_select %p264, %s18, 1
      %s266 = scalar_lea.vmem %s7, %s265
      %p267 = scmp.lt.s32.totalorder %s18, 1
      %s268 = scalar_select %p267, %s18, 1
      %s269 = smul.addr %s268, 32
      %s270 = smul.addr %s269, 8
      %s271 = scalar_lea.vmem %s0, %s270
      %p272 = scmp.lt.s32.totalorder %s18, 1
      %s273 = scalar_select %p272, %s18, 1
      %s274 = scalar_lea.vmem %s7, %s273
      %v277 = vld [vmem:[%s271] sm:$0xff]
      %v278 = vld [vmem:[%s271 + $0x8] sm:$0xff]
      %v279 = vld [vmem:[%s271 + $0x10] sm:$0xff]
      %v280 = vld [vmem:[%s271 + $0x18] sm:$0xff]
      %v281 = vld [vmem:[%s271 + $0x20] sm:$0xff]
      %v282 = vld [vmem:[%s271 + $0x28] sm:$0xff]
      %v283 = vld [vmem:[%s271 + $0x30] sm:$0xff]
      %v284 = vld [vmem:[%s271 + $0x38] sm:$0xff]
      %v285 = vld [vmem:[%s271 + $0x40] sm:$0xff]
      %v286 = vld [vmem:[%s271 + $0x48] sm:$0xff]
      %v287 = vld [vmem:[%s271 + $0x50] sm:$0xff]
      %v288 = vld [vmem:[%s271 + $0x58] sm:$0xff]
      %v289 = vld [vmem:[%s271 + $0x60] sm:$0xff]
      %v290 = vld [vmem:[%s271 + $0x68] sm:$0xff]
      %v291 = vld [vmem:[%s271 + $0x70] sm:$0xff]
      %v292 = vld [vmem:[%s271 + $0x78] sm:$0xff]
      %v293 = vld [vmem:[%s271 + $0x80] sm:$0xff]
      %v294 = vld [vmem:[%s271 + $0x88] sm:$0xff]
      %v295 = vld [vmem:[%s271 + $0x90] sm:$0xff]
      %v296 = vld [vmem:[%s271 + $0x98] sm:$0xff]
      %v297 = vld [vmem:[%s271 + $0xa0] sm:$0xff]
      %v298 = vld [vmem:[%s271 + $0xa8] sm:$0xff]
      %v299 = vld [vmem:[%s271 + $0xb0] sm:$0xff]
      %v300 = vld [vmem:[%s271 + $0xb8] sm:$0xff]
      %v301 = vld [vmem:[%s271 + $0xc0] sm:$0xff]
      %v302 = vld [vmem:[%s271 + $0xc8] sm:$0xff]
      %v303 = vld [vmem:[%s271 + $0xd0] sm:$0xff]
      %v304 = vld [vmem:[%s271 + $0xd8] sm:$0xff]
      %v305 = vld [vmem:[%s271 + $0xe0] sm:$0xff]
      %v306 = vld [vmem:[%s271 + $0xe8] sm:$0xff]
      %v307 = vld [vmem:[%s271 + $0xf0] sm:$0xff]
      %v308 = vld [vmem:[%s271 + $0xf8] sm:$0xff]
      %v309 = vpack.c.bf16 %v278, %v277
      %v310 = vpack.c.bf16 %v280, %v279
      %v311 = vpack.c.bf16 %v282, %v281
      %v312 = vpack.c.bf16 %v284, %v283
      %v313 = vpack.c.bf16 %v286, %v285
      %v314 = vpack.c.bf16 %v288, %v287
      %v315 = vpack.c.bf16 %v290, %v289
      %v316 = vpack.c.bf16 %v292, %v291
      %v317 = vpack.c.bf16 %v294, %v293
      %v318 = vpack.c.bf16 %v296, %v295
      %v319 = vpack.c.bf16 %v298, %v297
      %v320 = vpack.c.bf16 %v300, %v299
      %v321 = vpack.c.bf16 %v302, %v301
      %v322 = vpack.c.bf16 %v304, %v303
      %v323 = vpack.c.bf16 %v306, %v305
      %v324 = vpack.c.bf16 %v308, %v307
      %v340 = vcombine.high %v309, %v309
      %v342 = vunpack.c.l.s4 1966171168
      %v343 = vunpack.c.0.s8 %v342
      %v344 = vlaneseq
      %v345 = vshrl.u32 %v344, 7
      %v346 = vsub.s32 %v343, %v345
      %v347 = vrot.slane %v309, %v346
      %v349 = vunpack.c.l.s4 1966171168
      %v350 = vunpack.c.0.s8 %v349
      %v351 = vlaneseq
      %v352 = vshrl.u32 %v351, 7
      %v353 = vsub.s32 %v350, %v352
      %v354 = vrot.slane %v340, %v353
      %v355 = vcombine.high %v347, %v347
      %v356 = vcombine.high %v354, %v354
      %v358 = vunpack.c.l.s4 1966171168
      %v359 = vunpack.c.0.s8 %v358
      %v360 = vlaneseq
      %v361 = vshrl.u32 %v360, 7
      %v362 = vsub.s32 %v359, %v361
      %v363 = vrot.slane %v347, %v362
      %v365 = vunpack.c.l.s4 1966171168
      %v366 = vunpack.c.0.s8 %v365
      %v367 = vlaneseq
      %v368 = vshrl.u32 %v367, 7
      %v369 = vsub.s32 %v366, %v368
      %v370 = vrot.slane %v354, %v369
      %v372 = vunpack.c.l.s4 1966171168
      %v373 = vunpack.c.0.s8 %v372
      %v374 = vlaneseq
      %v375 = vshrl.u32 %v374, 7
      %v376 = vsub.s32 %v373, %v375
      %v377 = vrot.slane %v355, %v376
      %v379 = vunpack.c.l.s4 1966171168
      %v380 = vunpack.c.0.s8 %v379
      %v381 = vlaneseq
      %v382 = vshrl.u32 %v381, 7
      %v383 = vsub.s32 %v380, %v382
      %v384 = vrot.slane %v356, %v383
      %v385 = vcombine.high %v363, %v363
      %v386 = vcombine.high %v370, %v370
      %v387 = vcombine.high %v377, %v377
      %v388 = vcombine.high %v384, %v384
      %v389 = vcombine.high %v310, %v310
      %v391 = vunpack.c.l.s4 1966171168
      %v392 = vunpack.c.0.s8 %v391
      %v393 = vlaneseq
      %v394 = vshrl.u32 %v393, 7
      %v395 = vsub.s32 %v392, %v394
      %v396 = vrot.slane %v310, %v395
      %v398 = vunpack.c.l.s4 1966171168
      %v399 = vunpack.c.0.s8 %v398
      %v400 = vlaneseq
      %v401 = vshrl.u32 %v400, 7
      %v402 = vsub.s32 %v399, %v401
      %v403 = vrot.slane %v389, %v402
      %v404 = vcombine.high %v396, %v396
      %v405 = vcombine.high %v403, %v403
      %v407 = vunpack.c.l.s4 1966171168
      %v408 = vunpack.c.0.s8 %v407
      %v409 = vlaneseq
      %v410 = vshrl.u32 %v409, 7
      %v411 = vsub.s32 %v408, %v410
      %v412 = vrot.slane %v396, %v411
      %v414 = vunpack.c.l.s4 1966171168
      %v415 = vunpack.c.0.s8 %v414
      %v416 = vlaneseq
      %v417 = vshrl.u32 %v416, 7
      %v418 = vsub.s32 %v415, %v417
      %v419 = vrot.slane %v403, %v418
      %v421 = vunpack.c.l.s4 1966171168
      %v422 = vunpack.c.0.s8 %v421
      %v423 = vlaneseq
      %v424 = vshrl.u32 %v423, 7
      %v425 = vsub.s32 %v422, %v424
      %v426 = vrot.slane %v404, %v425
      %v428 = vunpack.c.l.s4 1966171168
      %v429 = vunpack.c.0.s8 %v428
      %v430 = vlaneseq
      %v431 = vshrl.u32 %v430, 7
      %v432 = vsub.s32 %v429, %v431
      %v433 = vrot.slane %v405, %v432
      %v434 = vcombine.high %v412, %v412
      %v435 = vcombine.high %v419, %v419
      %v436 = vcombine.high %v426, %v426
      %v437 = vcombine.high %v433, %v433
      %v438 = vcombine.high %v311, %v311
      %v440 = vunpack.c.l.s4 1966171168
      %v441 = vunpack.c.0.s8 %v440
      %v442 = vlaneseq
      %v443 = vshrl.u32 %v442, 7
      %v444 = vsub.s32 %v441, %v443
      %v445 = vrot.slane %v311, %v444
      %v447 = vunpack.c.l.s4 1966171168
      %v448 = vunpack.c.0.s8 %v447
      %v449 = vlaneseq
      %v450 = vshrl.u32 %v449, 7
      %v451 = vsub.s32 %v448, %v450
      %v452 = vrot.slane %v438, %v451
      %v453 = vcombine.high %v445, %v445
      %v454 = vcombine.high %v452, %v452
      %v456 = vunpack.c.l.s4 1966171168
      %v457 = vunpack.c.0.s8 %v456
      %v458 = vlaneseq
      %v459 = vshrl.u32 %v458, 7
      %v460 = vsub.s32 %v457, %v459
      %v461 = vrot.slane %v445, %v460
      %v463 = vunpack.c.l.s4 1966171168
      %v464 = vunpack.c.0.s8 %v463
      %v465 = vlaneseq
      %v466 = vshrl.u32 %v465, 7
      %v467 = vsub.s32 %v464, %v466
      %v468 = vrot.slane %v452, %v467
      %v470 = vunpack.c.l.s4 1966171168
      %v471 = vunpack.c.0.s8 %v470
      %v472 = vlaneseq
      %v473 = vshrl.u32 %v472, 7
      %v474 = vsub.s32 %v471, %v473
      %v475 = vrot.slane %v453, %v474
      %v477 = vunpack.c.l.s4 1966171168
      %v478 = vunpack.c.0.s8 %v477
      %v479 = vlaneseq
      %v480 = vshrl.u32 %v479, 7
      %v481 = vsub.s32 %v478, %v480
      %v482 = vrot.slane %v454, %v481
      %v483 = vcombine.high %v461, %v461
      %v484 = vcombine.high %v468, %v468
      %v485 = vcombine.high %v475, %v475
      %v486 = vcombine.high %v482, %v482
      %v487 = vcombine.high %v312, %v312
      %v489 = vunpack.c.l.s4 1966171168
      %v490 = vunpack.c.0.s8 %v489
      %v491 = vlaneseq
      %v492 = vshrl.u32 %v491, 7
      %v493 = vsub.s32 %v490, %v492
      %v494 = vrot.slane %v312, %v493
      %v496 = vunpack.c.l.s4 1966171168
      %v497 = vunpack.c.0.s8 %v496
      %v498 = vlaneseq
      %v499 = vshrl.u32 %v498, 7
      %v500 = vsub.s32 %v497, %v499
      %v501 = vrot.slane %v487, %v500
      %v502 = vcombine.high %v494, %v494
      %v503 = vcombine.high %v501, %v501
      %v505 = vunpack.c.l.s4 1966171168
      %v506 = vunpack.c.0.s8 %v505
      %v507 = vlaneseq
      %v508 = vshrl.u32 %v507, 7
      %v509 = vsub.s32 %v506, %v508
      %v510 = vrot.slane %v494, %v509
      %v512 = vunpack.c.l.s4 1966171168
      %v513 = vunpack.c.0.s8 %v512
      %v514 = vlaneseq
      %v515 = vshrl.u32 %v514, 7
      %v516 = vsub.s32 %v513, %v515
      %v517 = vrot.slane %v501, %v516
      %v519 = vunpack.c.l.s4 1966171168
      %v520 = vunpack.c.0.s8 %v519
      %v521 = vlaneseq
      %v522 = vshrl.u32 %v521, 7
      %v523 = vsub.s32 %v520, %v522
      %v524 = vrot.slane %v502, %v523
      %v526 = vunpack.c.l.s4 1966171168
      %v527 = vunpack.c.0.s8 %v526
      %v528 = vlaneseq
      %v529 = vshrl.u32 %v528, 7
      %v530 = vsub.s32 %v527, %v529
      %v531 = vrot.slane %v503, %v530
      %v532 = vcombine.high %v510, %v510
      %v533 = vcombine.high %v517, %v517
      %v534 = vcombine.high %v524, %v524
      %v535 = vcombine.high %v531, %v531
      %v536 = vcombine.high %v313, %v313
      %v538 = vunpack.c.l.s4 1966171168
      %v539 = vunpack.c.0.s8 %v538
      %v540 = vlaneseq
      %v541 = vshrl.u32 %v540, 7
      %v542 = vsub.s32 %v539, %v541
      %v543 = vrot.slane %v313, %v542
      %v545 = vunpack.c.l.s4 1966171168
      %v546 = vunpack.c.0.s8 %v545
      %v547 = vlaneseq
      %v548 = vshrl.u32 %v547, 7
      %v549 = vsub.s32 %v546, %v548
      %v550 = vrot.slane %v536, %v549
      %v551 = vcombine.high %v543, %v543
      %v552 = vcombine.high %v550, %v550
      %v554 = vunpack.c.l.s4 1966171168
      %v555 = vunpack.c.0.s8 %v554
      %v556 = vlaneseq
      %v557 = vshrl.u32 %v556, 7
      %v558 = vsub.s32 %v555, %v557
      %v559 = vrot.slane %v543, %v558
      %v561 = vunpack.c.l.s4 1966171168
      %v562 = vunpack.c.0.s8 %v561
      %v563 = vlaneseq
      %v564 = vshrl.u32 %v563, 7
      %v565 = vsub.s32 %v562, %v564
      %v566 = vrot.slane %v550, %v565
      %v568 = vunpack.c.l.s4 1966171168
      %v569 = vunpack.c.0.s8 %v568
      %v570 = vlaneseq
      %v571 = vshrl.u32 %v570, 7
      %v572 = vsub.s32 %v569, %v571
      %v573 = vrot.slane %v551, %v572
      %v575 = vunpack.c.l.s4 1966171168
      %v576 = vunpack.c.0.s8 %v575
      %v577 = vlaneseq
      %v578 = vshrl.u32 %v577, 7
      %v579 = vsub.s32 %v576, %v578
      %v580 = vrot.slane %v552, %v579
      %v581 = vcombine.high %v559, %v559
      %v582 = vcombine.high %v566, %v566
      %v583 = vcombine.high %v573, %v573
      %v584 = vcombine.high %v580, %v580
      %v585 = vcombine.high %v314, %v314
      %v587 = vunpack.c.l.s4 1966171168
      %v588 = vunpack.c.0.s8 %v587
      %v589 = vlaneseq
      %v590 = vshrl.u32 %v589, 7
      %v591 = vsub.s32 %v588, %v590
      %v592 = vrot.slane %v314, %v591
      %v594 = vunpack.c.l.s4 1966171168
      %v595 = vunpack.c.0.s8 %v594
      %v596 = vlaneseq
      %v597 = vshrl.u32 %v596, 7
      %v598 = vsub.s32 %v595, %v597
      %v599 = vrot.slane %v585, %v598
      %v600 = vcombine.high %v592, %v592
      %v601 = vcombine.high %v599, %v599
      %v603 = vunpack.c.l.s4 1966171168
      %v604 = vunpack.c.0.s8 %v603
      %v605 = vlaneseq
      %v606 = vshrl.u32 %v605, 7
      %v607 = vsub.s32 %v604, %v606
      %v608 = vrot.slane %v592, %v607
      %v610 = vunpack.c.l.s4 1966171168
      %v611 = vunpack.c.0.s8 %v610
      %v612 = vlaneseq
      %v613 = vshrl.u32 %v612, 7
      %v614 = vsub.s32 %v611, %v613
      %v615 = vrot.slane %v599, %v614
      %v617 = vunpack.c.l.s4 1966171168
      %v618 = vunpack.c.0.s8 %v617
      %v619 = vlaneseq
      %v620 = vshrl.u32 %v619, 7
      %v621 = vsub.s32 %v618, %v620
      %v622 = vrot.slane %v600, %v621
      %v624 = vunpack.c.l.s4 1966171168
      %v625 = vunpack.c.0.s8 %v624
      %v626 = vlaneseq
      %v627 = vshrl.u32 %v626, 7
      %v628 = vsub.s32 %v625, %v627
      %v629 = vrot.slane %v601, %v628
      %v630 = vcombine.high %v608, %v608
      %v631 = vcombine.high %v615, %v615
      %v632 = vcombine.high %v622, %v622
      %v633 = vcombine.high %v629, %v629
      %v634 = vcombine.high %v315, %v315
      %v636 = vunpack.c.l.s4 1966171168
      %v637 = vunpack.c.0.s8 %v636
      %v638 = vlaneseq
      %v639 = vshrl.u32 %v638, 7
      %v640 = vsub.s32 %v637, %v639
      %v641 = vrot.slane %v315, %v640
      %v643 = vunpack.c.l.s4 1966171168
      %v644 = vunpack.c.0.s8 %v643
      %v645 = vlaneseq
      %v646 = vshrl.u32 %v645, 7
      %v647 = vsub.s32 %v644, %v646
      %v648 = vrot.slane %v634, %v647
      %v649 = vcombine.high %v641, %v641
      %v650 = vcombine.high %v648, %v648
      %v652 = vunpack.c.l.s4 1966171168
      %v653 = vunpack.c.0.s8 %v652
      %v654 = vlaneseq
      %v655 = vshrl.u32 %v654, 7
      %v656 = vsub.s32 %v653, %v655
      %v657 = vrot.slane %v641, %v656
      %v659 = vunpack.c.l.s4 1966171168
      %v660 = vunpack.c.0.s8 %v659
      %v661 = vlaneseq
      %v662 = vshrl.u32 %v661, 7
      %v663 = vsub.s32 %v660, %v662
      %v664 = vrot.slane %v648, %v663
      %v666 = vunpack.c.l.s4 1966171168
      %v667 = vunpack.c.0.s8 %v666
      %v668 = vlaneseq
      %v669 = vshrl.u32 %v668, 7
      %v670 = vsub.s32 %v667, %v669
      %v671 = vrot.slane %v649, %v670
      %v673 = vunpack.c.l.s4 1966171168
      %v674 = vunpack.c.0.s8 %v673
      %v675 = vlaneseq
      %v676 = vshrl.u32 %v675, 7
      %v677 = vsub.s32 %v674, %v676
      %v678 = vrot.slane %v650, %v677
      %v679 = vcombine.high %v657, %v657
      %v680 = vcombine.high %v664, %v664
      %v681 = vcombine.high %v671, %v671
      %v682 = vcombine.high %v678, %v678
      %v683 = vcombine.high %v316, %v316
      %v685 = vunpack.c.l.s4 1966171168
      %v686 = vunpack.c.0.s8 %v685
      %v687 = vlaneseq
      %v688 = vshrl.u32 %v687, 7
      %v689 = vsub.s32 %v686, %v688
      %v690 = vrot.slane %v316, %v689
      %v692 = vunpack.c.l.s4 1966171168
      %v693 = vunpack.c.0.s8 %v692
      %v694 = vlaneseq
      %v695 = vshrl.u32 %v694, 7
      %v696 = vsub.s32 %v693, %v695
      %v697 = vrot.slane %v683, %v696
      %v698 = vcombine.high %v690, %v690
      %v699 = vcombine.high %v697, %v697
      %v701 = vunpack.c.l.s4 1966171168
      %v702 = vunpack.c.0.s8 %v701
      %v703 = vlaneseq
      %v704 = vshrl.u32 %v703, 7
      %v705 = vsub.s32 %v702, %v704
      %v706 = vrot.slane %v690, %v705
      %v708 = vunpack.c.l.s4 1966171168
      %v709 = vunpack.c.0.s8 %v708
      %v710 = vlaneseq
      %v711 = vshrl.u32 %v710, 7
      %v712 = vsub.s32 %v709, %v711
      %v713 = vrot.slane %v697, %v712
      %v715 = vunpack.c.l.s4 1966171168
      %v716 = vunpack.c.0.s8 %v715
      %v717 = vlaneseq
      %v718 = vshrl.u32 %v717, 7
      %v719 = vsub.s32 %v716, %v718
      %v720 = vrot.slane %v698, %v719
      %v722 = vunpack.c.l.s4 1966171168
      %v723 = vunpack.c.0.s8 %v722
      %v724 = vlaneseq
      %v725 = vshrl.u32 %v724, 7
      %v726 = vsub.s32 %v723, %v725
      %v727 = vrot.slane %v699, %v726
      %v728 = vcombine.high %v706, %v706
      %v729 = vcombine.high %v713, %v713
      %v730 = vcombine.high %v720, %v720
      %v731 = vcombine.high %v727, %v727
      %v732 = vcombine.high %v317, %v317
      %v734 = vunpack.c.l.s4 1966171168
      %v735 = vunpack.c.0.s8 %v734
      %v736 = vlaneseq
      %v737 = vshrl.u32 %v736, 7
      %v738 = vsub.s32 %v735, %v737
      %v739 = vrot.slane %v317, %v738
      %v741 = vunpack.c.l.s4 1966171168
      %v742 = vunpack.c.0.s8 %v741
      %v743 = vlaneseq
      %v744 = vshrl.u32 %v743, 7
      %v745 = vsub.s32 %v742, %v744
      %v746 = vrot.slane %v732, %v745
      %v747 = vcombine.high %v739, %v739
      %v748 = vcombine.high %v746, %v746
      %v750 = vunpack.c.l.s4 1966171168
      %v751 = vunpack.c.0.s8 %v750
      %v752 = vlaneseq
      %v753 = vshrl.u32 %v752, 7
      %v754 = vsub.s32 %v751, %v753
      %v755 = vrot.slane %v739, %v754
      %v757 = vunpack.c.l.s4 1966171168
      %v758 = vunpack.c.0.s8 %v757
      %v759 = vlaneseq
      %v760 = vshrl.u32 %v759, 7
      %v761 = vsub.s32 %v758, %v760
      %v762 = vrot.slane %v746, %v761
      %v764 = vunpack.c.l.s4 1966171168
      %v765 = vunpack.c.0.s8 %v764
      %v766 = vlaneseq
      %v767 = vshrl.u32 %v766, 7
      %v768 = vsub.s32 %v765, %v767
      %v769 = vrot.slane %v747, %v768
      %v771 = vunpack.c.l.s4 1966171168
      %v772 = vunpack.c.0.s8 %v771
      %v773 = vlaneseq
      %v774 = vshrl.u32 %v773, 7
      %v775 = vsub.s32 %v772, %v774
      %v776 = vrot.slane %v748, %v775
      %v777 = vcombine.high %v755, %v755
      %v778 = vcombine.high %v762, %v762
      %v779 = vcombine.high %v769, %v769
      %v780 = vcombine.high %v776, %v776
      %v781 = vcombine.high %v318, %v318
      %v783 = vunpack.c.l.s4 1966171168
      %v784 = vunpack.c.0.s8 %v783
      %v785 = vlaneseq
      %v786 = vshrl.u32 %v785, 7
      %v787 = vsub.s32 %v784, %v786
      %v788 = vrot.slane %v318, %v787
      %v790 = vunpack.c.l.s4 1966171168
      %v791 = vunpack.c.0.s8 %v790
      %v792 = vlaneseq
      %v793 = vshrl.u32 %v792, 7
      %v794 = vsub.s32 %v791, %v793
      %v795 = vrot.slane %v781, %v794
      %v796 = vcombine.high %v788, %v788
      %v797 = vcombine.high %v795, %v795
      %v799 = vunpack.c.l.s4 1966171168
      %v800 = vunpack.c.0.s8 %v799
      %v801 = vlaneseq
      %v802 = vshrl.u32 %v801, 7
      %v803 = vsub.s32 %v800, %v802
      %v804 = vrot.slane %v788, %v803
      %v806 = vunpack.c.l.s4 1966171168
      %v807 = vunpack.c.0.s8 %v806
      %v808 = vlaneseq
      %v809 = vshrl.u32 %v808, 7
      %v810 = vsub.s32 %v807, %v809
      %v811 = vrot.slane %v795, %v810
      %v813 = vunpack.c.l.s4 1966171168
      %v814 = vunpack.c.0.s8 %v813
      %v815 = vlaneseq
      %v816 = vshrl.u32 %v815, 7
      %v817 = vsub.s32 %v814, %v816
      %v818 = vrot.slane %v796, %v817
      %v820 = vunpack.c.l.s4 1966171168
      %v821 = vunpack.c.0.s8 %v820
      %v822 = vlaneseq
      %v823 = vshrl.u32 %v822, 7
      %v824 = vsub.s32 %v821, %v823
      %v825 = vrot.slane %v797, %v824
      %v826 = vcombine.high %v804, %v804
      %v827 = vcombine.high %v811, %v811
      %v828 = vcombine.high %v818, %v818
      %v829 = vcombine.high %v825, %v825
      %v830 = vcombine.high %v319, %v319
      %v832 = vunpack.c.l.s4 1966171168
      %v833 = vunpack.c.0.s8 %v832
      %v834 = vlaneseq
      %v835 = vshrl.u32 %v834, 7
      %v836 = vsub.s32 %v833, %v835
      %v837 = vrot.slane %v319, %v836
      %v839 = vunpack.c.l.s4 1966171168
      %v840 = vunpack.c.0.s8 %v839
      %v841 = vlaneseq
      %v842 = vshrl.u32 %v841, 7
      %v843 = vsub.s32 %v840, %v842
      %v844 = vrot.slane %v830, %v843
      %v845 = vcombine.high %v837, %v837
      %v846 = vcombine.high %v844, %v844
      %v848 = vunpack.c.l.s4 1966171168
      %v849 = vunpack.c.0.s8 %v848
      %v850 = vlaneseq
      %v851 = vshrl.u32 %v850, 7
      %v852 = vsub.s32 %v849, %v851
      %v853 = vrot.slane %v837, %v852
      %v855 = vunpack.c.l.s4 1966171168
      %v856 = vunpack.c.0.s8 %v855
      %v857 = vlaneseq
      %v858 = vshrl.u32 %v857, 7
      %v859 = vsub.s32 %v856, %v858
      %v860 = vrot.slane %v844, %v859
      %v862 = vunpack.c.l.s4 1966171168
      %v863 = vunpack.c.0.s8 %v862
      %v864 = vlaneseq
      %v865 = vshrl.u32 %v864, 7
      %v866 = vsub.s32 %v863, %v865
      %v867 = vrot.slane %v845, %v866
      %v869 = vunpack.c.l.s4 1966171168
      %v870 = vunpack.c.0.s8 %v869
      %v871 = vlaneseq
      %v872 = vshrl.u32 %v871, 7
      %v873 = vsub.s32 %v870, %v872
      %v874 = vrot.slane %v846, %v873
      %v875 = vcombine.high %v853, %v853
      %v876 = vcombine.high %v860, %v860
      %v877 = vcombine.high %v867, %v867
      %v878 = vcombine.high %v874, %v874
      %v879 = vcombine.high %v320, %v320
      %v881 = vunpack.c.l.s4 1966171168
      %v882 = vunpack.c.0.s8 %v881
      %v883 = vlaneseq
      %v884 = vshrl.u32 %v883, 7
      %v885 = vsub.s32 %v882, %v884
      %v886 = vrot.slane %v320, %v885
      %v888 = vunpack.c.l.s4 1966171168
      %v889 = vunpack.c.0.s8 %v888
      %v890 = vlaneseq
      %v891 = vshrl.u32 %v890, 7
      %v892 = vsub.s32 %v889, %v891
      %v893 = vrot.slane %v879, %v892
      %v894 = vcombine.high %v886, %v886
      %v895 = vcombine.high %v893, %v893
      %v897 = vunpack.c.l.s4 1966171168
      %v898 = vunpack.c.0.s8 %v897
      %v899 = vlaneseq
      %v900 = vshrl.u32 %v899, 7
      %v901 = vsub.s32 %v898, %v900
      %v902 = vrot.slane %v886, %v901
      %v904 = vunpack.c.l.s4 1966171168
      %v905 = vunpack.c.0.s8 %v904
      %v906 = vlaneseq
      %v907 = vshrl.u32 %v906, 7
      %v908 = vsub.s32 %v905, %v907
      %v909 = vrot.slane %v893, %v908
      %v911 = vunpack.c.l.s4 1966171168
      %v912 = vunpack.c.0.s8 %v911
      %v913 = vlaneseq
      %v914 = vshrl.u32 %v913, 7
      %v915 = vsub.s32 %v912, %v914
      %v916 = vrot.slane %v894, %v915
      %v918 = vunpack.c.l.s4 1966171168
      %v919 = vunpack.c.0.s8 %v918
      %v920 = vlaneseq
      %v921 = vshrl.u32 %v920, 7
      %v922 = vsub.s32 %v919, %v921
      %v923 = vrot.slane %v895, %v922
      %v924 = vcombine.high %v902, %v902
      %v925 = vcombine.high %v909, %v909
      %v926 = vcombine.high %v916, %v916
      %v927 = vcombine.high %v923, %v923
      %v928 = vcombine.high %v321, %v321
      %v930 = vunpack.c.l.s4 1966171168
      %v931 = vunpack.c.0.s8 %v930
      %v932 = vlaneseq
      %v933 = vshrl.u32 %v932, 7
      %v934 = vsub.s32 %v931, %v933
      %v935 = vrot.slane %v321, %v934
      %v937 = vunpack.c.l.s4 1966171168
      %v938 = vunpack.c.0.s8 %v937
      %v939 = vlaneseq
      %v940 = vshrl.u32 %v939, 7
      %v941 = vsub.s32 %v938, %v940
      %v942 = vrot.slane %v928, %v941
      %v943 = vcombine.high %v935, %v935
      %v944 = vcombine.high %v942, %v942
      %v946 = vunpack.c.l.s4 1966171168
      %v947 = vunpack.c.0.s8 %v946
      %v948 = vlaneseq
      %v949 = vshrl.u32 %v948, 7
      %v950 = vsub.s32 %v947, %v949
      %v951 = vrot.slane %v935, %v950
      %v953 = vunpack.c.l.s4 1966171168
      %v954 = vunpack.c.0.s8 %v953
      %v955 = vlaneseq
      %v956 = vshrl.u32 %v955, 7
      %v957 = vsub.s32 %v954, %v956
      %v958 = vrot.slane %v942, %v957
      %v960 = vunpack.c.l.s4 1966171168
      %v961 = vunpack.c.0.s8 %v960
      %v962 = vlaneseq
      %v963 = vshrl.u32 %v962, 7
      %v964 = vsub.s32 %v961, %v963
      %v965 = vrot.slane %v943, %v964
      %v967 = vunpack.c.l.s4 1966171168
      %v968 = vunpack.c.0.s8 %v967
      %v969 = vlaneseq
      %v970 = vshrl.u32 %v969, 7
      %v971 = vsub.s32 %v968, %v970
      %v972 = vrot.slane %v944, %v971
      %v973 = vcombine.high %v951, %v951
      %v974 = vcombine.high %v958, %v958
      %v975 = vcombine.high %v965, %v965
      %v976 = vcombine.high %v972, %v972
      %v977 = vcombine.high %v322, %v322
      %v979 = vunpack.c.l.s4 1966171168
      %v980 = vunpack.c.0.s8 %v979
      %v981 = vlaneseq
      %v982 = vshrl.u32 %v981, 7
      %v983 = vsub.s32 %v980, %v982
      %v984 = vrot.slane %v322, %v983
      %v986 = vunpack.c.l.s4 1966171168
      %v987 = vunpack.c.0.s8 %v986
      %v988 = vlaneseq
      %v989 = vshrl.u32 %v988, 7
      %v990 = vsub.s32 %v987, %v989
      %v991 = vrot.slane %v977, %v990
      %v992 = vcombine.high %v984, %v984
      %v993 = vcombine.high %v991, %v991
      %v995 = vunpack.c.l.s4 1966171168
      %v996 = vunpack.c.0.s8 %v995
      %v997 = vlaneseq
      %v998 = vshrl.u32 %v997, 7
      %v999 = vsub.s32 %v996, %v998
      %v1000 = vrot.slane %v984, %v999
      %v1002 = vunpack.c.l.s4 1966171168
      %v1003 = vunpack.c.0.s8 %v1002
      %v1004 = vlaneseq
      %v1005 = vshrl.u32 %v1004, 7
      %v1006 = vsub.s32 %v1003, %v1005
      %v1007 = vrot.slane %v991, %v1006
      %v1009 = vunpack.c.l.s4 1966171168
      %v1010 = vunpack.c.0.s8 %v1009
      %v1011 = vlaneseq
      %v1012 = vshrl.u32 %v1011, 7
      %v1013 = vsub.s32 %v1010, %v1012
      %v1014 = vrot.slane %v992, %v1013
      %v1016 = vunpack.c.l.s4 1966171168
      %v1017 = vunpack.c.0.s8 %v1016
      %v1018 = vlaneseq
      %v1019 = vshrl.u32 %v1018, 7
      %v1020 = vsub.s32 %v1017, %v1019
      %v1021 = vrot.slane %v993, %v1020
      %v1022 = vcombine.high %v1000, %v1000
      %v1023 = vcombine.high %v1007, %v1007
      %v1024 = vcombine.high %v1014, %v1014
      %v1025 = vcombine.high %v1021, %v1021
      %v1026 = vcombine.high %v323, %v323
      %v1028 = vunpack.c.l.s4 1966171168
      %v1029 = vunpack.c.0.s8 %v1028
      %v1030 = vlaneseq
      %v1031 = vshrl.u32 %v1030, 7
      %v1032 = vsub.s32 %v1029, %v1031
      %v1033 = vrot.slane %v323, %v1032
      %v1035 = vunpack.c.l.s4 1966171168
      %v1036 = vunpack.c.0.s8 %v1035
      %v1037 = vlaneseq
      %v1038 = vshrl.u32 %v1037, 7
      %v1039 = vsub.s32 %v1036, %v1038
      %v1040 = vrot.slane %v1026, %v1039
      %v1041 = vcombine.high %v1033, %v1033
      %v1042 = vcombine.high %v1040, %v1040
      %v1044 = vunpack.c.l.s4 1966171168
      %v1045 = vunpack.c.0.s8 %v1044
      %v1046 = vlaneseq
      %v1047 = vshrl.u32 %v1046, 7
      %v1048 = vsub.s32 %v1045, %v1047
      %v1049 = vrot.slane %v1033, %v1048
      %v1051 = vunpack.c.l.s4 1966171168
      %v1052 = vunpack.c.0.s8 %v1051
      %v1053 = vlaneseq
      %v1054 = vshrl.u32 %v1053, 7
      %v1055 = vsub.s32 %v1052, %v1054
      %v1056 = vrot.slane %v1040, %v1055
      %v1058 = vunpack.c.l.s4 1966171168
      %v1059 = vunpack.c.0.s8 %v1058
      %v1060 = vlaneseq
      %v1061 = vshrl.u32 %v1060, 7
      %v1062 = vsub.s32 %v1059, %v1061
      %v1063 = vrot.slane %v1041, %v1062
      %v1065 = vunpack.c.l.s4 1966171168
      %v1066 = vunpack.c.0.s8 %v1065
      %v1067 = vlaneseq
      %v1068 = vshrl.u32 %v1067, 7
      %v1069 = vsub.s32 %v1066, %v1068
      %v1070 = vrot.slane %v1042, %v1069
      %v1071 = vcombine.high %v1049, %v1049
      %v1072 = vcombine.high %v1056, %v1056
      %v1073 = vcombine.high %v1063, %v1063
      %v1074 = vcombine.high %v1070, %v1070
      %v1075 = vunpack.i.l.s16 %v363
      %v1076 = vunpack.i.h.s16 %v363
      %v1077 = vunpack.i.l.s16 %v377
      %v1078 = vunpack.i.h.s16 %v377
      %v1079 = vunpack.i.l.s16 %v385
      %v1080 = vunpack.i.h.s16 %v385
      %v1081 = vunpack.i.l.s16 %v387
      %v1082 = vunpack.i.h.s16 %v387
      %v1083 = vunpack.i.l.s16 %v370
      %v1084 = vunpack.i.h.s16 %v370
      %v1085 = vunpack.i.l.s16 %v384
      %v1086 = vunpack.i.h.s16 %v384
      %v1087 = vunpack.i.l.s16 %v386
      %v1088 = vunpack.i.h.s16 %v386
      %v1089 = vunpack.i.l.s16 %v388
      %v1090 = vunpack.i.l.s16 %v412
      %v1091 = vunpack.i.h.s16 %v412
      %v1092 = vunpack.i.l.s16 %v426
      %v1093 = vunpack.i.h.s16 %v426
      %v1094 = vunpack.i.l.s16 %v434
      %v1095 = vunpack.i.h.s16 %v434
      %v1096 = vunpack.i.l.s16 %v436
      %v1097 = vunpack.i.h.s16 %v436
      %v1098 = vunpack.i.l.s16 %v419
      %v1099 = vunpack.i.h.s16 %v419
      %v1100 = vunpack.i.l.s16 %v433
      %v1101 = vunpack.i.h.s16 %v433
      %v1102 = vunpack.i.l.s16 %v435
      %v1103 = vunpack.i.h.s16 %v435
      %v1104 = vunpack.i.l.s16 %v437
      %v1105 = vunpack.i.l.s16 %v461
      %v1106 = vunpack.i.h.s16 %v461
      %v1107 = vunpack.i.l.s16 %v475
      %v1108 = vunpack.i.h.s16 %v475
      %v1109 = vunpack.i.l.s16 %v483
      %v1110 = vunpack.i.h.s16 %v483
      %v1111 = vunpack.i.l.s16 %v485
      %v1112 = vunpack.i.h.s16 %v485
      %v1113 = vunpack.i.l.s16 %v468
      %v1114 = vunpack.i.h.s16 %v468
      %v1115 = vunpack.i.l.s16 %v482
      %v1116 = vunpack.i.h.s16 %v482
      %v1117 = vunpack.i.l.s16 %v484
      %v1118 = vunpack.i.h.s16 %v484
      %v1119 = vunpack.i.l.s16 %v486
      %v1120 = vunpack.i.l.s16 %v510
      %v1121 = vunpack.i.h.s16 %v510
      %v1122 = vunpack.i.l.s16 %v524
      %v1123 = vunpack.i.h.s16 %v524
      %v1124 = vunpack.i.l.s16 %v532
      %v1125 = vunpack.i.h.s16 %v532
      %v1126 = vunpack.i.l.s16 %v534
      %v1127 = vunpack.i.h.s16 %v534
      %v1128 = vunpack.i.l.s16 %v517
      %v1129 = vunpack.i.h.s16 %v517
      %v1130 = vunpack.i.l.s16 %v531
      %v1131 = vunpack.i.h.s16 %v531
      %v1132 = vunpack.i.l.s16 %v533
      %v1133 = vunpack.i.h.s16 %v533
      %v1134 = vunpack.i.l.s16 %v535
      %v1135 = vunpack.i.l.s16 %v559
      %v1136 = vunpack.i.h.s16 %v559
      %v1137 = vunpack.i.l.s16 %v573
      %v1138 = vunpack.i.h.s16 %v573
      %v1139 = vunpack.i.l.s16 %v581
      %v1140 = vunpack.i.h.s16 %v581
      %v1141 = vunpack.i.l.s16 %v583
      %v1142 = vunpack.i.h.s16 %v583
      %v1143 = vunpack.i.l.s16 %v566
      %v1144 = vunpack.i.h.s16 %v566
      %v1145 = vunpack.i.l.s16 %v580
      %v1146 = vunpack.i.h.s16 %v580
      %v1147 = vunpack.i.l.s16 %v582
      %v1148 = vunpack.i.h.s16 %v582
      %v1149 = vunpack.i.l.s16 %v584
      %v1150 = vunpack.i.l.s16 %v608
      %v1151 = vunpack.i.h.s16 %v608
      %v1152 = vunpack.i.l.s16 %v622
      %v1153 = vunpack.i.h.s16 %v622
      %v1154 = vunpack.i.l.s16 %v630
      %v1155 = vunpack.i.h.s16 %v630
      %v1156 = vunpack.i.l.s16 %v632
      %v1157 = vunpack.i.h.s16 %v632
      %v1158 = vunpack.i.l.s16 %v615
      %v1159 = vunpack.i.h.s16 %v615
      %v1160 = vunpack.i.l.s16 %v629
      %v1161 = vunpack.i.h.s16 %v629
      %v1162 = vunpack.i.l.s16 %v631
      %v1163 = vunpack.i.h.s16 %v631
      %v1164 = vunpack.i.l.s16 %v633
      %v1165 = vunpack.i.l.s16 %v657
      %v1166 = vunpack.i.h.s16 %v657
      %v1167 = vunpack.i.l.s16 %v671
      %v1168 = vunpack.i.h.s16 %v671
      %v1169 = vunpack.i.l.s16 %v679
      %v1170 = vunpack.i.h.s16 %v679
      %v1171 = vunpack.i.l.s16 %v681
      %v1172 = vunpack.i.h.s16 %v681
      %v1173 = vunpack.i.l.s16 %v664
      %v1174 = vunpack.i.h.s16 %v664
      %v1175 = vunpack.i.l.s16 %v678
      %v1176 = vunpack.i.h.s16 %v678
      %v1177 = vunpack.i.l.s16 %v680
      %v1178 = vunpack.i.h.s16 %v680
      %v1179 = vunpack.i.l.s16 %v682
      %v1180 = vunpack.i.l.s16 %v706
      %v1181 = vunpack.i.h.s16 %v706
      %v1182 = vunpack.i.l.s16 %v720
      %v1183 = vunpack.i.h.s16 %v720
      %v1184 = vunpack.i.l.s16 %v728
      %v1185 = vunpack.i.h.s16 %v728
      %v1186 = vunpack.i.l.s16 %v730
      %v1187 = vunpack.i.h.s16 %v730
      %v1188 = vunpack.i.l.s16 %v713
      %v1189 = vunpack.i.h.s16 %v713
      %v1190 = vunpack.i.l.s16 %v727
      %v1191 = vunpack.i.h.s16 %v727
      %v1192 = vunpack.i.l.s16 %v729
      %v1193 = vunpack.i.h.s16 %v729
      %v1194 = vunpack.i.l.s16 %v731
      %v1195 = vunpack.i.l.s16 %v755
      %v1196 = vunpack.i.h.s16 %v755
      %v1197 = vunpack.i.l.s16 %v769
      %v1198 = vunpack.i.h.s16 %v769
      %v1199 = vunpack.i.l.s16 %v777
      %v1200 = vunpack.i.h.s16 %v777
      %v1201 = vunpack.i.l.s16 %v779
      %v1202 = vunpack.i.h.s16 %v779
      %v1203 = vunpack.i.l.s16 %v762
      %v1204 = vunpack.i.h.s16 %v762
      %v1205 = vunpack.i.l.s16 %v776
      %v1206 = vunpack.i.h.s16 %v776
      %v1207 = vunpack.i.l.s16 %v778
      %v1208 = vunpack.i.h.s16 %v778
      %v1209 = vunpack.i.l.s16 %v780
      %v1210 = vunpack.i.l.s16 %v804
      %v1211 = vunpack.i.h.s16 %v804
      %v1212 = vunpack.i.l.s16 %v818
      %v1213 = vunpack.i.h.s16 %v818
      %v1214 = vunpack.i.l.s16 %v826
      %v1215 = vunpack.i.h.s16 %v826
      %v1216 = vunpack.i.l.s16 %v828
      %v1217 = vunpack.i.h.s16 %v828
      %v1218 = vunpack.i.l.s16 %v811
      %v1219 = vunpack.i.h.s16 %v811
      %v1220 = vunpack.i.l.s16 %v825
      %v1221 = vunpack.i.h.s16 %v825
      %v1222 = vunpack.i.l.s16 %v827
      %v1223 = vunpack.i.h.s16 %v827
      %v1224 = vunpack.i.l.s16 %v829
      %v1225 = vunpack.i.l.s16 %v853
      %v1226 = vunpack.i.h.s16 %v853
      %v1227 = vunpack.i.l.s16 %v867
      %v1228 = vunpack.i.h.s16 %v867
      %v1229 = vunpack.i.l.s16 %v875
      %v1230 = vunpack.i.h.s16 %v875
      %v1231 = vunpack.i.l.s16 %v877
      %v1232 = vunpack.i.h.s16 %v877
      %v1233 = vunpack.i.l.s16 %v860
      %v1234 = vunpack.i.h.s16 %v860
      %v1235 = vunpack.i.l.s16 %v874
      %v1236 = vunpack.i.h.s16 %v874
      %v1237 = vunpack.i.l.s16 %v876
      %v1238 = vunpack.i.h.s16 %v876
      %v1239 = vunpack.i.l.s16 %v878
      %v1240 = vunpack.i.l.s16 %v902
      %v1241 = vunpack.i.h.s16 %v902
      %v1242 = vunpack.i.l.s16 %v916
      %v1243 = vunpack.i.h.s16 %v916
      %v1244 = vunpack.i.l.s16 %v924
      %v1245 = vunpack.i.h.s16 %v924
      %v1246 = vunpack.i.l.s16 %v926
      %v1247 = vunpack.i.h.s16 %v926
      %v1248 = vunpack.i.l.s16 %v909
      %v1249 = vunpack.i.h.s16 %v909
      %v1250 = vunpack.i.l.s16 %v923
      %v1251 = vunpack.i.h.s16 %v923
      %v1252 = vunpack.i.l.s16 %v925
      %v1253 = vunpack.i.h.s16 %v925
      %v1254 = vunpack.i.l.s16 %v927
      %v1255 = vunpack.i.l.s16 %v951
      %v1256 = vunpack.i.h.s16 %v951
      %v1257 = vunpack.i.l.s16 %v965
      %v1258 = vunpack.i.h.s16 %v965
      %v1259 = vunpack.i.l.s16 %v973
      %v1260 = vunpack.i.h.s16 %v973
      %v1261 = vunpack.i.l.s16 %v975
      %v1262 = vunpack.i.h.s16 %v975
      %v1263 = vunpack.i.l.s16 %v958
      %v1264 = vunpack.i.h.s16 %v958
      %v1265 = vunpack.i.l.s16 %v972
      %v1266 = vunpack.i.h.s16 %v972
      %v1267 = vunpack.i.l.s16 %v974
      %v1268 = vunpack.i.h.s16 %v974
      %v1269 = vunpack.i.l.s16 %v976
      %v1270 = vunpack.i.l.s16 %v1000
      %v1271 = vunpack.i.h.s16 %v1000
      %v1272 = vunpack.i.l.s16 %v1014
      %v1273 = vunpack.i.h.s16 %v1014
      %v1274 = vunpack.i.l.s16 %v1022
      %v1275 = vunpack.i.h.s16 %v1022
      %v1276 = vunpack.i.l.s16 %v1024
      %v1277 = vunpack.i.h.s16 %v1024
      %v1278 = vunpack.i.l.s16 %v1007
      %v1279 = vunpack.i.h.s16 %v1007
      %v1280 = vunpack.i.l.s16 %v1021
      %v1281 = vunpack.i.h.s16 %v1021
      %v1282 = vunpack.i.l.s16 %v1023
      %v1283 = vunpack.i.h.s16 %v1023
      %v1284 = vunpack.i.l.s16 %v1025
      %v1285 = vunpack.i.l.s16 %v1049
      %v1286 = vunpack.i.h.s16 %v1049
      %v1287 = vunpack.i.l.s16 %v1063
      %v1288 = vunpack.i.h.s16 %v1063
      %v1289 = vunpack.i.l.s16 %v1071
      %v1290 = vunpack.i.h.s16 %v1071
      %v1291 = vunpack.i.l.s16 %v1073
      %v1292 = vunpack.i.h.s16 %v1073
      %v1293 = vunpack.i.l.s16 %v1056
      %v1294 = vunpack.i.h.s16 %v1056
      %v1295 = vunpack.i.l.s16 %v1070
      %v1296 = vunpack.i.h.s16 %v1070
      %v1297 = vunpack.i.l.s16 %v1072
      %v1298 = vunpack.i.h.s16 %v1072
      %v1299 = vunpack.i.l.s16 %v1074
      %v1300 = vld [vmem:[%s1] sm:$0x3]
      %v1301 = vunpack.i.h.s16 %v388
      %v1302 = vunpack.i.h.s16 %v437
      %v1303 = vunpack.i.h.s16 %v486
      %v1304 = vunpack.i.h.s16 %v535
      %v1305 = vunpack.i.h.s16 %v584
      %v1306 = vunpack.i.h.s16 %v633
      %v1307 = vunpack.i.h.s16 %v682
      %v1308 = vunpack.i.h.s16 %v731
      %v1309 = vunpack.i.h.s16 %v780
      %v1310 = vunpack.i.h.s16 %v829
      %v1311 = vunpack.i.h.s16 %v878
      %v1312 = vunpack.i.h.s16 %v927
      %v1313 = vunpack.i.h.s16 %v976
      %v1314 = vunpack.i.h.s16 %v1025
      %v1315 = vunpack.i.h.s16 %v1074
      %s1316 = scalar_lea.vmem %s1, 2
      %v1317 = vld [vmem:[%s1316] sm:$0x3]
      %v1318 = vpack.i.b16 %v1077, %v1076
      %v1319 = vpack.i.b16 %v1079, %v1078
      %v1320 = vpack.i.b16 %v1081, %v1080
      %v1321 = vpack.i.b16 %v1083, %v1082
      %v1322 = vpack.i.b16 %v1085, %v1084
      %v1323 = vpack.i.b16 %v1087, %v1086
      %v1324 = vpack.i.b16 %v1089, %v1088
      %v1325 = vpack.i.b16 %v1091, %v1301
      %v1326 = vpack.i.b16 %v1093, %v1092
      %v1327 = vpack.i.b16 %v1095, %v1094
      %v1328 = vpack.i.b16 %v1097, %v1096
      %v1329 = vpack.i.b16 %v1099, %v1098
      %v1330 = vpack.i.b16 %v1101, %v1100
      %v1331 = vpack.i.b16 %v1103, %v1102
      %v1332 = vpack.i.b16 %v1302, %v1104
      %v1333 = vpack.i.b16 %v1107, %v1106
      %v1334 = vpack.i.b16 %v1109, %v1108
      %v1335 = vpack.i.b16 %v1111, %v1110
      %v1336 = vpack.i.b16 %v1113, %v1112
      %v1337 = vpack.i.b16 %v1115, %v1114
      %v1338 = vpack.i.b16 %v1117, %v1116
      %v1339 = vpack.i.b16 %v1119, %v1118
      %v1340 = vpack.i.b16 %v1121, %v1303
      %v1341 = vpack.i.b16 %v1123, %v1122
      %v1342 = vpack.i.b16 %v1125, %v1124
      %v1343 = vpack.i.b16 %v1127, %v1126
      %v1344 = vpack.i.b16 %v1129, %v1128
      %v1345 = vpack.i.b16 %v1131, %v1130
      %v1346 = vpack.i.b16 %v1133, %v1132
      %v1347 = vpack.i.b16 %v1304, %v1134
      %v1348 = vpack.i.b16 %v1137, %v1136
      %v1349 = vpack.i.b16 %v1139, %v1138
      %v1350 = vpack.i.b16 %v1141, %v1140
      %v1351 = vpack.i.b16 %v1143, %v1142
      %v1352 = vpack.i.b16 %v1145, %v1144
      %v1353 = vpack.i.b16 %v1147, %v1146
      %v1354 = vpack.i.b16 %v1149, %v1148
      %v1355 = vpack.i.b16 %v1151, %v1305
      %v1356 = vpack.i.b16 %v1153, %v1152
      %v1357 = vpack.i.b16 %v1155, %v1154
      %v1358 = vpack.i.b16 %v1157, %v1156
      %v1359 = vpack.i.b16 %v1159, %v1158
      %v1360 = vpack.i.b16 %v1161, %v1160
      %v1361 = vpack.i.b16 %v1163, %v1162
      %v1362 = vpack.i.b16 %v1306, %v1164
      %v1363 = vpack.i.b16 %v1167, %v1166
      %v1364 = vpack.i.b16 %v1169, %v1168
      %v1365 = vpack.i.b16 %v1171, %v1170
      %v1366 = vpack.i.b16 %v1173, %v1172
      %v1367 = vpack.i.b16 %v1175, %v1174
      %v1368 = vpack.i.b16 %v1177, %v1176
      %v1369 = vpack.i.b16 %v1179, %v1178
      %v1370 = vpack.i.b16 %v1181, %v1307
      %v1371 = vpack.i.b16 %v1183, %v1182
      %v1372 = vpack.i.b16 %v1185, %v1184
      %v1373 = vpack.i.b16 %v1187, %v1186
      %v1374 = vpack.i.b16 %v1189, %v1188
      %v1375 = vpack.i.b16 %v1191, %v1190
      %v1376 = vpack.i.b16 %v1193, %v1192
      %v1377 = vpack.i.b16 %v1308, %v1194
      %v1378 = vpack.i.b16 %v1197, %v1196
      %v1379 = vpack.i.b16 %v1199, %v1198
      %v1380 = vpack.i.b16 %v1201, %v1200
      %v1381 = vpack.i.b16 %v1203, %v1202
      %v1382 = vpack.i.b16 %v1205, %v1204
      %v1383 = vpack.i.b16 %v1207, %v1206
      %v1384 = vpack.i.b16 %v1209, %v1208
      %v1385 = vpack.i.b16 %v1211, %v1309
      %v1386 = vpack.i.b16 %v1213, %v1212
      %v1387 = vpack.i.b16 %v1215, %v1214
      %v1388 = vpack.i.b16 %v1217, %v1216
      %v1389 = vpack.i.b16 %v1219, %v1218
      %v1390 = vpack.i.b16 %v1221, %v1220
      %v1391 = vpack.i.b16 %v1223, %v1222
      %v1392 = vpack.i.b16 %v1310, %v1224
      %v1393 = vpack.i.b16 %v1227, %v1226
      %v1394 = vpack.i.b16 %v1229, %v1228
      %v1395 = vpack.i.b16 %v1231, %v1230
      %v1396 = vpack.i.b16 %v1233, %v1232
      %v1397 = vpack.i.b16 %v1235, %v1234
      %v1398 = vpack.i.b16 %v1237, %v1236
      %v1399 = vpack.i.b16 %v1239, %v1238
      %v1400 = vpack.i.b16 %v1241, %v1311
      %v1401 = vpack.i.b16 %v1243, %v1242
      %v1402 = vpack.i.b16 %v1245, %v1244
      %v1403 = vpack.i.b16 %v1247, %v1246
      %v1404 = vpack.i.b16 %v1249, %v1248
      %v1405 = vpack.i.b16 %v1251, %v1250
      %v1406 = vpack.i.b16 %v1253, %v1252
      %v1407 = vpack.i.b16 %v1312, %v1254
      %v1408 = vpack.i.b16 %v1257, %v1256
      %v1409 = vpack.i.b16 %v1259, %v1258
      %v1410 = vpack.i.b16 %v1261, %v1260
      %v1411 = vpack.i.b16 %v1263, %v1262
      %v1412 = vpack.i.b16 %v1265, %v1264
      %v1413 = vpack.i.b16 %v1267, %v1266
      %v1414 = vpack.i.b16 %v1269, %v1268
      %v1415 = vpack.i.b16 %v1271, %v1313
      %v1416 = vpack.i.b16 %v1273, %v1272
      %v1417 = vpack.i.b16 %v1275, %v1274
      %v1418 = vpack.i.b16 %v1277, %v1276
      %v1419 = vpack.i.b16 %v1279, %v1278
      %v1420 = vpack.i.b16 %v1281, %v1280
      %v1421 = vpack.i.b16 %v1283, %v1282
      %v1422 = vpack.i.b16 %v1314, %v1284
      %v1423 = vpack.i.b16 %v1287, %v1286
      %v1424 = vpack.i.b16 %v1289, %v1288
      %v1425 = vpack.i.b16 %v1291, %v1290
      %v1426 = vpack.i.b16 %v1293, %v1292
      %v1427 = vpack.i.b16 %v1295, %v1294
      %v1428 = vpack.i.b16 %v1297, %v1296
      %v1429 = vpack.i.b16 %v1299, %v1298
      %v1431 = vcombine.low %v1318, %v1319
      %v1432 = vcombine.low %v1320, %v1321
      %v1433 = vcombine.low %v1322, %v1323
      %v1434 = vcombine.low %v1324, %v1325
      %v1436 = vunpack.c.l.s4 1966171168
      %v1437 = vunpack.c.0.s8 %v1436
      %v1438 = vlaneseq
      %v1439 = vshrl.u32 %v1438, 7
      %v1440 = vsub.s32 %v1437, %v1439
      %v1441 = vrot.slane %v1431, %v1440
      %v1443 = vunpack.c.l.s4 1966171168
      %v1444 = vunpack.c.0.s8 %v1443
      %v1445 = vlaneseq
      %v1446 = vshrl.u32 %v1445, 7
      %v1447 = vsub.s32 %v1444, %v1446
      %v1448 = vrot.slane %v1432, %v1447
      %v1450 = vunpack.c.l.s4 1966171168
      %v1451 = vunpack.c.0.s8 %v1450
      %v1452 = vlaneseq
      %v1453 = vshrl.u32 %v1452, 7
      %v1454 = vsub.s32 %v1451, %v1453
      %v1455 = vrot.slane %v1433, %v1454
      %v1457 = vunpack.c.l.s4 1966171168
      %v1458 = vunpack.c.0.s8 %v1457
      %v1459 = vlaneseq
      %v1460 = vshrl.u32 %v1459, 7
      %v1461 = vsub.s32 %v1458, %v1460
      %v1462 = vrot.slane %v1434, %v1461
      %v1463 = vcombine.low %v1441, %v1448
      %v1464 = vcombine.low %v1455, %v1462
      %v1466 = vunpack.c.l.s4 1966171168
      %v1467 = vunpack.c.0.s8 %v1466
      %v1468 = vlaneseq
      %v1469 = vshrl.u32 %v1468, 7
      %v1470 = vsub.s32 %v1467, %v1469
      %v1471 = vrot.slane %v1463, %v1470
      %v1473 = vunpack.c.l.s4 1966171168
      %v1474 = vunpack.c.0.s8 %v1473
      %v1475 = vlaneseq
      %v1476 = vshrl.u32 %v1475, 7
      %v1477 = vsub.s32 %v1474, %v1476
      %v1478 = vrot.slane %v1464, %v1477
      %v1479 = vcombine.low %v1471, %v1478
      %v1480 = vcombine.low %v1326, %v1327
      %v1481 = vcombine.low %v1328, %v1329
      %v1482 = vcombine.low %v1330, %v1331
      %v1483 = vcombine.low %v1332, %v1333
      %v1485 = vunpack.c.l.s4 1966171168
      %v1486 = vunpack.c.0.s8 %v1485
      %v1487 = vlaneseq
      %v1488 = vshrl.u32 %v1487, 7
      %v1489 = vsub.s32 %v1486, %v1488
      %v1490 = vrot.slane %v1480, %v1489
      %v1492 = vunpack.c.l.s4 1966171168
      %v1493 = vunpack.c.0.s8 %v1492
      %v1494 = vlaneseq
      %v1495 = vshrl.u32 %v1494, 7
      %v1496 = vsub.s32 %v1493, %v1495
      %v1497 = vrot.slane %v1481, %v1496
      %v1499 = vunpack.c.l.s4 1966171168
      %v1500 = vunpack.c.0.s8 %v1499
      %v1501 = vlaneseq
      %v1502 = vshrl.u32 %v1501, 7
      %v1503 = vsub.s32 %v1500, %v1502
      %v1504 = vrot.slane %v1482, %v1503
      %v1506 = vunpack.c.l.s4 1966171168
      %v1507 = vunpack.c.0.s8 %v1506
      %v1508 = vlaneseq
      %v1509 = vshrl.u32 %v1508, 7
      %v1510 = vsub.s32 %v1507, %v1509
      %v1511 = vrot.slane %v1483, %v1510
      %v1512 = vcombine.low %v1490, %v1497
      %v1513 = vcombine.low %v1504, %v1511
      %v1515 = vunpack.c.l.s4 1966171168
      %v1516 = vunpack.c.0.s8 %v1515
      %v1517 = vlaneseq
      %v1518 = vshrl.u32 %v1517, 7
      %v1519 = vsub.s32 %v1516, %v1518
      %v1520 = vrot.slane %v1512, %v1519
      %v1522 = vunpack.c.l.s4 1966171168
      %v1523 = vunpack.c.0.s8 %v1522
      %v1524 = vlaneseq
      %v1525 = vshrl.u32 %v1524, 7
      %v1526 = vsub.s32 %v1523, %v1525
      %v1527 = vrot.slane %v1513, %v1526
      %v1528 = vcombine.low %v1520, %v1527
      %v1529 = vcombine.low %v1334, %v1335
      %v1530 = vcombine.low %v1336, %v1337
      %v1531 = vcombine.low %v1338, %v1339
      %v1532 = vcombine.low %v1340, %v1341
      %v1534 = vunpack.c.l.s4 1966171168
      %v1535 = vunpack.c.0.s8 %v1534
      %v1536 = vlaneseq
      %v1537 = vshrl.u32 %v1536, 7
      %v1538 = vsub.s32 %v1535, %v1537
      %v1539 = vrot.slane %v1529, %v1538
      %v1541 = vunpack.c.l.s4 1966171168
      %v1542 = vunpack.c.0.s8 %v1541
      %v1543 = vlaneseq
      %v1544 = vshrl.u32 %v1543, 7
      %v1545 = vsub.s32 %v1542, %v1544
      %v1546 = vrot.slane %v1530, %v1545
      %v1548 = vunpack.c.l.s4 1966171168
      %v1549 = vunpack.c.0.s8 %v1548
      %v1550 = vlaneseq
      %v1551 = vshrl.u32 %v1550, 7
      %v1552 = vsub.s32 %v1549, %v1551
      %v1553 = vrot.slane %v1531, %v1552
      %v1555 = vunpack.c.l.s4 1966171168
      %v1556 = vunpack.c.0.s8 %v1555
      %v1557 = vlaneseq
      %v1558 = vshrl.u32 %v1557, 7
      %v1559 = vsub.s32 %v1556, %v1558
      %v1560 = vrot.slane %v1532, %v1559
      %v1561 = vcombine.low %v1539, %v1546
      %v1562 = vcombine.low %v1553, %v1560
      %v1564 = vunpack.c.l.s4 1966171168
      %v1565 = vunpack.c.0.s8 %v1564
      %v1566 = vlaneseq
      %v1567 = vshrl.u32 %v1566, 7
      %v1568 = vsub.s32 %v1565, %v1567
      %v1569 = vrot.slane %v1561, %v1568
      %v1571 = vunpack.c.l.s4 1966171168
      %v1572 = vunpack.c.0.s8 %v1571
      %v1573 = vlaneseq
      %v1574 = vshrl.u32 %v1573, 7
      %v1575 = vsub.s32 %v1572, %v1574
      %v1576 = vrot.slane %v1562, %v1575
      %v1577 = vcombine.low %v1569, %v1576
      %v1578 = vcombine.low %v1342, %v1343
      %v1579 = vcombine.low %v1344, %v1345
      %v1580 = vcombine.low %v1346, %v1347
      %v1581 = vcombine.low %v1348, %v1349
      %v1583 = vunpack.c.l.s4 1966171168
      %v1584 = vunpack.c.0.s8 %v1583
      %v1585 = vlaneseq
      %v1586 = vshrl.u32 %v1585, 7
      %v1587 = vsub.s32 %v1584, %v1586
      %v1588 = vrot.slane %v1578, %v1587
      %v1590 = vunpack.c.l.s4 1966171168
      %v1591 = vunpack.c.0.s8 %v1590
      %v1592 = vlaneseq
      %v1593 = vshrl.u32 %v1592, 7
      %v1594 = vsub.s32 %v1591, %v1593
      %v1595 = vrot.slane %v1579, %v1594
      %v1597 = vunpack.c.l.s4 1966171168
      %v1598 = vunpack.c.0.s8 %v1597
      %v1599 = vlaneseq
      %v1600 = vshrl.u32 %v1599, 7
      %v1601 = vsub.s32 %v1598, %v1600
      %v1602 = vrot.slane %v1580, %v1601
      %v1604 = vunpack.c.l.s4 1966171168
      %v1605 = vunpack.c.0.s8 %v1604
      %v1606 = vlaneseq
      %v1607 = vshrl.u32 %v1606, 7
      %v1608 = vsub.s32 %v1605, %v1607
      %v1609 = vrot.slane %v1581, %v1608
      %v1610 = vcombine.low %v1588, %v1595
      %v1611 = vcombine.low %v1602, %v1609
      %v1613 = vunpack.c.l.s4 1966171168
      %v1614 = vunpack.c.0.s8 %v1613
      %v1615 = vlaneseq
      %v1616 = vshrl.u32 %v1615, 7
      %v1617 = vsub.s32 %v1614, %v1616
      %v1618 = vrot.slane %v1610, %v1617
      %v1620 = vunpack.c.l.s4 1966171168
      %v1621 = vunpack.c.0.s8 %v1620
      %v1622 = vlaneseq
      %v1623 = vshrl.u32 %v1622, 7
      %v1624 = vsub.s32 %v1621, %v1623
      %v1625 = vrot.slane %v1611, %v1624
      %v1626 = vcombine.low %v1618, %v1625
      %v1627 = vcombine.low %v1350, %v1351
      %v1628 = vcombine.low %v1352, %v1353
      %v1629 = vcombine.low %v1354, %v1355
      %v1630 = vcombine.low %v1356, %v1357
      %v1632 = vunpack.c.l.s4 1966171168
      %v1633 = vunpack.c.0.s8 %v1632
      %v1634 = vlaneseq
      %v1635 = vshrl.u32 %v1634, 7
      %v1636 = vsub.s32 %v1633, %v1635
      %v1637 = vrot.slane %v1627, %v1636
      %v1639 = vunpack.c.l.s4 1966171168
      %v1640 = vunpack.c.0.s8 %v1639
      %v1641 = vlaneseq
      %v1642 = vshrl.u32 %v1641, 7
      %v1643 = vsub.s32 %v1640, %v1642
      %v1644 = vrot.slane %v1628, %v1643
      %v1646 = vunpack.c.l.s4 1966171168
      %v1647 = vunpack.c.0.s8 %v1646
      %v1648 = vlaneseq
      %v1649 = vshrl.u32 %v1648, 7
      %v1650 = vsub.s32 %v1647, %v1649
      %v1651 = vrot.slane %v1629, %v1650
      %v1653 = vunpack.c.l.s4 1966171168
      %v1654 = vunpack.c.0.s8 %v1653
      %v1655 = vlaneseq
      %v1656 = vshrl.u32 %v1655, 7
      %v1657 = vsub.s32 %v1654, %v1656
      %v1658 = vrot.slane %v1630, %v1657
      %v1659 = vcombine.low %v1637, %v1644
      %v1660 = vcombine.low %v1651, %v1658
      %v1662 = vunpack.c.l.s4 1966171168
      %v1663 = vunpack.c.0.s8 %v1662
      %v1664 = vlaneseq
      %v1665 = vshrl.u32 %v1664, 7
      %v1666 = vsub.s32 %v1663, %v1665
      %v1667 = vrot.slane %v1659, %v1666
      %v1669 = vunpack.c.l.s4 1966171168
      %v1670 = vunpack.c.0.s8 %v1669
      %v1671 = vlaneseq
      %v1672 = vshrl.u32 %v1671, 7
      %v1673 = vsub.s32 %v1670, %v1672
      %v1674 = vrot.slane %v1660, %v1673
      %v1675 = vcombine.low %v1667, %v1674
      %v1676 = vcombine.low %v1358, %v1359
      %v1677 = vcombine.low %v1360, %v1361
      %v1678 = vcombine.low %v1362, %v1363
      %v1679 = vcombine.low %v1364, %v1365
      %v1681 = vunpack.c.l.s4 1966171168
      %v1682 = vunpack.c.0.s8 %v1681
      %v1683 = vlaneseq
      %v1684 = vshrl.u32 %v1683, 7
      %v1685 = vsub.s32 %v1682, %v1684
      %v1686 = vrot.slane %v1676, %v1685
      %v1688 = vunpack.c.l.s4 1966171168
      %v1689 = vunpack.c.0.s8 %v1688
      %v1690 = vlaneseq
      %v1691 = vshrl.u32 %v1690, 7
      %v1692 = vsub.s32 %v1689, %v1691
      %v1693 = vrot.slane %v1677, %v1692
      %v1695 = vunpack.c.l.s4 1966171168
      %v1696 = vunpack.c.0.s8 %v1695
      %v1697 = vlaneseq
      %v1698 = vshrl.u32 %v1697, 7
      %v1699 = vsub.s32 %v1696, %v1698
      %v1700 = vrot.slane %v1678, %v1699
      %v1702 = vunpack.c.l.s4 1966171168
      %v1703 = vunpack.c.0.s8 %v1702
      %v1704 = vlaneseq
      %v1705 = vshrl.u32 %v1704, 7
      %v1706 = vsub.s32 %v1703, %v1705
      %v1707 = vrot.slane %v1679, %v1706
      %v1708 = vcombine.low %v1686, %v1693
      %v1709 = vcombine.low %v1700, %v1707
      %v1711 = vunpack.c.l.s4 1966171168
      %v1712 = vunpack.c.0.s8 %v1711
      %v1713 = vlaneseq
      %v1714 = vshrl.u32 %v1713, 7
      %v1715 = vsub.s32 %v1712, %v1714
      %v1716 = vrot.slane %v1708, %v1715
      %v1718 = vunpack.c.l.s4 1966171168
      %v1719 = vunpack.c.0.s8 %v1718
      %v1720 = vlaneseq
      %v1721 = vshrl.u32 %v1720, 7
      %v1722 = vsub.s32 %v1719, %v1721
      %v1723 = vrot.slane %v1709, %v1722
      %v1724 = vcombine.low %v1716, %v1723
      %v1725 = vcombine.low %v1366, %v1367
      %v1726 = vcombine.low %v1368, %v1369
      %v1727 = vcombine.low %v1370, %v1371
      %v1728 = vcombine.low %v1372, %v1373
      %v1730 = vunpack.c.l.s4 1966171168
      %v1731 = vunpack.c.0.s8 %v1730
      %v1732 = vlaneseq
      %v1733 = vshrl.u32 %v1732, 7
      %v1734 = vsub.s32 %v1731, %v1733
      %v1735 = vrot.slane %v1725, %v1734
      %v1737 = vunpack.c.l.s4 1966171168
      %v1738 = vunpack.c.0.s8 %v1737
      %v1739 = vlaneseq
      %v1740 = vshrl.u32 %v1739, 7
      %v1741 = vsub.s32 %v1738, %v1740
      %v1742 = vrot.slane %v1726, %v1741
      %v1744 = vunpack.c.l.s4 1966171168
      %v1745 = vunpack.c.0.s8 %v1744
      %v1746 = vlaneseq
      %v1747 = vshrl.u32 %v1746, 7
      %v1748 = vsub.s32 %v1745, %v1747
      %v1749 = vrot.slane %v1727, %v1748
      %v1751 = vunpack.c.l.s4 1966171168
      %v1752 = vunpack.c.0.s8 %v1751
      %v1753 = vlaneseq
      %v1754 = vshrl.u32 %v1753, 7
      %v1755 = vsub.s32 %v1752, %v1754
      %v1756 = vrot.slane %v1728, %v1755
      %v1757 = vcombine.low %v1735, %v1742
      %v1758 = vcombine.low %v1749, %v1756
      %v1760 = vunpack.c.l.s4 1966171168
      %v1761 = vunpack.c.0.s8 %v1760
      %v1762 = vlaneseq
      %v1763 = vshrl.u32 %v1762, 7
      %v1764 = vsub.s32 %v1761, %v1763
      %v1765 = vrot.slane %v1757, %v1764
      %v1767 = vunpack.c.l.s4 1966171168
      %v1768 = vunpack.c.0.s8 %v1767
      %v1769 = vlaneseq
      %v1770 = vshrl.u32 %v1769, 7
      %v1771 = vsub.s32 %v1768, %v1770
      %v1772 = vrot.slane %v1758, %v1771
      %v1773 = vcombine.low %v1765, %v1772
      %v1774 = vcombine.low %v1374, %v1375
      %v1775 = vcombine.low %v1376, %v1377
      %v1776 = vcombine.low %v1378, %v1379
      %v1777 = vcombine.low %v1380, %v1381
      %v1779 = vunpack.c.l.s4 1966171168
      %v1780 = vunpack.c.0.s8 %v1779
      %v1781 = vlaneseq
      %v1782 = vshrl.u32 %v1781, 7
      %v1783 = vsub.s32 %v1780, %v1782
      %v1784 = vrot.slane %v1774, %v1783
      %v1786 = vunpack.c.l.s4 1966171168
      %v1787 = vunpack.c.0.s8 %v1786
      %v1788 = vlaneseq
      %v1789 = vshrl.u32 %v1788, 7
      %v1790 = vsub.s32 %v1787, %v1789
      %v1791 = vrot.slane %v1775, %v1790
      %v1793 = vunpack.c.l.s4 1966171168
      %v1794 = vunpack.c.0.s8 %v1793
      %v1795 = vlaneseq
      %v1796 = vshrl.u32 %v1795, 7
      %v1797 = vsub.s32 %v1794, %v1796
      %v1798 = vrot.slane %v1776, %v1797
      %v1800 = vunpack.c.l.s4 1966171168
      %v1801 = vunpack.c.0.s8 %v1800
      %v1802 = vlaneseq
      %v1803 = vshrl.u32 %v1802, 7
      %v1804 = vsub.s32 %v1801, %v1803
      %v1805 = vrot.slane %v1777, %v1804
      %v1806 = vcombine.low %v1784, %v1791
      %v1807 = vcombine.low %v1798, %v1805
      %v1809 = vunpack.c.l.s4 1966171168
      %v1810 = vunpack.c.0.s8 %v1809
      %v1811 = vlaneseq
      %v1812 = vshrl.u32 %v1811, 7
      %v1813 = vsub.s32 %v1810, %v1812
      %v1814 = vrot.slane %v1806, %v1813
      %v1816 = vunpack.c.l.s4 1966171168
      %v1817 = vunpack.c.0.s8 %v1816
      %v1818 = vlaneseq
      %v1819 = vshrl.u32 %v1818, 7
      %v1820 = vsub.s32 %v1817, %v1819
      %v1821 = vrot.slane %v1807, %v1820
      %v1822 = vcombine.low %v1814, %v1821
      %v1823 = vcombine.low %v1382, %v1383
      %v1824 = vcombine.low %v1384, %v1385
      %v1825 = vcombine.low %v1386, %v1387
      %v1826 = vcombine.low %v1388, %v1389
      %v1828 = vunpack.c.l.s4 1966171168
      %v1829 = vunpack.c.0.s8 %v1828
      %v1830 = vlaneseq
      %v1831 = vshrl.u32 %v1830, 7
      %v1832 = vsub.s32 %v1829, %v1831
      %v1833 = vrot.slane %v1823, %v1832
      %v1835 = vunpack.c.l.s4 1966171168
      %v1836 = vunpack.c.0.s8 %v1835
      %v1837 = vlaneseq
      %v1838 = vshrl.u32 %v1837, 7
      %v1839 = vsub.s32 %v1836, %v1838
      %v1840 = vrot.slane %v1824, %v1839
      %v1842 = vunpack.c.l.s4 1966171168
      %v1843 = vunpack.c.0.s8 %v1842
      %v1844 = vlaneseq
      %v1845 = vshrl.u32 %v1844, 7
      %v1846 = vsub.s32 %v1843, %v1845
      %v1847 = vrot.slane %v1825, %v1846
      %v1849 = vunpack.c.l.s4 1966171168
      %v1850 = vunpack.c.0.s8 %v1849
      %v1851 = vlaneseq
      %v1852 = vshrl.u32 %v1851, 7
      %v1853 = vsub.s32 %v1850, %v1852
      %v1854 = vrot.slane %v1826, %v1853
      %v1855 = vcombine.low %v1833, %v1840
      %v1856 = vcombine.low %v1847, %v1854
      %v1858 = vunpack.c.l.s4 1966171168
      %v1859 = vunpack.c.0.s8 %v1858
      %v1860 = vlaneseq
      %v1861 = vshrl.u32 %v1860, 7
      %v1862 = vsub.s32 %v1859, %v1861
      %v1863 = vrot.slane %v1855, %v1862
      %v1865 = vunpack.c.l.s4 1966171168
      %v1866 = vunpack.c.0.s8 %v1865
      %v1867 = vlaneseq
      %v1868 = vshrl.u32 %v1867, 7
      %v1869 = vsub.s32 %v1866, %v1868
      %v1870 = vrot.slane %v1856, %v1869
      %v1871 = vcombine.low %v1863, %v1870
      %v1872 = vcombine.low %v1390, %v1391
      %v1873 = vcombine.low %v1392, %v1393
      %v1874 = vcombine.low %v1394, %v1395
      %v1875 = vcombine.low %v1396, %v1397
      %v1877 = vunpack.c.l.s4 1966171168
      %v1878 = vunpack.c.0.s8 %v1877
      %v1879 = vlaneseq
      %v1880 = vshrl.u32 %v1879, 7
      %v1881 = vsub.s32 %v1878, %v1880
      %v1882 = vrot.slane %v1872, %v1881
      %v1884 = vunpack.c.l.s4 1966171168
      %v1885 = vunpack.c.0.s8 %v1884
      %v1886 = vlaneseq
      %v1887 = vshrl.u32 %v1886, 7
      %v1888 = vsub.s32 %v1885, %v1887
      %v1889 = vrot.slane %v1873, %v1888
      %v1891 = vunpack.c.l.s4 1966171168
      %v1892 = vunpack.c.0.s8 %v1891
      %v1893 = vlaneseq
      %v1894 = vshrl.u32 %v1893, 7
      %v1895 = vsub.s32 %v1892, %v1894
      %v1896 = vrot.slane %v1874, %v1895
      %v1898 = vunpack.c.l.s4 1966171168
      %v1899 = vunpack.c.0.s8 %v1898
      %v1900 = vlaneseq
      %v1901 = vshrl.u32 %v1900, 7
      %v1902 = vsub.s32 %v1899, %v1901
      %v1903 = vrot.slane %v1875, %v1902
      %v1904 = vcombine.low %v1882, %v1889
      %v1905 = vcombine.low %v1896, %v1903
      %v1907 = vunpack.c.l.s4 1966171168
      %v1908 = vunpack.c.0.s8 %v1907
      %v1909 = vlaneseq
      %v1910 = vshrl.u32 %v1909, 7
      %v1911 = vsub.s32 %v1908, %v1910
      %v1912 = vrot.slane %v1904, %v1911
      %v1914 = vunpack.c.l.s4 1966171168
      %v1915 = vunpack.c.0.s8 %v1914
      %v1916 = vlaneseq
      %v1917 = vshrl.u32 %v1916, 7
      %v1918 = vsub.s32 %v1915, %v1917
      %v1919 = vrot.slane %v1905, %v1918
      %v1920 = vcombine.low %v1912, %v1919
      %v1921 = vcombine.low %v1398, %v1399
      %v1922 = vcombine.low %v1400, %v1401
      %v1923 = vcombine.low %v1402, %v1403
      %v1924 = vcombine.low %v1404, %v1405
      %v1926 = vunpack.c.l.s4 1966171168
      %v1927 = vunpack.c.0.s8 %v1926
      %v1928 = vlaneseq
      %v1929 = vshrl.u32 %v1928, 7
      %v1930 = vsub.s32 %v1927, %v1929
      %v1931 = vrot.slane %v1921, %v1930
      %v1933 = vunpack.c.l.s4 1966171168
      %v1934 = vunpack.c.0.s8 %v1933
      %v1935 = vlaneseq
      %v1936 = vshrl.u32 %v1935, 7
      %v1937 = vsub.s32 %v1934, %v1936
      %v1938 = vrot.slane %v1922, %v1937
      %v1940 = vunpack.c.l.s4 1966171168
      %v1941 = vunpack.c.0.s8 %v1940
      %v1942 = vlaneseq
      %v1943 = vshrl.u32 %v1942, 7
      %v1944 = vsub.s32 %v1941, %v1943
      %v1945 = vrot.slane %v1923, %v1944
      %v1947 = vunpack.c.l.s4 1966171168
      %v1948 = vunpack.c.0.s8 %v1947
      %v1949 = vlaneseq
      %v1950 = vshrl.u32 %v1949, 7
      %v1951 = vsub.s32 %v1948, %v1950
      %v1952 = vrot.slane %v1924, %v1951
      %v1953 = vcombine.low %v1931, %v1938
      %v1954 = vcombine.low %v1945, %v1952
      %v1956 = vunpack.c.l.s4 1966171168
      %v1957 = vunpack.c.0.s8 %v1956
      %v1958 = vlaneseq
      %v1959 = vshrl.u32 %v1958, 7
      %v1960 = vsub.s32 %v1957, %v1959
      %v1961 = vrot.slane %v1953, %v1960
      %v1963 = vunpack.c.l.s4 1966171168
      %v1964 = vunpack.c.0.s8 %v1963
      %v1965 = vlaneseq
      %v1966 = vshrl.u32 %v1965, 7
      %v1967 = vsub.s32 %v1964, %v1966
      %v1968 = vrot.slane %v1954, %v1967
      %v1969 = vcombine.low %v1961, %v1968
      %v1970 = vcombine.low %v1406, %v1407
      %v1971 = vcombine.low %v1408, %v1409
      %v1972 = vcombine.low %v1410, %v1411
      %v1973 = vcombine.low %v1412, %v1413
      %v1975 = vunpack.c.l.s4 1966171168
      %v1976 = vunpack.c.0.s8 %v1975
      %v1977 = vlaneseq
      %v1978 = vshrl.u32 %v1977, 7
      %v1979 = vsub.s32 %v1976, %v1978
      %v1980 = vrot.slane %v1970, %v1979
      %v1982 = vunpack.c.l.s4 1966171168
      %v1983 = vunpack.c.0.s8 %v1982
      %v1984 = vlaneseq
      %v1985 = vshrl.u32 %v1984, 7
      %v1986 = vsub.s32 %v1983, %v1985
      %v1987 = vrot.slane %v1971, %v1986
      %v1989 = vunpack.c.l.s4 1966171168
      %v1990 = vunpack.c.0.s8 %v1989
      %v1991 = vlaneseq
      %v1992 = vshrl.u32 %v1991, 7
      %v1993 = vsub.s32 %v1990, %v1992
      %v1994 = vrot.slane %v1972, %v1993
      %v1996 = vunpack.c.l.s4 1966171168
      %v1997 = vunpack.c.0.s8 %v1996
      %v1998 = vlaneseq
      %v1999 = vshrl.u32 %v1998, 7
      %v2000 = vsub.s32 %v1997, %v1999
      %v2001 = vrot.slane %v1973, %v2000
      %v2002 = vcombine.low %v1980, %v1987
      %v2003 = vcombine.low %v1994, %v2001
      %v2005 = vunpack.c.l.s4 1966171168
      %v2006 = vunpack.c.0.s8 %v2005
      %v2007 = vlaneseq
      %v2008 = vshrl.u32 %v2007, 7
      %v2009 = vsub.s32 %v2006, %v2008
      %v2010 = vrot.slane %v2002, %v2009
      %v2012 = vunpack.c.l.s4 1966171168
      %v2013 = vunpack.c.0.s8 %v2012
      %v2014 = vlaneseq
      %v2015 = vshrl.u32 %v2014, 7
      %v2016 = vsub.s32 %v2013, %v2015
      %v2017 = vrot.slane %v2003, %v2016
      %v2018 = vcombine.low %v2010, %v2017
      %v2019 = vcombine.low %v1414, %v1415
      %v2020 = vcombine.low %v1416, %v1417
      %v2021 = vcombine.low %v1418, %v1419
      %v2022 = vcombine.low %v1420, %v1421
      %v2024 = vunpack.c.l.s4 1966171168
      %v2025 = vunpack.c.0.s8 %v2024
      %v2026 = vlaneseq
      %v2027 = vshrl.u32 %v2026, 7
      %v2028 = vsub.s32 %v2025, %v2027
      %v2029 = vrot.slane %v2019, %v2028
      %v2031 = vunpack.c.l.s4 1966171168
      %v2032 = vunpack.c.0.s8 %v2031
      %v2033 = vlaneseq
      %v2034 = vshrl.u32 %v2033, 7
      %v2035 = vsub.s32 %v2032, %v2034
      %v2036 = vrot.slane %v2020, %v2035
      %v2038 = vunpack.c.l.s4 1966171168
      %v2039 = vunpack.c.0.s8 %v2038
      %v2040 = vlaneseq
      %v2041 = vshrl.u32 %v2040, 7
      %v2042 = vsub.s32 %v2039, %v2041
      %v2043 = vrot.slane %v2021, %v2042
      %v2045 = vunpack.c.l.s4 1966171168
      %v2046 = vunpack.c.0.s8 %v2045
      %v2047 = vlaneseq
      %v2048 = vshrl.u32 %v2047, 7
      %v2049 = vsub.s32 %v2046, %v2048
      %v2050 = vrot.slane %v2022, %v2049
      %v2051 = vcombine.low %v2029, %v2036
      %v2052 = vcombine.low %v2043, %v2050
      %v2054 = vunpack.c.l.s4 1966171168
      %v2055 = vunpack.c.0.s8 %v2054
      %v2056 = vlaneseq
      %v2057 = vshrl.u32 %v2056, 7
      %v2058 = vsub.s32 %v2055, %v2057
      %v2059 = vrot.slane %v2051, %v2058
      %v2061 = vunpack.c.l.s4 1966171168
      %v2062 = vunpack.c.0.s8 %v2061
      %v2063 = vlaneseq
      %v2064 = vshrl.u32 %v2063, 7
      %v2065 = vsub.s32 %v2062, %v2064
      %v2066 = vrot.slane %v2052, %v2065
      %v2067 = vcombine.low %v2059, %v2066
      %v2068 = vcombine.low %v1422, %v1423
      %v2069 = vcombine.low %v1424, %v1425
      %v2070 = vcombine.low %v1426, %v1427
      %v2071 = vcombine.low %v1428, %v1429
      %v2073 = vunpack.c.l.s4 1966171168
      %v2074 = vunpack.c.0.s8 %v2073
      %v2075 = vlaneseq
      %v2076 = vshrl.u32 %v2075, 7
      %v2077 = vsub.s32 %v2074, %v2076
      %v2078 = vrot.slane %v2068, %v2077
      %v2080 = vunpack.c.l.s4 1966171168
      %v2081 = vunpack.c.0.s8 %v2080
      %v2082 = vlaneseq
      %v2083 = vshrl.u32 %v2082, 7
      %v2084 = vsub.s32 %v2081, %v2083
      %v2085 = vrot.slane %v2069, %v2084
      %v2087 = vunpack.c.l.s4 1966171168
      %v2088 = vunpack.c.0.s8 %v2087
      %v2089 = vlaneseq
      %v2090 = vshrl.u32 %v2089, 7
      %v2091 = vsub.s32 %v2088, %v2090
      %v2092 = vrot.slane %v2070, %v2091
      %v2094 = vunpack.c.l.s4 1966171168
      %v2095 = vunpack.c.0.s8 %v2094
      %v2096 = vlaneseq
      %v2097 = vshrl.u32 %v2096, 7
      %v2098 = vsub.s32 %v2095, %v2097
      %v2099 = vrot.slane %v2071, %v2098
      %v2100 = vcombine.low %v2078, %v2085
      %v2101 = vcombine.low %v2092, %v2099
      %v2103 = vunpack.c.l.s4 1966171168
      %v2104 = vunpack.c.0.s8 %v2103
      %v2105 = vlaneseq
      %v2106 = vshrl.u32 %v2105, 7
      %v2107 = vsub.s32 %v2104, %v2106
      %v2108 = vrot.slane %v2100, %v2107
      %v2110 = vunpack.c.l.s4 1966171168
      %v2111 = vunpack.c.0.s8 %v2110
      %v2112 = vlaneseq
      %v2113 = vshrl.u32 %v2112, 7
      %v2114 = vsub.s32 %v2111, %v2113
      %v2115 = vrot.slane %v2101, %v2114
      %v2116 = vcombine.low %v2108, %v2115
      %v2118 = vunpack.c.l.s4 1966171168
      %v2119 = vunpack.c.0.s8 %v2118
      %v2120 = vlaneseq
      %v2121 = vshrl.u32 %v2120, 7
      %v2122 = vsub.s32 %v2119, %v2121
      %v2123 = vrot.slane %v1315, %v2122
      %v2125 = vunpack.c.l.s4 1966171168
      %v2126 = vunpack.c.0.s8 %v2125
      %v2127 = vlaneseq
      %v2128 = vshrl.u32 %v2127, 7
      %v2129 = vsub.s32 %v2126, %v2128
      %v2130 = vrot.slane %v2123, %v2129
      %vm2131 = vcmask 23552
      %v2133 = vsel %vm2131, %v1479, 0
      %v2136 = vsel %vm2131, %v1528, 0
      %v2139 = vsel %vm2131, %v1577, 0
      %v2142 = vsel %vm2131, %v1626, 0
      %v2145 = vsel %vm2131, %v1675, 0
      %v2148 = vsel %vm2131, %v1724, 0
      %v2151 = vsel %vm2131, %v1773, 0
      %v2154 = vsel %vm2131, %v1822, 0
      %v2157 = vsel %vm2131, %v1871, 0
      %v2160 = vsel %vm2131, %v1920, 0
      %v2163 = vsel %vm2131, %v1969, 0
      %v2166 = vsel %vm2131, %v2018, 0
      %v2169 = vsel %vm2131, %v2067, 0
      %v2172 = vsel %vm2131, %v2116, 0
      %v2175 = vsel %vm2131, %v2130, 0
      %vm2177 = vcmask 1040384
      %vm2178 = vcmask 1041408
      %v2179 = vsel %vm2177, 4294967295, 65535
      %v2180 = vsel %vm2178, %v2179, 0
      %v2182 = vand.u32 %v1317, %v2180
      %2184 = vmatprep.subr.bf16.mxu0 0
      %2185 = vmatpush1.bf16.msra.mxu0 %v2182
      %2186 = vmatprep.subr.bf16.mxu0 0
      %2187 = vmatpush1.bf16.msra.mxu0 0
      %2188 = vmatprep.subr.bf16.mxu0 0
      %2189 = vmatpush1.bf16.msra.mxu0 0
      %2190 = vmatprep.subr.bf16.mxu0 0
      %2191 = vmatpush1.bf16.msra.mxu0 0
      %2192 = vmatprep.subr.bf16.mxu0 0
      %2193 = vmatpush1.bf16.msra.mxu0 0
      %2194 = vmatprep.subr.bf16.mxu0 0
      %2195 = vmatpush1.bf16.msra.mxu0 0
      %2196 = vmatprep.subr.bf16.mxu0 0
      %2197 = vmatpush1.bf16.msra.mxu0 0
      %2198 = vmatprep.subr.bf16.mxu0 0
      %2199 = vmatpush1.bf16.msra.mxu0 0
      %2200 = vmatprep.subr.bf16.mxu0 0
      %2201 = vmatpush1.bf16.msra.mxu0 0
      %2202 = vmatprep.subr.bf16.mxu0 0
      %2203 = vmatpush1.bf16.msra.mxu0 0
      %2204 = vmatprep.subr.bf16.mxu0 0
      %2205 = vmatpush1.bf16.msra.mxu0 0
      %2206 = vmatprep.subr.bf16.mxu0 0
      %2207 = vmatpush1.bf16.msra.mxu0 0
      %2208 = vmatprep.subr.bf16.mxu0 0
      %2209 = vmatpush1.bf16.msra.mxu0 0
      %2210 = vmatprep.subr.bf16.mxu0 0
      %2211 = vmatpush1.bf16.msra.mxu0 0
      %2212 = vmatprep.subr.bf16.mxu0 0
      %2213 = vmatpush1.bf16.msra.mxu0 0
      %2214 = vmatprep.subr.bf16.mxu0 0
      %2215 = vmatpush1.bf16.msra.mxu0 0
      %2216 = vmatprep.mubr.bf16.mxu0 0
      %2217 = vmatmul.mubr.bf16.gmra.mrb[0].mxu0 %v2133
      %v2218 = vpop.f32.mrb[0].mxu0
      %v2219 = vadd.f32 0.0, %v2218
      %v2220 = vpop.f32.mrb[0].mxu0
      %v2221 = vpop.f32.mrb[0].mxu0
      %v2222 = vadd.f32 0.0, %v2221
      %v2223 = vpop.f32.mrb[0].mxu0
      %2224 = vmatprep.mubr.bf16.mxu0 0
      %2225 = vmatmul.mubr.bf16.gmra.mrb[0].mxu0 %v2136
      %v2226 = vpop.f32.mrb[0].mxu0
      %v2227 = vadd.f32 0.0, %v2226
      %v2228 = vpop.f32.mrb[0].mxu0
      %v2229 = vpop.f32.mrb[0].mxu0
      %v2230 = vadd.f32 0.0, %v2229
      %v2231 = vpop.f32.mrb[0].mxu0
      %2232 = vmatprep.mubr.bf16.mxu0 0
      %2233 = vmatmul.mubr.bf16.gmra.mrb[0].mxu0 %v2139
      %v2234 = vpop.f32.mrb[0].mxu0
      %v2235 = vadd.f32 0.0, %v2234
      %v2236 = vpop.f32.mrb[0].mxu0
      %v2237 = vpop.f32.mrb[0].mxu0
      %v2238 = vadd.f32 0.0, %v2237
      %v2239 = vpop.f32.mrb[0].mxu0
      %2240 = vmatprep.mubr.bf16.mxu0 0
      %2241 = vmatmul.mubr.bf16.gmra.mrb[0].mxu0 %v2142
      %v2242 = vpop.f32.mrb[0].mxu0
      %v2243 = vadd.f32 0.0, %v2242
      %v2244 = vpop.f32.mrb[0].mxu0
      %v2245 = vpop.f32.mrb[0].mxu0
      %v2246 = vadd.f32 0.0, %v2245
      %v2247 = vpop.f32.mrb[0].mxu0
      %2248 = vmatprep.mubr.bf16.mxu0 0
      %2249 = vmatmul.mubr.bf16.gmra.mrb[0].mxu0 %v2145
      %v2250 = vpop.f32.mrb[0].mxu0
      %v2251 = vadd.f32 0.0, %v2250
      %v2252 = vpop.f32.mrb[0].mxu0
      %v2253 = vpop.f32.mrb[0].mxu0
      %v2254 = vadd.f32 0.0, %v2253
      %v2255 = vpop.f32.mrb[0].mxu0
      %2256 = vmatprep.mubr.bf16.mxu0 0
      %2257 = vmatmul.mubr.bf16.gmra.mrb[0].mxu0 %v2148
      %v2258 = vpop.f32.mrb[0].mxu0
      %v2259 = vadd.f32 0.0, %v2258
      %v2260 = vpop.f32.mrb[0].mxu0
      %v2261 = vpop.f32.mrb[0].mxu0
      %v2262 = vadd.f32 0.0, %v2261
      %v2263 = vpop.f32.mrb[0].mxu0
      %2264 = vmatprep.mubr.bf16.mxu0 0
      %2265 = vmatmul.mubr.bf16.gmra.mrb[0].mxu0 %v2151
      %v2266 = vpop.f32.mrb[0].mxu0
      %v2267 = vadd.f32 0.0, %v2266
      %v2268 = vpop.f32.mrb[0].mxu0
      %v2269 = vpop.f32.mrb[0].mxu0
      %v2270 = vadd.f32 0.0, %v2269
      %v2271 = vpop.f32.mrb[0].mxu0
      %2272 = vmatprep.mubr.bf16.mxu0 0
      %2273 = vmatmul.mubr.bf16.gmra.mrb[0].mxu0 %v2154
      %v2274 = vpop.f32.mrb[0].mxu0
      %v2275 = vadd.f32 0.0, %v2274
      %v2276 = vpop.f32.mrb[0].mxu0
      %v2277 = vpop.f32.mrb[0].mxu0
      %v2278 = vadd.f32 0.0, %v2277
      %v2279 = vpop.f32.mrb[0].mxu0
      %2280 = vmatprep.mubr.bf16.mxu0 0
      %2281 = vmatmul.mubr.bf16.gmra.mrb[0].mxu0 %v2157
      %v2282 = vpop.f32.mrb[0].mxu0
      %v2283 = vadd.f32 0.0, %v2282
      %v2284 = vpop.f32.mrb[0].mxu0
      %v2285 = vpop.f32.mrb[0].mxu0
      %v2286 = vadd.f32 0.0, %v2285
      %v2287 = vpop.f32.mrb[0].mxu0
      %2288 = vmatprep.mubr.bf16.mxu0 0
      %2289 = vmatmul.mubr.bf16.gmra.mrb[0].mxu0 %v2160
      %v2290 = vpop.f32.mrb[0].mxu0
      %v2291 = vadd.f32 0.0, %v2290
      %v2292 = vpop.f32.mrb[0].mxu0
      %v2293 = vpop.f32.mrb[0].mxu0
      %v2294 = vadd.f32 0.0, %v2293
      %v2295 = vpop.f32.mrb[0].mxu0
      %2296 = vmatprep.mubr.bf16.mxu0 0
      %2297 = vmatmul.mubr.bf16.gmra.mrb[0].mxu0 %v2163
      %v2298 = vpop.f32.mrb[0].mxu0
      %v2299 = vadd.f32 0.0, %v2298
      %v2300 = vpop.f32.mrb[0].mxu0
      %v2301 = vpop.f32.mrb[0].mxu0
      %v2302 = vadd.f32 0.0, %v2301
      %v2303 = vpop.f32.mrb[0].mxu0
      %2304 = vmatprep.mubr.bf16.mxu0 0
      %2305 = vmatmul.mubr.bf16.gmra.mrb[0].mxu0 %v2166
      %v2306 = vpop.f32.mrb[0].mxu0
      %v2307 = vadd.f32 0.0, %v2306
      %v2308 = vpop.f32.mrb[0].mxu0
      %v2309 = vpop.f32.mrb[0].mxu0
      %v2310 = vadd.f32 0.0, %v2309
      %v2311 = vpop.f32.mrb[0].mxu0
      %2312 = vmatprep.mubr.bf16.mxu0 0
      %2313 = vmatmul.mubr.bf16.gmra.mrb[0].mxu0 %v2169
      %v2314 = vpop.f32.mrb[0].mxu0
      %v2315 = vadd.f32 0.0, %v2314
      %v2316 = vpop.f32.mrb[0].mxu0
      %v2317 = vpop.f32.mrb[0].mxu0
      %v2318 = vadd.f32 0.0, %v2317
      %v2319 = vpop.f32.mrb[0].mxu0
      %2320 = vmatprep.mubr.bf16.mxu0 0
      %2321 = vmatmul.mubr.bf16.gmra.mrb[0].mxu0 %v2172
      %v2322 = vpop.f32.mrb[0].mxu0
      %v2323 = vadd.f32 0.0, %v2322
      %v2324 = vpop.f32.mrb[0].mxu0
      %v2325 = vpop.f32.mrb[0].mxu0
      %v2326 = vadd.f32 0.0, %v2325
      %v2327 = vpop.f32.mrb[0].mxu0
      %2328 = vmatprep.mubr.bf16.mxu0 0
      %2329 = vmatmul.mubr.bf16.gmra.mrb[0].mxu0 %v2175
      %v2330 = vpop.f32.mrb[0].mxu0
      %v2331 = vadd.f32 0.0, %v2330
      %v2332 = vpop.f32.mrb[0].mxu0
      %v2333 = vpop.f32.mrb[0].mxu0
      %v2334 = vpop.f32.mrb[0].mxu0
      %2335 = vdwg.mxu0
      %v2336 = vpack.i.b16 %v1076, %v1075
      %v2337 = vpack.i.b16 %v1078, %v1077
      %v2338 = vpack.i.b16 %v1080, %v1079
      %v2339 = vpack.i.b16 %v1082, %v1081
      %v2340 = vpack.i.b16 %v1084, %v1083
      %v2341 = vpack.i.b16 %v1086, %v1085
      %v2342 = vpack.i.b16 %v1088, %v1087
      %v2343 = vpack.i.b16 %v1090, %v1089
      %v2344 = vpack.i.b16 %v1092, %v1091
      %v2345 = vpack.i.b16 %v1094, %v1093
      %v2346 = vpack.i.b16 %v1096, %v1095
      %v2347 = vpack.i.b16 %v1098, %v1097
      %v2348 = vpack.i.b16 %v1100, %v1099
      %v2349 = vpack.i.b16 %v1102, %v1101
      %v2350 = vpack.i.b16 %v1104, %v1103
      %v2351 = vpack.i.b16 %v1106, %v1105
      %v2352 = vpack.i.b16 %v1108, %v1107
      %v2353 = vpack.i.b16 %v1110, %v1109
      %v2354 = vpack.i.b16 %v1112, %v1111
      %v2355 = vpack.i.b16 %v1114, %v1113
      %v2356 = vpack.i.b16 %v1116, %v1115
      %v2357 = vpack.i.b16 %v1118, %v1117
      %v2358 = vpack.i.b16 %v1120, %v1119
      %v2359 = vpack.i.b16 %v1122, %v1121
      %v2360 = vpack.i.b16 %v1124, %v1123
      %v2361 = vpack.i.b16 %v1126, %v1125
      %v2362 = vpack.i.b16 %v1128, %v1127
      %v2363 = vpack.i.b16 %v1130, %v1129
      %v2364 = vpack.i.b16 %v1132, %v1131
      %v2365 = vpack.i.b16 %v1134, %v1133
      %v2366 = vpack.i.b16 %v1136, %v1135
      %v2367 = vpack.i.b16 %v1138, %v1137
      %v2368 = vpack.i.b16 %v1140, %v1139
      %v2369 = vpack.i.b16 %v1142, %v1141
      %v2370 = vpack.i.b16 %v1144, %v1143
      %v2371 = vpack.i.b16 %v1146, %v1145
      %v2372 = vpack.i.b16 %v1148, %v1147
      %v2373 = vpack.i.b16 %v1150, %v1149
      %v2374 = vpack.i.b16 %v1152, %v1151
      %v2375 = vpack.i.b16 %v1154, %v1153
      %v2376 = vpack.i.b16 %v1156, %v1155
      %v2377 = vpack.i.b16 %v1158, %v1157
      %v2378 = vpack.i.b16 %v1160, %v1159
      %v2379 = vpack.i.b16 %v1162, %v1161
      %v2380 = vpack.i.b16 %v1164, %v1163
      %v2381 = vpack.i.b16 %v1166, %v1165
      %v2382 = vpack.i.b16 %v1168, %v1167
      %v2383 = vpack.i.b16 %v1170, %v1169
      %v2384 = vpack.i.b16 %v1172, %v1171
      %v2385 = vpack.i.b16 %v1174, %v1173
      %v2386 = vpack.i.b16 %v1176, %v1175
      %v2387 = vpack.i.b16 %v1178, %v1177
      %v2388 = vpack.i.b16 %v1180, %v1179
      %v2389 = vpack.i.b16 %v1182, %v1181
      %v2390 = vpack.i.b16 %v1184, %v1183
      %v2391 = vpack.i.b16 %v1186, %v1185
      %v2392 = vpack.i.b16 %v1188, %v1187
      %v2393 = vpack.i.b16 %v1190, %v1189
      %v2394 = vpack.i.b16 %v1192, %v1191
      %v2395 = vpack.i.b16 %v1194, %v1193
      %v2396 = vpack.i.b16 %v1196, %v1195
      %v2397 = vpack.i.b16 %v1198, %v1197
      %v2398 = vpack.i.b16 %v1200, %v1199
      %v2399 = vpack.i.b16 %v1202, %v1201
      %v2400 = vpack.i.b16 %v1204, %v1203
      %v2401 = vpack.i.b16 %v1206, %v1205
      %v2402 = vpack.i.b16 %v1208, %v1207
      %v2403 = vpack.i.b16 %v1210, %v1209
      %v2404 = vpack.i.b16 %v1212, %v1211
      %v2405 = vpack.i.b16 %v1214, %v1213
      %v2406 = vpack.i.b16 %v1216, %v1215
      %v2407 = vpack.i.b16 %v1218, %v1217
      %v2408 = vpack.i.b16 %v1220, %v1219
      %v2409 = vpack.i.b16 %v1222, %v1221
      %v2410 = vpack.i.b16 %v1224, %v1223
      %v2411 = vpack.i.b16 %v1226, %v1225
      %v2412 = vpack.i.b16 %v1228, %v1227
      %v2413 = vpack.i.b16 %v1230, %v1229
      %v2414 = vpack.i.b16 %v1232, %v1231
      %v2415 = vpack.i.b16 %v1234, %v1233
      %v2416 = vpack.i.b16 %v1236, %v1235
      %v2417 = vpack.i.b16 %v1238, %v1237
      %v2418 = vpack.i.b16 %v1240, %v1239
      %v2419 = vpack.i.b16 %v1242, %v1241
      %v2420 = vpack.i.b16 %v1244, %v1243
      %v2421 = vpack.i.b16 %v1246, %v1245
      %v2422 = vpack.i.b16 %v1248, %v1247
      %v2423 = vpack.i.b16 %v1250, %v1249
      %v2424 = vpack.i.b16 %v1252, %v1251
      %v2425 = vpack.i.b16 %v1254, %v1253
      %v2426 = vpack.i.b16 %v1256, %v1255
      %v2427 = vpack.i.b16 %v1258, %v1257
      %v2428 = vpack.i.b16 %v1260, %v1259
      %v2429 = vpack.i.b16 %v1262, %v1261
      %v2430 = vpack.i.b16 %v1264, %v1263
      %v2431 = vpack.i.b16 %v1266, %v1265
      %v2432 = vpack.i.b16 %v1268, %v1267
      %v2433 = vpack.i.b16 %v1270, %v1269
      %v2434 = vpack.i.b16 %v1272, %v1271
      %v2435 = vpack.i.b16 %v1274, %v1273
      %v2436 = vpack.i.b16 %v1276, %v1275
      %v2437 = vpack.i.b16 %v1278, %v1277
      %v2438 = vpack.i.b16 %v1280, %v1279
      %v2439 = vpack.i.b16 %v1282, %v1281
      %v2440 = vpack.i.b16 %v1284, %v1283
      %v2441 = vpack.i.b16 %v1286, %v1285
      %v2442 = vpack.i.b16 %v1288, %v1287
      %v2443 = vpack.i.b16 %v1290, %v1289
      %v2444 = vpack.i.b16 %v1292, %v1291
      %v2445 = vpack.i.b16 %v1294, %v1293
      %v2446 = vpack.i.b16 %v1296, %v1295
      %v2447 = vpack.i.b16 %v1298, %v1297
      %v2449 = vcombine.low %v2336, %v2337
      %v2450 = vcombine.low %v2338, %v2339
      %v2451 = vcombine.low %v2340, %v2341
      %v2452 = vcombine.low %v2342, %v2343
      %v2454 = vunpack.c.l.s4 1966171168
      %v2455 = vunpack.c.0.s8 %v2454
      %v2456 = vlaneseq
      %v2457 = vshrl.u32 %v2456, 7
      %v2458 = vsub.s32 %v2455, %v2457
      %v2459 = vrot.slane %v2449, %v2458
      %v2461 = vunpack.c.l.s4 1966171168
      %v2462 = vunpack.c.0.s8 %v2461
      %v2463 = vlaneseq
      %v2464 = vshrl.u32 %v2463, 7
      %v2465 = vsub.s32 %v2462, %v2464
      %v2466 = vrot.slane %v2450, %v2465
      %v2468 = vunpack.c.l.s4 1966171168
      %v2469 = vunpack.c.0.s8 %v2468
      %v2470 = vlaneseq
      %v2471 = vshrl.u32 %v2470, 7
      %v2472 = vsub.s32 %v2469, %v2471
      %v2473 = vrot.slane %v2451, %v2472
      %v2475 = vunpack.c.l.s4 1966171168
      %v2476 = vunpack.c.0.s8 %v2475
      %v2477 = vlaneseq
      %v2478 = vshrl.u32 %v2477, 7
      %v2479 = vsub.s32 %v2476, %v2478
      %v2480 = vrot.slane %v2452, %v2479
      %v2481 = vcombine.low %v2459, %v2466
      %v2482 = vcombine.low %v2473, %v2480
      %v2484 = vunpack.c.l.s4 1966171168
      %v2485 = vunpack.c.0.s8 %v2484
      %v2486 = vlaneseq
      %v2487 = vshrl.u32 %v2486, 7
      %v2488 = vsub.s32 %v2485, %v2487
      %v2489 = vrot.slane %v2481, %v2488
      %v2491 = vunpack.c.l.s4 1966171168
      %v2492 = vunpack.c.0.s8 %v2491
      %v2493 = vlaneseq
      %v2494 = vshrl.u32 %v2493, 7
      %v2495 = vsub.s32 %v2492, %v2494
      %v2496 = vrot.slane %v2482, %v2495
      %v2497 = vcombine.low %v2489, %v2496
      %v2498 = vcombine.low %v2344, %v2345
      %v2499 = vcombine.low %v2346, %v2347
      %v2500 = vcombine.low %v2348, %v2349
      %v2501 = vcombine.low %v2350, %v2351
      %v2503 = vunpack.c.l.s4 1966171168
      %v2504 = vunpack.c.0.s8 %v2503
      %v2505 = vlaneseq
      %v2506 = vshrl.u32 %v2505, 7
      %v2507 = vsub.s32 %v2504, %v2506
      %v2508 = vrot.slane %v2498, %v2507
      %v2510 = vunpack.c.l.s4 1966171168
      %v2511 = vunpack.c.0.s8 %v2510
      %v2512 = vlaneseq
      %v2513 = vshrl.u32 %v2512, 7
      %v2514 = vsub.s32 %v2511, %v2513
      %v2515 = vrot.slane %v2499, %v2514
      %v2517 = vunpack.c.l.s4 1966171168
      %v2518 = vunpack.c.0.s8 %v2517
      %v2519 = vlaneseq
      %v2520 = vshrl.u32 %v2519, 7
      %v2521 = vsub.s32 %v2518, %v2520
      %v2522 = vrot.slane %v2500, %v2521
      %v2524 = vunpack.c.l.s4 1966171168
      %v2525 = vunpack.c.0.s8 %v2524
      %v2526 = vlaneseq
      %v2527 = vshrl.u32 %v2526, 7
      %v2528 = vsub.s32 %v2525, %v2527
      %v2529 = vrot.slane %v2501, %v2528
      %v2530 = vcombine.low %v2508, %v2515
      %v2531 = vcombine.low %v2522, %v2529
      %v2533 = vunpack.c.l.s4 1966171168
      %v2534 = vunpack.c.0.s8 %v2533
      %v2535 = vlaneseq
      %v2536 = vshrl.u32 %v2535, 7
      %v2537 = vsub.s32 %v2534, %v2536
      %v2538 = vrot.slane %v2530, %v2537
      %v2540 = vunpack.c.l.s4 1966171168
      %v2541 = vunpack.c.0.s8 %v2540
      %v2542 = vlaneseq
      %v2543 = vshrl.u32 %v2542, 7
      %v2544 = vsub.s32 %v2541, %v2543
      %v2545 = vrot.slane %v2531, %v2544
      %v2546 = vcombine.low %v2538, %v2545
      %v2547 = vcombine.low %v2352, %v2353
      %v2548 = vcombine.low %v2354, %v2355
      %v2549 = vcombine.low %v2356, %v2357
      %v2550 = vcombine.low %v2358, %v2359
      %v2552 = vunpack.c.l.s4 1966171168
      %v2553 = vunpack.c.0.s8 %v2552
      %v2554 = vlaneseq
      %v2555 = vshrl.u32 %v2554, 7
      %v2556 = vsub.s32 %v2553, %v2555
      %v2557 = vrot.slane %v2547, %v2556
      %v2559 = vunpack.c.l.s4 1966171168
      %v2560 = vunpack.c.0.s8 %v2559
      %v2561 = vlaneseq
      %v2562 = vshrl.u32 %v2561, 7
      %v2563 = vsub.s32 %v2560, %v2562
      %v2564 = vrot.slane %v2548, %v2563
      %v2566 = vunpack.c.l.s4 1966171168
      %v2567 = vunpack.c.0.s8 %v2566
      %v2568 = vlaneseq
      %v2569 = vshrl.u32 %v2568, 7
      %v2570 = vsub.s32 %v2567, %v2569
      %v2571 = vrot.slane %v2549, %v2570
      %v2573 = vunpack.c.l.s4 1966171168
      %v2574 = vunpack.c.0.s8 %v2573
      %v2575 = vlaneseq
      %v2576 = vshrl.u32 %v2575, 7
      %v2577 = vsub.s32 %v2574, %v2576
      %v2578 = vrot.slane %v2550, %v2577
      %v2579 = vcombine.low %v2557, %v2564
      %v2580 = vcombine.low %v2571, %v2578
      %v2582 = vunpack.c.l.s4 1966171168
      %v2583 = vunpack.c.0.s8 %v2582
      %v2584 = vlaneseq
      %v2585 = vshrl.u32 %v2584, 7
      %v2586 = vsub.s32 %v2583, %v2585
      %v2587 = vrot.slane %v2579, %v2586
      %v2589 = vunpack.c.l.s4 1966171168
      %v2590 = vunpack.c.0.s8 %v2589
      %v2591 = vlaneseq
      %v2592 = vshrl.u32 %v2591, 7
      %v2593 = vsub.s32 %v2590, %v2592
      %v2594 = vrot.slane %v2580, %v2593
      %v2595 = vcombine.low %v2587, %v2594
      %v2596 = vcombine.low %v2360, %v2361
      %v2597 = vcombine.low %v2362, %v2363
      %v2598 = vcombine.low %v2364, %v2365
      %v2599 = vcombine.low %v2366, %v2367
      %v2601 = vunpack.c.l.s4 1966171168
      %v2602 = vunpack.c.0.s8 %v2601
      %v2603 = vlaneseq
      %v2604 = vshrl.u32 %v2603, 7
      %v2605 = vsub.s32 %v2602, %v2604
      %v2606 = vrot.slane %v2596, %v2605
      %v2608 = vunpack.c.l.s4 1966171168
      %v2609 = vunpack.c.0.s8 %v2608
      %v2610 = vlaneseq
      %v2611 = vshrl.u32 %v2610, 7
      %v2612 = vsub.s32 %v2609, %v2611
      %v2613 = vrot.slane %v2597, %v2612
      %v2615 = vunpack.c.l.s4 1966171168
      %v2616 = vunpack.c.0.s8 %v2615
      %v2617 = vlaneseq
      %v2618 = vshrl.u32 %v2617, 7
      %v2619 = vsub.s32 %v2616, %v2618
      %v2620 = vrot.slane %v2598, %v2619
      %v2622 = vunpack.c.l.s4 1966171168
      %v2623 = vunpack.c.0.s8 %v2622
      %v2624 = vlaneseq
      %v2625 = vshrl.u32 %v2624, 7
      %v2626 = vsub.s32 %v2623, %v2625
      %v2627 = vrot.slane %v2599, %v2626
      %v2628 = vcombine.low %v2606, %v2613
      %v2629 = vcombine.low %v2620, %v2627
      %v2631 = vunpack.c.l.s4 1966171168
      %v2632 = vunpack.c.0.s8 %v2631
      %v2633 = vlaneseq
      %v2634 = vshrl.u32 %v2633, 7
      %v2635 = vsub.s32 %v2632, %v2634
      %v2636 = vrot.slane %v2628, %v2635
      %v2638 = vunpack.c.l.s4 1966171168
      %v2639 = vunpack.c.0.s8 %v2638
      %v2640 = vlaneseq
      %v2641 = vshrl.u32 %v2640, 7
      %v2642 = vsub.s32 %v2639, %v2641
      %v2643 = vrot.slane %v2629, %v2642
      %v2644 = vcombine.low %v2636, %v2643
      %v2645 = vcombine.low %v2368, %v2369
      %v2646 = vcombine.low %v2370, %v2371
      %v2647 = vcombine.low %v2372, %v2373
      %v2648 = vcombine.low %v2374, %v2375
      %v2650 = vunpack.c.l.s4 1966171168
      %v2651 = vunpack.c.0.s8 %v2650
      %v2652 = vlaneseq
      %v2653 = vshrl.u32 %v2652, 7
      %v2654 = vsub.s32 %v2651, %v2653
      %v2655 = vrot.slane %v2645, %v2654
      %v2657 = vunpack.c.l.s4 1966171168
      %v2658 = vunpack.c.0.s8 %v2657
      %v2659 = vlaneseq
      %v2660 = vshrl.u32 %v2659, 7
      %v2661 = vsub.s32 %v2658, %v2660
      %v2662 = vrot.slane %v2646, %v2661
      %v2664 = vunpack.c.l.s4 1966171168
      %v2665 = vunpack.c.0.s8 %v2664
      %v2666 = vlaneseq
      %v2667 = vshrl.u32 %v2666, 7
      %v2668 = vsub.s32 %v2665, %v2667
      %v2669 = vrot.slane %v2647, %v2668
      %v2671 = vunpack.c.l.s4 1966171168
      %v2672 = vunpack.c.0.s8 %v2671
      %v2673 = vlaneseq
      %v2674 = vshrl.u32 %v2673, 7
      %v2675 = vsub.s32 %v2672, %v2674
      %v2676 = vrot.slane %v2648, %v2675
      %v2677 = vcombine.low %v2655, %v2662
      %v2678 = vcombine.low %v2669, %v2676
      %v2680 = vunpack.c.l.s4 1966171168
      %v2681 = vunpack.c.0.s8 %v2680
      %v2682 = vlaneseq
      %v2683 = vshrl.u32 %v2682, 7
      %v2684 = vsub.s32 %v2681, %v2683
      %v2685 = vrot.slane %v2677, %v2684
      %v2687 = vunpack.c.l.s4 1966171168
      %v2688 = vunpack.c.0.s8 %v2687
      %v2689 = vlaneseq
      %v2690 = vshrl.u32 %v2689, 7
      %v2691 = vsub.s32 %v2688, %v2690
      %v2692 = vrot.slane %v2678, %v2691
      %v2693 = vcombine.low %v2685, %v2692
      %v2694 = vcombine.low %v2376, %v2377
      %v2695 = vcombine.low %v2378, %v2379
      %v2696 = vcombine.low %v2380, %v2381
      %v2697 = vcombine.low %v2382, %v2383
      %v2699 = vunpack.c.l.s4 1966171168
      %v2700 = vunpack.c.0.s8 %v2699
      %v2701 = vlaneseq
      %v2702 = vshrl.u32 %v2701, 7
      %v2703 = vsub.s32 %v2700, %v2702
      %v2704 = vrot.slane %v2694, %v2703
      %v2706 = vunpack.c.l.s4 1966171168
      %v2707 = vunpack.c.0.s8 %v2706
      %v2708 = vlaneseq
      %v2709 = vshrl.u32 %v2708, 7
      %v2710 = vsub.s32 %v2707, %v2709
      %v2711 = vrot.slane %v2695, %v2710
      %v2713 = vunpack.c.l.s4 1966171168
      %v2714 = vunpack.c.0.s8 %v2713
      %v2715 = vlaneseq
      %v2716 = vshrl.u32 %v2715, 7
      %v2717 = vsub.s32 %v2714, %v2716
      %v2718 = vrot.slane %v2696, %v2717
      %v2720 = vunpack.c.l.s4 1966171168
      %v2721 = vunpack.c.0.s8 %v2720
      %v2722 = vlaneseq
      %v2723 = vshrl.u32 %v2722, 7
      %v2724 = vsub.s32 %v2721, %v2723
      %v2725 = vrot.slane %v2697, %v2724
      %v2726 = vcombine.low %v2704, %v2711
      %v2727 = vcombine.low %v2718, %v2725
      %v2729 = vunpack.c.l.s4 1966171168
      %v2730 = vunpack.c.0.s8 %v2729
      %v2731 = vlaneseq
      %v2732 = vshrl.u32 %v2731, 7
      %v2733 = vsub.s32 %v2730, %v2732
      %v2734 = vrot.slane %v2726, %v2733
      %v2736 = vunpack.c.l.s4 1966171168
      %v2737 = vunpack.c.0.s8 %v2736
      %v2738 = vlaneseq
      %v2739 = vshrl.u32 %v2738, 7
      %v2740 = vsub.s32 %v2737, %v2739
      %v2741 = vrot.slane %v2727, %v2740
      %v2742 = vcombine.low %v2734, %v2741
      %v2743 = vcombine.low %v2384, %v2385
      %v2744 = vcombine.low %v2386, %v2387
      %v2745 = vcombine.low %v2388, %v2389
      %v2746 = vcombine.low %v2390, %v2391
      %v2748 = vunpack.c.l.s4 1966171168
      %v2749 = vunpack.c.0.s8 %v2748
      %v2750 = vlaneseq
      %v2751 = vshrl.u32 %v2750, 7
      %v2752 = vsub.s32 %v2749, %v2751
      %v2753 = vrot.slane %v2743, %v2752
      %v2755 = vunpack.c.l.s4 1966171168
      %v2756 = vunpack.c.0.s8 %v2755
      %v2757 = vlaneseq
      %v2758 = vshrl.u32 %v2757, 7
      %v2759 = vsub.s32 %v2756, %v2758
      %v2760 = vrot.slane %v2744, %v2759
      %v2762 = vunpack.c.l.s4 1966171168
      %v2763 = vunpack.c.0.s8 %v2762
      %v2764 = vlaneseq
      %v2765 = vshrl.u32 %v2764, 7
      %v2766 = vsub.s32 %v2763, %v2765
      %v2767 = vrot.slane %v2745, %v2766
      %v2769 = vunpack.c.l.s4 1966171168
      %v2770 = vunpack.c.0.s8 %v2769
      %v2771 = vlaneseq
      %v2772 = vshrl.u32 %v2771, 7
      %v2773 = vsub.s32 %v2770, %v2772
      %v2774 = vrot.slane %v2746, %v2773
      %v2775 = vcombine.low %v2753, %v2760
      %v2776 = vcombine.low %v2767, %v2774
      %v2778 = vunpack.c.l.s4 1966171168
      %v2779 = vunpack.c.0.s8 %v2778
      %v2780 = vlaneseq
      %v2781 = vshrl.u32 %v2780, 7
      %v2782 = vsub.s32 %v2779, %v2781
      %v2783 = vrot.slane %v2775, %v2782
      %v2785 = vunpack.c.l.s4 1966171168
      %v2786 = vunpack.c.0.s8 %v2785
      %v2787 = vlaneseq
      %v2788 = vshrl.u32 %v2787, 7
      %v2789 = vsub.s32 %v2786, %v2788
      %v2790 = vrot.slane %v2776, %v2789
      %v2791 = vcombine.low %v2783, %v2790
      %v2792 = vcombine.low %v2392, %v2393
      %v2793 = vcombine.low %v2394, %v2395
      %v2794 = vcombine.low %v2396, %v2397
      %v2795 = vcombine.low %v2398, %v2399
      %v2797 = vunpack.c.l.s4 1966171168
      %v2798 = vunpack.c.0.s8 %v2797
      %v2799 = vlaneseq
      %v2800 = vshrl.u32 %v2799, 7
      %v2801 = vsub.s32 %v2798, %v2800
      %v2802 = vrot.slane %v2792, %v2801
      %v2804 = vunpack.c.l.s4 1966171168
      %v2805 = vunpack.c.0.s8 %v2804
      %v2806 = vlaneseq
      %v2807 = vshrl.u32 %v2806, 7
      %v2808 = vsub.s32 %v2805, %v2807
      %v2809 = vrot.slane %v2793, %v2808
      %v2811 = vunpack.c.l.s4 1966171168
      %v2812 = vunpack.c.0.s8 %v2811
      %v2813 = vlaneseq
      %v2814 = vshrl.u32 %v2813, 7
      %v2815 = vsub.s32 %v2812, %v2814
      %v2816 = vrot.slane %v2794, %v2815
      %v2818 = vunpack.c.l.s4 1966171168
      %v2819 = vunpack.c.0.s8 %v2818
      %v2820 = vlaneseq
      %v2821 = vshrl.u32 %v2820, 7
      %v2822 = vsub.s32 %v2819, %v2821
      %v2823 = vrot.slane %v2795, %v2822
      %v2824 = vcombine.low %v2802, %v2809
      %v2825 = vcombine.low %v2816, %v2823
      %v2827 = vunpack.c.l.s4 1966171168
      %v2828 = vunpack.c.0.s8 %v2827
      %v2829 = vlaneseq
      %v2830 = vshrl.u32 %v2829, 7
      %v2831 = vsub.s32 %v2828, %v2830
      %v2832 = vrot.slane %v2824, %v2831
      %v2834 = vunpack.c.l.s4 1966171168
      %v2835 = vunpack.c.0.s8 %v2834
      %v2836 = vlaneseq
      %v2837 = vshrl.u32 %v2836, 7
      %v2838 = vsub.s32 %v2835, %v2837
      %v2839 = vrot.slane %v2825, %v2838
      %v2840 = vcombine.low %v2832, %v2839
      %v2841 = vcombine.low %v2400, %v2401
      %v2842 = vcombine.low %v2402, %v2403
      %v2843 = vcombine.low %v2404, %v2405
      %v2844 = vcombine.low %v2406, %v2407
      %v2846 = vunpack.c.l.s4 1966171168
      %v2847 = vunpack.c.0.s8 %v2846
      %v2848 = vlaneseq
      %v2849 = vshrl.u32 %v2848, 7
      %v2850 = vsub.s32 %v2847, %v2849
      %v2851 = vrot.slane %v2841, %v2850
      %v2853 = vunpack.c.l.s4 1966171168
      %v2854 = vunpack.c.0.s8 %v2853
      %v2855 = vlaneseq
      %v2856 = vshrl.u32 %v2855, 7
      %v2857 = vsub.s32 %v2854, %v2856
      %v2858 = vrot.slane %v2842, %v2857
      %v2860 = vunpack.c.l.s4 1966171168
      %v2861 = vunpack.c.0.s8 %v2860
      %v2862 = vlaneseq
      %v2863 = vshrl.u32 %v2862, 7
      %v2864 = vsub.s32 %v2861, %v2863
      %v2865 = vrot.slane %v2843, %v2864
      %v2867 = vunpack.c.l.s4 1966171168
      %v2868 = vunpack.c.0.s8 %v2867
      %v2869 = vlaneseq
      %v2870 = vshrl.u32 %v2869, 7
      %v2871 = vsub.s32 %v2868, %v2870
      %v2872 = vrot.slane %v2844, %v2871
      %v2873 = vcombine.low %v2851, %v2858
      %v2874 = vcombine.low %v2865, %v2872
      %v2876 = vunpack.c.l.s4 1966171168
      %v2877 = vunpack.c.0.s8 %v2876
      %v2878 = vlaneseq
      %v2879 = vshrl.u32 %v2878, 7
      %v2880 = vsub.s32 %v2877, %v2879
      %v2881 = vrot.slane %v2873, %v2880
      %v2883 = vunpack.c.l.s4 1966171168
      %v2884 = vunpack.c.0.s8 %v2883
      %v2885 = vlaneseq
      %v2886 = vshrl.u32 %v2885, 7
      %v2887 = vsub.s32 %v2884, %v2886
      %v2888 = vrot.slane %v2874, %v2887
      %v2889 = vcombine.low %v2881, %v2888
      %v2890 = vcombine.low %v2408, %v2409
      %v2891 = vcombine.low %v2410, %v2411
      %v2892 = vcombine.low %v2412, %v2413
      %v2893 = vcombine.low %v2414, %v2415
      %v2895 = vunpack.c.l.s4 1966171168
      %v2896 = vunpack.c.0.s8 %v2895
      %v2897 = vlaneseq
      %v2898 = vshrl.u32 %v2897, 7
      %v2899 = vsub.s32 %v2896, %v2898
      %v2900 = vrot.slane %v2890, %v2899
      %v2902 = vunpack.c.l.s4 1966171168
      %v2903 = vunpack.c.0.s8 %v2902
      %v2904 = vlaneseq
      %v2905 = vshrl.u32 %v2904, 7
      %v2906 = vsub.s32 %v2903, %v2905
      %v2907 = vrot.slane %v2891, %v2906
      %v2909 = vunpack.c.l.s4 1966171168
      %v2910 = vunpack.c.0.s8 %v2909
      %v2911 = vlaneseq
      %v2912 = vshrl.u32 %v2911, 7
      %v2913 = vsub.s32 %v2910, %v2912
      %v2914 = vrot.slane %v2892, %v2913
      %v2916 = vunpack.c.l.s4 1966171168
      %v2917 = vunpack.c.0.s8 %v2916
      %v2918 = vlaneseq
      %v2919 = vshrl.u32 %v2918, 7
      %v2920 = vsub.s32 %v2917, %v2919
      %v2921 = vrot.slane %v2893, %v2920
      %v2922 = vcombine.low %v2900, %v2907
      %v2923 = vcombine.low %v2914, %v2921
      %v2925 = vunpack.c.l.s4 1966171168
      %v2926 = vunpack.c.0.s8 %v2925
      %v2927 = vlaneseq
      %v2928 = vshrl.u32 %v2927, 7
      %v2929 = vsub.s32 %v2926, %v2928
      %v2930 = vrot.slane %v2922, %v2929
      %v2932 = vunpack.c.l.s4 1966171168
      %v2933 = vunpack.c.0.s8 %v2932
      %v2934 = vlaneseq
      %v2935 = vshrl.u32 %v2934, 7
      %v2936 = vsub.s32 %v2933, %v2935
      %v2937 = vrot.slane %v2923, %v2936
      %v2938 = vcombine.low %v2930, %v2937
      %v2939 = vcombine.low %v2416, %v2417
      %v2940 = vcombine.low %v2418, %v2419
      %v2941 = vcombine.low %v2420, %v2421
      %v2942 = vcombine.low %v2422, %v2423
      %v2944 = vunpack.c.l.s4 1966171168
      %v2945 = vunpack.c.0.s8 %v2944
      %v2946 = vlaneseq
      %v2947 = vshrl.u32 %v2946, 7
      %v2948 = vsub.s32 %v2945, %v2947
      %v2949 = vrot.slane %v2939, %v2948
      %v2951 = vunpack.c.l.s4 1966171168
      %v2952 = vunpack.c.0.s8 %v2951
      %v2953 = vlaneseq
      %v2954 = vshrl.u32 %v2953, 7
      %v2955 = vsub.s32 %v2952, %v2954
      %v2956 = vrot.slane %v2940, %v2955
      %v2958 = vunpack.c.l.s4 1966171168
      %v2959 = vunpack.c.0.s8 %v2958
      %v2960 = vlaneseq
      %v2961 = vshrl.u32 %v2960, 7
      %v2962 = vsub.s32 %v2959, %v2961
      %v2963 = vrot.slane %v2941, %v2962
      %v2965 = vunpack.c.l.s4 1966171168
      %v2966 = vunpack.c.0.s8 %v2965
      %v2967 = vlaneseq
      %v2968 = vshrl.u32 %v2967, 7
      %v2969 = vsub.s32 %v2966, %v2968
      %v2970 = vrot.slane %v2942, %v2969
      %v2971 = vcombine.low %v2949, %v2956
      %v2972 = vcombine.low %v2963, %v2970
      %v2974 = vunpack.c.l.s4 1966171168
      %v2975 = vunpack.c.0.s8 %v2974
      %v2976 = vlaneseq
      %v2977 = vshrl.u32 %v2976, 7
      %v2978 = vsub.s32 %v2975, %v2977
      %v2979 = vrot.slane %v2971, %v2978
      %v2981 = vunpack.c.l.s4 1966171168
      %v2982 = vunpack.c.0.s8 %v2981
      %v2983 = vlaneseq
      %v2984 = vshrl.u32 %v2983, 7
      %v2985 = vsub.s32 %v2982, %v2984
      %v2986 = vrot.slane %v2972, %v2985
      %v2987 = vcombine.low %v2979, %v2986
      %v2988 = vcombine.low %v2424, %v2425
      %v2989 = vcombine.low %v2426, %v2427
      %v2990 = vcombine.low %v2428, %v2429
      %v2991 = vcombine.low %v2430, %v2431
      %v2993 = vunpack.c.l.s4 1966171168
      %v2994 = vunpack.c.0.s8 %v2993
      %v2995 = vlaneseq
      %v2996 = vshrl.u32 %v2995, 7
      %v2997 = vsub.s32 %v2994, %v2996
      %v2998 = vrot.slane %v2988, %v2997
      %v3000 = vunpack.c.l.s4 1966171168
      %v3001 = vunpack.c.0.s8 %v3000
      %v3002 = vlaneseq
      %v3003 = vshrl.u32 %v3002, 7
      %v3004 = vsub.s32 %v3001, %v3003
      %v3005 = vrot.slane %v2989, %v3004
      %v3007 = vunpack.c.l.s4 1966171168
      %v3008 = vunpack.c.0.s8 %v3007
      %v3009 = vlaneseq
      %v3010 = vshrl.u32 %v3009, 7
      %v3011 = vsub.s32 %v3008, %v3010
      %v3012 = vrot.slane %v2990, %v3011
      %v3014 = vunpack.c.l.s4 1966171168
      %v3015 = vunpack.c.0.s8 %v3014
      %v3016 = vlaneseq
      %v3017 = vshrl.u32 %v3016, 7
      %v3018 = vsub.s32 %v3015, %v3017
      %v3019 = vrot.slane %v2991, %v3018
      %v3020 = vcombine.low %v2998, %v3005
      %v3021 = vcombine.low %v3012, %v3019
      %v3023 = vunpack.c.l.s4 1966171168
      %v3024 = vunpack.c.0.s8 %v3023
      %v3025 = vlaneseq
      %v3026 = vshrl.u32 %v3025, 7
      %v3027 = vsub.s32 %v3024, %v3026
      %v3028 = vrot.slane %v3020, %v3027
      %v3030 = vunpack.c.l.s4 1966171168
      %v3031 = vunpack.c.0.s8 %v3030
      %v3032 = vlaneseq
      %v3033 = vshrl.u32 %v3032, 7
      %v3034 = vsub.s32 %v3031, %v3033
      %v3035 = vrot.slane %v3021, %v3034
      %v3036 = vcombine.low %v3028, %v3035
      %v3037 = vcombine.low %v2432, %v2433
      %v3038 = vcombine.low %v2434, %v2435
      %v3039 = vcombine.low %v2436, %v2437
      %v3040 = vcombine.low %v2438, %v2439
      %v3042 = vunpack.c.l.s4 1966171168
      %v3043 = vunpack.c.0.s8 %v3042
      %v3044 = vlaneseq
      %v3045 = vshrl.u32 %v3044, 7
      %v3046 = vsub.s32 %v3043, %v3045
      %v3047 = vrot.slane %v3037, %v3046
      %v3049 = vunpack.c.l.s4 1966171168
      %v3050 = vunpack.c.0.s8 %v3049
      %v3051 = vlaneseq
      %v3052 = vshrl.u32 %v3051, 7
      %v3053 = vsub.s32 %v3050, %v3052
      %v3054 = vrot.slane %v3038, %v3053
      %v3056 = vunpack.c.l.s4 1966171168
      %v3057 = vunpack.c.0.s8 %v3056
      %v3058 = vlaneseq
      %v3059 = vshrl.u32 %v3058, 7
      %v3060 = vsub.s32 %v3057, %v3059
      %v3061 = vrot.slane %v3039, %v3060
      %v3063 = vunpack.c.l.s4 1966171168
      %v3064 = vunpack.c.0.s8 %v3063
      %v3065 = vlaneseq
      %v3066 = vshrl.u32 %v3065, 7
      %v3067 = vsub.s32 %v3064, %v3066
      %v3068 = vrot.slane %v3040, %v3067
      %v3069 = vcombine.low %v3047, %v3054
      %v3070 = vcombine.low %v3061, %v3068
      %v3072 = vunpack.c.l.s4 1966171168
      %v3073 = vunpack.c.0.s8 %v3072
      %v3074 = vlaneseq
      %v3075 = vshrl.u32 %v3074, 7
      %v3076 = vsub.s32 %v3073, %v3075
      %v3077 = vrot.slane %v3069, %v3076
      %v3079 = vunpack.c.l.s4 1966171168
      %v3080 = vunpack.c.0.s8 %v3079
      %v3081 = vlaneseq
      %v3082 = vshrl.u32 %v3081, 7
      %v3083 = vsub.s32 %v3080, %v3082
      %v3084 = vrot.slane %v3070, %v3083
      %v3085 = vcombine.low %v3077, %v3084
      %v3086 = vcombine.low %v2440, %v2441
      %v3087 = vcombine.low %v2442, %v2443
      %v3088 = vcombine.low %v2444, %v2445
      %v3089 = vcombine.low %v2446, %v2447
      %v3091 = vunpack.c.l.s4 1966171168
      %v3092 = vunpack.c.0.s8 %v3091
      %v3093 = vlaneseq
      %v3094 = vshrl.u32 %v3093, 7
      %v3095 = vsub.s32 %v3092, %v3094
      %v3096 = vrot.slane %v3086, %v3095
      %v3098 = vunpack.c.l.s4 1966171168
      %v3099 = vunpack.c.0.s8 %v3098
      %v3100 = vlaneseq
      %v3101 = vshrl.u32 %v3100, 7
      %v3102 = vsub.s32 %v3099, %v3101
      %v3103 = vrot.slane %v3087, %v3102
      %v3105 = vunpack.c.l.s4 1966171168
      %v3106 = vunpack.c.0.s8 %v3105
      %v3107 = vlaneseq
      %v3108 = vshrl.u32 %v3107, 7
      %v3109 = vsub.s32 %v3106, %v3108
      %v3110 = vrot.slane %v3088, %v3109
      %v3112 = vunpack.c.l.s4 1966171168
      %v3113 = vunpack.c.0.s8 %v3112
      %v3114 = vlaneseq
      %v3115 = vshrl.u32 %v3114, 7
      %v3116 = vsub.s32 %v3113, %v3115
      %v3117 = vrot.slane %v3089, %v3116
      %v3118 = vcombine.low %v3096, %v3103
      %v3119 = vcombine.low %v3110, %v3117
      %v3121 = vunpack.c.l.s4 1966171168
      %v3122 = vunpack.c.0.s8 %v3121
      %v3123 = vlaneseq
      %v3124 = vshrl.u32 %v3123, 7
      %v3125 = vsub.s32 %v3122, %v3124
      %v3126 = vrot.slane %v3118, %v3125
      %v3128 = vunpack.c.l.s4 1966171168
      %v3129 = vunpack.c.0.s8 %v3128
      %v3130 = vlaneseq
      %v3131 = vshrl.u32 %v3130, 7
      %v3132 = vsub.s32 %v3129, %v3131
      %v3133 = vrot.slane %v3119, %v3132
      %v3134 = vcombine.low %v3126, %v3133
      %v3136 = vunpack.c.l.s4 1966171168
      %v3137 = vunpack.c.0.s8 %v3136
      %v3138 = vlaneseq
      %v3139 = vshrl.u32 %v3138, 7
      %v3140 = vsub.s32 %v3137, %v3139
      %v3141 = vrot.slane %v1299, %v3140
      %v3143 = vunpack.c.l.s4 1966171168
      %v3144 = vunpack.c.0.s8 %v3143
      %v3145 = vlaneseq
      %v3146 = vshrl.u32 %v3145, 7
      %v3147 = vsub.s32 %v3144, %v3146
      %v3148 = vrot.slane %v3141, %v3147
      %v3150 = vsel %vm2131, %v2497, 0
      %v3153 = vsel %vm2131, %v2546, 0
      %v3156 = vsel %vm2131, %v2595, 0
      %v3159 = vsel %vm2131, %v2644, 0
      %v3162 = vsel %vm2131, %v2693, 0
      %v3165 = vsel %vm2131, %v2742, 0
      %v3168 = vsel %vm2131, %v2791, 0
      %v3171 = vsel %vm2131, %v2840, 0
      %v3174 = vsel %vm2131, %v2889, 0
      %v3177 = vsel %vm2131, %v2938, 0
      %v3180 = vsel %vm2131, %v2987, 0
      %v3183 = vsel %vm2131, %v3036, 0
      %v3186 = vsel %vm2131, %v3085, 0
      %v3189 = vsel %vm2131, %v3134, 0
      %v3192 = vsel %vm2131, %v3148, 0
      %v3195 = vand.u32 %v1300, %v2180
      %3197 = vmatprep.subr.bf16.mxu0 0
      %3198 = vmatpush1.bf16.msra.mxu0 %v3195
      %3199 = vmatprep.subr.bf16.mxu0 0
      %3200 = vmatpush1.bf16.msra.mxu0 0
      %3201 = vmatprep.subr.bf16.mxu0 0
      %3202 = vmatpush1.bf16.msra.mxu0 0
      %3203 = vmatprep.subr.bf16.mxu0 0
      %3204 = vmatpush1.bf16.msra.mxu0 0
      %3205 = vmatprep.subr.bf16.mxu0 0
      %3206 = vmatpush1.bf16.msra.mxu0 0
      %3207 = vmatprep.subr.bf16.mxu0 0
      %3208 = vmatpush1.bf16.msra.mxu0 0
      %3209 = vmatprep.subr.bf16.mxu0 0
      %3210 = vmatpush1.bf16.msra.mxu0 0
      %3211 = vmatprep.subr.bf16.mxu0 0
      %3212 = vmatpush1.bf16.msra.mxu0 0
      %3213 = vmatprep.subr.bf16.mxu0 0
      %3214 = vmatpush1.bf16.msra.mxu0 0
      %3215 = vmatprep.subr.bf16.mxu0 0
      %3216 = vmatpush1.bf16.msra.mxu0 0
      %3217 = vmatprep.subr.bf16.mxu0 0
      %3218 = vmatpush1.bf16.msra.mxu0 0
      %3219 = vmatprep.subr.bf16.mxu0 0
      %3220 = vmatpush1.bf16.msra.mxu0 0
      %3221 = vmatprep.subr.bf16.mxu0 0
      %3222 = vmatpush1.bf16.msra.mxu0 0
      %3223 = vmatprep.subr.bf16.mxu0 0
      %3224 = vmatpush1.bf16.msra.mxu0 0
      %3225 = vmatprep.subr.bf16.mxu0 0
      %3226 = vmatpush1.bf16.msra.mxu0 0
      %3227 = vmatprep.subr.bf16.mxu0 0
      %3228 = vmatpush1.bf16.msra.mxu0 0
      %3229 = vmatprep.mubr.bf16.mxu0 0
      %3230 = vmatmul.mubr.bf16.gmra.mrb[0].mxu0 %v3150
      %v3231 = vpop.f32.mrb[0].mxu0
      %v3232 = vadd.f32 %v2219, %v3231
      %v3233 = vpop.f32.mrb[0].mxu0
      %v3234 = vpop.f32.mrb[0].mxu0
      %v3235 = vadd.f32 %v2222, %v3234
      %v3236 = vpop.f32.mrb[0].mxu0
      %3237 = vmatprep.mubr.bf16.mxu0 0
      %3238 = vmatmul.mubr.bf16.gmra.mrb[0].mxu0 %v3153
      %v3239 = vpop.f32.mrb[0].mxu0
      %v3240 = vadd.f32 %v2227, %v3239
      %v3241 = vpop.f32.mrb[0].mxu0
      %v3242 = vpop.f32.mrb[0].mxu0
      %v3243 = vadd.f32 %v2230, %v3242
      %v3244 = vpop.f32.mrb[0].mxu0
      %3245 = vmatprep.mubr.bf16.mxu0 0
      %3246 = vmatmul.mubr.bf16.gmra.mrb[0].mxu0 %v3156
      %v3247 = vpop.f32.mrb[0].mxu0
      %v3248 = vadd.f32 %v2235, %v3247
      %v3249 = vpop.f32.mrb[0].mxu0
      %v3250 = vpop.f32.mrb[0].mxu0
      %v3251 = vadd.f32 %v2238, %v3250
      %v3252 = vpop.f32.mrb[0].mxu0
      %3253 = vmatprep.mubr.bf16.mxu0 0
      %3254 = vmatmul.mubr.bf16.gmra.mrb[0].mxu0 %v3159
      %v3255 = vpop.f32.mrb[0].mxu0
      %v3256 = vadd.f32 %v2243, %v3255
      %v3257 = vpop.f32.mrb[0].mxu0
      %v3258 = vpop.f32.mrb[0].mxu0
      %v3259 = vadd.f32 %v2246, %v3258
      %v3260 = vpop.f32.mrb[0].mxu0
      %3261 = vmatprep.mubr.bf16.mxu0 0
      %3262 = vmatmul.mubr.bf16.gmra.mrb[0].mxu0 %v3162
      %v3263 = vpop.f32.mrb[0].mxu0
      %v3264 = vadd.f32 %v2251, %v3263
      %v3265 = vpop.f32.mrb[0].mxu0
      %v3266 = vpop.f32.mrb[0].mxu0
      %v3267 = vadd.f32 %v2254, %v3266
      %v3268 = vpop.f32.mrb[0].mxu0
      %3269 = vmatprep.mubr.bf16.mxu0 0
      %3270 = vmatmul.mubr.bf16.gmra.mrb[0].mxu0 %v3165
      %v3271 = vpop.f32.mrb[0].mxu0
      %v3272 = vadd.f32 %v2259, %v3271
      %v3273 = vpop.f32.mrb[0].mxu0
      %v3274 = vpop.f32.mrb[0].mxu0
      %v3275 = vadd.f32 %v2262, %v3274
      %v3276 = vpop.f32.mrb[0].mxu0
      %3277 = vmatprep.mubr.bf16.mxu0 0
      %3278 = vmatmul.mubr.bf16.gmra.mrb[0].mxu0 %v3168
      %v3279 = vpop.f32.mrb[0].mxu0
      %v3280 = vadd.f32 %v2267, %v3279
      %v3281 = vpop.f32.mrb[0].mxu0
      %v3282 = vpop.f32.mrb[0].mxu0
      %v3283 = vadd.f32 %v2270, %v3282
      %v3284 = vpop.f32.mrb[0].mxu0
      %3285 = vmatprep.mubr.bf16.mxu0 0
      %3286 = vmatmul.mubr.bf16.gmra.mrb[0].mxu0 %v3171
      %v3287 = vpop.f32.mrb[0].mxu0
      %v3288 = vadd.f32 %v2275, %v3287
      %v3289 = vpop.f32.mrb[0].mxu0
      %v3290 = vpop.f32.mrb[0].mxu0
      %v3291 = vadd.f32 %v2278, %v3290
      %v3292 = vpop.f32.mrb[0].mxu0
      %3293 = vmatprep.mubr.bf16.mxu0 0
      %3294 = vmatmul.mubr.bf16.gmra.mrb[0].mxu0 %v3174
      %v3295 = vpop.f32.mrb[0].mxu0
      %v3296 = vadd.f32 %v2283, %v3295
      %v3297 = vpop.f32.mrb[0].mxu0
      %v3298 = vpop.f32.mrb[0].mxu0
      %v3299 = vadd.f32 %v2286, %v3298
      %v3300 = vpop.f32.mrb[0].mxu0
      %3301 = vmatprep.mubr.bf16.mxu0 0
      %3302 = vmatmul.mubr.bf16.gmra.mrb[0].mxu0 %v3177
      %v3303 = vpop.f32.mrb[0].mxu0
      %v3304 = vadd.f32 %v2291, %v3303
      %v3305 = vpop.f32.mrb[0].mxu0
      %v3306 = vpop.f32.mrb[0].mxu0
      %v3307 = vadd.f32 %v2294, %v3306
      %v3308 = vpop.f32.mrb[0].mxu0
      %3309 = vmatprep.mubr.bf16.mxu0 0
      %3310 = vmatmul.mubr.bf16.gmra.mrb[0].mxu0 %v3180
      %v3311 = vpop.f32.mrb[0].mxu0
      %v3312 = vadd.f32 %v2299, %v3311
      %v3313 = vpop.f32.mrb[0].mxu0
      %v3314 = vpop.f32.mrb[0].mxu0
      %v3315 = vadd.f32 %v2302, %v3314
      %v3316 = vpop.f32.mrb[0].mxu0
      %3317 = vmatprep.mubr.bf16.mxu0 0
      %3318 = vmatmul.mubr.bf16.gmra.mrb[0].mxu0 %v3183
      %v3319 = vpop.f32.mrb[0].mxu0
      %v3320 = vadd.f32 %v2307, %v3319
      %v3321 = vpop.f32.mrb[0].mxu0
      %v3322 = vpop.f32.mrb[0].mxu0
      %v3323 = vadd.f32 %v2310, %v3322
      %v3324 = vpop.f32.mrb[0].mxu0
      %3325 = vmatprep.mubr.bf16.mxu0 0
      %3326 = vmatmul.mubr.bf16.gmra.mrb[0].mxu0 %v3186
      %v3327 = vpop.f32.mrb[0].mxu0
      %v3328 = vadd.f32 %v2315, %v3327
      %v3329 = vpop.f32.mrb[0].mxu0
      %v3330 = vpop.f32.mrb[0].mxu0
      %v3331 = vadd.f32 %v2318, %v3330
      %v3332 = vpop.f32.mrb[0].mxu0
      %3333 = vmatprep.mubr.bf16.mxu0 0
      %3334 = vmatmul.mubr.bf16.gmra.mrb[0].mxu0 %v3189
      %v3335 = vpop.f32.mrb[0].mxu0
      %v3336 = vadd.f32 %v2323, %v3335
      %v3337 = vpop.f32.mrb[0].mxu0
      %v3338 = vpop.f32.mrb[0].mxu0
      %v3339 = vadd.f32 %v2326, %v3338
      %v3340 = vpop.f32.mrb[0].mxu0
      %3341 = vmatprep.mubr.bf16.mxu0 0
      %3342 = vmatmul.mubr.bf16.gmra.mrb[0].mxu0 %v3192
      %v3343 = vpop.f32.mrb[0].mxu0
      %v3344 = vadd.f32 %v2331, %v3343
      %v3345 = vpop.f32.mrb[0].mxu0
      %v3346 = vpop.f32.mrb[0].mxu0
      %v3347 = vpop.f32.mrb[0].mxu0
      %3348 = vdwg.mxu0
      %v3350 = vcombine.high %v324, %v324
      %v3352 = vunpack.c.l.s4 1966171168
      %v3353 = vunpack.c.0.s8 %v3352
      %v3354 = vlaneseq
      %v3355 = vshrl.u32 %v3354, 7
      %v3356 = vsub.s32 %v3353, %v3355
      %v3357 = vrot.slane %v324, %v3356
      %v3359 = vunpack.c.l.s4 1966171168
      %v3360 = vunpack.c.0.s8 %v3359
      %v3361 = vlaneseq
      %v3362 = vshrl.u32 %v3361, 7
      %v3363 = vsub.s32 %v3360, %v3362
      %v3364 = vrot.slane %v3350, %v3363
      %v3365 = vcombine.high %v3357, %v3357
      %v3366 = vcombine.high %v3364, %v3364
      %v3368 = vunpack.c.l.s4 1966171168
      %v3369 = vunpack.c.0.s8 %v3368
      %v3370 = vlaneseq
      %v3371 = vshrl.u32 %v3370, 7
      %v3372 = vsub.s32 %v3369, %v3371
      %v3373 = vrot.slane %v3357, %v3372
      %v3375 = vunpack.c.l.s4 1966171168
      %v3376 = vunpack.c.0.s8 %v3375
      %v3377 = vlaneseq
      %v3378 = vshrl.u32 %v3377, 7
      %v3379 = vsub.s32 %v3376, %v3378
      %v3380 = vrot.slane %v3364, %v3379
      %v3382 = vunpack.c.l.s4 1966171168
      %v3383 = vunpack.c.0.s8 %v3382
      %v3384 = vlaneseq
      %v3385 = vshrl.u32 %v3384, 7
      %v3386 = vsub.s32 %v3383, %v3385
      %v3387 = vrot.slane %v3365, %v3386
      %v3389 = vunpack.c.l.s4 1966171168
      %v3390 = vunpack.c.0.s8 %v3389
      %v3391 = vlaneseq
      %v3392 = vshrl.u32 %v3391, 7
      %v3393 = vsub.s32 %v3390, %v3392
      %v3394 = vrot.slane %v3366, %v3393
      %v3395 = vcombine.high %v3373, %v3373
      %v3396 = vcombine.high %v3380, %v3380
      %v3397 = vcombine.high %v3387, %v3387
      %v3398 = vcombine.high %v3394, %v3394
      %v3399 = vunpack.i.l.s16 %v3373
      %v3400 = vunpack.i.h.s16 %v3373
      %v3401 = vunpack.i.l.s16 %v3387
      %v3402 = vunpack.i.h.s16 %v3387
      %v3403 = vunpack.i.l.s16 %v3395
      %v3404 = vunpack.i.h.s16 %v3395
      %v3405 = vunpack.i.l.s16 %v3397
      %v3406 = vunpack.i.h.s16 %v3397
      %v3407 = vunpack.i.l.s16 %v3380
      %v3408 = vunpack.i.h.s16 %v3380
      %v3409 = vunpack.i.l.s16 %v3394
      %v3410 = vunpack.i.h.s16 %v3394
      %v3411 = vunpack.i.l.s16 %v3396
      %v3412 = vunpack.i.h.s16 %v3396
      %v3413 = vunpack.i.l.s16 %v3398
      %s3414 = scalar_lea.vmem %s1, 4
      %v3415 = vld [vmem:[%s3414] sm:$0x3]
      %v3416 = vpack.i.b16 %v1091, %v1090
      %v3417 = vpack.i.b16 %v1105, %v1104
      %v3418 = vpack.i.b16 %v1121, %v1120
      %v3419 = vpack.i.b16 %v1135, %v1134
      %v3420 = vpack.i.b16 %v1151, %v1150
      %v3421 = vpack.i.b16 %v1165, %v1164
      %v3422 = vpack.i.b16 %v1181, %v1180
      %v3423 = vpack.i.b16 %v1195, %v1194
      %v3424 = vpack.i.b16 %v1211, %v1210
      %v3425 = vpack.i.b16 %v1225, %v1224
      %v3426 = vpack.i.b16 %v1241, %v1240
      %v3427 = vpack.i.b16 %v1255, %v1254
      %v3428 = vpack.i.b16 %v1271, %v1270
      %v3429 = vpack.i.b16 %v1285, %v1284
      %v3430 = vpack.i.b16 %v3400, %v3399
      %v3431 = vpack.i.b16 %v3402, %v3401
      %v3432 = vpack.i.b16 %v3404, %v3403
      %v3433 = vpack.i.b16 %v3406, %v3405
      %v3434 = vpack.i.b16 %v3408, %v3407
      %v3435 = vpack.i.b16 %v3410, %v3409
      %v3436 = vpack.i.b16 %v3412, %v3411
      %v3438 = vcombine.low %v3416, %v1326
      %v3439 = vcombine.low %v1327, %v1328
      %v3440 = vcombine.low %v1329, %v1330
      %v3441 = vcombine.low %v1331, %v3417
      %v3443 = vunpack.c.l.s4 1966171168
      %v3444 = vunpack.c.0.s8 %v3443
      %v3445 = vlaneseq
      %v3446 = vshrl.u32 %v3445, 7
      %v3447 = vsub.s32 %v3444, %v3446
      %v3448 = vrot.slane %v3438, %v3447
      %v3450 = vunpack.c.l.s4 1966171168
      %v3451 = vunpack.c.0.s8 %v3450
      %v3452 = vlaneseq
      %v3453 = vshrl.u32 %v3452, 7
      %v3454 = vsub.s32 %v3451, %v3453
      %v3455 = vrot.slane %v3439, %v3454
      %v3457 = vunpack.c.l.s4 1966171168
      %v3458 = vunpack.c.0.s8 %v3457
      %v3459 = vlaneseq
      %v3460 = vshrl.u32 %v3459, 7
      %v3461 = vsub.s32 %v3458, %v3460
      %v3462 = vrot.slane %v3440, %v3461
      %v3464 = vunpack.c.l.s4 1966171168
      %v3465 = vunpack.c.0.s8 %v3464
      %v3466 = vlaneseq
      %v3467 = vshrl.u32 %v3466, 7
      %v3468 = vsub.s32 %v3465, %v3467
      %v3469 = vrot.slane %v3441, %v3468
      %v3470 = vcombine.low %v3448, %v3455
      %v3471 = vcombine.low %v3462, %v3469
      %v3473 = vunpack.c.l.s4 1966171168
      %v3474 = vunpack.c.0.s8 %v3473
      %v3475 = vlaneseq
      %v3476 = vshrl.u32 %v3475, 7
      %v3477 = vsub.s32 %v3474, %v3476
      %v3478 = vrot.slane %v3470, %v3477
      %v3480 = vunpack.c.l.s4 1966171168
      %v3481 = vunpack.c.0.s8 %v3480
      %v3482 = vlaneseq
      %v3483 = vshrl.u32 %v3482, 7
      %v3484 = vsub.s32 %v3481, %v3483
      %v3485 = vrot.slane %v3471, %v3484
      %v3486 = vcombine.low %v3478, %v3485
      %v3487 = vcombine.low %v1333, %v1334
      %v3488 = vcombine.low %v1335, %v1336
      %v3489 = vcombine.low %v1337, %v1338
      %v3490 = vcombine.low %v1339, %v3418
      %v3492 = vunpack.c.l.s4 1966171168
      %v3493 = vunpack.c.0.s8 %v3492
      %v3494 = vlaneseq
      %v3495 = vshrl.u32 %v3494, 7
      %v3496 = vsub.s32 %v3493, %v3495
      %v3497 = vrot.slane %v3487, %v3496
      %v3499 = vunpack.c.l.s4 1966171168
      %v3500 = vunpack.c.0.s8 %v3499
      %v3501 = vlaneseq
      %v3502 = vshrl.u32 %v3501, 7
      %v3503 = vsub.s32 %v3500, %v3502
      %v3504 = vrot.slane %v3488, %v3503
      %v3506 = vunpack.c.l.s4 1966171168
      %v3507 = vunpack.c.0.s8 %v3506
      %v3508 = vlaneseq
      %v3509 = vshrl.u32 %v3508, 7
      %v3510 = vsub.s32 %v3507, %v3509
      %v3511 = vrot.slane %v3489, %v3510
      %v3513 = vunpack.c.l.s4 1966171168
      %v3514 = vunpack.c.0.s8 %v3513
      %v3515 = vlaneseq
      %v3516 = vshrl.u32 %v3515, 7
      %v3517 = vsub.s32 %v3514, %v3516
      %v3518 = vrot.slane %v3490, %v3517
      %v3519 = vcombine.low %v3497, %v3504
      %v3520 = vcombine.low %v3511, %v3518
      %v3522 = vunpack.c.l.s4 1966171168
      %v3523 = vunpack.c.0.s8 %v3522
      %v3524 = vlaneseq
      %v3525 = vshrl.u32 %v3524, 7
      %v3526 = vsub.s32 %v3523, %v3525
      %v3527 = vrot.slane %v3519, %v3526
      %v3529 = vunpack.c.l.s4 1966171168
      %v3530 = vunpack.c.0.s8 %v3529
      %v3531 = vlaneseq
      %v3532 = vshrl.u32 %v3531, 7
      %v3533 = vsub.s32 %v3530, %v3532
      %v3534 = vrot.slane %v3520, %v3533
      %v3535 = vcombine.low %v3527, %v3534
      %v3536 = vcombine.low %v1341, %v1342
      %v3537 = vcombine.low %v1343, %v1344
      %v3538 = vcombine.low %v1345, %v1346
      %v3539 = vcombine.low %v3419, %v1348
      %v3541 = vunpack.c.l.s4 1966171168
      %v3542 = vunpack.c.0.s8 %v3541
      %v3543 = vlaneseq
      %v3544 = vshrl.u32 %v3543, 7
      %v3545 = vsub.s32 %v3542, %v3544
      %v3546 = vrot.slane %v3536, %v3545
      %v3548 = vunpack.c.l.s4 1966171168
      %v3549 = vunpack.c.0.s8 %v3548
      %v3550 = vlaneseq
      %v3551 = vshrl.u32 %v3550, 7
      %v3552 = vsub.s32 %v3549, %v3551
      %v3553 = vrot.slane %v3537, %v3552
      %v3555 = vunpack.c.l.s4 1966171168
      %v3556 = vunpack.c.0.s8 %v3555
      %v3557 = vlaneseq
      %v3558 = vshrl.u32 %v3557, 7
      %v3559 = vsub.s32 %v3556, %v3558
      %v3560 = vrot.slane %v3538, %v3559
      %v3562 = vunpack.c.l.s4 1966171168
      %v3563 = vunpack.c.0.s8 %v3562
      %v3564 = vlaneseq
      %v3565 = vshrl.u32 %v3564, 7
      %v3566 = vsub.s32 %v3563, %v3565
      %v3567 = vrot.slane %v3539, %v3566
      %v3568 = vcombine.low %v3546, %v3553
      %v3569 = vcombine.low %v3560, %v3567
      %v3571 = vunpack.c.l.s4 1966171168
      %v3572 = vunpack.c.0.s8 %v3571
      %v3573 = vlaneseq
      %v3574 = vshrl.u32 %v3573, 7
      %v3575 = vsub.s32 %v3572, %v3574
      %v3576 = vrot.slane %v3568, %v3575
      %v3578 = vunpack.c.l.s4 1966171168
      %v3579 = vunpack.c.0.s8 %v3578
      %v3580 = vlaneseq
      %v3581 = vshrl.u32 %v3580, 7
      %v3582 = vsub.s32 %v3579, %v3581
      %v3583 = vrot.slane %v3569, %v3582
      %v3584 = vcombine.low %v3576, %v3583
      %v3585 = vcombine.low %v1349, %v1350
      %v3586 = vcombine.low %v1351, %v1352
      %v3587 = vcombine.low %v1353, %v1354
      %v3588 = vcombine.low %v3420, %v1356
      %v3590 = vunpack.c.l.s4 1966171168
      %v3591 = vunpack.c.0.s8 %v3590
      %v3592 = vlaneseq
      %v3593 = vshrl.u32 %v3592, 7
      %v3594 = vsub.s32 %v3591, %v3593
      %v3595 = vrot.slane %v3585, %v3594
      %v3597 = vunpack.c.l.s4 1966171168
      %v3598 = vunpack.c.0.s8 %v3597
      %v3599 = vlaneseq
      %v3600 = vshrl.u32 %v3599, 7
      %v3601 = vsub.s32 %v3598, %v3600
      %v3602 = vrot.slane %v3586, %v3601
      %v3604 = vunpack.c.l.s4 1966171168
      %v3605 = vunpack.c.0.s8 %v3604
      %v3606 = vlaneseq
      %v3607 = vshrl.u32 %v3606, 7
      %v3608 = vsub.s32 %v3605, %v3607
      %v3609 = vrot.slane %v3587, %v3608
      %v3611 = vunpack.c.l.s4 1966171168
      %v3612 = vunpack.c.0.s8 %v3611
      %v3613 = vlaneseq
      %v3614 = vshrl.u32 %v3613, 7
      %v3615 = vsub.s32 %v3612, %v3614
      %v3616 = vrot.slane %v3588, %v3615
      %v3617 = vcombine.low %v3595, %v3602
      %v3618 = vcombine.low %v3609, %v3616
      %v3620 = vunpack.c.l.s4 1966171168
      %v3621 = vunpack.c.0.s8 %v3620
      %v3622 = vlaneseq
      %v3623 = vshrl.u32 %v3622, 7
      %v3624 = vsub.s32 %v3621, %v3623
      %v3625 = vrot.slane %v3617, %v3624
      %v3627 = vunpack.c.l.s4 1966171168
      %v3628 = vunpack.c.0.s8 %v3627
      %v3629 = vlaneseq
      %v3630 = vshrl.u32 %v3629, 7
      %v3631 = vsub.s32 %v3628, %v3630
      %v3632 = vrot.slane %v3618, %v3631
      %v3633 = vcombine.low %v3625, %v3632
      %v3634 = vcombine.low %v1357, %v1358
      %v3635 = vcombine.low %v1359, %v1360
      %v3636 = vcombine.low %v1361, %v3421
      %v3637 = vcombine.low %v1363, %v1364
      %v3639 = vunpack.c.l.s4 1966171168
      %v3640 = vunpack.c.0.s8 %v3639
      %v3641 = vlaneseq
      %v3642 = vshrl.u32 %v3641, 7
      %v3643 = vsub.s32 %v3640, %v3642
      %v3644 = vrot.slane %v3634, %v3643
      %v3646 = vunpack.c.l.s4 1966171168
      %v3647 = vunpack.c.0.s8 %v3646
      %v3648 = vlaneseq
      %v3649 = vshrl.u32 %v3648, 7
      %v3650 = vsub.s32 %v3647, %v3649
      %v3651 = vrot.slane %v3635, %v3650
      %v3653 = vunpack.c.l.s4 1966171168
      %v3654 = vunpack.c.0.s8 %v3653
      %v3655 = vlaneseq
      %v3656 = vshrl.u32 %v3655, 7
      %v3657 = vsub.s32 %v3654, %v3656
      %v3658 = vrot.slane %v3636, %v3657
      %v3660 = vunpack.c.l.s4 1966171168
      %v3661 = vunpack.c.0.s8 %v3660
      %v3662 = vlaneseq
      %v3663 = vshrl.u32 %v3662, 7
      %v3664 = vsub.s32 %v3661, %v3663
      %v3665 = vrot.slane %v3637, %v3664
      %v3666 = vcombine.low %v3644, %v3651
      %v3667 = vcombine.low %v3658, %v3665
      %v3669 = vunpack.c.l.s4 1966171168
      %v3670 = vunpack.c.0.s8 %v3669
      %v3671 = vlaneseq
      %v3672 = vshrl.u32 %v3671, 7
      %v3673 = vsub.s32 %v3670, %v3672
      %v3674 = vrot.slane %v3666, %v3673
      %v3676 = vunpack.c.l.s4 1966171168
      %v3677 = vunpack.c.0.s8 %v3676
      %v3678 = vlaneseq
      %v3679 = vshrl.u32 %v3678, 7
      %v3680 = vsub.s32 %v3677, %v3679
      %v3681 = vrot.slane %v3667, %v3680
      %v3682 = vcombine.low %v3674, %v3681
      %v3683 = vcombine.low %v1365, %v1366
      %v3684 = vcombine.low %v1367, %v1368
      %v3685 = vcombine.low %v1369, %v3422
      %v3686 = vcombine.low %v1371, %v1372
      %v3688 = vunpack.c.l.s4 1966171168
      %v3689 = vunpack.c.0.s8 %v3688
      %v3690 = vlaneseq
      %v3691 = vshrl.u32 %v3690, 7
      %v3692 = vsub.s32 %v3689, %v3691
      %v3693 = vrot.slane %v3683, %v3692
      %v3695 = vunpack.c.l.s4 1966171168
      %v3696 = vunpack.c.0.s8 %v3695
      %v3697 = vlaneseq
      %v3698 = vshrl.u32 %v3697, 7
      %v3699 = vsub.s32 %v3696, %v3698
      %v3700 = vrot.slane %v3684, %v3699
      %v3702 = vunpack.c.l.s4 1966171168
      %v3703 = vunpack.c.0.s8 %v3702
      %v3704 = vlaneseq
      %v3705 = vshrl.u32 %v3704, 7
      %v3706 = vsub.s32 %v3703, %v3705
      %v3707 = vrot.slane %v3685, %v3706
      %v3709 = vunpack.c.l.s4 1966171168
      %v3710 = vunpack.c.0.s8 %v3709
      %v3711 = vlaneseq
      %v3712 = vshrl.u32 %v3711, 7
      %v3713 = vsub.s32 %v3710, %v3712
      %v3714 = vrot.slane %v3686, %v3713
      %v3715 = vcombine.low %v3693, %v3700
      %v3716 = vcombine.low %v3707, %v3714
      %v3718 = vunpack.c.l.s4 1966171168
      %v3719 = vunpack.c.0.s8 %v3718
      %v3720 = vlaneseq
      %v3721 = vshrl.u32 %v3720, 7
      %v3722 = vsub.s32 %v3719, %v3721
      %v3723 = vrot.slane %v3715, %v3722
      %v3725 = vunpack.c.l.s4 1966171168
      %v3726 = vunpack.c.0.s8 %v3725
      %v3727 = vlaneseq
      %v3728 = vshrl.u32 %v3727, 7
      %v3729 = vsub.s32 %v3726, %v3728
      %v3730 = vrot.slane %v3716, %v3729
      %v3731 = vcombine.low %v3723, %v3730
      %v3732 = vcombine.low %v1373, %v1374
      %v3733 = vcombine.low %v1375, %v1376
      %v3734 = vcombine.low %v3423, %v1378
      %v3735 = vcombine.low %v1379, %v1380
      %v3737 = vunpack.c.l.s4 1966171168
      %v3738 = vunpack.c.0.s8 %v3737
      %v3739 = vlaneseq
      %v3740 = vshrl.u32 %v3739, 7
      %v3741 = vsub.s32 %v3738, %v3740
      %v3742 = vrot.slane %v3732, %v3741
      %v3744 = vunpack.c.l.s4 1966171168
      %v3745 = vunpack.c.0.s8 %v3744
      %v3746 = vlaneseq
      %v3747 = vshrl.u32 %v3746, 7
      %v3748 = vsub.s32 %v3745, %v3747
      %v3749 = vrot.slane %v3733, %v3748
      %v3751 = vunpack.c.l.s4 1966171168
      %v3752 = vunpack.c.0.s8 %v3751
      %v3753 = vlaneseq
      %v3754 = vshrl.u32 %v3753, 7
      %v3755 = vsub.s32 %v3752, %v3754
      %v3756 = vrot.slane %v3734, %v3755
      %v3758 = vunpack.c.l.s4 1966171168
      %v3759 = vunpack.c.0.s8 %v3758
      %v3760 = vlaneseq
      %v3761 = vshrl.u32 %v3760, 7
      %v3762 = vsub.s32 %v3759, %v3761
      %v3763 = vrot.slane %v3735, %v3762
      %v3764 = vcombine.low %v3742, %v3749
      %v3765 = vcombine.low %v3756, %v3763
      %v3767 = vunpack.c.l.s4 1966171168
      %v3768 = vunpack.c.0.s8 %v3767
      %v3769 = vlaneseq
      %v3770 = vshrl.u32 %v3769, 7
      %v3771 = vsub.s32 %v3768, %v3770
      %v3772 = vrot.slane %v3764, %v3771
      %v3774 = vunpack.c.l.s4 1966171168
      %v3775 = vunpack.c.0.s8 %v3774
      %v3776 = vlaneseq
      %v3777 = vshrl.u32 %v3776, 7
      %v3778 = vsub.s32 %v3775, %v3777
      %v3779 = vrot.slane %v3765, %v3778
      %v3780 = vcombine.low %v3772, %v3779
      %v3781 = vcombine.low %v1381, %v1382
      %v3782 = vcombine.low %v1383, %v1384
      %v3783 = vcombine.low %v3424, %v1386
      %v3784 = vcombine.low %v1387, %v1388
      %v3786 = vunpack.c.l.s4 1966171168
      %v3787 = vunpack.c.0.s8 %v3786
      %v3788 = vlaneseq
      %v3789 = vshrl.u32 %v3788, 7
      %v3790 = vsub.s32 %v3787, %v3789
      %v3791 = vrot.slane %v3781, %v3790
      %v3793 = vunpack.c.l.s4 1966171168
      %v3794 = vunpack.c.0.s8 %v3793
      %v3795 = vlaneseq
      %v3796 = vshrl.u32 %v3795, 7
      %v3797 = vsub.s32 %v3794, %v3796
      %v3798 = vrot.slane %v3782, %v3797
      %v3800 = vunpack.c.l.s4 1966171168
      %v3801 = vunpack.c.0.s8 %v3800
      %v3802 = vlaneseq
      %v3803 = vshrl.u32 %v3802, 7
      %v3804 = vsub.s32 %v3801, %v3803
      %v3805 = vrot.slane %v3783, %v3804
      %v3807 = vunpack.c.l.s4 1966171168
      %v3808 = vunpack.c.0.s8 %v3807
      %v3809 = vlaneseq
      %v3810 = vshrl.u32 %v3809, 7
      %v3811 = vsub.s32 %v3808, %v3810
      %v3812 = vrot.slane %v3784, %v3811
      %v3813 = vcombine.low %v3791, %v3798
      %v3814 = vcombine.low %v3805, %v3812
      %v3816 = vunpack.c.l.s4 1966171168
      %v3817 = vunpack.c.0.s8 %v3816
      %v3818 = vlaneseq
      %v3819 = vshrl.u32 %v3818, 7
      %v3820 = vsub.s32 %v3817, %v3819
      %v3821 = vrot.slane %v3813, %v3820
      %v3823 = vunpack.c.l.s4 1966171168
      %v3824 = vunpack.c.0.s8 %v3823
      %v3825 = vlaneseq
      %v3826 = vshrl.u32 %v3825, 7
      %v3827 = vsub.s32 %v3824, %v3826
      %v3828 = vrot.slane %v3814, %v3827
      %v3829 = vcombine.low %v3821, %v3828
      %v3830 = vcombine.low %v1389, %v1390
      %v3831 = vcombine.low %v1391, %v3425
      %v3832 = vcombine.low %v1393, %v1394
      %v3833 = vcombine.low %v1395, %v1396
      %v3835 = vunpack.c.l.s4 1966171168
      %v3836 = vunpack.c.0.s8 %v3835
      %v3837 = vlaneseq
      %v3838 = vshrl.u32 %v3837, 7
      %v3839 = vsub.s32 %v3836, %v3838
      %v3840 = vrot.slane %v3830, %v3839
      %v3842 = vunpack.c.l.s4 1966171168
      %v3843 = vunpack.c.0.s8 %v3842
      %v3844 = vlaneseq
      %v3845 = vshrl.u32 %v3844, 7
      %v3846 = vsub.s32 %v3843, %v3845
      %v3847 = vrot.slane %v3831, %v3846
      %v3849 = vunpack.c.l.s4 1966171168
      %v3850 = vunpack.c.0.s8 %v3849
      %v3851 = vlaneseq
      %v3852 = vshrl.u32 %v3851, 7
      %v3853 = vsub.s32 %v3850, %v3852
      %v3854 = vrot.slane %v3832, %v3853
      %v3856 = vunpack.c.l.s4 1966171168
      %v3857 = vunpack.c.0.s8 %v3856
      %v3858 = vlaneseq
      %v3859 = vshrl.u32 %v3858, 7
      %v3860 = vsub.s32 %v3857, %v3859
      %v3861 = vrot.slane %v3833, %v3860
      %v3862 = vcombine.low %v3840, %v3847
      %v3863 = vcombine.low %v3854, %v3861
      %v3865 = vunpack.c.l.s4 1966171168
      %v3866 = vunpack.c.0.s8 %v3865
      %v3867 = vlaneseq
      %v3868 = vshrl.u32 %v3867, 7
      %v3869 = vsub.s32 %v3866, %v3868
      %v3870 = vrot.slane %v3862, %v3869
      %v3872 = vunpack.c.l.s4 1966171168
      %v3873 = vunpack.c.0.s8 %v3872
      %v3874 = vlaneseq
      %v3875 = vshrl.u32 %v3874, 7
      %v3876 = vsub.s32 %v3873, %v3875
      %v3877 = vrot.slane %v3863, %v3876
      %v3878 = vcombine.low %v3870, %v3877
      %v3879 = vcombine.low %v1397, %v1398
      %v3880 = vcombine.low %v1399, %v3426
      %v3881 = vcombine.low %v1401, %v1402
      %v3882 = vcombine.low %v1403, %v1404
      %v3884 = vunpack.c.l.s4 1966171168
      %v3885 = vunpack.c.0.s8 %v3884
      %v3886 = vlaneseq
      %v3887 = vshrl.u32 %v3886, 7
      %v3888 = vsub.s32 %v3885, %v3887
      %v3889 = vrot.slane %v3879, %v3888
      %v3891 = vunpack.c.l.s4 1966171168
      %v3892 = vunpack.c.0.s8 %v3891
      %v3893 = vlaneseq
      %v3894 = vshrl.u32 %v3893, 7
      %v3895 = vsub.s32 %v3892, %v3894
      %v3896 = vrot.slane %v3880, %v3895
      %v3898 = vunpack.c.l.s4 1966171168
      %v3899 = vunpack.c.0.s8 %v3898
      %v3900 = vlaneseq
      %v3901 = vshrl.u32 %v3900, 7
      %v3902 = vsub.s32 %v3899, %v3901
      %v3903 = vrot.slane %v3881, %v3902
      %v3905 = vunpack.c.l.s4 1966171168
      %v3906 = vunpack.c.0.s8 %v3905
      %v3907 = vlaneseq
      %v3908 = vshrl.u32 %v3907, 7
      %v3909 = vsub.s32 %v3906, %v3908
      %v3910 = vrot.slane %v3882, %v3909
      %v3911 = vcombine.low %v3889, %v3896
      %v3912 = vcombine.low %v3903, %v3910
      %v3914 = vunpack.c.l.s4 1966171168
      %v3915 = vunpack.c.0.s8 %v3914
      %v3916 = vlaneseq
      %v3917 = vshrl.u32 %v3916, 7
      %v3918 = vsub.s32 %v3915, %v3917
      %v3919 = vrot.slane %v3911, %v3918
      %v3921 = vunpack.c.l.s4 1966171168
      %v3922 = vunpack.c.0.s8 %v3921
      %v3923 = vlaneseq
      %v3924 = vshrl.u32 %v3923, 7
      %v3925 = vsub.s32 %v3922, %v3924
      %v3926 = vrot.slane %v3912, %v3925
      %v3927 = vcombine.low %v3919, %v3926
      %v3928 = vcombine.low %v1405, %v1406
      %v3929 = vcombine.low %v3427, %v1408
      %v3930 = vcombine.low %v1409, %v1410
      %v3931 = vcombine.low %v1411, %v1412
      %v3933 = vunpack.c.l.s4 1966171168
      %v3934 = vunpack.c.0.s8 %v3933
      %v3935 = vlaneseq
      %v3936 = vshrl.u32 %v3935, 7
      %v3937 = vsub.s32 %v3934, %v3936
      %v3938 = vrot.slane %v3928, %v3937
      %v3940 = vunpack.c.l.s4 1966171168
      %v3941 = vunpack.c.0.s8 %v3940
      %v3942 = vlaneseq
      %v3943 = vshrl.u32 %v3942, 7
      %v3944 = vsub.s32 %v3941, %v3943
      %v3945 = vrot.slane %v3929, %v3944
      %v3947 = vunpack.c.l.s4 1966171168
      %v3948 = vunpack.c.0.s8 %v3947
      %v3949 = vlaneseq
      %v3950 = vshrl.u32 %v3949, 7
      %v3951 = vsub.s32 %v3948, %v3950
      %v3952 = vrot.slane %v3930, %v3951
      %v3954 = vunpack.c.l.s4 1966171168
      %v3955 = vunpack.c.0.s8 %v3954
      %v3956 = vlaneseq
      %v3957 = vshrl.u32 %v3956, 7
      %v3958 = vsub.s32 %v3955, %v3957
      %v3959 = vrot.slane %v3931, %v3958
      %v3960 = vcombine.low %v3938, %v3945
      %v3961 = vcombine.low %v3952, %v3959
      %v3963 = vunpack.c.l.s4 1966171168
      %v3964 = vunpack.c.0.s8 %v3963
      %v3965 = vlaneseq
      %v3966 = vshrl.u32 %v3965, 7
      %v3967 = vsub.s32 %v3964, %v3966
      %v3968 = vrot.slane %v3960, %v3967
      %v3970 = vunpack.c.l.s4 1966171168
      %v3971 = vunpack.c.0.s8 %v3970
      %v3972 = vlaneseq
      %v3973 = vshrl.u32 %v3972, 7
      %v3974 = vsub.s32 %v3971, %v3973
      %v3975 = vrot.slane %v3961, %v3974
      %v3976 = vcombine.low %v3968, %v3975
      %v3977 = vcombine.low %v1413, %v1414
      %v3978 = vcombine.low %v3428, %v1416
      %v3979 = vcombine.low %v1417, %v1418
      %v3980 = vcombine.low %v1419, %v1420
      %v3982 = vunpack.c.l.s4 1966171168
      %v3983 = vunpack.c.0.s8 %v3982
      %v3984 = vlaneseq
      %v3985 = vshrl.u32 %v3984, 7
      %v3986 = vsub.s32 %v3983, %v3985
      %v3987 = vrot.slane %v3977, %v3986
      %v3989 = vunpack.c.l.s4 1966171168
      %v3990 = vunpack.c.0.s8 %v3989
      %v3991 = vlaneseq
      %v3992 = vshrl.u32 %v3991, 7
      %v3993 = vsub.s32 %v3990, %v3992
      %v3994 = vrot.slane %v3978, %v3993
      %v3996 = vunpack.c.l.s4 1966171168
      %v3997 = vunpack.c.0.s8 %v3996
      %v3998 = vlaneseq
      %v3999 = vshrl.u32 %v3998, 7
      %v4000 = vsub.s32 %v3997, %v3999
      %v4001 = vrot.slane %v3979, %v4000
      %v4003 = vunpack.c.l.s4 1966171168
      %v4004 = vunpack.c.0.s8 %v4003
      %v4005 = vlaneseq
      %v4006 = vshrl.u32 %v4005, 7
      %v4007 = vsub.s32 %v4004, %v4006
      %v4008 = vrot.slane %v3980, %v4007
      %v4009 = vcombine.low %v3987, %v3994
      %v4010 = vcombine.low %v4001, %v4008
      %v4012 = vunpack.c.l.s4 1966171168
      %v4013 = vunpack.c.0.s8 %v4012
      %v4014 = vlaneseq
      %v4015 = vshrl.u32 %v4014, 7
      %v4016 = vsub.s32 %v4013, %v4015
      %v4017 = vrot.slane %v4009, %v4016
      %v4019 = vunpack.c.l.s4 1966171168
      %v4020 = vunpack.c.0.s8 %v4019
      %v4021 = vlaneseq
      %v4022 = vshrl.u32 %v4021, 7
      %v4023 = vsub.s32 %v4020, %v4022
      %v4024 = vrot.slane %v4010, %v4023
      %v4025 = vcombine.low %v4017, %v4024
      %v4026 = vcombine.low %v1421, %v3429
      %v4027 = vcombine.low %v1423, %v1424
      %v4028 = vcombine.low %v1425, %v1426
      %v4029 = vcombine.low %v1427, %v1428
      %v4031 = vunpack.c.l.s4 1966171168
      %v4032 = vunpack.c.0.s8 %v4031
      %v4033 = vlaneseq
      %v4034 = vshrl.u32 %v4033, 7
      %v4035 = vsub.s32 %v4032, %v4034
      %v4036 = vrot.slane %v4026, %v4035
      %v4038 = vunpack.c.l.s4 1966171168
      %v4039 = vunpack.c.0.s8 %v4038
      %v4040 = vlaneseq
      %v4041 = vshrl.u32 %v4040, 7
      %v4042 = vsub.s32 %v4039, %v4041
      %v4043 = vrot.slane %v4027, %v4042
      %v4045 = vunpack.c.l.s4 1966171168
      %v4046 = vunpack.c.0.s8 %v4045
      %v4047 = vlaneseq
      %v4048 = vshrl.u32 %v4047, 7
      %v4049 = vsub.s32 %v4046, %v4048
      %v4050 = vrot.slane %v4028, %v4049
      %v4052 = vunpack.c.l.s4 1966171168
      %v4053 = vunpack.c.0.s8 %v4052
      %v4054 = vlaneseq
      %v4055 = vshrl.u32 %v4054, 7
      %v4056 = vsub.s32 %v4053, %v4055
      %v4057 = vrot.slane %v4029, %v4056
      %v4058 = vcombine.low %v4036, %v4043
      %v4059 = vcombine.low %v4050, %v4057
      %v4061 = vunpack.c.l.s4 1966171168
      %v4062 = vunpack.c.0.s8 %v4061
      %v4063 = vlaneseq
      %v4064 = vshrl.u32 %v4063, 7
      %v4065 = vsub.s32 %v4062, %v4064
      %v4066 = vrot.slane %v4058, %v4065
      %v4068 = vunpack.c.l.s4 1966171168
      %v4069 = vunpack.c.0.s8 %v4068
      %v4070 = vlaneseq
      %v4071 = vshrl.u32 %v4070, 7
      %v4072 = vsub.s32 %v4069, %v4071
      %v4073 = vrot.slane %v4059, %v4072
      %v4074 = vcombine.low %v4066, %v4073
      %v4075 = vcombine.low %v1429, %v3430
      %v4076 = vcombine.low %v3431, %v3432
      %v4077 = vcombine.low %v3433, %v3434
      %v4078 = vcombine.low %v3435, %v3436
      %v4080 = vunpack.c.l.s4 1966171168
      %v4081 = vunpack.c.0.s8 %v4080
      %v4082 = vlaneseq
      %v4083 = vshrl.u32 %v4082, 7
      %v4084 = vsub.s32 %v4081, %v4083
      %v4085 = vrot.slane %v4075, %v4084
      %v4087 = vunpack.c.l.s4 1966171168
      %v4088 = vunpack.c.0.s8 %v4087
      %v4089 = vlaneseq
      %v4090 = vshrl.u32 %v4089, 7
      %v4091 = vsub.s32 %v4088, %v4090
      %v4092 = vrot.slane %v4076, %v4091
      %v4094 = vunpack.c.l.s4 1966171168
      %v4095 = vunpack.c.0.s8 %v4094
      %v4096 = vlaneseq
      %v4097 = vshrl.u32 %v4096, 7
      %v4098 = vsub.s32 %v4095, %v4097
      %v4099 = vrot.slane %v4077, %v4098
      %v4101 = vunpack.c.l.s4 1966171168
      %v4102 = vunpack.c.0.s8 %v4101
      %v4103 = vlaneseq
      %v4104 = vshrl.u32 %v4103, 7
      %v4105 = vsub.s32 %v4102, %v4104
      %v4106 = vrot.slane %v4078, %v4105
      %v4107 = vcombine.low %v4085, %v4092
      %v4108 = vcombine.low %v4099, %v4106
      %v4110 = vunpack.c.l.s4 1966171168
      %v4111 = vunpack.c.0.s8 %v4110
      %v4112 = vlaneseq
      %v4113 = vshrl.u32 %v4112, 7
      %v4114 = vsub.s32 %v4111, %v4113
      %v4115 = vrot.slane %v4107, %v4114
      %v4117 = vunpack.c.l.s4 1966171168
      %v4118 = vunpack.c.0.s8 %v4117
      %v4119 = vlaneseq
      %v4120 = vshrl.u32 %v4119, 7
      %v4121 = vsub.s32 %v4118, %v4120
      %v4122 = vrot.slane %v4108, %v4121
      %v4123 = vcombine.low %v4115, %v4122
      %v4125 = vunpack.c.l.s4 1966171168
      %v4126 = vunpack.c.0.s8 %v4125
      %v4127 = vlaneseq
      %v4128 = vshrl.u32 %v4127, 7
      %v4129 = vsub.s32 %v4126, %v4128
      %v4130 = vrot.slane %v3413, %v4129
      %v4132 = vunpack.c.l.s4 1966171168
      %v4133 = vunpack.c.0.s8 %v4132
      %v4134 = vlaneseq
      %v4135 = vshrl.u32 %v4134, 7
      %v4136 = vsub.s32 %v4133, %v4135
      %v4137 = vrot.slane %v4130, %v4136
      %v4139 = vsel %vm2131, %v3486, 0
      %v4142 = vsel %vm2131, %v3535, 0
      %v4145 = vsel %vm2131, %v3584, 0
      %v4148 = vsel %vm2131, %v3633, 0
      %v4151 = vsel %vm2131, %v3682, 0
      %v4154 = vsel %vm2131, %v3731, 0
      %v4157 = vsel %vm2131, %v3780, 0
      %v4160 = vsel %vm2131, %v3829, 0
      %v4163 = vsel %vm2131, %v3878, 0
      %v4166 = vsel %vm2131, %v3927, 0
      %v4169 = vsel %vm2131, %v3976, 0
      %v4172 = vsel %vm2131, %v4025, 0
      %v4175 = vsel %vm2131, %v4074, 0
      %v4178 = vsel %vm2131, %v4123, 0
      %v4181 = vsel %vm2131, %v4137, 0
      %v4184 = vand.u32 %v3415, %v2180
      %4186 = vmatprep.subr.bf16.mxu0 0
      %4187 = vmatpush1.bf16.msra.mxu0 %v4184
      %4188 = vmatprep.subr.bf16.mxu0 0
      %4189 = vmatpush1.bf16.msra.mxu0 0
      %4190 = vmatprep.subr.bf16.mxu0 0
      %4191 = vmatpush1.bf16.msra.mxu0 0
      %4192 = vmatprep.subr.bf16.mxu0 0
      %4193 = vmatpush1.bf16.msra.mxu0 0
      %4194 = vmatprep.subr.bf16.mxu0 0
      %4195 = vmatpush1.bf16.msra.mxu0 0
      %4196 = vmatprep.subr.bf16.mxu0 0
      %4197 = vmatpush1.bf16.msra.mxu0 0
      %4198 = vmatprep.subr.bf16.mxu0 0
      %4199 = vmatpush1.bf16.msra.mxu0 0
      %4200 = vmatprep.subr.bf16.mxu0 0
      %4201 = vmatpush1.bf16.msra.mxu0 0
      %4202 = vmatprep.subr.bf16.mxu0 0
      %4203 = vmatpush1.bf16.msra.mxu0 0
      %4204 = vmatprep.subr.bf16.mxu0 0
      %4205 = vmatpush1.bf16.msra.mxu0 0
      %4206 = vmatprep.subr.bf16.mxu0 0
      %4207 = vmatpush1.bf16.msra.mxu0 0
      %4208 = vmatprep.subr.bf16.mxu0 0
      %4209 = vmatpush1.bf16.msra.mxu0 0
      %4210 = vmatprep.subr.bf16.mxu0 0
      %4211 = vmatpush1.bf16.msra.mxu0 0
      %4212 = vmatprep.subr.bf16.mxu0 0
      %4213 = vmatpush1.bf16.msra.mxu0 0
      %4214 = vmatprep.subr.bf16.mxu0 0
      %4215 = vmatpush1.bf16.msra.mxu0 0
      %4216 = vmatprep.subr.bf16.mxu0 0
      %4217 = vmatpush1.bf16.msra.mxu0 0
      %4218 = vmatprep.mubr.bf16.mxu0 0
      %4219 = vmatmul.mubr.bf16.gmra.mrb[0].mxu0 %v4139
      %v4220 = vpop.f32.mrb[0].mxu0
      %v4221 = vadd.f32 0.0, %v4220
      %v4222 = vpop.f32.mrb[0].mxu0
      %v4223 = vpop.f32.mrb[0].mxu0
      %v4224 = vadd.f32 0.0, %v4223
      %v4225 = vpop.f32.mrb[0].mxu0
      %4226 = vmatprep.mubr.bf16.mxu0 0
      %4227 = vmatmul.mubr.bf16.gmra.mrb[0].mxu0 %v4142
      %v4228 = vpop.f32.mrb[0].mxu0
      %v4229 = vadd.f32 0.0, %v4228
      %v4230 = vpop.f32.mrb[0].mxu0
      %v4231 = vpop.f32.mrb[0].mxu0
      %v4232 = vadd.f32 0.0, %v4231
      %v4233 = vpop.f32.mrb[0].mxu0
      %4234 = vmatprep.mubr.bf16.mxu0 0
      %4235 = vmatmul.mubr.bf16.gmra.mrb[0].mxu0 %v4145
      %v4236 = vpop.f32.mrb[0].mxu0
      %v4237 = vadd.f32 0.0, %v4236
      %v4238 = vpop.f32.mrb[0].mxu0
      %v4239 = vpop.f32.mrb[0].mxu0
      %v4240 = vadd.f32 0.0, %v4239
      %v4241 = vpop.f32.mrb[0].mxu0
      %4242 = vmatprep.mubr.bf16.mxu0 0
      %4243 = vmatmul.mubr.bf16.gmra.mrb[0].mxu0 %v4148
      %v4244 = vpop.f32.mrb[0].mxu0
      %v4245 = vadd.f32 0.0, %v4244
      %v4246 = vpop.f32.mrb[0].mxu0
      %v4247 = vpop.f32.mrb[0].mxu0
      %v4248 = vadd.f32 0.0, %v4247
      %v4249 = vpop.f32.mrb[0].mxu0
      %4250 = vmatprep.mubr.bf16.mxu0 0
      %4251 = vmatmul.mubr.bf16.gmra.mrb[0].mxu0 %v4151
      %v4252 = vpop.f32.mrb[0].mxu0
      %v4253 = vadd.f32 0.0, %v4252
      %v4254 = vpop.f32.mrb[0].mxu0
      %v4255 = vpop.f32.mrb[0].mxu0
      %v4256 = vadd.f32 0.0, %v4255
      %v4257 = vpop.f32.mrb[0].mxu0
      %4258 = vmatprep.mubr.bf16.mxu0 0
      %4259 = vmatmul.mubr.bf16.gmra.mrb[0].mxu0 %v4154
      %v4260 = vpop.f32.mrb[0].mxu0
      %v4261 = vadd.f32 0.0, %v4260
      %v4262 = vpop.f32.mrb[0].mxu0
      %v4263 = vpop.f32.mrb[0].mxu0
      %v4264 = vadd.f32 0.0, %v4263
      %v4265 = vpop.f32.mrb[0].mxu0
      %4266 = vmatprep.mubr.bf16.mxu0 0
      %4267 = vmatmul.mubr.bf16.gmra.mrb[0].mxu0 %v4157
      %v4268 = vpop.f32.mrb[0].mxu0
      %v4269 = vadd.f32 0.0, %v4268
      %v4270 = vpop.f32.mrb[0].mxu0
      %v4271 = vpop.f32.mrb[0].mxu0
      %v4272 = vadd.f32 0.0, %v4271
      %v4273 = vpop.f32.mrb[0].mxu0
      %4274 = vmatprep.mubr.bf16.mxu0 0
      %4275 = vmatmul.mubr.bf16.gmra.mrb[0].mxu0 %v4160
      %v4276 = vpop.f32.mrb[0].mxu0
      %v4277 = vadd.f32 0.0, %v4276
      %v4278 = vpop.f32.mrb[0].mxu0
      %v4279 = vpop.f32.mrb[0].mxu0
      %v4280 = vadd.f32 0.0, %v4279
      %v4281 = vpop.f32.mrb[0].mxu0
      %4282 = vmatprep.mubr.bf16.mxu0 0
      %4283 = vmatmul.mubr.bf16.gmra.mrb[0].mxu0 %v4163
      %v4284 = vpop.f32.mrb[0].mxu0
      %v4285 = vadd.f32 0.0, %v4284
      %v4286 = vpop.f32.mrb[0].mxu0
      %v4287 = vpop.f32.mrb[0].mxu0
      %v4288 = vadd.f32 0.0, %v4287
      %v4289 = vpop.f32.mrb[0].mxu0
      %4290 = vmatprep.mubr.bf16.mxu0 0
      %4291 = vmatmul.mubr.bf16.gmra.mrb[0].mxu0 %v4166
      %v4292 = vpop.f32.mrb[0].mxu0
      %v4293 = vadd.f32 0.0, %v4292
      %v4294 = vpop.f32.mrb[0].mxu0
      %v4295 = vpop.f32.mrb[0].mxu0
      %v4296 = vadd.f32 0.0, %v4295
      %v4297 = vpop.f32.mrb[0].mxu0
      %4298 = vmatprep.mubr.bf16.mxu0 0
      %4299 = vmatmul.mubr.bf16.gmra.mrb[0].mxu0 %v4169
      %v4300 = vpop.f32.mrb[0].mxu0
      %v4301 = vadd.f32 0.0, %v4300
      %v4302 = vpop.f32.mrb[0].mxu0
      %v4303 = vpop.f32.mrb[0].mxu0
      %v4304 = vadd.f32 0.0, %v4303
      %v4305 = vpop.f32.mrb[0].mxu0
      %4306 = vmatprep.mubr.bf16.mxu0 0
      %4307 = vmatmul.mubr.bf16.gmra.mrb[0].mxu0 %v4172
      %v4308 = vpop.f32.mrb[0].mxu0
      %v4309 = vadd.f32 0.0, %v4308
      %v4310 = vpop.f32.mrb[0].mxu0
      %v4311 = vpop.f32.mrb[0].mxu0
      %v4312 = vadd.f32 0.0, %v4311
      %v4313 = vpop.f32.mrb[0].mxu0
      %4314 = vmatprep.mubr.bf16.mxu0 0
      %4315 = vmatmul.mubr.bf16.gmra.mrb[0].mxu0 %v4175
      %v4316 = vpop.f32.mrb[0].mxu0
      %v4317 = vadd.f32 0.0, %v4316
      %v4318 = vpop.f32.mrb[0].mxu0
      %v4319 = vpop.f32.mrb[0].mxu0
      %v4320 = vadd.f32 0.0, %v4319
      %v4321 = vpop.f32.mrb[0].mxu0
      %4322 = vmatprep.mubr.bf16.mxu0 0
      %4323 = vmatmul.mubr.bf16.gmra.mrb[0].mxu0 %v4178
      %v4324 = vpop.f32.mrb[0].mxu0
      %v4325 = vadd.f32 0.0, %v4324
      %v4326 = vpop.f32.mrb[0].mxu0
      %v4327 = vpop.f32.mrb[0].mxu0
      %v4328 = vadd.f32 0.0, %v4327
      %v4329 = vpop.f32.mrb[0].mxu0
      %4330 = vmatprep.mubr.bf16.mxu0 0
      %4331 = vmatmul.mubr.bf16.gmra.mrb[0].mxu0 %v4181
      %v4332 = vpop.f32.mrb[0].mxu0
      %v4333 = vadd.f32 0.0, %v4332
      %v4334 = vpop.f32.mrb[0].mxu0
      %v4335 = vpop.f32.mrb[0].mxu0
      %v4336 = vpop.f32.mrb[0].mxu0
      %4337 = vdwg.mxu0
      %v4338 = vadd.f32 %v3232, %v4221
      %v4339 = vadd.f32 %v3235, %v4224
      %v4340 = vadd.f32 %v3240, %v4229
      %v4341 = vadd.f32 %v3243, %v4232
      %v4342 = vadd.f32 %v3248, %v4237
      %v4343 = vadd.f32 %v3251, %v4240
      %v4344 = vadd.f32 %v3256, %v4245
      %v4345 = vadd.f32 %v3259, %v4248
      %v4346 = vadd.f32 %v3264, %v4253
      %v4347 = vadd.f32 %v3267, %v4256
      %v4348 = vadd.f32 %v3272, %v4261
      %v4349 = vadd.f32 %v3275, %v4264
      %v4350 = vadd.f32 %v3280, %v4269
      %v4351 = vadd.f32 %v3283, %v4272
      %v4352 = vadd.f32 %v3288, %v4277
      %v4353 = vadd.f32 %v3291, %v4280
      %v4354 = vadd.f32 %v3296, %v4285
      %v4355 = vadd.f32 %v3299, %v4288
      %v4356 = vadd.f32 %v3304, %v4293
      %v4357 = vadd.f32 %v3307, %v4296
      %v4358 = vadd.f32 %v3312, %v4301
      %v4359 = vadd.f32 %v3315, %v4304
      %v4360 = vadd.f32 %v3320, %v4309
      %v4361 = vadd.f32 %v3323, %v4312
      %v4362 = vadd.f32 %v3328, %v4317
      %v4363 = vadd.f32 %v3331, %v4320
      %v4364 = vadd.f32 %v3336, %v4325
      %v4365 = vadd.f32 %v3339, %v4328
      %v4366 = vadd.f32 %v3344, %v4333
      %v4367 = vunpack.i.h.s16 %v3398
      %s4368 = scalar_lea.vmem %s1, 6
      %v4369 = vld [vmem:[%s4368] sm:$0x3]
      %v4370 = vpack.i.b16 %v1106, %v1302
      %v4371 = vpack.i.b16 %v1303, %v1119
      %v4372 = vpack.i.b16 %v1136, %v1304
      %v4373 = vpack.i.b16 %v1305, %v1149
      %v4374 = vpack.i.b16 %v1166, %v1306
      %v4375 = vpack.i.b16 %v1307, %v1179
      %v4376 = vpack.i.b16 %v1196, %v1308
      %v4377 = vpack.i.b16 %v1309, %v1209
      %v4378 = vpack.i.b16 %v1226, %v1310
      %v4379 = vpack.i.b16 %v1311, %v1239
      %v4380 = vpack.i.b16 %v1256, %v1312
      %v4381 = vpack.i.b16 %v1313, %v1269
      %v4382 = vpack.i.b16 %v1286, %v1314
      %v4383 = vpack.i.b16 %v1315, %v1299
      %v4384 = vpack.i.b16 %v3401, %v3400
      %v4385 = vpack.i.b16 %v3403, %v3402
      %v4386 = vpack.i.b16 %v3405, %v3404
      %v4387 = vpack.i.b16 %v3407, %v3406
      %v4388 = vpack.i.b16 %v3409, %v3408
      %v4389 = vpack.i.b16 %v3411, %v3410
      %v4390 = vpack.i.b16 %v3413, %v3412
      %v4392 = vcombine.low %v2350, %v4370
      %v4394 = vunpack.c.l.s4 1966171168
      %v4395 = vunpack.c.0.s8 %v4394
      %v4396 = vlaneseq
      %v4397 = vshrl.u32 %v4396, 7
      %v4398 = vsub.s32 %v4395, %v4397
      %v4399 = vrot.slane %v4392, %v4398
      %v4400 = vcombine.low %v2522, %v4399
      %v4402 = vunpack.c.l.s4 1966171168
      %v4403 = vunpack.c.0.s8 %v4402
      %v4404 = vlaneseq
      %v4405 = vshrl.u32 %v4404, 7
      %v4406 = vsub.s32 %v4403, %v4405
      %v4407 = vrot.slane %v4400, %v4406
      %v4408 = vcombine.low %v2538, %v4407
      %v4409 = vcombine.low %v4371, %v2359
      %v4411 = vunpack.c.l.s4 1966171168
      %v4412 = vunpack.c.0.s8 %v4411
      %v4413 = vlaneseq
      %v4414 = vshrl.u32 %v4413, 7
      %v4415 = vsub.s32 %v4412, %v4414
      %v4416 = vrot.slane %v4409, %v4415
      %v4417 = vcombine.low %v2571, %v4416
      %v4419 = vunpack.c.l.s4 1966171168
      %v4420 = vunpack.c.0.s8 %v4419
      %v4421 = vlaneseq
      %v4422 = vshrl.u32 %v4421, 7
      %v4423 = vsub.s32 %v4420, %v4422
      %v4424 = vrot.slane %v4417, %v4423
      %v4425 = vcombine.low %v2587, %v4424
      %v4426 = vcombine.low %v4372, %v2367
      %v4428 = vunpack.c.l.s4 1966171168
      %v4429 = vunpack.c.0.s8 %v4428
      %v4430 = vlaneseq
      %v4431 = vshrl.u32 %v4430, 7
      %v4432 = vsub.s32 %v4429, %v4431
      %v4433 = vrot.slane %v4426, %v4432
      %v4434 = vcombine.low %v2620, %v4433
      %v4436 = vunpack.c.l.s4 1966171168
      %v4437 = vunpack.c.0.s8 %v4436
      %v4438 = vlaneseq
      %v4439 = vshrl.u32 %v4438, 7
      %v4440 = vsub.s32 %v4437, %v4439
      %v4441 = vrot.slane %v4434, %v4440
      %v4442 = vcombine.low %v2636, %v4441
      %v4443 = vcombine.low %v2372, %v4373
      %v4445 = vunpack.c.l.s4 1966171168
      %v4446 = vunpack.c.0.s8 %v4445
      %v4447 = vlaneseq
      %v4448 = vshrl.u32 %v4447, 7
      %v4449 = vsub.s32 %v4446, %v4448
      %v4450 = vrot.slane %v4443, %v4449
      %v4451 = vcombine.low %v4450, %v2676
      %v4453 = vunpack.c.l.s4 1966171168
      %v4454 = vunpack.c.0.s8 %v4453
      %v4455 = vlaneseq
      %v4456 = vshrl.u32 %v4455, 7
      %v4457 = vsub.s32 %v4454, %v4456
      %v4458 = vrot.slane %v4451, %v4457
      %v4459 = vcombine.low %v2685, %v4458
      %v4460 = vcombine.low %v2380, %v4374
      %v4462 = vunpack.c.l.s4 1966171168
      %v4463 = vunpack.c.0.s8 %v4462
      %v4464 = vlaneseq
      %v4465 = vshrl.u32 %v4464, 7
      %v4466 = vsub.s32 %v4463, %v4465
      %v4467 = vrot.slane %v4460, %v4466
      %v4468 = vcombine.low %v4467, %v2725
      %v4470 = vunpack.c.l.s4 1966171168
      %v4471 = vunpack.c.0.s8 %v4470
      %v4472 = vlaneseq
      %v4473 = vshrl.u32 %v4472, 7
      %v4474 = vsub.s32 %v4471, %v4473
      %v4475 = vrot.slane %v4468, %v4474
      %v4476 = vcombine.low %v2734, %v4475
      %v4477 = vcombine.low %v4375, %v2389
      %v4479 = vunpack.c.l.s4 1966171168
      %v4480 = vunpack.c.0.s8 %v4479
      %v4481 = vlaneseq
      %v4482 = vshrl.u32 %v4481, 7
      %v4483 = vsub.s32 %v4480, %v4482
      %v4484 = vrot.slane %v4477, %v4483
      %v4485 = vcombine.low %v4484, %v2774
      %v4487 = vunpack.c.l.s4 1966171168
      %v4488 = vunpack.c.0.s8 %v4487
      %v4489 = vlaneseq
      %v4490 = vshrl.u32 %v4489, 7
      %v4491 = vsub.s32 %v4488, %v4490
      %v4492 = vrot.slane %v4485, %v4491
      %v4493 = vcombine.low %v2783, %v4492
      %v4494 = vcombine.low %v4376, %v2397
      %v4496 = vunpack.c.l.s4 1966171168
      %v4497 = vunpack.c.0.s8 %v4496
      %v4498 = vlaneseq
      %v4499 = vshrl.u32 %v4498, 7
      %v4500 = vsub.s32 %v4497, %v4499
      %v4501 = vrot.slane %v4494, %v4500
      %v4502 = vcombine.low %v4501, %v2823
      %v4504 = vunpack.c.l.s4 1966171168
      %v4505 = vunpack.c.0.s8 %v4504
      %v4506 = vlaneseq
      %v4507 = vshrl.u32 %v4506, 7
      %v4508 = vsub.s32 %v4505, %v4507
      %v4509 = vrot.slane %v4502, %v4508
      %v4510 = vcombine.low %v2832, %v4509
      %v4511 = vcombine.low %v2402, %v4377
      %v4513 = vunpack.c.l.s4 1966171168
      %v4514 = vunpack.c.0.s8 %v4513
      %v4515 = vlaneseq
      %v4516 = vshrl.u32 %v4515, 7
      %v4517 = vsub.s32 %v4514, %v4516
      %v4518 = vrot.slane %v4511, %v4517
      %v4519 = vcombine.low %v2851, %v4518
      %v4521 = vunpack.c.l.s4 1966171168
      %v4522 = vunpack.c.0.s8 %v4521
      %v4523 = vlaneseq
      %v4524 = vshrl.u32 %v4523, 7
      %v4525 = vsub.s32 %v4522, %v4524
      %v4526 = vrot.slane %v4519, %v4525
      %v4527 = vcombine.low %v4526, %v2888
      %v4528 = vcombine.low %v2410, %v4378
      %v4530 = vunpack.c.l.s4 1966171168
      %v4531 = vunpack.c.0.s8 %v4530
      %v4532 = vlaneseq
      %v4533 = vshrl.u32 %v4532, 7
      %v4534 = vsub.s32 %v4531, %v4533
      %v4535 = vrot.slane %v4528, %v4534
      %v4536 = vcombine.low %v2900, %v4535
      %v4538 = vunpack.c.l.s4 1966171168
      %v4539 = vunpack.c.0.s8 %v4538
      %v4540 = vlaneseq
      %v4541 = vshrl.u32 %v4540, 7
      %v4542 = vsub.s32 %v4539, %v4541
      %v4543 = vrot.slane %v4536, %v4542
      %v4544 = vcombine.low %v4543, %v2937
      %v4545 = vcombine.low %v4379, %v2419
      %v4547 = vunpack.c.l.s4 1966171168
      %v4548 = vunpack.c.0.s8 %v4547
      %v4549 = vlaneseq
      %v4550 = vshrl.u32 %v4549, 7
      %v4551 = vsub.s32 %v4548, %v4550
      %v4552 = vrot.slane %v4545, %v4551
      %v4553 = vcombine.low %v2949, %v4552
      %v4555 = vunpack.c.l.s4 1966171168
      %v4556 = vunpack.c.0.s8 %v4555
      %v4557 = vlaneseq
      %v4558 = vshrl.u32 %v4557, 7
      %v4559 = vsub.s32 %v4556, %v4558
      %v4560 = vrot.slane %v4553, %v4559
      %v4561 = vcombine.low %v4560, %v2986
      %v4562 = vcombine.low %v4380, %v2427
      %v4564 = vunpack.c.l.s4 1966171168
      %v4565 = vunpack.c.0.s8 %v4564
      %v4566 = vlaneseq
      %v4567 = vshrl.u32 %v4566, 7
      %v4568 = vsub.s32 %v4565, %v4567
      %v4569 = vrot.slane %v4562, %v4568
      %v4570 = vcombine.low %v2998, %v4569
      %v4572 = vunpack.c.l.s4 1966171168
      %v4573 = vunpack.c.0.s8 %v4572
      %v4574 = vlaneseq
      %v4575 = vshrl.u32 %v4574, 7
      %v4576 = vsub.s32 %v4573, %v4575
      %v4577 = vrot.slane %v4570, %v4576
      %v4578 = vcombine.low %v4577, %v3035
      %v4579 = vcombine.low %v2432, %v4381
      %v4581 = vunpack.c.l.s4 1966171168
      %v4582 = vunpack.c.0.s8 %v4581
      %v4583 = vlaneseq
      %v4584 = vshrl.u32 %v4583, 7
      %v4585 = vsub.s32 %v4582, %v4584
      %v4586 = vrot.slane %v4579, %v4585
      %v4587 = vcombine.low %v4586, %v3054
      %v4589 = vunpack.c.l.s4 1966171168
      %v4590 = vunpack.c.0.s8 %v4589
      %v4591 = vlaneseq
      %v4592 = vshrl.u32 %v4591, 7
      %v4593 = vsub.s32 %v4590, %v4592
      %v4594 = vrot.slane %v4587, %v4593
      %v4595 = vcombine.low %v4594, %v3084
      %v4596 = vcombine.low %v2440, %v4382
      %v4598 = vunpack.c.l.s4 1966171168
      %v4599 = vunpack.c.0.s8 %v4598
      %v4600 = vlaneseq
      %v4601 = vshrl.u32 %v4600, 7
      %v4602 = vsub.s32 %v4599, %v4601
      %v4603 = vrot.slane %v4596, %v4602
      %v4604 = vcombine.low %v4603, %v3103
      %v4606 = vunpack.c.l.s4 1966171168
      %v4607 = vunpack.c.0.s8 %v4606
      %v4608 = vlaneseq
      %v4609 = vshrl.u32 %v4608, 7
      %v4610 = vsub.s32 %v4607, %v4609
      %v4611 = vrot.slane %v4604, %v4610
      %v4612 = vcombine.low %v4611, %v3133
      %v4613 = vcombine.low %v4383, %v4384
      %v4614 = vcombine.low %v4385, %v4386
      %v4615 = vcombine.low %v4387, %v4388
      %v4616 = vcombine.low %v4389, %v4390
      %v4618 = vunpack.c.l.s4 1966171168
      %v4619 = vunpack.c.0.s8 %v4618
      %v4620 = vlaneseq
      %v4621 = vshrl.u32 %v4620, 7
      %v4622 = vsub.s32 %v4619, %v4621
      %v4623 = vrot.slane %v4613, %v4622
      %v4625 = vunpack.c.l.s4 1966171168
      %v4626 = vunpack.c.0.s8 %v4625
      %v4627 = vlaneseq
      %v4628 = vshrl.u32 %v4627, 7
      %v4629 = vsub.s32 %v4626, %v4628
      %v4630 = vrot.slane %v4614, %v4629
      %v4632 = vunpack.c.l.s4 1966171168
      %v4633 = vunpack.c.0.s8 %v4632
      %v4634 = vlaneseq
      %v4635 = vshrl.u32 %v4634, 7
      %v4636 = vsub.s32 %v4633, %v4635
      %v4637 = vrot.slane %v4615, %v4636
      %v4639 = vunpack.c.l.s4 1966171168
      %v4640 = vunpack.c.0.s8 %v4639
      %v4641 = vlaneseq
      %v4642 = vshrl.u32 %v4641, 7
      %v4643 = vsub.s32 %v4640, %v4642
      %v4644 = vrot.slane %v4616, %v4643
      %v4645 = vcombine.low %v4623, %v4630
      %v4646 = vcombine.low %v4637, %v4644
      %v4648 = vunpack.c.l.s4 1966171168
      %v4649 = vunpack.c.0.s8 %v4648
      %v4650 = vlaneseq
      %v4651 = vshrl.u32 %v4650, 7
      %v4652 = vsub.s32 %v4649, %v4651
      %v4653 = vrot.slane %v4645, %v4652
      %v4655 = vunpack.c.l.s4 1966171168
      %v4656 = vunpack.c.0.s8 %v4655
      %v4657 = vlaneseq
      %v4658 = vshrl.u32 %v4657, 7
      %v4659 = vsub.s32 %v4656, %v4658
      %v4660 = vrot.slane %v4646, %v4659
      %v4661 = vcombine.low %v4653, %v4660
      %v4663 = vunpack.c.l.s4 1966171168
      %v4664 = vunpack.c.0.s8 %v4663
      %v4665 = vlaneseq
      %v4666 = vshrl.u32 %v4665, 7
      %v4667 = vsub.s32 %v4664, %v4666
      %v4668 = vrot.slane %v4367, %v4667
      %v4670 = vunpack.c.l.s4 1966171168
      %v4671 = vunpack.c.0.s8 %v4670
      %v4672 = vlaneseq
      %v4673 = vshrl.u32 %v4672, 7
      %v4674 = vsub.s32 %v4671, %v4673
      %v4675 = vrot.slane %v4668, %v4674
      %v4677 = vsel %vm2131, %v4408, 0
      %v4680 = vsel %vm2131, %v4425, 0
      %v4683 = vsel %vm2131, %v4442, 0
      %v4686 = vsel %vm2131, %v4459, 0
      %v4689 = vsel %vm2131, %v4476, 0
      %v4692 = vsel %vm2131, %v4493, 0
      %v4695 = vsel %vm2131, %v4510, 0
      %v4698 = vsel %vm2131, %v4527, 0
      %v4701 = vsel %vm2131, %v4544, 0
      %v4704 = vsel %vm2131, %v4561, 0
      %v4707 = vsel %vm2131, %v4578, 0
      %v4710 = vsel %vm2131, %v4595, 0
      %v4713 = vsel %vm2131, %v4612, 0
      %v4716 = vsel %vm2131, %v4661, 0
      %v4719 = vsel %vm2131, %v4675, 0
      %v4722 = vand.u32 %v4369, %v2180
      %4724 = vmatprep.subr.bf16.mxu0 0
      %4725 = vmatpush1.bf16.msra.mxu0 %v4722
      %4726 = vmatprep.subr.bf16.mxu0 0
      %4727 = vmatpush1.bf16.msra.mxu0 0
      %4728 = vmatprep.subr.bf16.mxu0 0
      %4729 = vmatpush1.bf16.msra.mxu0 0
      %4730 = vmatprep.subr.bf16.mxu0 0
      %4731 = vmatpush1.bf16.msra.mxu0 0
      %4732 = vmatprep.subr.bf16.mxu0 0
      %4733 = vmatpush1.bf16.msra.mxu0 0
      %4734 = vmatprep.subr.bf16.mxu0 0
      %4735 = vmatpush1.bf16.msra.mxu0 0
      %4736 = vmatprep.subr.bf16.mxu0 0
      %4737 = vmatpush1.bf16.msra.mxu0 0
      %4738 = vmatprep.subr.bf16.mxu0 0
      %4739 = vmatpush1.bf16.msra.mxu0 0
      %4740 = vmatprep.subr.bf16.mxu0 0
      %4741 = vmatpush1.bf16.msra.mxu0 0
      %4742 = vmatprep.subr.bf16.mxu0 0
      %4743 = vmatpush1.bf16.msra.mxu0 0
      %4744 = vmatprep.subr.bf16.mxu0 0
      %4745 = vmatpush1.bf16.msra.mxu0 0
      %4746 = vmatprep.subr.bf16.mxu0 0
      %4747 = vmatpush1.bf16.msra.mxu0 0
      %4748 = vmatprep.subr.bf16.mxu0 0
      %4749 = vmatpush1.bf16.msra.mxu0 0
      %4750 = vmatprep.subr.bf16.mxu0 0
      %4751 = vmatpush1.bf16.msra.mxu0 0
      %4752 = vmatprep.subr.bf16.mxu0 0
      %4753 = vmatpush1.bf16.msra.mxu0 0
      %4754 = vmatprep.subr.bf16.mxu0 0
      %4755 = vmatpush1.bf16.msra.mxu0 0
      %4756 = vmatprep.mubr.bf16.mxu0 0
      %4757 = vmatmul.mubr.bf16.gmra.mrb[0].mxu0 %v4677
      %v4758 = vpop.f32.mrb[0].mxu0
      %v4759 = vadd.f32 0.0, %v4758
      %v4760 = vpop.f32.mrb[0].mxu0
      %v4761 = vpop.f32.mrb[0].mxu0
      %v4762 = vadd.f32 0.0, %v4761
      %v4763 = vpop.f32.mrb[0].mxu0
      %4764 = vmatprep.mubr.bf16.mxu0 0
      %4765 = vmatmul.mubr.bf16.gmra.mrb[0].mxu0 %v4680
      %v4766 = vpop.f32.mrb[0].mxu0
      %v4767 = vadd.f32 0.0, %v4766
      %v4768 = vpop.f32.mrb[0].mxu0
      %v4769 = vpop.f32.mrb[0].mxu0
      %v4770 = vadd.f32 0.0, %v4769
      %v4771 = vpop.f32.mrb[0].mxu0
      %4772 = vmatprep.mubr.bf16.mxu0 0
      %4773 = vmatmul.mubr.bf16.gmra.mrb[0].mxu0 %v4683
      %v4774 = vpop.f32.mrb[0].mxu0
      %v4775 = vadd.f32 0.0, %v4774
      %v4776 = vpop.f32.mrb[0].mxu0
      %v4777 = vpop.f32.mrb[0].mxu0
      %v4778 = vadd.f32 0.0, %v4777
      %v4779 = vpop.f32.mrb[0].mxu0
      %4780 = vmatprep.mubr.bf16.mxu0 0
      %4781 = vmatmul.mubr.bf16.gmra.mrb[0].mxu0 %v4686
      %v4782 = vpop.f32.mrb[0].mxu0
      %v4783 = vadd.f32 0.0, %v4782
      %v4784 = vpop.f32.mrb[0].mxu0
      %v4785 = vpop.f32.mrb[0].mxu0
      %v4786 = vadd.f32 0.0, %v4785
      %v4787 = vpop.f32.mrb[0].mxu0
      %4788 = vmatprep.mubr.bf16.mxu0 0
      %4789 = vmatmul.mubr.bf16.gmra.mrb[0].mxu0 %v4689
      %v4790 = vpop.f32.mrb[0].mxu0
      %v4791 = vadd.f32 0.0, %v4790
      %v4792 = vpop.f32.mrb[0].mxu0
      %v4793 = vpop.f32.mrb[0].mxu0
      %v4794 = vadd.f32 0.0, %v4793
      %v4795 = vpop.f32.mrb[0].mxu0
      %4796 = vmatprep.mubr.bf16.mxu0 0
      %4797 = vmatmul.mubr.bf16.gmra.mrb[0].mxu0 %v4692
      %v4798 = vpop.f32.mrb[0].mxu0
      %v4799 = vadd.f32 0.0, %v4798
      %v4800 = vpop.f32.mrb[0].mxu0
      %v4801 = vpop.f32.mrb[0].mxu0
      %v4802 = vadd.f32 0.0, %v4801
      %v4803 = vpop.f32.mrb[0].mxu0
      %4804 = vmatprep.mubr.bf16.mxu0 0
      %4805 = vmatmul.mubr.bf16.gmra.mrb[0].mxu0 %v4695
      %v4806 = vpop.f32.mrb[0].mxu0
      %v4807 = vadd.f32 0.0, %v4806
      %v4808 = vpop.f32.mrb[0].mxu0
      %v4809 = vpop.f32.mrb[0].mxu0
      %v4810 = vadd.f32 0.0, %v4809
      %v4811 = vpop.f32.mrb[0].mxu0
      %4812 = vmatprep.mubr.bf16.mxu0 0
      %4813 = vmatmul.mubr.bf16.gmra.mrb[0].mxu0 %v4698
      %v4814 = vpop.f32.mrb[0].mxu0
      %v4815 = vadd.f32 0.0, %v4814
      %v4816 = vpop.f32.mrb[0].mxu0
      %v4817 = vpop.f32.mrb[0].mxu0
      %v4818 = vadd.f32 0.0, %v4817
      %v4819 = vpop.f32.mrb[0].mxu0
      %4820 = vmatprep.mubr.bf16.mxu0 0
      %4821 = vmatmul.mubr.bf16.gmra.mrb[0].mxu0 %v4701
      %v4822 = vpop.f32.mrb[0].mxu0
      %v4823 = vadd.f32 0.0, %v4822
      %v4824 = vpop.f32.mrb[0].mxu0
      %v4825 = vpop.f32.mrb[0].mxu0
      %v4826 = vadd.f32 0.0, %v4825
      %v4827 = vpop.f32.mrb[0].mxu0
      %4828 = vmatprep.mubr.bf16.mxu0 0
      %4829 = vmatmul.mubr.bf16.gmra.mrb[0].mxu0 %v4704
      %v4830 = vpop.f32.mrb[0].mxu0
      %v4831 = vadd.f32 0.0, %v4830
      %v4832 = vpop.f32.mrb[0].mxu0
      %v4833 = vpop.f32.mrb[0].mxu0
      %v4834 = vadd.f32 0.0, %v4833
      %v4835 = vpop.f32.mrb[0].mxu0
      %4836 = vmatprep.mubr.bf16.mxu0 0
      %4837 = vmatmul.mubr.bf16.gmra.mrb[0].mxu0 %v4707
      %v4838 = vpop.f32.mrb[0].mxu0
      %v4839 = vadd.f32 0.0, %v4838
      %v4840 = vpop.f32.mrb[0].mxu0
      %v4841 = vpop.f32.mrb[0].mxu0
      %v4842 = vadd.f32 0.0, %v4841
      %v4843 = vpop.f32.mrb[0].mxu0
      %4844 = vmatprep.mubr.bf16.mxu0 0
      %4845 = vmatmul.mubr.bf16.gmra.mrb[0].mxu0 %v4710
      %v4846 = vpop.f32.mrb[0].mxu0
      %v4847 = vadd.f32 0.0, %v4846
      %v4848 = vpop.f32.mrb[0].mxu0
      %v4849 = vpop.f32.mrb[0].mxu0
      %v4850 = vadd.f32 0.0, %v4849
      %v4851 = vpop.f32.mrb[0].mxu0
      %4852 = vmatprep.mubr.bf16.mxu0 0
      %4853 = vmatmul.mubr.bf16.gmra.mrb[0].mxu0 %v4713
      %v4854 = vpop.f32.mrb[0].mxu0
      %v4855 = vadd.f32 0.0, %v4854
      %v4856 = vpop.f32.mrb[0].mxu0
      %v4857 = vpop.f32.mrb[0].mxu0
      %v4858 = vadd.f32 0.0, %v4857
      %v4859 = vpop.f32.mrb[0].mxu0
      %4860 = vmatprep.mubr.bf16.mxu0 0
      %4861 = vmatmul.mubr.bf16.gmra.mrb[0].mxu0 %v4716
      %v4862 = vpop.f32.mrb[0].mxu0
      %v4863 = vadd.f32 0.0, %v4862
      %v4864 = vpop.f32.mrb[0].mxu0
      %v4865 = vpop.f32.mrb[0].mxu0
      %v4866 = vadd.f32 0.0, %v4865
      %v4867 = vpop.f32.mrb[0].mxu0
      %4868 = vmatprep.mubr.bf16.mxu0 0
      %4869 = vmatmul.mubr.bf16.gmra.mrb[0].mxu0 %v4719
      %v4870 = vpop.f32.mrb[0].mxu0
      %v4871 = vadd.f32 0.0, %v4870
      %v4872 = vpop.f32.mrb[0].mxu0
      %v4873 = vpop.f32.mrb[0].mxu0
      %v4874 = vpop.f32.mrb[0].mxu0
      %4875 = vdwg.mxu0
      %v4876 = vadd.f32 %v4338, %v4759
      %v4877 = vadd.f32 %v4339, %v4762
      %v4878 = vadd.f32 %v4340, %v4767
      %v4879 = vadd.f32 %v4341, %v4770
      %v4880 = vadd.f32 %v4342, %v4775
      %v4881 = vadd.f32 %v4343, %v4778
      %v4882 = vadd.f32 %v4344, %v4783
      %v4883 = vadd.f32 %v4345, %v4786
      %v4884 = vadd.f32 %v4346, %v4791
      %v4885 = vadd.f32 %v4347, %v4794
      %v4886 = vadd.f32 %v4348, %v4799
      %v4887 = vadd.f32 %v4349, %v4802
      %v4888 = vadd.f32 %v4350, %v4807
      %v4889 = vadd.f32 %v4351, %v4810
      %v4890 = vadd.f32 %v4352, %v4815
      %v4891 = vadd.f32 %v4353, %v4818
      %v4892 = vadd.f32 %v4354, %v4823
      %v4893 = vadd.f32 %v4355, %v4826
      %v4894 = vadd.f32 %v4356, %v4831
      %v4895 = vadd.f32 %v4357, %v4834
      %v4896 = vadd.f32 %v4358, %v4839
      %v4897 = vadd.f32 %v4359, %v4842
      %v4898 = vadd.f32 %v4360, %v4847
      %v4899 = vadd.f32 %v4361, %v4850
      %v4900 = vadd.f32 %v4362, %v4855
      %v4901 = vadd.f32 %v4363, %v4858
      %v4902 = vadd.f32 %v4364, %v4863
      %v4903 = vadd.f32 %v4365, %v4866
      %v4904 = vadd.f32 %v4366, %v4871
      %v4905 = vld [vmem:[%s2] sm:$0x1]
      %v4907 = vlaneseq
      %v4908 = vshrl.u32 %v4907, 7
      %v4909 = vsub.s32 0, %v4908
      %v4910 = vrot.slane %v4905, %v4909
      %v4912 = vadd.f32 %v4876, %v4910
      %v4913 = vadd.f32 %v4877, %v4910
      %v4914 = vadd.f32 %v4878, %v4910
      %v4915 = vadd.f32 %v4879, %v4910
      %v4916 = vadd.f32 %v4880, %v4910
      %v4917 = vadd.f32 %v4881, %v4910
      %v4918 = vadd.f32 %v4882, %v4910
      %v4919 = vadd.f32 %v4883, %v4910
      %v4920 = vadd.f32 %v4884, %v4910
      %v4921 = vadd.f32 %v4885, %v4910
      %v4922 = vadd.f32 %v4886, %v4910
      %v4923 = vadd.f32 %v4887, %v4910
      %v4924 = vadd.f32 %v4888, %v4910
      %v4925 = vadd.f32 %v4889, %v4910
      %v4926 = vadd.f32 %v4890, %v4910
      %v4927 = vadd.f32 %v4891, %v4910
      %v4928 = vadd.f32 %v4892, %v4910
      %v4929 = vadd.f32 %v4893, %v4910
      %v4930 = vadd.f32 %v4894, %v4910
      %v4931 = vadd.f32 %v4895, %v4910
      %v4932 = vadd.f32 %v4896, %v4910
      %v4933 = vadd.f32 %v4897, %v4910
      %v4934 = vadd.f32 %v4898, %v4910
      %v4935 = vadd.f32 %v4899, %v4910
      %v4936 = vadd.f32 %v4900, %v4910
      %v4937 = vadd.f32 %v4901, %v4910
      %v4938 = vadd.f32 %v4902, %v4910
      %v4939 = vadd.f32 %v4903, %v4910
      %v4940 = vadd.f32 %v4904, %v4910
      %v4941 = vmax.f32 %v4912, 0.0
      %v4942 = vmax.f32 %v4913, 0.0
      %v4943 = vmax.f32 %v4914, 0.0
      %v4944 = vmax.f32 %v4915, 0.0
      %v4945 = vmax.f32 %v4916, 0.0
      %v4946 = vmax.f32 %v4917, 0.0
      %v4947 = vmax.f32 %v4918, 0.0
      %v4948 = vmax.f32 %v4919, 0.0
      %v4949 = vmax.f32 %v4920, 0.0
      %v4950 = vmax.f32 %v4921, 0.0
      %v4951 = vmax.f32 %v4922, 0.0
      %v4952 = vmax.f32 %v4923, 0.0
      %v4953 = vmax.f32 %v4924, 0.0
      %v4954 = vmax.f32 %v4925, 0.0
      %v4955 = vmax.f32 %v4926, 0.0
      %v4956 = vmax.f32 %v4927, 0.0
      %v4957 = vmax.f32 %v4928, 0.0
      %v4958 = vmax.f32 %v4929, 0.0
      %v4959 = vmax.f32 %v4930, 0.0
      %v4960 = vmax.f32 %v4931, 0.0
      %v4961 = vmax.f32 %v4932, 0.0
      %v4962 = vmax.f32 %v4933, 0.0
      %v4963 = vmax.f32 %v4934, 0.0
      %v4964 = vmax.f32 %v4935, 0.0
      %v4965 = vmax.f32 %v4936, 0.0
      %v4966 = vmax.f32 %v4937, 0.0
      %v4967 = vmax.f32 %v4938, 0.0
      %v4968 = vmax.f32 %v4939, 0.0
      %v4969 = vmax.f32 %v4940, 0.0
      %v4970 = vpack.c.bf16 %v4942, %v4941
      %v4971 = vpack.c.bf16 %v4944, %v4943
      %v4972 = vpack.c.bf16 %v4946, %v4945
      %v4973 = vpack.c.bf16 %v4948, %v4947
      %v4974 = vpack.c.bf16 %v4950, %v4949
      %v4975 = vpack.c.bf16 %v4952, %v4951
      %v4976 = vpack.c.bf16 %v4954, %v4953
      %v4977 = vpack.c.bf16 %v4956, %v4955
      %v4978 = vpack.c.bf16 %v4958, %v4957
      %v4979 = vpack.c.bf16 %v4960, %v4959
      %v4980 = vpack.c.bf16 %v4962, %v4961
      %v4981 = vpack.c.bf16 %v4964, %v4963
      %v4982 = vpack.c.bf16 %v4966, %v4965
      %v4983 = vpack.c.bf16 %v4968, %v4967
      %v4984 = vpack.c.bf16 %v4969, %v4969
      %v5000 = vcombine.high %v4970, %v4970
      %v5002 = vunpack.c.l.s4 1966171168
      %v5003 = vunpack.c.0.s8 %v5002
      %v5004 = vlaneseq
      %v5005 = vshrl.u32 %v5004, 7
      %v5006 = vsub.s32 %v5003, %v5005
      %v5007 = vrot.slane %v4970, %v5006
      %v5009 = vunpack.c.l.s4 1966171168
      %v5010 = vunpack.c.0.s8 %v5009
      %v5011 = vlaneseq
      %v5012 = vshrl.u32 %v5011, 7
      %v5013 = vsub.s32 %v5010, %v5012
      %v5014 = vrot.slane %v5000, %v5013
      %v5015 = vcombine.high %v5007, %v5007
      %v5016 = vcombine.high %v5014, %v5014
      %v5018 = vunpack.c.l.s4 1966171168
      %v5019 = vunpack.c.0.s8 %v5018
      %v5020 = vlaneseq
      %v5021 = vshrl.u32 %v5020, 7
      %v5022 = vsub.s32 %v5019, %v5021
      %v5023 = vrot.slane %v5007, %v5022
      %v5025 = vunpack.c.l.s4 1966171168
      %v5026 = vunpack.c.0.s8 %v5025
      %v5027 = vlaneseq
      %v5028 = vshrl.u32 %v5027, 7
      %v5029 = vsub.s32 %v5026, %v5028
      %v5030 = vrot.slane %v5014, %v5029
      %v5032 = vunpack.c.l.s4 1966171168
      %v5033 = vunpack.c.0.s8 %v5032
      %v5034 = vlaneseq
      %v5035 = vshrl.u32 %v5034, 7
      %v5036 = vsub.s32 %v5033, %v5035
      %v5037 = vrot.slane %v5015, %v5036
      %v5039 = vunpack.c.l.s4 1966171168
      %v5040 = vunpack.c.0.s8 %v5039
      %v5041 = vlaneseq
      %v5042 = vshrl.u32 %v5041, 7
      %v5043 = vsub.s32 %v5040, %v5042
      %v5044 = vrot.slane %v5016, %v5043
      %v5045 = vcombine.high %v5023, %v5023
      %v5046 = vcombine.high %v5030, %v5030
      %v5047 = vcombine.high %v5037, %v5037
      %v5048 = vcombine.high %v5044, %v5044
      %v5049 = vcombine.high %v4971, %v4971
      %v5051 = vunpack.c.l.s4 1966171168
      %v5052 = vunpack.c.0.s8 %v5051
      %v5053 = vlaneseq
      %v5054 = vshrl.u32 %v5053, 7
      %v5055 = vsub.s32 %v5052, %v5054
      %v5056 = vrot.slane %v4971, %v5055
      %v5058 = vunpack.c.l.s4 1966171168
      %v5059 = vunpack.c.0.s8 %v5058
      %v5060 = vlaneseq
      %v5061 = vshrl.u32 %v5060, 7
      %v5062 = vsub.s32 %v5059, %v5061
      %v5063 = vrot.slane %v5049, %v5062
      %v5064 = vcombine.high %v5056, %v5056
      %v5065 = vcombine.high %v5063, %v5063
      %v5067 = vunpack.c.l.s4 1966171168
      %v5068 = vunpack.c.0.s8 %v5067
      %v5069 = vlaneseq
      %v5070 = vshrl.u32 %v5069, 7
      %v5071 = vsub.s32 %v5068, %v5070
      %v5072 = vrot.slane %v5056, %v5071
      %v5074 = vunpack.c.l.s4 1966171168
      %v5075 = vunpack.c.0.s8 %v5074
      %v5076 = vlaneseq
      %v5077 = vshrl.u32 %v5076, 7
      %v5078 = vsub.s32 %v5075, %v5077
      %v5079 = vrot.slane %v5063, %v5078
      %v5081 = vunpack.c.l.s4 1966171168
      %v5082 = vunpack.c.0.s8 %v5081
      %v5083 = vlaneseq
      %v5084 = vshrl.u32 %v5083, 7
      %v5085 = vsub.s32 %v5082, %v5084
      %v5086 = vrot.slane %v5064, %v5085
      %v5088 = vunpack.c.l.s4 1966171168
      %v5089 = vunpack.c.0.s8 %v5088
      %v5090 = vlaneseq
      %v5091 = vshrl.u32 %v5090, 7
      %v5092 = vsub.s32 %v5089, %v5091
      %v5093 = vrot.slane %v5065, %v5092
      %v5094 = vcombine.high %v5072, %v5072
      %v5095 = vcombine.high %v5079, %v5079
      %v5096 = vcombine.high %v5086, %v5086
      %v5097 = vcombine.high %v5093, %v5093
      %v5098 = vcombine.high %v4972, %v4972
      %v5100 = vunpack.c.l.s4 1966171168
      %v5101 = vunpack.c.0.s8 %v5100
      %v5102 = vlaneseq
      %v5103 = vshrl.u32 %v5102, 7
      %v5104 = vsub.s32 %v5101, %v5103
      %v5105 = vrot.slane %v4972, %v5104
      %v5107 = vunpack.c.l.s4 1966171168
      %v5108 = vunpack.c.0.s8 %v5107
      %v5109 = vlaneseq
      %v5110 = vshrl.u32 %v5109, 7
      %v5111 = vsub.s32 %v5108, %v5110
      %v5112 = vrot.slane %v5098, %v5111
      %v5113 = vcombine.high %v5105, %v5105
      %v5114 = vcombine.high %v5112, %v5112
      %v5116 = vunpack.c.l.s4 1966171168
      %v5117 = vunpack.c.0.s8 %v5116
      %v5118 = vlaneseq
      %v5119 = vshrl.u32 %v5118, 7
      %v5120 = vsub.s32 %v5117, %v5119
      %v5121 = vrot.slane %v5105, %v5120
      %v5123 = vunpack.c.l.s4 1966171168
      %v5124 = vunpack.c.0.s8 %v5123
      %v5125 = vlaneseq
      %v5126 = vshrl.u32 %v5125, 7
      %v5127 = vsub.s32 %v5124, %v5126
      %v5128 = vrot.slane %v5112, %v5127
      %v5130 = vunpack.c.l.s4 1966171168
      %v5131 = vunpack.c.0.s8 %v5130
      %v5132 = vlaneseq
      %v5133 = vshrl.u32 %v5132, 7
      %v5134 = vsub.s32 %v5131, %v5133
      %v5135 = vrot.slane %v5113, %v5134
      %v5137 = vunpack.c.l.s4 1966171168
      %v5138 = vunpack.c.0.s8 %v5137
      %v5139 = vlaneseq
      %v5140 = vshrl.u32 %v5139, 7
      %v5141 = vsub.s32 %v5138, %v5140
      %v5142 = vrot.slane %v5114, %v5141
      %v5143 = vcombine.high %v5121, %v5121
      %v5144 = vcombine.high %v5128, %v5128
      %v5145 = vcombine.high %v5135, %v5135
      %v5146 = vcombine.high %v5142, %v5142
      %v5147 = vcombine.high %v4973, %v4973
      %v5149 = vunpack.c.l.s4 1966171168
      %v5150 = vunpack.c.0.s8 %v5149
      %v5151 = vlaneseq
      %v5152 = vshrl.u32 %v5151, 7
      %v5153 = vsub.s32 %v5150, %v5152
      %v5154 = vrot.slane %v4973, %v5153
      %v5156 = vunpack.c.l.s4 1966171168
      %v5157 = vunpack.c.0.s8 %v5156
      %v5158 = vlaneseq
      %v5159 = vshrl.u32 %v5158, 7
      %v5160 = vsub.s32 %v5157, %v5159
      %v5161 = vrot.slane %v5147, %v5160
      %v5162 = vcombine.high %v5154, %v5154
      %v5163 = vcombine.high %v5161, %v5161
      %v5165 = vunpack.c.l.s4 1966171168
      %v5166 = vunpack.c.0.s8 %v5165
      %v5167 = vlaneseq
      %v5168 = vshrl.u32 %v5167, 7
      %v5169 = vsub.s32 %v5166, %v5168
      %v5170 = vrot.slane %v5154, %v5169
      %v5172 = vunpack.c.l.s4 1966171168
      %v5173 = vunpack.c.0.s8 %v5172
      %v5174 = vlaneseq
      %v5175 = vshrl.u32 %v5174, 7
      %v5176 = vsub.s32 %v5173, %v5175
      %v5177 = vrot.slane %v5161, %v5176
      %v5179 = vunpack.c.l.s4 1966171168
      %v5180 = vunpack.c.0.s8 %v5179
      %v5181 = vlaneseq
      %v5182 = vshrl.u32 %v5181, 7
      %v5183 = vsub.s32 %v5180, %v5182
      %v5184 = vrot.slane %v5162, %v5183
      %v5186 = vunpack.c.l.s4 1966171168
      %v5187 = vunpack.c.0.s8 %v5186
      %v5188 = vlaneseq
      %v5189 = vshrl.u32 %v5188, 7
      %v5190 = vsub.s32 %v5187, %v5189
      %v5191 = vrot.slane %v5163, %v5190
      %v5192 = vcombine.high %v5170, %v5170
      %v5193 = vcombine.high %v5177, %v5177
      %v5194 = vcombine.high %v5184, %v5184
      %v5195 = vcombine.high %v5191, %v5191
      %v5196 = vcombine.high %v4974, %v4974
      %v5198 = vunpack.c.l.s4 1966171168
      %v5199 = vunpack.c.0.s8 %v5198
      %v5200 = vlaneseq
      %v5201 = vshrl.u32 %v5200, 7
      %v5202 = vsub.s32 %v5199, %v5201
      %v5203 = vrot.slane %v4974, %v5202
      %v5205 = vunpack.c.l.s4 1966171168
      %v5206 = vunpack.c.0.s8 %v5205
      %v5207 = vlaneseq
      %v5208 = vshrl.u32 %v5207, 7
      %v5209 = vsub.s32 %v5206, %v5208
      %v5210 = vrot.slane %v5196, %v5209
      %v5211 = vcombine.high %v5203, %v5203
      %v5212 = vcombine.high %v5210, %v5210
      %v5214 = vunpack.c.l.s4 1966171168
      %v5215 = vunpack.c.0.s8 %v5214
      %v5216 = vlaneseq
      %v5217 = vshrl.u32 %v5216, 7
      %v5218 = vsub.s32 %v5215, %v5217
      %v5219 = vrot.slane %v5203, %v5218
      %v5221 = vunpack.c.l.s4 1966171168
      %v5222 = vunpack.c.0.s8 %v5221
      %v5223 = vlaneseq
      %v5224 = vshrl.u32 %v5223, 7
      %v5225 = vsub.s32 %v5222, %v5224
      %v5226 = vrot.slane %v5210, %v5225
      %v5228 = vunpack.c.l.s4 1966171168
      %v5229 = vunpack.c.0.s8 %v5228
      %v5230 = vlaneseq
      %v5231 = vshrl.u32 %v5230, 7
      %v5232 = vsub.s32 %v5229, %v5231
      %v5233 = vrot.slane %v5211, %v5232
      %v5235 = vunpack.c.l.s4 1966171168
      %v5236 = vunpack.c.0.s8 %v5235
      %v5237 = vlaneseq
      %v5238 = vshrl.u32 %v5237, 7
      %v5239 = vsub.s32 %v5236, %v5238
      %v5240 = vrot.slane %v5212, %v5239
      %v5241 = vcombine.high %v5219, %v5219
      %v5242 = vcombine.high %v5226, %v5226
      %v5243 = vcombine.high %v5233, %v5233
      %v5244 = vcombine.high %v5240, %v5240
      %v5245 = vcombine.high %v4975, %v4975
      %v5247 = vunpack.c.l.s4 1966171168
      %v5248 = vunpack.c.0.s8 %v5247
      %v5249 = vlaneseq
      %v5250 = vshrl.u32 %v5249, 7
      %v5251 = vsub.s32 %v5248, %v5250
      %v5252 = vrot.slane %v4975, %v5251
      %v5254 = vunpack.c.l.s4 1966171168
      %v5255 = vunpack.c.0.s8 %v5254
      %v5256 = vlaneseq
      %v5257 = vshrl.u32 %v5256, 7
      %v5258 = vsub.s32 %v5255, %v5257
      %v5259 = vrot.slane %v5245, %v5258
      %v5260 = vcombine.high %v5252, %v5252
      %v5261 = vcombine.high %v5259, %v5259
      %v5263 = vunpack.c.l.s4 1966171168
      %v5264 = vunpack.c.0.s8 %v5263
      %v5265 = vlaneseq
      %v5266 = vshrl.u32 %v5265, 7
      %v5267 = vsub.s32 %v5264, %v5266
      %v5268 = vrot.slane %v5252, %v5267
      %v5270 = vunpack.c.l.s4 1966171168
      %v5271 = vunpack.c.0.s8 %v5270
      %v5272 = vlaneseq
      %v5273 = vshrl.u32 %v5272, 7
      %v5274 = vsub.s32 %v5271, %v5273
      %v5275 = vrot.slane %v5259, %v5274
      %v5277 = vunpack.c.l.s4 1966171168
      %v5278 = vunpack.c.0.s8 %v5277
      %v5279 = vlaneseq
      %v5280 = vshrl.u32 %v5279, 7
      %v5281 = vsub.s32 %v5278, %v5280
      %v5282 = vrot.slane %v5260, %v5281
      %v5284 = vunpack.c.l.s4 1966171168
      %v5285 = vunpack.c.0.s8 %v5284
      %v5286 = vlaneseq
      %v5287 = vshrl.u32 %v5286, 7
      %v5288 = vsub.s32 %v5285, %v5287
      %v5289 = vrot.slane %v5261, %v5288
      %v5290 = vcombine.high %v5268, %v5268
      %v5291 = vcombine.high %v5275, %v5275
      %v5292 = vcombine.high %v5282, %v5282
      %v5293 = vcombine.high %v5289, %v5289
      %v5294 = vcombine.high %v4976, %v4976
      %v5296 = vunpack.c.l.s4 1966171168
      %v5297 = vunpack.c.0.s8 %v5296
      %v5298 = vlaneseq
      %v5299 = vshrl.u32 %v5298, 7
      %v5300 = vsub.s32 %v5297, %v5299
      %v5301 = vrot.slane %v4976, %v5300
      %v5303 = vunpack.c.l.s4 1966171168
      %v5304 = vunpack.c.0.s8 %v5303
      %v5305 = vlaneseq
      %v5306 = vshrl.u32 %v5305, 7
      %v5307 = vsub.s32 %v5304, %v5306
      %v5308 = vrot.slane %v5294, %v5307
      %v5309 = vcombine.high %v5301, %v5301
      %v5310 = vcombine.high %v5308, %v5308
      %v5312 = vunpack.c.l.s4 1966171168
      %v5313 = vunpack.c.0.s8 %v5312
      %v5314 = vlaneseq
      %v5315 = vshrl.u32 %v5314, 7
      %v5316 = vsub.s32 %v5313, %v5315
      %v5317 = vrot.slane %v5301, %v5316
      %v5319 = vunpack.c.l.s4 1966171168
      %v5320 = vunpack.c.0.s8 %v5319
      %v5321 = vlaneseq
      %v5322 = vshrl.u32 %v5321, 7
      %v5323 = vsub.s32 %v5320, %v5322
      %v5324 = vrot.slane %v5308, %v5323
      %v5326 = vunpack.c.l.s4 1966171168
      %v5327 = vunpack.c.0.s8 %v5326
      %v5328 = vlaneseq
      %v5329 = vshrl.u32 %v5328, 7
      %v5330 = vsub.s32 %v5327, %v5329
      %v5331 = vrot.slane %v5309, %v5330
      %v5333 = vunpack.c.l.s4 1966171168
      %v5334 = vunpack.c.0.s8 %v5333
      %v5335 = vlaneseq
      %v5336 = vshrl.u32 %v5335, 7
      %v5337 = vsub.s32 %v5334, %v5336
      %v5338 = vrot.slane %v5310, %v5337
      %v5339 = vcombine.high %v5317, %v5317
      %v5340 = vcombine.high %v5324, %v5324
      %v5341 = vcombine.high %v5331, %v5331
      %v5342 = vcombine.high %v5338, %v5338
      %v5343 = vcombine.high %v4977, %v4977
      %v5345 = vunpack.c.l.s4 1966171168
      %v5346 = vunpack.c.0.s8 %v5345
      %v5347 = vlaneseq
      %v5348 = vshrl.u32 %v5347, 7
      %v5349 = vsub.s32 %v5346, %v5348
      %v5350 = vrot.slane %v4977, %v5349
      %v5352 = vunpack.c.l.s4 1966171168
      %v5353 = vunpack.c.0.s8 %v5352
      %v5354 = vlaneseq
      %v5355 = vshrl.u32 %v5354, 7
      %v5356 = vsub.s32 %v5353, %v5355
      %v5357 = vrot.slane %v5343, %v5356
      %v5358 = vcombine.high %v5350, %v5350
      %v5359 = vcombine.high %v5357, %v5357
      %v5361 = vunpack.c.l.s4 1966171168
      %v5362 = vunpack.c.0.s8 %v5361
      %v5363 = vlaneseq
      %v5364 = vshrl.u32 %v5363, 7
      %v5365 = vsub.s32 %v5362, %v5364
      %v5366 = vrot.slane %v5350, %v5365
      %v5368 = vunpack.c.l.s4 1966171168
      %v5369 = vunpack.c.0.s8 %v5368
      %v5370 = vlaneseq
      %v5371 = vshrl.u32 %v5370, 7
      %v5372 = vsub.s32 %v5369, %v5371
      %v5373 = vrot.slane %v5357, %v5372
      %v5375 = vunpack.c.l.s4 1966171168
      %v5376 = vunpack.c.0.s8 %v5375
      %v5377 = vlaneseq
      %v5378 = vshrl.u32 %v5377, 7
      %v5379 = vsub.s32 %v5376, %v5378
      %v5380 = vrot.slane %v5358, %v5379
      %v5382 = vunpack.c.l.s4 1966171168
      %v5383 = vunpack.c.0.s8 %v5382
      %v5384 = vlaneseq
      %v5385 = vshrl.u32 %v5384, 7
      %v5386 = vsub.s32 %v5383, %v5385
      %v5387 = vrot.slane %v5359, %v5386
      %v5388 = vcombine.high %v5366, %v5366
      %v5389 = vcombine.high %v5373, %v5373
      %v5390 = vcombine.high %v5380, %v5380
      %v5391 = vcombine.high %v5387, %v5387
      %v5392 = vcombine.high %v4978, %v4978
      %v5394 = vunpack.c.l.s4 1966171168
      %v5395 = vunpack.c.0.s8 %v5394
      %v5396 = vlaneseq
      %v5397 = vshrl.u32 %v5396, 7
      %v5398 = vsub.s32 %v5395, %v5397
      %v5399 = vrot.slane %v4978, %v5398
      %v5401 = vunpack.c.l.s4 1966171168
      %v5402 = vunpack.c.0.s8 %v5401
      %v5403 = vlaneseq
      %v5404 = vshrl.u32 %v5403, 7
      %v5405 = vsub.s32 %v5402, %v5404
      %v5406 = vrot.slane %v5392, %v5405
      %v5407 = vcombine.high %v5399, %v5399
      %v5408 = vcombine.high %v5406, %v5406
      %v5410 = vunpack.c.l.s4 1966171168
      %v5411 = vunpack.c.0.s8 %v5410
      %v5412 = vlaneseq
      %v5413 = vshrl.u32 %v5412, 7
      %v5414 = vsub.s32 %v5411, %v5413
      %v5415 = vrot.slane %v5399, %v5414
      %v5417 = vunpack.c.l.s4 1966171168
      %v5418 = vunpack.c.0.s8 %v5417
      %v5419 = vlaneseq
      %v5420 = vshrl.u32 %v5419, 7
      %v5421 = vsub.s32 %v5418, %v5420
      %v5422 = vrot.slane %v5406, %v5421
      %v5424 = vunpack.c.l.s4 1966171168
      %v5425 = vunpack.c.0.s8 %v5424
      %v5426 = vlaneseq
      %v5427 = vshrl.u32 %v5426, 7
      %v5428 = vsub.s32 %v5425, %v5427
      %v5429 = vrot.slane %v5407, %v5428
      %v5431 = vunpack.c.l.s4 1966171168
      %v5432 = vunpack.c.0.s8 %v5431
      %v5433 = vlaneseq
      %v5434 = vshrl.u32 %v5433, 7
      %v5435 = vsub.s32 %v5432, %v5434
      %v5436 = vrot.slane %v5408, %v5435
      %v5437 = vcombine.high %v5415, %v5415
      %v5438 = vcombine.high %v5422, %v5422
      %v5439 = vcombine.high %v5429, %v5429
      %v5440 = vcombine.high %v5436, %v5436
      %v5441 = vcombine.high %v4979, %v4979
      %v5443 = vunpack.c.l.s4 1966171168
      %v5444 = vunpack.c.0.s8 %v5443
      %v5445 = vlaneseq
      %v5446 = vshrl.u32 %v5445, 7
      %v5447 = vsub.s32 %v5444, %v5446
      %v5448 = vrot.slane %v4979, %v5447
      %v5450 = vunpack.c.l.s4 1966171168
      %v5451 = vunpack.c.0.s8 %v5450
      %v5452 = vlaneseq
      %v5453 = vshrl.u32 %v5452, 7
      %v5454 = vsub.s32 %v5451, %v5453
      %v5455 = vrot.slane %v5441, %v5454
      %v5456 = vcombine.high %v5448, %v5448
      %v5457 = vcombine.high %v5455, %v5455
      %v5459 = vunpack.c.l.s4 1966171168
      %v5460 = vunpack.c.0.s8 %v5459
      %v5461 = vlaneseq
      %v5462 = vshrl.u32 %v5461, 7
      %v5463 = vsub.s32 %v5460, %v5462
      %v5464 = vrot.slane %v5448, %v5463
      %v5466 = vunpack.c.l.s4 1966171168
      %v5467 = vunpack.c.0.s8 %v5466
      %v5468 = vlaneseq
      %v5469 = vshrl.u32 %v5468, 7
      %v5470 = vsub.s32 %v5467, %v5469
      %v5471 = vrot.slane %v5455, %v5470
      %v5473 = vunpack.c.l.s4 1966171168
      %v5474 = vunpack.c.0.s8 %v5473
      %v5475 = vlaneseq
      %v5476 = vshrl.u32 %v5475, 7
      %v5477 = vsub.s32 %v5474, %v5476
      %v5478 = vrot.slane %v5456, %v5477
      %v5480 = vunpack.c.l.s4 1966171168
      %v5481 = vunpack.c.0.s8 %v5480
      %v5482 = vlaneseq
      %v5483 = vshrl.u32 %v5482, 7
      %v5484 = vsub.s32 %v5481, %v5483
      %v5485 = vrot.slane %v5457, %v5484
      %v5486 = vcombine.high %v5464, %v5464
      %v5487 = vcombine.high %v5471, %v5471
      %v5488 = vcombine.high %v5478, %v5478
      %v5489 = vcombine.high %v5485, %v5485
      %v5490 = vcombine.high %v4980, %v4980
      %v5492 = vunpack.c.l.s4 1966171168
      %v5493 = vunpack.c.0.s8 %v5492
      %v5494 = vlaneseq
      %v5495 = vshrl.u32 %v5494, 7
      %v5496 = vsub.s32 %v5493, %v5495
      %v5497 = vrot.slane %v4980, %v5496
      %v5499 = vunpack.c.l.s4 1966171168
      %v5500 = vunpack.c.0.s8 %v5499
      %v5501 = vlaneseq
      %v5502 = vshrl.u32 %v5501, 7
      %v5503 = vsub.s32 %v5500, %v5502
      %v5504 = vrot.slane %v5490, %v5503
      %v5505 = vcombine.high %v5497, %v5497
      %v5506 = vcombine.high %v5504, %v5504
      %v5508 = vunpack.c.l.s4 1966171168
      %v5509 = vunpack.c.0.s8 %v5508
      %v5510 = vlaneseq
      %v5511 = vshrl.u32 %v5510, 7
      %v5512 = vsub.s32 %v5509, %v5511
      %v5513 = vrot.slane %v5497, %v5512
      %v5515 = vunpack.c.l.s4 1966171168
      %v5516 = vunpack.c.0.s8 %v5515
      %v5517 = vlaneseq
      %v5518 = vshrl.u32 %v5517, 7
      %v5519 = vsub.s32 %v5516, %v5518
      %v5520 = vrot.slane %v5504, %v5519
      %v5522 = vunpack.c.l.s4 1966171168
      %v5523 = vunpack.c.0.s8 %v5522
      %v5524 = vlaneseq
      %v5525 = vshrl.u32 %v5524, 7
      %v5526 = vsub.s32 %v5523, %v5525
      %v5527 = vrot.slane %v5505, %v5526
      %v5529 = vunpack.c.l.s4 1966171168
      %v5530 = vunpack.c.0.s8 %v5529
      %v5531 = vlaneseq
      %v5532 = vshrl.u32 %v5531, 7
      %v5533 = vsub.s32 %v5530, %v5532
      %v5534 = vrot.slane %v5506, %v5533
      %v5535 = vcombine.high %v5513, %v5513
      %v5536 = vcombine.high %v5520, %v5520
      %v5537 = vcombine.high %v5527, %v5527
      %v5538 = vcombine.high %v5534, %v5534
      %v5539 = vcombine.high %v4981, %v4981
      %v5541 = vunpack.c.l.s4 1966171168
      %v5542 = vunpack.c.0.s8 %v5541
      %v5543 = vlaneseq
      %v5544 = vshrl.u32 %v5543, 7
      %v5545 = vsub.s32 %v5542, %v5544
      %v5546 = vrot.slane %v4981, %v5545
      %v5548 = vunpack.c.l.s4 1966171168
      %v5549 = vunpack.c.0.s8 %v5548
      %v5550 = vlaneseq
      %v5551 = vshrl.u32 %v5550, 7
      %v5552 = vsub.s32 %v5549, %v5551
      %v5553 = vrot.slane %v5539, %v5552
      %v5554 = vcombine.high %v5546, %v5546
      %v5555 = vcombine.high %v5553, %v5553
      %v5557 = vunpack.c.l.s4 1966171168
      %v5558 = vunpack.c.0.s8 %v5557
      %v5559 = vlaneseq
      %v5560 = vshrl.u32 %v5559, 7
      %v5561 = vsub.s32 %v5558, %v5560
      %v5562 = vrot.slane %v5546, %v5561
      %v5564 = vunpack.c.l.s4 1966171168
      %v5565 = vunpack.c.0.s8 %v5564
      %v5566 = vlaneseq
      %v5567 = vshrl.u32 %v5566, 7
      %v5568 = vsub.s32 %v5565, %v5567
      %v5569 = vrot.slane %v5553, %v5568
      %v5571 = vunpack.c.l.s4 1966171168
      %v5572 = vunpack.c.0.s8 %v5571
      %v5573 = vlaneseq
      %v5574 = vshrl.u32 %v5573, 7
      %v5575 = vsub.s32 %v5572, %v5574
      %v5576 = vrot.slane %v5554, %v5575
      %v5578 = vunpack.c.l.s4 1966171168
      %v5579 = vunpack.c.0.s8 %v5578
      %v5580 = vlaneseq
      %v5581 = vshrl.u32 %v5580, 7
      %v5582 = vsub.s32 %v5579, %v5581
      %v5583 = vrot.slane %v5555, %v5582
      %v5584 = vcombine.high %v5562, %v5562
      %v5585 = vcombine.high %v5569, %v5569
      %v5586 = vcombine.high %v5576, %v5576
      %v5587 = vcombine.high %v5583, %v5583
      %v5588 = vcombine.high %v4982, %v4982
      %v5590 = vunpack.c.l.s4 1966171168
      %v5591 = vunpack.c.0.s8 %v5590
      %v5592 = vlaneseq
      %v5593 = vshrl.u32 %v5592, 7
      %v5594 = vsub.s32 %v5591, %v5593
      %v5595 = vrot.slane %v4982, %v5594
      %v5597 = vunpack.c.l.s4 1966171168
      %v5598 = vunpack.c.0.s8 %v5597
      %v5599 = vlaneseq
      %v5600 = vshrl.u32 %v5599, 7
      %v5601 = vsub.s32 %v5598, %v5600
      %v5602 = vrot.slane %v5588, %v5601
      %v5603 = vcombine.high %v5595, %v5595
      %v5604 = vcombine.high %v5602, %v5602
      %v5606 = vunpack.c.l.s4 1966171168
      %v5607 = vunpack.c.0.s8 %v5606
      %v5608 = vlaneseq
      %v5609 = vshrl.u32 %v5608, 7
      %v5610 = vsub.s32 %v5607, %v5609
      %v5611 = vrot.slane %v5595, %v5610
      %v5613 = vunpack.c.l.s4 1966171168
      %v5614 = vunpack.c.0.s8 %v5613
      %v5615 = vlaneseq
      %v5616 = vshrl.u32 %v5615, 7
      %v5617 = vsub.s32 %v5614, %v5616
      %v5618 = vrot.slane %v5602, %v5617
      %v5620 = vunpack.c.l.s4 1966171168
      %v5621 = vunpack.c.0.s8 %v5620
      %v5622 = vlaneseq
      %v5623 = vshrl.u32 %v5622, 7
      %v5624 = vsub.s32 %v5621, %v5623
      %v5625 = vrot.slane %v5603, %v5624
      %v5627 = vunpack.c.l.s4 1966171168
      %v5628 = vunpack.c.0.s8 %v5627
      %v5629 = vlaneseq
      %v5630 = vshrl.u32 %v5629, 7
      %v5631 = vsub.s32 %v5628, %v5630
      %v5632 = vrot.slane %v5604, %v5631
      %v5633 = vcombine.high %v5611, %v5611
      %v5634 = vcombine.high %v5618, %v5618
      %v5635 = vcombine.high %v5625, %v5625
      %v5636 = vcombine.high %v5632, %v5632
      %v5637 = vcombine.high %v4983, %v4983
      %v5639 = vunpack.c.l.s4 1966171168
      %v5640 = vunpack.c.0.s8 %v5639
      %v5641 = vlaneseq
      %v5642 = vshrl.u32 %v5641, 7
      %v5643 = vsub.s32 %v5640, %v5642
      %v5644 = vrot.slane %v4983, %v5643
      %v5646 = vunpack.c.l.s4 1966171168
      %v5647 = vunpack.c.0.s8 %v5646
      %v5648 = vlaneseq
      %v5649 = vshrl.u32 %v5648, 7
      %v5650 = vsub.s32 %v5647, %v5649
      %v5651 = vrot.slane %v5637, %v5650
      %v5652 = vcombine.high %v5644, %v5644
      %v5653 = vcombine.high %v5651, %v5651
      %v5655 = vunpack.c.l.s4 1966171168
      %v5656 = vunpack.c.0.s8 %v5655
      %v5657 = vlaneseq
      %v5658 = vshrl.u32 %v5657, 7
      %v5659 = vsub.s32 %v5656, %v5658
      %v5660 = vrot.slane %v5644, %v5659
      %v5662 = vunpack.c.l.s4 1966171168
      %v5663 = vunpack.c.0.s8 %v5662
      %v5664 = vlaneseq
      %v5665 = vshrl.u32 %v5664, 7
      %v5666 = vsub.s32 %v5663, %v5665
      %v5667 = vrot.slane %v5651, %v5666
      %v5669 = vunpack.c.l.s4 1966171168
      %v5670 = vunpack.c.0.s8 %v5669
      %v5671 = vlaneseq
      %v5672 = vshrl.u32 %v5671, 7
      %v5673 = vsub.s32 %v5670, %v5672
      %v5674 = vrot.slane %v5652, %v5673
      %v5676 = vunpack.c.l.s4 1966171168
      %v5677 = vunpack.c.0.s8 %v5676
      %v5678 = vlaneseq
      %v5679 = vshrl.u32 %v5678, 7
      %v5680 = vsub.s32 %v5677, %v5679
      %v5681 = vrot.slane %v5653, %v5680
      %v5682 = vcombine.high %v5660, %v5660
      %v5683 = vcombine.high %v5667, %v5667
      %v5684 = vcombine.high %v5674, %v5674
      %v5685 = vcombine.high %v5681, %v5681
      %v5687 = vunpack.c.l.s4 1966171168
      %v5688 = vunpack.c.0.s8 %v5687
      %v5689 = vlaneseq
      %v5690 = vshrl.u32 %v5689, 7
      %v5691 = vsub.s32 %v5688, %v5690
      %v5692 = vrot.slane %v4984, %v5691
      %v5694 = vunpack.c.l.s4 1966171168
      %v5695 = vunpack.c.0.s8 %v5694
      %v5696 = vlaneseq
      %v5697 = vshrl.u32 %v5696, 7
      %v5698 = vsub.s32 %v5695, %v5697
      %v5699 = vrot.slane %v5692, %v5698
      %v5700 = vunpack.i.l.s16 %v5023
      %v5701 = vunpack.i.h.s16 %v5023
      %v5702 = vunpack.i.l.s16 %v5037
      %v5703 = vunpack.i.h.s16 %v5037
      %v5704 = vunpack.i.l.s16 %v5045
      %v5705 = vunpack.i.h.s16 %v5045
      %v5706 = vunpack.i.l.s16 %v5047
      %v5707 = vunpack.i.h.s16 %v5047
      %v5708 = vunpack.i.l.s16 %v5030
      %v5709 = vunpack.i.h.s16 %v5030
      %v5710 = vunpack.i.l.s16 %v5044
      %v5711 = vunpack.i.h.s16 %v5044
      %v5712 = vunpack.i.l.s16 %v5046
      %v5713 = vunpack.i.h.s16 %v5046
      %v5714 = vunpack.i.l.s16 %v5048
      %v5715 = vunpack.i.h.s16 %v5048
      %v5716 = vunpack.i.l.s16 %v5072
      %v5717 = vunpack.i.h.s16 %v5072
      %v5718 = vunpack.i.l.s16 %v5086
      %v5719 = vunpack.i.h.s16 %v5086
      %v5720 = vunpack.i.l.s16 %v5094
      %v5721 = vunpack.i.h.s16 %v5094
      %v5722 = vunpack.i.l.s16 %v5096
      %v5723 = vunpack.i.h.s16 %v5096
      %v5724 = vunpack.i.l.s16 %v5079
      %v5725 = vunpack.i.h.s16 %v5079
      %v5726 = vunpack.i.l.s16 %v5093
      %v5727 = vunpack.i.h.s16 %v5093
      %v5728 = vunpack.i.l.s16 %v5095
      %v5729 = vunpack.i.h.s16 %v5095
      %v5730 = vunpack.i.l.s16 %v5097
      %v5731 = vunpack.i.h.s16 %v5097
      %v5732 = vunpack.i.l.s16 %v5121
      %v5733 = vunpack.i.h.s16 %v5121
      %v5734 = vunpack.i.l.s16 %v5135
      %v5735 = vunpack.i.h.s16 %v5135
      %v5736 = vunpack.i.l.s16 %v5143
      %v5737 = vunpack.i.h.s16 %v5143
      %v5738 = vunpack.i.l.s16 %v5145
      %v5739 = vunpack.i.h.s16 %v5145
      %v5740 = vunpack.i.l.s16 %v5128
      %v5741 = vunpack.i.h.s16 %v5128
      %v5742 = vunpack.i.l.s16 %v5142
      %v5743 = vunpack.i.h.s16 %v5142
      %v5744 = vunpack.i.l.s16 %v5144
      %v5745 = vunpack.i.h.s16 %v5144
      %v5746 = vunpack.i.l.s16 %v5146
      %v5747 = vunpack.i.h.s16 %v5146
      %v5748 = vunpack.i.l.s16 %v5170
      %v5749 = vunpack.i.h.s16 %v5170
      %v5750 = vunpack.i.l.s16 %v5184
      %v5751 = vunpack.i.h.s16 %v5184
      %v5752 = vunpack.i.l.s16 %v5192
      %v5753 = vunpack.i.h.s16 %v5192
      %v5754 = vunpack.i.l.s16 %v5194
      %v5755 = vunpack.i.h.s16 %v5194
      %v5756 = vunpack.i.l.s16 %v5177
      %v5757 = vunpack.i.h.s16 %v5177
      %v5758 = vunpack.i.l.s16 %v5191
      %v5759 = vunpack.i.h.s16 %v5191
      %v5760 = vunpack.i.l.s16 %v5193
      %v5761 = vunpack.i.h.s16 %v5193
      %v5762 = vunpack.i.l.s16 %v5195
      %v5763 = vunpack.i.h.s16 %v5195
      %v5764 = vunpack.i.l.s16 %v5219
      %v5765 = vunpack.i.h.s16 %v5219
      %v5766 = vunpack.i.l.s16 %v5233
      %v5767 = vunpack.i.h.s16 %v5233
      %v5768 = vunpack.i.l.s16 %v5241
      %v5769 = vunpack.i.h.s16 %v5241
      %v5770 = vunpack.i.l.s16 %v5243
      %v5771 = vunpack.i.h.s16 %v5243
      %v5772 = vunpack.i.l.s16 %v5226
      %v5773 = vunpack.i.h.s16 %v5226
      %v5774 = vunpack.i.l.s16 %v5240
      %v5775 = vunpack.i.h.s16 %v5240
      %v5776 = vunpack.i.l.s16 %v5242
      %v5777 = vunpack.i.h.s16 %v5242
      %v5778 = vunpack.i.l.s16 %v5244
      %v5779 = vunpack.i.h.s16 %v5244
      %v5780 = vunpack.i.l.s16 %v5268
      %v5781 = vunpack.i.h.s16 %v5268
      %v5782 = vunpack.i.l.s16 %v5282
      %v5783 = vunpack.i.h.s16 %v5282
      %v5784 = vunpack.i.l.s16 %v5290
      %v5785 = vunpack.i.h.s16 %v5290
      %v5786 = vunpack.i.l.s16 %v5292
      %v5787 = vunpack.i.h.s16 %v5292
      %v5788 = vunpack.i.l.s16 %v5275
      %v5789 = vunpack.i.h.s16 %v5275
      %v5790 = vunpack.i.l.s16 %v5289
      %v5791 = vunpack.i.h.s16 %v5289
      %v5792 = vunpack.i.l.s16 %v5291
      %v5793 = vunpack.i.h.s16 %v5291
      %v5794 = vunpack.i.l.s16 %v5293
      %v5795 = vunpack.i.h.s16 %v5293
      %v5796 = vunpack.i.l.s16 %v5317
      %v5797 = vunpack.i.h.s16 %v5317
      %v5798 = vunpack.i.l.s16 %v5331
      %v5799 = vunpack.i.h.s16 %v5331
      %v5800 = vunpack.i.l.s16 %v5339
      %v5801 = vunpack.i.h.s16 %v5339
      %v5802 = vunpack.i.l.s16 %v5341
      %v5803 = vunpack.i.h.s16 %v5341
      %v5804 = vunpack.i.l.s16 %v5324
      %v5805 = vunpack.i.h.s16 %v5324
      %v5806 = vunpack.i.l.s16 %v5338
      %v5807 = vunpack.i.h.s16 %v5338
      %v5808 = vunpack.i.l.s16 %v5340
      %v5809 = vunpack.i.h.s16 %v5340
      %v5810 = vunpack.i.l.s16 %v5342
      %v5811 = vunpack.i.h.s16 %v5342
      %v5812 = vunpack.i.l.s16 %v5366
      %v5813 = vunpack.i.h.s16 %v5366
      %v5814 = vunpack.i.l.s16 %v5380
      %v5815 = vunpack.i.h.s16 %v5380
      %v5816 = vunpack.i.l.s16 %v5388
      %v5817 = vunpack.i.h.s16 %v5388
      %v5818 = vunpack.i.l.s16 %v5390
      %v5819 = vunpack.i.h.s16 %v5390
      %v5820 = vunpack.i.l.s16 %v5373
      %v5821 = vunpack.i.h.s16 %v5373
      %v5822 = vunpack.i.l.s16 %v5387
      %v5823 = vunpack.i.h.s16 %v5387
      %v5824 = vunpack.i.l.s16 %v5389
      %v5825 = vunpack.i.h.s16 %v5389
      %v5826 = vunpack.i.l.s16 %v5391
      %v5827 = vunpack.i.h.s16 %v5391
      %v5828 = vunpack.i.l.s16 %v5415
      %v5829 = vunpack.i.h.s16 %v5415
      %v5830 = vunpack.i.l.s16 %v5429
      %v5831 = vunpack.i.h.s16 %v5429
      %v5832 = vunpack.i.l.s16 %v5437
      %v5833 = vunpack.i.h.s16 %v5437
      %v5834 = vunpack.i.l.s16 %v5439
      %v5835 = vunpack.i.h.s16 %v5439
      %v5836 = vunpack.i.l.s16 %v5422
      %v5837 = vunpack.i.h.s16 %v5422
      %v5838 = vunpack.i.l.s16 %v5436
      %v5839 = vunpack.i.h.s16 %v5436
      %v5840 = vunpack.i.l.s16 %v5438
      %v5841 = vunpack.i.h.s16 %v5438
      %v5842 = vunpack.i.l.s16 %v5440
      %v5843 = vunpack.i.h.s16 %v5440
      %v5844 = vunpack.i.l.s16 %v5464
      %v5845 = vunpack.i.h.s16 %v5464
      %v5846 = vunpack.i.l.s16 %v5478
      %v5847 = vunpack.i.h.s16 %v5478
      %v5848 = vunpack.i.l.s16 %v5486
      %v5849 = vunpack.i.h.s16 %v5486
      %v5850 = vunpack.i.l.s16 %v5488
      %v5851 = vunpack.i.h.s16 %v5488
      %v5852 = vunpack.i.l.s16 %v5471
      %v5853 = vunpack.i.h.s16 %v5471
      %v5854 = vunpack.i.l.s16 %v5485
      %v5855 = vunpack.i.h.s16 %v5485
      %v5856 = vunpack.i.l.s16 %v5487
      %v5857 = vunpack.i.h.s16 %v5487
      %v5858 = vunpack.i.l.s16 %v5489
      %v5859 = vunpack.i.h.s16 %v5489
      %v5860 = vunpack.i.l.s16 %v5513
      %v5861 = vunpack.i.h.s16 %v5513
      %v5862 = vunpack.i.l.s16 %v5527
      %v5863 = vunpack.i.h.s16 %v5527
      %v5864 = vunpack.i.l.s16 %v5535
      %v5865 = vunpack.i.h.s16 %v5535
      %v5866 = vunpack.i.l.s16 %v5537
      %v5867 = vunpack.i.h.s16 %v5537
      %v5868 = vunpack.i.l.s16 %v5520
      %v5869 = vunpack.i.h.s16 %v5520
      %v5870 = vunpack.i.l.s16 %v5534
      %v5871 = vunpack.i.h.s16 %v5534
      %v5872 = vunpack.i.l.s16 %v5536
      %v5873 = vunpack.i.h.s16 %v5536
      %v5874 = vunpack.i.l.s16 %v5538
      %v5875 = vunpack.i.h.s16 %v5538
      %v5876 = vunpack.i.l.s16 %v5562
      %v5877 = vunpack.i.h.s16 %v5562
      %v5878 = vunpack.i.l.s16 %v5576
      %v5879 = vunpack.i.h.s16 %v5576
      %v5880 = vunpack.i.l.s16 %v5584
      %v5881 = vunpack.i.h.s16 %v5584
      %v5882 = vunpack.i.l.s16 %v5586
      %v5883 = vunpack.i.h.s16 %v5586
      %v5884 = vunpack.i.l.s16 %v5569
      %v5885 = vunpack.i.h.s16 %v5569
      %v5886 = vunpack.i.l.s16 %v5583
      %v5887 = vunpack.i.h.s16 %v5583
      %v5888 = vunpack.i.l.s16 %v5585
      %v5889 = vunpack.i.h.s16 %v5585
      %v5890 = vunpack.i.l.s16 %v5587
      %v5891 = vunpack.i.h.s16 %v5587
      %v5892 = vunpack.i.l.s16 %v5611
      %v5893 = vunpack.i.h.s16 %v5611
      %v5894 = vunpack.i.l.s16 %v5625
      %v5895 = vunpack.i.h.s16 %v5625
      %v5896 = vunpack.i.l.s16 %v5633
      %v5897 = vunpack.i.h.s16 %v5633
      %v5898 = vunpack.i.l.s16 %v5635
      %v5899 = vunpack.i.h.s16 %v5635
      %v5900 = vunpack.i.l.s16 %v5618
      %v5901 = vunpack.i.h.s16 %v5618
      %v5902 = vunpack.i.l.s16 %v5632
      %v5903 = vunpack.i.h.s16 %v5632
      %v5904 = vunpack.i.l.s16 %v5634
      %v5905 = vunpack.i.h.s16 %v5634
      %v5906 = vunpack.i.l.s16 %v5636
      %v5907 = vunpack.i.h.s16 %v5636
      %v5908 = vunpack.i.l.s16 %v5660
      %v5909 = vunpack.i.h.s16 %v5660
      %v5910 = vunpack.i.l.s16 %v5674
      %v5911 = vunpack.i.h.s16 %v5674
      %v5912 = vunpack.i.l.s16 %v5682
      %v5913 = vunpack.i.h.s16 %v5682
      %v5914 = vunpack.i.l.s16 %v5684
      %v5915 = vunpack.i.h.s16 %v5684
      %v5916 = vunpack.i.l.s16 %v5667
      %v5917 = vunpack.i.h.s16 %v5667
      %v5918 = vunpack.i.l.s16 %v5681
      %v5919 = vunpack.i.h.s16 %v5681
      %v5920 = vunpack.i.l.s16 %v5683
      %v5921 = vunpack.i.h.s16 %v5683
      %v5922 = vunpack.i.l.s16 %v5685
      %v5923 = vunpack.i.h.s16 %v5685
      %v5924 = vunpack.i.l.s16 %v5699
      %v5925 = vld [vmem:[%s3] sm:$0xf]
      %v5926 = vld [vmem:[%s3 + $0x4] sm:$0xf]
      %v5927 = vld [vmem:[%s3 + $0x8] sm:$0xf]
      %v5928 = vld [vmem:[%s3 + $0xc] sm:$0xf]
      %s5929 = scalar_lea.vmem %s3, 16
      %v5930 = vld [vmem:[%s5929] sm:$0xf]
      %v5931 = vld [vmem:[%s5929 + $0x4] sm:$0xf]
      %v5932 = vld [vmem:[%s5929 + $0x8] sm:$0xf]
      %v5933 = vld [vmem:[%s5929 + $0xc] sm:$0xf]
      %v5934 = vpack.i.b16 %v5702, %v5701
      %v5935 = vpack.i.b16 %v5704, %v5703
      %v5936 = vpack.i.b16 %v5706, %v5705
      %v5937 = vpack.i.b16 %v5708, %v5707
      %v5938 = vpack.i.b16 %v5710, %v5709
      %v5939 = vpack.i.b16 %v5712, %v5711
      %v5940 = vpack.i.b16 %v5716, %v5713
      %v5941 = vpack.i.b16 %v5718, %v5717
      %v5942 = vpack.i.b16 %v5720, %v5719
      %v5943 = vpack.i.b16 %v5722, %v5721
      %v5944 = vpack.i.b16 %v5724, %v5723
      %v5945 = vpack.i.b16 %v5726, %v5725
      %v5946 = vpack.i.b16 %v5728, %v5727
      %v5947 = vpack.i.b16 %v5732, %v5731
      %v5948 = vpack.i.b16 %v5734, %v5733
      %v5949 = vpack.i.b16 %v5736, %v5735
      %v5950 = vpack.i.b16 %v5738, %v5737
      %v5951 = vpack.i.b16 %v5740, %v5739
      %v5952 = vpack.i.b16 %v5742, %v5741
      %v5953 = vpack.i.b16 %v5746, %v5743
      %v5954 = vpack.i.b16 %v5748, %v5747
      %v5955 = vpack.i.b16 %v5750, %v5749
      %v5956 = vpack.i.b16 %v5752, %v5751
      %v5957 = vpack.i.b16 %v5754, %v5753
      %v5958 = vpack.i.b16 %v5756, %v5755
      %v5959 = vpack.i.b16 %v5758, %v5757
      %v5960 = vpack.i.b16 %v5762, %v5761
      %v5961 = vpack.i.b16 %v5764, %v5763
      %v5962 = vpack.i.b16 %v5766, %v5765
      %v5963 = vpack.i.b16 %v5768, %v5767
      %v5964 = vpack.i.b16 %v5770, %v5769
      %v5965 = vpack.i.b16 %v5772, %v5771
      %v5966 = vpack.i.b16 %v5776, %v5773
      %v5967 = vpack.i.b16 %v5778, %v5777
      %v5968 = vpack.i.b16 %v5780, %v5779
      %v5969 = vpack.i.b16 %v5782, %v5781
      %v5970 = vpack.i.b16 %v5784, %v5783
      %v5971 = vpack.i.b16 %v5786, %v5785
      %v5972 = vpack.i.b16 %v5788, %v5787
      %v5973 = vpack.i.b16 %v5792, %v5791
      %v5974 = vpack.i.b16 %v5794, %v5793
      %v5975 = vpack.i.b16 %v5796, %v5795
      %v5976 = vpack.i.b16 %v5798, %v5797
      %v5977 = vpack.i.b16 %v5800, %v5799
      %v5978 = vpack.i.b16 %v5802, %v5801
      %v5979 = vpack.i.b16 %v5806, %v5803
      %v5980 = vpack.i.b16 %v5808, %v5807
      %v5981 = vpack.i.b16 %v5810, %v5809
      %v5982 = vpack.i.b16 %v5812, %v5811
      %v5983 = vpack.i.b16 %v5814, %v5813
      %v5984 = vpack.i.b16 %v5816, %v5815
      %v5985 = vpack.i.b16 %v5818, %v5817
      %v5986 = vpack.i.b16 %v5822, %v5821
      %v5987 = vpack.i.b16 %v5824, %v5823
      %v5988 = vpack.i.b16 %v5826, %v5825
      %v5989 = vpack.i.b16 %v5828, %v5827
      %v5990 = vpack.i.b16 %v5830, %v5829
      %v5991 = vpack.i.b16 %v5832, %v5831
      %v5992 = vpack.i.b16 %v5836, %v5833
      %v5993 = vpack.i.b16 %v5838, %v5837
      %v5994 = vpack.i.b16 %v5840, %v5839
      %v5995 = vpack.i.b16 %v5842, %v5841
      %v5996 = vpack.i.b16 %v5844, %v5843
      %v5997 = vpack.i.b16 %v5846, %v5845
      %v5998 = vpack.i.b16 %v5848, %v5847
      %v5999 = vpack.i.b16 %v5852, %v5851
      %v6000 = vpack.i.b16 %v5854, %v5853
      %v6001 = vpack.i.b16 %v5856, %v5855
      %v6002 = vpack.i.b16 %v5858, %v5857
      %v6003 = vpack.i.b16 %v5860, %v5859
      %v6004 = vpack.i.b16 %v5862, %v5861
      %v6005 = vpack.i.b16 %v5866, %v5863
      %v6006 = vpack.i.b16 %v5868, %v5867
      %v6007 = vpack.i.b16 %v5870, %v5869
      %v6008 = vpack.i.b16 %v5872, %v5871
      %v6009 = vpack.i.b16 %v5874, %v5873
      %v6010 = vpack.i.b16 %v5876, %v5875
      %v6011 = vpack.i.b16 %v5878, %v5877
      %v6012 = vpack.i.b16 %v5882, %v5881
      %v6013 = vpack.i.b16 %v5884, %v5883
      %v6014 = vpack.i.b16 %v5886, %v5885
      %v6015 = vpack.i.b16 %v5888, %v5887
      %v6016 = vpack.i.b16 %v5890, %v5889
      %v6017 = vpack.i.b16 %v5892, %v5891
      %v6019 = vcombine.low %v5934, %v5935
      %v6020 = vcombine.low %v5936, %v5937
      %v6021 = vcombine.low %v5938, %v5939
      %v6022 = vcombine.low %v5940, %v5941
      %v6024 = vunpack.c.l.s4 1966171168
      %v6025 = vunpack.c.0.s8 %v6024
      %v6026 = vlaneseq
      %v6027 = vshrl.u32 %v6026, 7
      %v6028 = vsub.s32 %v6025, %v6027
      %v6029 = vrot.slane %v6019, %v6028
      %v6031 = vunpack.c.l.s4 1966171168
      %v6032 = vunpack.c.0.s8 %v6031
      %v6033 = vlaneseq
      %v6034 = vshrl.u32 %v6033, 7
      %v6035 = vsub.s32 %v6032, %v6034
      %v6036 = vrot.slane %v6020, %v6035
      %v6038 = vunpack.c.l.s4 1966171168
      %v6039 = vunpack.c.0.s8 %v6038
      %v6040 = vlaneseq
      %v6041 = vshrl.u32 %v6040, 7
      %v6042 = vsub.s32 %v6039, %v6041
      %v6043 = vrot.slane %v6021, %v6042
      %v6045 = vunpack.c.l.s4 1966171168
      %v6046 = vunpack.c.0.s8 %v6045
      %v6047 = vlaneseq
      %v6048 = vshrl.u32 %v6047, 7
      %v6049 = vsub.s32 %v6046, %v6048
      %v6050 = vrot.slane %v6022, %v6049
      %v6051 = vcombine.low %v6029, %v6036
      %v6052 = vcombine.low %v6043, %v6050
      %v6054 = vunpack.c.l.s4 1966171168
      %v6055 = vunpack.c.0.s8 %v6054
      %v6056 = vlaneseq
      %v6057 = vshrl.u32 %v6056, 7
      %v6058 = vsub.s32 %v6055, %v6057
      %v6059 = vrot.slane %v6051, %v6058
      %v6061 = vunpack.c.l.s4 1966171168
      %v6062 = vunpack.c.0.s8 %v6061
      %v6063 = vlaneseq
      %v6064 = vshrl.u32 %v6063, 7
      %v6065 = vsub.s32 %v6062, %v6064
      %v6066 = vrot.slane %v6052, %v6065
      %v6067 = vcombine.low %v6059, %v6066
      %v6068 = vcombine.low %v5942, %v5943
      %v6069 = vcombine.low %v5944, %v5945
      %v6070 = vcombine.low %v5946, %v5947
      %v6071 = vcombine.low %v5948, %v5949
      %v6073 = vunpack.c.l.s4 1966171168
      %v6074 = vunpack.c.0.s8 %v6073
      %v6075 = vlaneseq
      %v6076 = vshrl.u32 %v6075, 7
      %v6077 = vsub.s32 %v6074, %v6076
      %v6078 = vrot.slane %v6068, %v6077
      %v6080 = vunpack.c.l.s4 1966171168
      %v6081 = vunpack.c.0.s8 %v6080
      %v6082 = vlaneseq
      %v6083 = vshrl.u32 %v6082, 7
      %v6084 = vsub.s32 %v6081, %v6083
      %v6085 = vrot.slane %v6069, %v6084
      %v6087 = vunpack.c.l.s4 1966171168
      %v6088 = vunpack.c.0.s8 %v6087
      %v6089 = vlaneseq
      %v6090 = vshrl.u32 %v6089, 7
      %v6091 = vsub.s32 %v6088, %v6090
      %v6092 = vrot.slane %v6070, %v6091
      %v6094 = vunpack.c.l.s4 1966171168
      %v6095 = vunpack.c.0.s8 %v6094
      %v6096 = vlaneseq
      %v6097 = vshrl.u32 %v6096, 7
      %v6098 = vsub.s32 %v6095, %v6097
      %v6099 = vrot.slane %v6071, %v6098
      %v6100 = vcombine.low %v6078, %v6085
      %v6101 = vcombine.low %v6092, %v6099
      %v6103 = vunpack.c.l.s4 1966171168
      %v6104 = vunpack.c.0.s8 %v6103
      %v6105 = vlaneseq
      %v6106 = vshrl.u32 %v6105, 7
      %v6107 = vsub.s32 %v6104, %v6106
      %v6108 = vrot.slane %v6100, %v6107
      %v6110 = vunpack.c.l.s4 1966171168
      %v6111 = vunpack.c.0.s8 %v6110
      %v6112 = vlaneseq
      %v6113 = vshrl.u32 %v6112, 7
      %v6114 = vsub.s32 %v6111, %v6113
      %v6115 = vrot.slane %v6101, %v6114
      %v6116 = vcombine.low %v6108, %v6115
      %v6117 = vcombine.low %v5950, %v5951
      %v6118 = vcombine.low %v5952, %v5953
      %v6119 = vcombine.low %v5954, %v5955
      %v6120 = vcombine.low %v5956, %v5957
      %v6122 = vunpack.c.l.s4 1966171168
      %v6123 = vunpack.c.0.s8 %v6122
      %v6124 = vlaneseq
      %v6125 = vshrl.u32 %v6124, 7
      %v6126 = vsub.s32 %v6123, %v6125
      %v6127 = vrot.slane %v6117, %v6126
      %v6129 = vunpack.c.l.s4 1966171168
      %v6130 = vunpack.c.0.s8 %v6129
      %v6131 = vlaneseq
      %v6132 = vshrl.u32 %v6131, 7
      %v6133 = vsub.s32 %v6130, %v6132
      %v6134 = vrot.slane %v6118, %v6133
      %v6136 = vunpack.c.l.s4 1966171168
      %v6137 = vunpack.c.0.s8 %v6136
      %v6138 = vlaneseq
      %v6139 = vshrl.u32 %v6138, 7
      %v6140 = vsub.s32 %v6137, %v6139
      %v6141 = vrot.slane %v6119, %v6140
      %v6143 = vunpack.c.l.s4 1966171168
      %v6144 = vunpack.c.0.s8 %v6143
      %v6145 = vlaneseq
      %v6146 = vshrl.u32 %v6145, 7
      %v6147 = vsub.s32 %v6144, %v6146
      %v6148 = vrot.slane %v6120, %v6147
      %v6149 = vcombine.low %v6127, %v6134
      %v6150 = vcombine.low %v6141, %v6148
      %v6152 = vunpack.c.l.s4 1966171168
      %v6153 = vunpack.c.0.s8 %v6152
      %v6154 = vlaneseq
      %v6155 = vshrl.u32 %v6154, 7
      %v6156 = vsub.s32 %v6153, %v6155
      %v6157 = vrot.slane %v6149, %v6156
      %v6159 = vunpack.c.l.s4 1966171168
      %v6160 = vunpack.c.0.s8 %v6159
      %v6161 = vlaneseq
      %v6162 = vshrl.u32 %v6161, 7
      %v6163 = vsub.s32 %v6160, %v6162
      %v6164 = vrot.slane %v6150, %v6163
      %v6165 = vcombine.low %v6157, %v6164
      %v6166 = vcombine.low %v5958, %v5959
      %v6167 = vcombine.low %v5960, %v5961
      %v6168 = vcombine.low %v5962, %v5963
      %v6169 = vcombine.low %v5964, %v5965
      %v6171 = vunpack.c.l.s4 1966171168
      %v6172 = vunpack.c.0.s8 %v6171
      %v6173 = vlaneseq
      %v6174 = vshrl.u32 %v6173, 7
      %v6175 = vsub.s32 %v6172, %v6174
      %v6176 = vrot.slane %v6166, %v6175
      %v6178 = vunpack.c.l.s4 1966171168
      %v6179 = vunpack.c.0.s8 %v6178
      %v6180 = vlaneseq
      %v6181 = vshrl.u32 %v6180, 7
      %v6182 = vsub.s32 %v6179, %v6181
      %v6183 = vrot.slane %v6167, %v6182
      %v6185 = vunpack.c.l.s4 1966171168
      %v6186 = vunpack.c.0.s8 %v6185
      %v6187 = vlaneseq
      %v6188 = vshrl.u32 %v6187, 7
      %v6189 = vsub.s32 %v6186, %v6188
      %v6190 = vrot.slane %v6168, %v6189
      %v6192 = vunpack.c.l.s4 1966171168
      %v6193 = vunpack.c.0.s8 %v6192
      %v6194 = vlaneseq
      %v6195 = vshrl.u32 %v6194, 7
      %v6196 = vsub.s32 %v6193, %v6195
      %v6197 = vrot.slane %v6169, %v6196
      %v6198 = vcombine.low %v6176, %v6183
      %v6199 = vcombine.low %v6190, %v6197
      %v6201 = vunpack.c.l.s4 1966171168
      %v6202 = vunpack.c.0.s8 %v6201
      %v6203 = vlaneseq
      %v6204 = vshrl.u32 %v6203, 7
      %v6205 = vsub.s32 %v6202, %v6204
      %v6206 = vrot.slane %v6198, %v6205
      %v6208 = vunpack.c.l.s4 1966171168
      %v6209 = vunpack.c.0.s8 %v6208
      %v6210 = vlaneseq
      %v6211 = vshrl.u32 %v6210, 7
      %v6212 = vsub.s32 %v6209, %v6211
      %v6213 = vrot.slane %v6199, %v6212
      %v6214 = vcombine.low %v6206, %v6213
      %v6215 = vcombine.low %v5966, %v5967
      %v6216 = vcombine.low %v5968, %v5969
      %v6217 = vcombine.low %v5970, %v5971
      %v6218 = vcombine.low %v5972, %v5973
      %v6220 = vunpack.c.l.s4 1966171168
      %v6221 = vunpack.c.0.s8 %v6220
      %v6222 = vlaneseq
      %v6223 = vshrl.u32 %v6222, 7
      %v6224 = vsub.s32 %v6221, %v6223
      %v6225 = vrot.slane %v6215, %v6224
      %v6227 = vunpack.c.l.s4 1966171168
      %v6228 = vunpack.c.0.s8 %v6227
      %v6229 = vlaneseq
      %v6230 = vshrl.u32 %v6229, 7
      %v6231 = vsub.s32 %v6228, %v6230
      %v6232 = vrot.slane %v6216, %v6231
      %v6234 = vunpack.c.l.s4 1966171168
      %v6235 = vunpack.c.0.s8 %v6234
      %v6236 = vlaneseq
      %v6237 = vshrl.u32 %v6236, 7
      %v6238 = vsub.s32 %v6235, %v6237
      %v6239 = vrot.slane %v6217, %v6238
      %v6241 = vunpack.c.l.s4 1966171168
      %v6242 = vunpack.c.0.s8 %v6241
      %v6243 = vlaneseq
      %v6244 = vshrl.u32 %v6243, 7
      %v6245 = vsub.s32 %v6242, %v6244
      %v6246 = vrot.slane %v6218, %v6245
      %v6247 = vcombine.low %v6225, %v6232
      %v6248 = vcombine.low %v6239, %v6246
      %v6250 = vunpack.c.l.s4 1966171168
      %v6251 = vunpack.c.0.s8 %v6250
      %v6252 = vlaneseq
      %v6253 = vshrl.u32 %v6252, 7
      %v6254 = vsub.s32 %v6251, %v6253
      %v6255 = vrot.slane %v6247, %v6254
      %v6257 = vunpack.c.l.s4 1966171168
      %v6258 = vunpack.c.0.s8 %v6257
      %v6259 = vlaneseq
      %v6260 = vshrl.u32 %v6259, 7
      %v6261 = vsub.s32 %v6258, %v6260
      %v6262 = vrot.slane %v6248, %v6261
      %v6263 = vcombine.low %v6255, %v6262
      %v6264 = vcombine.low %v5974, %v5975
      %v6265 = vcombine.low %v5976, %v5977
      %v6266 = vcombine.low %v5978, %v5979
      %v6267 = vcombine.low %v5980, %v5981
      %v6269 = vunpack.c.l.s4 1966171168
      %v6270 = vunpack.c.0.s8 %v6269
      %v6271 = vlaneseq
      %v6272 = vshrl.u32 %v6271, 7
      %v6273 = vsub.s32 %v6270, %v6272
      %v6274 = vrot.slane %v6264, %v6273
      %v6276 = vunpack.c.l.s4 1966171168
      %v6277 = vunpack.c.0.s8 %v6276
      %v6278 = vlaneseq
      %v6279 = vshrl.u32 %v6278, 7
      %v6280 = vsub.s32 %v6277, %v6279
      %v6281 = vrot.slane %v6265, %v6280
      %v6283 = vunpack.c.l.s4 1966171168
      %v6284 = vunpack.c.0.s8 %v6283
      %v6285 = vlaneseq
      %v6286 = vshrl.u32 %v6285, 7
      %v6287 = vsub.s32 %v6284, %v6286
      %v6288 = vrot.slane %v6266, %v6287
      %v6290 = vunpack.c.l.s4 1966171168
      %v6291 = vunpack.c.0.s8 %v6290
      %v6292 = vlaneseq
      %v6293 = vshrl.u32 %v6292, 7
      %v6294 = vsub.s32 %v6291, %v6293
      %v6295 = vrot.slane %v6267, %v6294
      %v6296 = vcombine.low %v6274, %v6281
      %v6297 = vcombine.low %v6288, %v6295
      %v6299 = vunpack.c.l.s4 1966171168
      %v6300 = vunpack.c.0.s8 %v6299
      %v6301 = vlaneseq
      %v6302 = vshrl.u32 %v6301, 7
      %v6303 = vsub.s32 %v6300, %v6302
      %v6304 = vrot.slane %v6296, %v6303
      %v6306 = vunpack.c.l.s4 1966171168
      %v6307 = vunpack.c.0.s8 %v6306
      %v6308 = vlaneseq
      %v6309 = vshrl.u32 %v6308, 7
      %v6310 = vsub.s32 %v6307, %v6309
      %v6311 = vrot.slane %v6297, %v6310
      %v6312 = vcombine.low %v6304, %v6311
      %v6313 = vcombine.low %v5982, %v5983
      %v6314 = vcombine.low %v5984, %v5985
      %v6315 = vcombine.low %v5986, %v5987
      %v6316 = vcombine.low %v5988, %v5989
      %v6318 = vunpack.c.l.s4 1966171168
      %v6319 = vunpack.c.0.s8 %v6318
      %v6320 = vlaneseq
      %v6321 = vshrl.u32 %v6320, 7
      %v6322 = vsub.s32 %v6319, %v6321
      %v6323 = vrot.slane %v6313, %v6322
      %v6325 = vunpack.c.l.s4 1966171168
      %v6326 = vunpack.c.0.s8 %v6325
      %v6327 = vlaneseq
      %v6328 = vshrl.u32 %v6327, 7
      %v6329 = vsub.s32 %v6326, %v6328
      %v6330 = vrot.slane %v6314, %v6329
      %v6332 = vunpack.c.l.s4 1966171168
      %v6333 = vunpack.c.0.s8 %v6332
      %v6334 = vlaneseq
      %v6335 = vshrl.u32 %v6334, 7
      %v6336 = vsub.s32 %v6333, %v6335
      %v6337 = vrot.slane %v6315, %v6336
      %v6339 = vunpack.c.l.s4 1966171168
      %v6340 = vunpack.c.0.s8 %v6339
      %v6341 = vlaneseq
      %v6342 = vshrl.u32 %v6341, 7
      %v6343 = vsub.s32 %v6340, %v6342
      %v6344 = vrot.slane %v6316, %v6343
      %v6345 = vcombine.low %v6323, %v6330
      %v6346 = vcombine.low %v6337, %v6344
      %v6348 = vunpack.c.l.s4 1966171168
      %v6349 = vunpack.c.0.s8 %v6348
      %v6350 = vlaneseq
      %v6351 = vshrl.u32 %v6350, 7
      %v6352 = vsub.s32 %v6349, %v6351
      %v6353 = vrot.slane %v6345, %v6352
      %v6355 = vunpack.c.l.s4 1966171168
      %v6356 = vunpack.c.0.s8 %v6355
      %v6357 = vlaneseq
      %v6358 = vshrl.u32 %v6357, 7
      %v6359 = vsub.s32 %v6356, %v6358
      %v6360 = vrot.slane %v6346, %v6359
      %v6361 = vcombine.low %v6353, %v6360
      %v6362 = vcombine.low %v5990, %v5991
      %v6363 = vcombine.low %v5992, %v5993
      %v6364 = vcombine.low %v5994, %v5995
      %v6365 = vcombine.low %v5996, %v5997
      %v6367 = vunpack.c.l.s4 1966171168
      %v6368 = vunpack.c.0.s8 %v6367
      %v6369 = vlaneseq
      %v6370 = vshrl.u32 %v6369, 7
      %v6371 = vsub.s32 %v6368, %v6370
      %v6372 = vrot.slane %v6362, %v6371
      %v6374 = vunpack.c.l.s4 1966171168
      %v6375 = vunpack.c.0.s8 %v6374
      %v6376 = vlaneseq
      %v6377 = vshrl.u32 %v6376, 7
      %v6378 = vsub.s32 %v6375, %v6377
      %v6379 = vrot.slane %v6363, %v6378
      %v6381 = vunpack.c.l.s4 1966171168
      %v6382 = vunpack.c.0.s8 %v6381
      %v6383 = vlaneseq
      %v6384 = vshrl.u32 %v6383, 7
      %v6385 = vsub.s32 %v6382, %v6384
      %v6386 = vrot.slane %v6364, %v6385
      %v6388 = vunpack.c.l.s4 1966171168
      %v6389 = vunpack.c.0.s8 %v6388
      %v6390 = vlaneseq
      %v6391 = vshrl.u32 %v6390, 7
      %v6392 = vsub.s32 %v6389, %v6391
      %v6393 = vrot.slane %v6365, %v6392
      %v6394 = vcombine.low %v6372, %v6379
      %v6395 = vcombine.low %v6386, %v6393
      %v6397 = vunpack.c.l.s4 1966171168
      %v6398 = vunpack.c.0.s8 %v6397
      %v6399 = vlaneseq
      %v6400 = vshrl.u32 %v6399, 7
      %v6401 = vsub.s32 %v6398, %v6400
      %v6402 = vrot.slane %v6394, %v6401
      %v6404 = vunpack.c.l.s4 1966171168
      %v6405 = vunpack.c.0.s8 %v6404
      %v6406 = vlaneseq
      %v6407 = vshrl.u32 %v6406, 7
      %v6408 = vsub.s32 %v6405, %v6407
      %v6409 = vrot.slane %v6395, %v6408
      %v6410 = vcombine.low %v6402, %v6409
      %v6411 = vcombine.low %v5998, %v5999
      %v6412 = vcombine.low %v6000, %v6001
      %v6413 = vcombine.low %v6002, %v6003
      %v6414 = vcombine.low %v6004, %v6005
      %v6416 = vunpack.c.l.s4 1966171168
      %v6417 = vunpack.c.0.s8 %v6416
      %v6418 = vlaneseq
      %v6419 = vshrl.u32 %v6418, 7
      %v6420 = vsub.s32 %v6417, %v6419
      %v6421 = vrot.slane %v6411, %v6420
      %v6423 = vunpack.c.l.s4 1966171168
      %v6424 = vunpack.c.0.s8 %v6423
      %v6425 = vlaneseq
      %v6426 = vshrl.u32 %v6425, 7
      %v6427 = vsub.s32 %v6424, %v6426
      %v6428 = vrot.slane %v6412, %v6427
      %v6430 = vunpack.c.l.s4 1966171168
      %v6431 = vunpack.c.0.s8 %v6430
      %v6432 = vlaneseq
      %v6433 = vshrl.u32 %v6432, 7
      %v6434 = vsub.s32 %v6431, %v6433
      %v6435 = vrot.slane %v6413, %v6434
      %v6437 = vunpack.c.l.s4 1966171168
      %v6438 = vunpack.c.0.s8 %v6437
      %v6439 = vlaneseq
      %v6440 = vshrl.u32 %v6439, 7
      %v6441 = vsub.s32 %v6438, %v6440
      %v6442 = vrot.slane %v6414, %v6441
      %v6443 = vcombine.low %v6421, %v6428
      %v6444 = vcombine.low %v6435, %v6442
      %v6446 = vunpack.c.l.s4 1966171168
      %v6447 = vunpack.c.0.s8 %v6446
      %v6448 = vlaneseq
      %v6449 = vshrl.u32 %v6448, 7
      %v6450 = vsub.s32 %v6447, %v6449
      %v6451 = vrot.slane %v6443, %v6450
      %v6453 = vunpack.c.l.s4 1966171168
      %v6454 = vunpack.c.0.s8 %v6453
      %v6455 = vlaneseq
      %v6456 = vshrl.u32 %v6455, 7
      %v6457 = vsub.s32 %v6454, %v6456
      %v6458 = vrot.slane %v6444, %v6457
      %v6459 = vcombine.low %v6451, %v6458
      %v6460 = vcombine.low %v6006, %v6007
      %v6461 = vcombine.low %v6008, %v6009
      %v6462 = vcombine.low %v6010, %v6011
      %v6463 = vcombine.low %v6012, %v6013
      %v6465 = vunpack.c.l.s4 1966171168
      %v6466 = vunpack.c.0.s8 %v6465
      %v6467 = vlaneseq
      %v6468 = vshrl.u32 %v6467, 7
      %v6469 = vsub.s32 %v6466, %v6468
      %v6470 = vrot.slane %v6460, %v6469
      %v6472 = vunpack.c.l.s4 1966171168
      %v6473 = vunpack.c.0.s8 %v6472
      %v6474 = vlaneseq
      %v6475 = vshrl.u32 %v6474, 7
      %v6476 = vsub.s32 %v6473, %v6475
      %v6477 = vrot.slane %v6461, %v6476
      %v6479 = vunpack.c.l.s4 1966171168
      %v6480 = vunpack.c.0.s8 %v6479
      %v6481 = vlaneseq
      %v6482 = vshrl.u32 %v6481, 7
      %v6483 = vsub.s32 %v6480, %v6482
      %v6484 = vrot.slane %v6462, %v6483
      %v6486 = vunpack.c.l.s4 1966171168
      %v6487 = vunpack.c.0.s8 %v6486
      %v6488 = vlaneseq
      %v6489 = vshrl.u32 %v6488, 7
      %v6490 = vsub.s32 %v6487, %v6489
      %v6491 = vrot.slane %v6463, %v6490
      %v6492 = vcombine.low %v6470, %v6477
      %v6493 = vcombine.low %v6484, %v6491
      %v6495 = vunpack.c.l.s4 1966171168
      %v6496 = vunpack.c.0.s8 %v6495
      %v6497 = vlaneseq
      %v6498 = vshrl.u32 %v6497, 7
      %v6499 = vsub.s32 %v6496, %v6498
      %v6500 = vrot.slane %v6492, %v6499
      %v6502 = vunpack.c.l.s4 1966171168
      %v6503 = vunpack.c.0.s8 %v6502
      %v6504 = vlaneseq
      %v6505 = vshrl.u32 %v6504, 7
      %v6506 = vsub.s32 %v6503, %v6505
      %v6507 = vrot.slane %v6493, %v6506
      %v6508 = vcombine.low %v6500, %v6507
      %v6509 = vcombine.low %v6014, %v6015
      %v6510 = vcombine.low %v6016, %v6017
      %v6512 = vunpack.c.l.s4 1966171168
      %v6513 = vunpack.c.0.s8 %v6512
      %v6514 = vlaneseq
      %v6515 = vshrl.u32 %v6514, 7
      %v6516 = vsub.s32 %v6513, %v6515
      %v6517 = vrot.slane %v6509, %v6516
      %v6519 = vunpack.c.l.s4 1966171168
      %v6520 = vunpack.c.0.s8 %v6519
      %v6521 = vlaneseq
      %v6522 = vshrl.u32 %v6521, 7
      %v6523 = vsub.s32 %v6520, %v6522
      %v6524 = vrot.slane %v6510, %v6523
      %v6526 = vunpack.c.l.s4 1966171168
      %v6527 = vunpack.c.0.s8 %v6526
      %v6528 = vlaneseq
      %v6529 = vshrl.u32 %v6528, 7
      %v6530 = vsub.s32 %v6527, %v6529
      %v6531 = vrot.slane %v5893, %v6530
      %v6532 = vcombine.low %v6517, %v6524
      %v6534 = vunpack.c.l.s4 1966171168
      %v6535 = vunpack.c.0.s8 %v6534
      %v6536 = vlaneseq
      %v6537 = vshrl.u32 %v6536, 7
      %v6538 = vsub.s32 %v6535, %v6537
      %v6539 = vrot.slane %v6532, %v6538
      %v6541 = vunpack.c.l.s4 1966171168
      %v6542 = vunpack.c.0.s8 %v6541
      %v6543 = vlaneseq
      %v6544 = vshrl.u32 %v6543, 7
      %v6545 = vsub.s32 %v6542, %v6544
      %v6546 = vrot.slane %v6531, %v6545
      %v6547 = vcombine.low %v6539, %v6546
      %v6552 = vunpack.c.l.b16 %v5930
      %v6553 = vunpack.c.l.b16 %v5931
      %v6554 = vunpack.c.l.b16 %v5932
      %v6555 = vunpack.c.l.b16 %v5933
      %v6556 = vpack.c.b16 %v6553, %v6552
      %v6557 = vpack.c.b16 %v6555, %v6554
      %vm6560 = vcmask 261120
      %v6562 = vsel %vm6560, %v6067, 0
      %v6565 = vsel %vm6560, %v6116, 0
      %v6568 = vsel %vm6560, %v6165, 0
      %v6571 = vsel %vm6560, %v6214, 0
      %v6574 = vsel %vm6560, %v6263, 0
      %v6577 = vsel %vm6560, %v6312, 0
      %v6580 = vsel %vm6560, %v6361, 0
      %v6583 = vsel %vm6560, %v6410, 0
      %v6586 = vsel %vm6560, %v6459, 0
      %v6589 = vsel %vm6560, %v6508, 0
      %v6592 = vsel %vm6560, %v6547, 0
      %6594 = vmatprep.subr.bf16.mxu0 0
      %6595 = vmatpush1.bf16.msra.mxu0 %v6556
      %6596 = vmatprep.subr.bf16.mxu0 0
      %6597 = vmatpush1.bf16.msra.mxu0 %v6557
      %6598 = vmatprep.subr.bf16.mxu0 0
      %6599 = vmatpush1.bf16.msra.mxu0 0
      %6600 = vmatprep.subr.bf16.mxu0 0
      %6601 = vmatpush1.bf16.msra.mxu0 0
      %6602 = vmatprep.subr.bf16.mxu0 0
      %6603 = vmatpush1.bf16.msra.mxu0 0
      %6604 = vmatprep.subr.bf16.mxu0 0
      %6605 = vmatpush1.bf16.msra.mxu0 0
      %6606 = vmatprep.subr.bf16.mxu0 0
      %6607 = vmatpush1.bf16.msra.mxu0 0
      %6608 = vmatprep.subr.bf16.mxu0 0
      %6609 = vmatpush1.bf16.msra.mxu0 0
      %6610 = vmatprep.subr.bf16.mxu0 0
      %6611 = vmatpush1.bf16.msra.mxu0 0
      %6612 = vmatprep.subr.bf16.mxu0 0
      %6613 = vmatpush1.bf16.msra.mxu0 0
      %6614 = vmatprep.subr.bf16.mxu0 0
      %6615 = vmatpush1.bf16.msra.mxu0 0
      %6616 = vmatprep.subr.bf16.mxu0 0
      %6617 = vmatpush1.bf16.msra.mxu0 0
      %6618 = vmatprep.subr.bf16.mxu0 0
      %6619 = vmatpush1.bf16.msra.mxu0 0
      %6620 = vmatprep.subr.bf16.mxu0 0
      %6621 = vmatpush1.bf16.msra.mxu0 0
      %6622 = vmatprep.subr.bf16.mxu0 0
      %6623 = vmatpush1.bf16.msra.mxu0 0
      %6624 = vmatprep.subr.bf16.mxu0 0
      %6625 = vmatpush1.bf16.msra.mxu0 0
      %6626 = vmatprep.mubr.bf16.mxu0 0
      %6627 = vmatmul.mubr.bf16.gmra.mrb[0].mxu0 %v6562
      %v6628 = vpop.f32.mrb[0].mxu0
      %v6629 = vadd.f32 0.0, %v6628
      %v6630 = vpop.f32.mrb[0].mxu0
      %v6631 = vpop.f32.mrb[0].mxu0
      %v6632 = vadd.f32 0.0, %v6631
      %v6633 = vpop.f32.mrb[0].mxu0
      %6634 = vmatprep.mubr.bf16.mxu0 0
      %6635 = vmatmul.mubr.bf16.gmra.mrb[0].mxu0 %v6565
      %v6636 = vpop.f32.mrb[0].mxu0
      %v6637 = vadd.f32 0.0, %v6636
      %v6638 = vpop.f32.mrb[0].mxu0
      %v6639 = vpop.f32.mrb[0].mxu0
      %v6640 = vadd.f32 0.0, %v6639
      %v6641 = vpop.f32.mrb[0].mxu0
      %6642 = vmatprep.mubr.bf16.mxu0 0
      %6643 = vmatmul.mubr.bf16.gmra.mrb[0].mxu0 %v6568
      %v6644 = vpop.f32.mrb[0].mxu0
      %v6645 = vadd.f32 0.0, %v6644
      %v6646 = vpop.f32.mrb[0].mxu0
      %v6647 = vpop.f32.mrb[0].mxu0
      %v6648 = vadd.f32 0.0, %v6647
      %v6649 = vpop.f32.mrb[0].mxu0
      %6650 = vmatprep.mubr.bf16.mxu0 0
      %6651 = vmatmul.mubr.bf16.gmra.mrb[0].mxu0 %v6571
      %v6652 = vpop.f32.mrb[0].mxu0
      %v6653 = vadd.f32 0.0, %v6652
      %v6654 = vpop.f32.mrb[0].mxu0
      %v6655 = vpop.f32.mrb[0].mxu0
      %v6656 = vadd.f32 0.0, %v6655
      %v6657 = vpop.f32.mrb[0].mxu0
      %6658 = vmatprep.mubr.bf16.mxu0 0
      %6659 = vmatmul.mubr.bf16.gmra.mrb[0].mxu0 %v6574
      %v6660 = vpop.f32.mrb[0].mxu0
      %v6661 = vadd.f32 0.0, %v6660
      %v6662 = vpop.f32.mrb[0].mxu0
      %v6663 = vpop.f32.mrb[0].mxu0
      %v6664 = vadd.f32 0.0, %v6663
      %v6665 = vpop.f32.mrb[0].mxu0
      %6666 = vmatprep.mubr.bf16.mxu0 0
      %6667 = vmatmul.mubr.bf16.gmra.mrb[0].mxu0 %v6577
      %v6668 = vpop.f32.mrb[0].mxu0
      %v6669 = vadd.f32 0.0, %v6668
      %v6670 = vpop.f32.mrb[0].mxu0
      %v6671 = vpop.f32.mrb[0].mxu0
      %v6672 = vadd.f32 0.0, %v6671
      %v6673 = vpop.f32.mrb[0].mxu0
      %6674 = vmatprep.mubr.bf16.mxu0 0
      %6675 = vmatmul.mubr.bf16.gmra.mrb[0].mxu0 %v6580
      %v6676 = vpop.f32.mrb[0].mxu0
      %v6677 = vadd.f32 0.0, %v6676
      %v6678 = vpop.f32.mrb[0].mxu0
      %v6679 = vpop.f32.mrb[0].mxu0
      %v6680 = vadd.f32 0.0, %v6679
      %v6681 = vpop.f32.mrb[0].mxu0
      %6682 = vmatprep.mubr.bf16.mxu0 0
      %6683 = vmatmul.mubr.bf16.gmra.mrb[0].mxu0 %v6583
      %v6684 = vpop.f32.mrb[0].mxu0
      %v6685 = vadd.f32 0.0, %v6684
      %v6686 = vpop.f32.mrb[0].mxu0
      %v6687 = vpop.f32.mrb[0].mxu0
      %v6688 = vadd.f32 0.0, %v6687
      %v6689 = vpop.f32.mrb[0].mxu0
      %6690 = vmatprep.mubr.bf16.mxu0 0
      %6691 = vmatmul.mubr.bf16.gmra.mrb[0].mxu0 %v6586
      %v6692 = vpop.f32.mrb[0].mxu0
      %v6693 = vadd.f32 0.0, %v6692
      %v6694 = vpop.f32.mrb[0].mxu0
      %v6695 = vpop.f32.mrb[0].mxu0
      %v6696 = vadd.f32 0.0, %v6695
      %v6697 = vpop.f32.mrb[0].mxu0
      %6698 = vmatprep.mubr.bf16.mxu0 0
      %6699 = vmatmul.mubr.bf16.gmra.mrb[0].mxu0 %v6589
      %v6700 = vpop.f32.mrb[0].mxu0
      %v6701 = vadd.f32 0.0, %v6700
      %v6702 = vpop.f32.mrb[0].mxu0
      %v6703 = vpop.f32.mrb[0].mxu0
      %v6704 = vadd.f32 0.0, %v6703
      %v6705 = vpop.f32.mrb[0].mxu0
      %6706 = vmatprep.mubr.bf16.mxu0 0
      %6707 = vmatmul.mubr.bf16.gmra.mrb[0].mxu0 %v6592
      %v6708 = vpop.f32.mrb[0].mxu0
      %v6709 = vadd.f32 0.0, %v6708
      %v6710 = vpop.f32.mrb[0].mxu0
      %v6711 = vpop.f32.mrb[0].mxu0
      %v6712 = vadd.f32 0.0, %v6711
      %v6713 = vpop.f32.mrb[0].mxu0
      %6714 = vdwg.mxu0
      %v6715 = vpack.i.b16 %v5701, %v5700
      %v6716 = vpack.i.b16 %v5703, %v5702
      %v6717 = vpack.i.b16 %v5705, %v5704
      %v6718 = vpack.i.b16 %v5707, %v5706
      %v6719 = vpack.i.b16 %v5709, %v5708
      %v6720 = vpack.i.b16 %v5711, %v5710
      %v6721 = vpack.i.b16 %v5715, %v5712
      %v6722 = vpack.i.b16 %v5717, %v5716
      %v6723 = vpack.i.b16 %v5719, %v5718
      %v6724 = vpack.i.b16 %v5721, %v5720
      %v6725 = vpack.i.b16 %v5723, %v5722
      %v6726 = vpack.i.b16 %v5725, %v5724
      %v6727 = vpack.i.b16 %v5727, %v5726
      %v6728 = vpack.i.b16 %v5731, %v5730
      %v6729 = vpack.i.b16 %v5733, %v5732
      %v6730 = vpack.i.b16 %v5735, %v5734
      %v6731 = vpack.i.b16 %v5737, %v5736
      %v6732 = vpack.i.b16 %v5739, %v5738
      %v6733 = vpack.i.b16 %v5741, %v5740
      %v6734 = vpack.i.b16 %v5745, %v5742
      %v6735 = vpack.i.b16 %v5747, %v5746
      %v6736 = vpack.i.b16 %v5749, %v5748
      %v6737 = vpack.i.b16 %v5751, %v5750
      %v6738 = vpack.i.b16 %v5753, %v5752
      %v6739 = vpack.i.b16 %v5755, %v5754
      %v6740 = vpack.i.b16 %v5757, %v5756
      %v6741 = vpack.i.b16 %v5761, %v5760
      %v6742 = vpack.i.b16 %v5763, %v5762
      %v6743 = vpack.i.b16 %v5765, %v5764
      %v6744 = vpack.i.b16 %v5767, %v5766
      %v6745 = vpack.i.b16 %v5769, %v5768
      %v6746 = vpack.i.b16 %v5771, %v5770
      %v6747 = vpack.i.b16 %v5775, %v5772
      %v6748 = vpack.i.b16 %v5777, %v5776
      %v6749 = vpack.i.b16 %v5779, %v5778
      %v6750 = vpack.i.b16 %v5781, %v5780
      %v6751 = vpack.i.b16 %v5783, %v5782
      %v6752 = vpack.i.b16 %v5785, %v5784
      %v6753 = vpack.i.b16 %v5787, %v5786
      %v6754 = vpack.i.b16 %v5791, %v5790
      %v6755 = vpack.i.b16 %v5793, %v5792
      %v6756 = vpack.i.b16 %v5795, %v5794
      %v6757 = vpack.i.b16 %v5797, %v5796
      %v6758 = vpack.i.b16 %v5799, %v5798
      %v6759 = vpack.i.b16 %v5801, %v5800
      %v6760 = vpack.i.b16 %v5805, %v5802
      %v6761 = vpack.i.b16 %v5807, %v5806
      %v6762 = vpack.i.b16 %v5809, %v5808
      %v6763 = vpack.i.b16 %v5811, %v5810
      %v6764 = vpack.i.b16 %v5813, %v5812
      %v6765 = vpack.i.b16 %v5815, %v5814
      %v6766 = vpack.i.b16 %v5817, %v5816
      %v6767 = vpack.i.b16 %v5821, %v5820
      %v6768 = vpack.i.b16 %v5823, %v5822
      %v6769 = vpack.i.b16 %v5825, %v5824
      %v6770 = vpack.i.b16 %v5827, %v5826
      %v6771 = vpack.i.b16 %v5829, %v5828
      %v6772 = vpack.i.b16 %v5831, %v5830
      %v6773 = vpack.i.b16 %v5835, %v5832
      %v6774 = vpack.i.b16 %v5837, %v5836
      %v6775 = vpack.i.b16 %v5839, %v5838
      %v6776 = vpack.i.b16 %v5841, %v5840
      %v6777 = vpack.i.b16 %v5843, %v5842
      %v6778 = vpack.i.b16 %v5845, %v5844
      %v6779 = vpack.i.b16 %v5847, %v5846
      %v6780 = vpack.i.b16 %v5851, %v5850
      %v6781 = vpack.i.b16 %v5853, %v5852
      %v6782 = vpack.i.b16 %v5855, %v5854
      %v6783 = vpack.i.b16 %v5857, %v5856
      %v6784 = vpack.i.b16 %v5859, %v5858
      %v6785 = vpack.i.b16 %v5861, %v5860
      %v6786 = vpack.i.b16 %v5865, %v5862
      %v6787 = vpack.i.b16 %v5867, %v5866
      %v6788 = vpack.i.b16 %v5869, %v5868
      %v6789 = vpack.i.b16 %v5871, %v5870
      %v6790 = vpack.i.b16 %v5873, %v5872
      %v6791 = vpack.i.b16 %v5875, %v5874
      %v6792 = vpack.i.b16 %v5877, %v5876
      %v6793 = vpack.i.b16 %v5881, %v5880
      %v6794 = vpack.i.b16 %v5883, %v5882
      %v6795 = vpack.i.b16 %v5885, %v5884
      %v6796 = vpack.i.b16 %v5887, %v5886
      %v6797 = vpack.i.b16 %v5889, %v5888
      %v6798 = vpack.i.b16 %v5891, %v5890
      %v6800 = vcombine.low %v6715, %v6716
      %v6801 = vcombine.low %v6717, %v6718
      %v6802 = vcombine.low %v6719, %v6720
      %v6803 = vcombine.low %v6721, %v6722
      %v6805 = vunpack.c.l.s4 1966171168
      %v6806 = vunpack.c.0.s8 %v6805
      %v6807 = vlaneseq
      %v6808 = vshrl.u32 %v6807, 7
      %v6809 = vsub.s32 %v6806, %v6808
      %v6810 = vrot.slane %v6800, %v6809
      %v6812 = vunpack.c.l.s4 1966171168
      %v6813 = vunpack.c.0.s8 %v6812
      %v6814 = vlaneseq
      %v6815 = vshrl.u32 %v6814, 7
      %v6816 = vsub.s32 %v6813, %v6815
      %v6817 = vrot.slane %v6801, %v6816
      %v6819 = vunpack.c.l.s4 1966171168
      %v6820 = vunpack.c.0.s8 %v6819
      %v6821 = vlaneseq
      %v6822 = vshrl.u32 %v6821, 7
      %v6823 = vsub.s32 %v6820, %v6822
      %v6824 = vrot.slane %v6802, %v6823
      %v6826 = vunpack.c.l.s4 1966171168
      %v6827 = vunpack.c.0.s8 %v6826
      %v6828 = vlaneseq
      %v6829 = vshrl.u32 %v6828, 7
      %v6830 = vsub.s32 %v6827, %v6829
      %v6831 = vrot.slane %v6803, %v6830
      %v6832 = vcombine.low %v6810, %v6817
      %v6833 = vcombine.low %v6824, %v6831
      %v6835 = vunpack.c.l.s4 1966171168
      %v6836 = vunpack.c.0.s8 %v6835
      %v6837 = vlaneseq
      %v6838 = vshrl.u32 %v6837, 7
      %v6839 = vsub.s32 %v6836, %v6838
      %v6840 = vrot.slane %v6832, %v6839
      %v6842 = vunpack.c.l.s4 1966171168
      %v6843 = vunpack.c.0.s8 %v6842
      %v6844 = vlaneseq
      %v6845 = vshrl.u32 %v6844, 7
      %v6846 = vsub.s32 %v6843, %v6845
      %v6847 = vrot.slane %v6833, %v6846
      %v6848 = vcombine.low %v6840, %v6847
      %v6849 = vcombine.low %v6723, %v6724
      %v6850 = vcombine.low %v6725, %v6726
      %v6851 = vcombine.low %v6727, %v6728
      %v6852 = vcombine.low %v6729, %v6730
      %v6854 = vunpack.c.l.s4 1966171168
      %v6855 = vunpack.c.0.s8 %v6854
      %v6856 = vlaneseq
      %v6857 = vshrl.u32 %v6856, 7
      %v6858 = vsub.s32 %v6855, %v6857
      %v6859 = vrot.slane %v6849, %v6858
      %v6861 = vunpack.c.l.s4 1966171168
      %v6862 = vunpack.c.0.s8 %v6861
      %v6863 = vlaneseq
      %v6864 = vshrl.u32 %v6863, 7
      %v6865 = vsub.s32 %v6862, %v6864
      %v6866 = vrot.slane %v6850, %v6865
      %v6868 = vunpack.c.l.s4 1966171168
      %v6869 = vunpack.c.0.s8 %v6868
      %v6870 = vlaneseq
      %v6871 = vshrl.u32 %v6870, 7
      %v6872 = vsub.s32 %v6869, %v6871
      %v6873 = vrot.slane %v6851, %v6872
      %v6875 = vunpack.c.l.s4 1966171168
      %v6876 = vunpack.c.0.s8 %v6875
      %v6877 = vlaneseq
      %v6878 = vshrl.u32 %v6877, 7
      %v6879 = vsub.s32 %v6876, %v6878
      %v6880 = vrot.slane %v6852, %v6879
      %v6881 = vcombine.low %v6859, %v6866
      %v6882 = vcombine.low %v6873, %v6880
      %v6884 = vunpack.c.l.s4 1966171168
      %v6885 = vunpack.c.0.s8 %v6884
      %v6886 = vlaneseq
      %v6887 = vshrl.u32 %v6886, 7
      %v6888 = vsub.s32 %v6885, %v6887
      %v6889 = vrot.slane %v6881, %v6888
      %v6891 = vunpack.c.l.s4 1966171168
      %v6892 = vunpack.c.0.s8 %v6891
      %v6893 = vlaneseq
      %v6894 = vshrl.u32 %v6893, 7
      %v6895 = vsub.s32 %v6892, %v6894
      %v6896 = vrot.slane %v6882, %v6895
      %v6897 = vcombine.low %v6889, %v6896
      %v6898 = vcombine.low %v6731, %v6732
      %v6899 = vcombine.low %v6733, %v6734
      %v6900 = vcombine.low %v6735, %v6736
      %v6901 = vcombine.low %v6737, %v6738
      %v6903 = vunpack.c.l.s4 1966171168
      %v6904 = vunpack.c.0.s8 %v6903
      %v6905 = vlaneseq
      %v6906 = vshrl.u32 %v6905, 7
      %v6907 = vsub.s32 %v6904, %v6906
      %v6908 = vrot.slane %v6898, %v6907
      %v6910 = vunpack.c.l.s4 1966171168
      %v6911 = vunpack.c.0.s8 %v6910
      %v6912 = vlaneseq
      %v6913 = vshrl.u32 %v6912, 7
      %v6914 = vsub.s32 %v6911, %v6913
      %v6915 = vrot.slane %v6899, %v6914
      %v6917 = vunpack.c.l.s4 1966171168
      %v6918 = vunpack.c.0.s8 %v6917
      %v6919 = vlaneseq
      %v6920 = vshrl.u32 %v6919, 7
      %v6921 = vsub.s32 %v6918, %v6920
      %v6922 = vrot.slane %v6900, %v6921
      %v6924 = vunpack.c.l.s4 1966171168
      %v6925 = vunpack.c.0.s8 %v6924
      %v6926 = vlaneseq
      %v6927 = vshrl.u32 %v6926, 7
      %v6928 = vsub.s32 %v6925, %v6927
      %v6929 = vrot.slane %v6901, %v6928
      %v6930 = vcombine.low %v6908, %v6915
      %v6931 = vcombine.low %v6922, %v6929
      %v6933 = vunpack.c.l.s4 1966171168
      %v6934 = vunpack.c.0.s8 %v6933
      %v6935 = vlaneseq
      %v6936 = vshrl.u32 %v6935, 7
      %v6937 = vsub.s32 %v6934, %v6936
      %v6938 = vrot.slane %v6930, %v6937
      %v6940 = vunpack.c.l.s4 1966171168
      %v6941 = vunpack.c.0.s8 %v6940
      %v6942 = vlaneseq
      %v6943 = vshrl.u32 %v6942, 7
      %v6944 = vsub.s32 %v6941, %v6943
      %v6945 = vrot.slane %v6931, %v6944
      %v6946 = vcombine.low %v6938, %v6945
      %v6947 = vcombine.low %v6739, %v6740
      %v6948 = vcombine.low %v6741, %v6742
      %v6949 = vcombine.low %v6743, %v6744
      %v6950 = vcombine.low %v6745, %v6746
      %v6952 = vunpack.c.l.s4 1966171168
      %v6953 = vunpack.c.0.s8 %v6952
      %v6954 = vlaneseq
      %v6955 = vshrl.u32 %v6954, 7
      %v6956 = vsub.s32 %v6953, %v6955
      %v6957 = vrot.slane %v6947, %v6956
      %v6959 = vunpack.c.l.s4 1966171168
      %v6960 = vunpack.c.0.s8 %v6959
      %v6961 = vlaneseq
      %v6962 = vshrl.u32 %v6961, 7
      %v6963 = vsub.s32 %v6960, %v6962
      %v6964 = vrot.slane %v6948, %v6963
      %v6966 = vunpack.c.l.s4 1966171168
      %v6967 = vunpack.c.0.s8 %v6966
      %v6968 = vlaneseq
      %v6969 = vshrl.u32 %v6968, 7
      %v6970 = vsub.s32 %v6967, %v6969
      %v6971 = vrot.slane %v6949, %v6970
      %v6973 = vunpack.c.l.s4 1966171168
      %v6974 = vunpack.c.0.s8 %v6973
      %v6975 = vlaneseq
      %v6976 = vshrl.u32 %v6975, 7
      %v6977 = vsub.s32 %v6974, %v6976
      %v6978 = vrot.slane %v6950, %v6977
      %v6979 = vcombine.low %v6957, %v6964
      %v6980 = vcombine.low %v6971, %v6978
      %v6982 = vunpack.c.l.s4 1966171168
      %v6983 = vunpack.c.0.s8 %v6982
      %v6984 = vlaneseq
      %v6985 = vshrl.u32 %v6984, 7
      %v6986 = vsub.s32 %v6983, %v6985
      %v6987 = vrot.slane %v6979, %v6986
      %v6989 = vunpack.c.l.s4 1966171168
      %v6990 = vunpack.c.0.s8 %v6989
      %v6991 = vlaneseq
      %v6992 = vshrl.u32 %v6991, 7
      %v6993 = vsub.s32 %v6990, %v6992
      %v6994 = vrot.slane %v6980, %v6993
      %v6995 = vcombine.low %v6987, %v6994
      %v6996 = vcombine.low %v6747, %v6748
      %v6997 = vcombine.low %v6749, %v6750
      %v6998 = vcombine.low %v6751, %v6752
      %v6999 = vcombine.low %v6753, %v6754
      %v7001 = vunpack.c.l.s4 1966171168
      %v7002 = vunpack.c.0.s8 %v7001
      %v7003 = vlaneseq
      %v7004 = vshrl.u32 %v7003, 7
      %v7005 = vsub.s32 %v7002, %v7004
      %v7006 = vrot.slane %v6996, %v7005
      %v7008 = vunpack.c.l.s4 1966171168
      %v7009 = vunpack.c.0.s8 %v7008
      %v7010 = vlaneseq
      %v7011 = vshrl.u32 %v7010, 7
      %v7012 = vsub.s32 %v7009, %v7011
      %v7013 = vrot.slane %v6997, %v7012
      %v7015 = vunpack.c.l.s4 1966171168
      %v7016 = vunpack.c.0.s8 %v7015
      %v7017 = vlaneseq
      %v7018 = vshrl.u32 %v7017, 7
      %v7019 = vsub.s32 %v7016, %v7018
      %v7020 = vrot.slane %v6998, %v7019
      %v7022 = vunpack.c.l.s4 1966171168
      %v7023 = vunpack.c.0.s8 %v7022
      %v7024 = vlaneseq
      %v7025 = vshrl.u32 %v7024, 7
      %v7026 = vsub.s32 %v7023, %v7025
      %v7027 = vrot.slane %v6999, %v7026
      %v7028 = vcombine.low %v7006, %v7013
      %v7029 = vcombine.low %v7020, %v7027
      %v7031 = vunpack.c.l.s4 1966171168
      %v7032 = vunpack.c.0.s8 %v7031
      %v7033 = vlaneseq
      %v7034 = vshrl.u32 %v7033, 7
      %v7035 = vsub.s32 %v7032, %v7034
      %v7036 = vrot.slane %v7028, %v7035
      %v7038 = vunpack.c.l.s4 1966171168
      %v7039 = vunpack.c.0.s8 %v7038
      %v7040 = vlaneseq
      %v7041 = vshrl.u32 %v7040, 7
      %v7042 = vsub.s32 %v7039, %v7041
      %v7043 = vrot.slane %v7029, %v7042
      %v7044 = vcombine.low %v7036, %v7043
      %v7045 = vcombine.low %v6755, %v6756
      %v7046 = vcombine.low %v6757, %v6758
      %v7047 = vcombine.low %v6759, %v6760
      %v7048 = vcombine.low %v6761, %v6762
      %v7050 = vunpack.c.l.s4 1966171168
      %v7051 = vunpack.c.0.s8 %v7050
      %v7052 = vlaneseq
      %v7053 = vshrl.u32 %v7052, 7
      %v7054 = vsub.s32 %v7051, %v7053
      %v7055 = vrot.slane %v7045, %v7054
      %v7057 = vunpack.c.l.s4 1966171168
      %v7058 = vunpack.c.0.s8 %v7057
      %v7059 = vlaneseq
      %v7060 = vshrl.u32 %v7059, 7
      %v7061 = vsub.s32 %v7058, %v7060
      %v7062 = vrot.slane %v7046, %v7061
      %v7064 = vunpack.c.l.s4 1966171168
      %v7065 = vunpack.c.0.s8 %v7064
      %v7066 = vlaneseq
      %v7067 = vshrl.u32 %v7066, 7
      %v7068 = vsub.s32 %v7065, %v7067
      %v7069 = vrot.slane %v7047, %v7068
      %v7071 = vunpack.c.l.s4 1966171168
      %v7072 = vunpack.c.0.s8 %v7071
      %v7073 = vlaneseq
      %v7074 = vshrl.u32 %v7073, 7
      %v7075 = vsub.s32 %v7072, %v7074
      %v7076 = vrot.slane %v7048, %v7075
      %v7077 = vcombine.low %v7055, %v7062
      %v7078 = vcombine.low %v7069, %v7076
      %v7080 = vunpack.c.l.s4 1966171168
      %v7081 = vunpack.c.0.s8 %v7080
      %v7082 = vlaneseq
      %v7083 = vshrl.u32 %v7082, 7
      %v7084 = vsub.s32 %v7081, %v7083
      %v7085 = vrot.slane %v7077, %v7084
      %v7087 = vunpack.c.l.s4 1966171168
      %v7088 = vunpack.c.0.s8 %v7087
      %v7089 = vlaneseq
      %v7090 = vshrl.u32 %v7089, 7
      %v7091 = vsub.s32 %v7088, %v7090
      %v7092 = vrot.slane %v7078, %v7091
      %v7093 = vcombine.low %v7085, %v7092
      %v7094 = vcombine.low %v6763, %v6764
      %v7095 = vcombine.low %v6765, %v6766
      %v7096 = vcombine.low %v6767, %v6768
      %v7097 = vcombine.low %v6769, %v6770
      %v7099 = vunpack.c.l.s4 1966171168
      %v7100 = vunpack.c.0.s8 %v7099
      %v7101 = vlaneseq
      %v7102 = vshrl.u32 %v7101, 7
      %v7103 = vsub.s32 %v7100, %v7102
      %v7104 = vrot.slane %v7094, %v7103
      %v7106 = vunpack.c.l.s4 1966171168
      %v7107 = vunpack.c.0.s8 %v7106
      %v7108 = vlaneseq
      %v7109 = vshrl.u32 %v7108, 7
      %v7110 = vsub.s32 %v7107, %v7109
      %v7111 = vrot.slane %v7095, %v7110
      %v7113 = vunpack.c.l.s4 1966171168
      %v7114 = vunpack.c.0.s8 %v7113
      %v7115 = vlaneseq
      %v7116 = vshrl.u32 %v7115, 7
      %v7117 = vsub.s32 %v7114, %v7116
      %v7118 = vrot.slane %v7096, %v7117
      %v7120 = vunpack.c.l.s4 1966171168
      %v7121 = vunpack.c.0.s8 %v7120
      %v7122 = vlaneseq
      %v7123 = vshrl.u32 %v7122, 7
      %v7124 = vsub.s32 %v7121, %v7123
      %v7125 = vrot.slane %v7097, %v7124
      %v7126 = vcombine.low %v7104, %v7111
      %v7127 = vcombine.low %v7118, %v7125
      %v7129 = vunpack.c.l.s4 1966171168
      %v7130 = vunpack.c.0.s8 %v7129
      %v7131 = vlaneseq
      %v7132 = vshrl.u32 %v7131, 7
      %v7133 = vsub.s32 %v7130, %v7132
      %v7134 = vrot.slane %v7126, %v7133
      %v7136 = vunpack.c.l.s4 1966171168
      %v7137 = vunpack.c.0.s8 %v7136
      %v7138 = vlaneseq
      %v7139 = vshrl.u32 %v7138, 7
      %v7140 = vsub.s32 %v7137, %v7139
      %v7141 = vrot.slane %v7127, %v7140
      %v7142 = vcombine.low %v7134, %v7141
      %v7143 = vcombine.low %v6771, %v6772
      %v7144 = vcombine.low %v6773, %v6774
      %v7145 = vcombine.low %v6775, %v6776
      %v7146 = vcombine.low %v6777, %v6778
      %v7148 = vunpack.c.l.s4 1966171168
      %v7149 = vunpack.c.0.s8 %v7148
      %v7150 = vlaneseq
      %v7151 = vshrl.u32 %v7150, 7
      %v7152 = vsub.s32 %v7149, %v7151
      %v7153 = vrot.slane %v7143, %v7152
      %v7155 = vunpack.c.l.s4 1966171168
      %v7156 = vunpack.c.0.s8 %v7155
      %v7157 = vlaneseq
      %v7158 = vshrl.u32 %v7157, 7
      %v7159 = vsub.s32 %v7156, %v7158
      %v7160 = vrot.slane %v7144, %v7159
      %v7162 = vunpack.c.l.s4 1966171168
      %v7163 = vunpack.c.0.s8 %v7162
      %v7164 = vlaneseq
      %v7165 = vshrl.u32 %v7164, 7
      %v7166 = vsub.s32 %v7163, %v7165
      %v7167 = vrot.slane %v7145, %v7166
      %v7169 = vunpack.c.l.s4 1966171168
      %v7170 = vunpack.c.0.s8 %v7169
      %v7171 = vlaneseq
      %v7172 = vshrl.u32 %v7171, 7
      %v7173 = vsub.s32 %v7170, %v7172
      %v7174 = vrot.slane %v7146, %v7173
      %v7175 = vcombine.low %v7153, %v7160
      %v7176 = vcombine.low %v7167, %v7174
      %v7178 = vunpack.c.l.s4 1966171168
      %v7179 = vunpack.c.0.s8 %v7178
      %v7180 = vlaneseq
      %v7181 = vshrl.u32 %v7180, 7
      %v7182 = vsub.s32 %v7179, %v7181
      %v7183 = vrot.slane %v7175, %v7182
      %v7185 = vunpack.c.l.s4 1966171168
      %v7186 = vunpack.c.0.s8 %v7185
      %v7187 = vlaneseq
      %v7188 = vshrl.u32 %v7187, 7
      %v7189 = vsub.s32 %v7186, %v7188
      %v7190 = vrot.slane %v7176, %v7189
      %v7191 = vcombine.low %v7183, %v7190
      %v7192 = vcombine.low %v6779, %v6780
      %v7193 = vcombine.low %v6781, %v6782
      %v7194 = vcombine.low %v6783, %v6784
      %v7195 = vcombine.low %v6785, %v6786
      %v7197 = vunpack.c.l.s4 1966171168
      %v7198 = vunpack.c.0.s8 %v7197
      %v7199 = vlaneseq
      %v7200 = vshrl.u32 %v7199, 7
      %v7201 = vsub.s32 %v7198, %v7200
      %v7202 = vrot.slane %v7192, %v7201
      %v7204 = vunpack.c.l.s4 1966171168
      %v7205 = vunpack.c.0.s8 %v7204
      %v7206 = vlaneseq
      %v7207 = vshrl.u32 %v7206, 7
      %v7208 = vsub.s32 %v7205, %v7207
      %v7209 = vrot.slane %v7193, %v7208
      %v7211 = vunpack.c.l.s4 1966171168
      %v7212 = vunpack.c.0.s8 %v7211
      %v7213 = vlaneseq
      %v7214 = vshrl.u32 %v7213, 7
      %v7215 = vsub.s32 %v7212, %v7214
      %v7216 = vrot.slane %v7194, %v7215
      %v7218 = vunpack.c.l.s4 1966171168
      %v7219 = vunpack.c.0.s8 %v7218
      %v7220 = vlaneseq
      %v7221 = vshrl.u32 %v7220, 7
      %v7222 = vsub.s32 %v7219, %v7221
      %v7223 = vrot.slane %v7195, %v7222
      %v7224 = vcombine.low %v7202, %v7209
      %v7225 = vcombine.low %v7216, %v7223
      %v7227 = vunpack.c.l.s4 1966171168
      %v7228 = vunpack.c.0.s8 %v7227
      %v7229 = vlaneseq
      %v7230 = vshrl.u32 %v7229, 7
      %v7231 = vsub.s32 %v7228, %v7230
      %v7232 = vrot.slane %v7224, %v7231
      %v7234 = vunpack.c.l.s4 1966171168
      %v7235 = vunpack.c.0.s8 %v7234
      %v7236 = vlaneseq
      %v7237 = vshrl.u32 %v7236, 7
      %v7238 = vsub.s32 %v7235, %v7237
      %v7239 = vrot.slane %v7225, %v7238
      %v7240 = vcombine.low %v7232, %v7239
      %v7241 = vcombine.low %v6787, %v6788
      %v7242 = vcombine.low %v6789, %v6790
      %v7243 = vcombine.low %v6791, %v6792
      %v7244 = vcombine.low %v6793, %v6794
      %v7246 = vunpack.c.l.s4 1966171168
      %v7247 = vunpack.c.0.s8 %v7246
      %v7248 = vlaneseq
      %v7249 = vshrl.u32 %v7248, 7
      %v7250 = vsub.s32 %v7247, %v7249
      %v7251 = vrot.slane %v7241, %v7250
      %v7253 = vunpack.c.l.s4 1966171168
      %v7254 = vunpack.c.0.s8 %v7253
      %v7255 = vlaneseq
      %v7256 = vshrl.u32 %v7255, 7
      %v7257 = vsub.s32 %v7254, %v7256
      %v7258 = vrot.slane %v7242, %v7257
      %v7260 = vunpack.c.l.s4 1966171168
      %v7261 = vunpack.c.0.s8 %v7260
      %v7262 = vlaneseq
      %v7263 = vshrl.u32 %v7262, 7
      %v7264 = vsub.s32 %v7261, %v7263
      %v7265 = vrot.slane %v7243, %v7264
      %v7267 = vunpack.c.l.s4 1966171168
      %v7268 = vunpack.c.0.s8 %v7267
      %v7269 = vlaneseq
      %v7270 = vshrl.u32 %v7269, 7
      %v7271 = vsub.s32 %v7268, %v7270
      %v7272 = vrot.slane %v7244, %v7271
      %v7273 = vcombine.low %v7251, %v7258
      %v7274 = vcombine.low %v7265, %v7272
      %v7276 = vunpack.c.l.s4 1966171168
      %v7277 = vunpack.c.0.s8 %v7276
      %v7278 = vlaneseq
      %v7279 = vshrl.u32 %v7278, 7
      %v7280 = vsub.s32 %v7277, %v7279
      %v7281 = vrot.slane %v7273, %v7280
      %v7283 = vunpack.c.l.s4 1966171168
      %v7284 = vunpack.c.0.s8 %v7283
      %v7285 = vlaneseq
      %v7286 = vshrl.u32 %v7285, 7
      %v7287 = vsub.s32 %v7284, %v7286
      %v7288 = vrot.slane %v7274, %v7287
      %v7289 = vcombine.low %v7281, %v7288
      %v7290 = vcombine.low %v6795, %v6796
      %v7291 = vcombine.low %v6797, %v6798
      %v7293 = vunpack.c.l.s4 1966171168
      %v7294 = vunpack.c.0.s8 %v7293
      %v7295 = vlaneseq
      %v7296 = vshrl.u32 %v7295, 7
      %v7297 = vsub.s32 %v7294, %v7296
      %v7298 = vrot.slane %v7290, %v7297
      %v7300 = vunpack.c.l.s4 1966171168
      %v7301 = vunpack.c.0.s8 %v7300
      %v7302 = vlaneseq
      %v7303 = vshrl.u32 %v7302, 7
      %v7304 = vsub.s32 %v7301, %v7303
      %v7305 = vrot.slane %v7291, %v7304
      %v7307 = vunpack.c.l.s4 1966171168
      %v7308 = vunpack.c.0.s8 %v7307
      %v7309 = vlaneseq
      %v7310 = vshrl.u32 %v7309, 7
      %v7311 = vsub.s32 %v7308, %v7310
      %v7312 = vrot.slane %v5892, %v7311
      %v7313 = vcombine.low %v7298, %v7305
      %v7315 = vunpack.c.l.s4 1966171168
      %v7316 = vunpack.c.0.s8 %v7315
      %v7317 = vlaneseq
      %v7318 = vshrl.u32 %v7317, 7
      %v7319 = vsub.s32 %v7316, %v7318
      %v7320 = vrot.slane %v7313, %v7319
      %v7322 = vunpack.c.l.s4 1966171168
      %v7323 = vunpack.c.0.s8 %v7322
      %v7324 = vlaneseq
      %v7325 = vshrl.u32 %v7324, 7
      %v7326 = vsub.s32 %v7323, %v7325
      %v7327 = vrot.slane %v7312, %v7326
      %v7328 = vcombine.low %v7320, %v7327
      %v7333 = vunpack.c.l.b16 %v5925
      %v7334 = vunpack.c.l.b16 %v5926
      %v7335 = vunpack.c.l.b16 %v5927
      %v7336 = vunpack.c.l.b16 %v5928
      %v7337 = vpack.c.b16 %v7334, %v7333
      %v7338 = vpack.c.b16 %v7336, %v7335
      %v7342 = vsel %vm6560, %v6848, 0
      %v7345 = vsel %vm6560, %v6897, 0
      %v7348 = vsel %vm6560, %v6946, 0
      %v7351 = vsel %vm6560, %v6995, 0
      %v7354 = vsel %vm6560, %v7044, 0
      %v7357 = vsel %vm6560, %v7093, 0
      %v7360 = vsel %vm6560, %v7142, 0
      %v7363 = vsel %vm6560, %v7191, 0
      %v7366 = vsel %vm6560, %v7240, 0
      %v7369 = vsel %vm6560, %v7289, 0
      %v7372 = vsel %vm6560, %v7328, 0
      %7374 = vmatprep.subr.bf16.mxu0 0
      %7375 = vmatpush1.bf16.msra.mxu0 %v7337
      %7376 = vmatprep.subr.bf16.mxu0 0
      %7377 = vmatpush1.bf16.msra.mxu0 %v7338
      %7378 = vmatprep.subr.bf16.mxu0 0
      %7379 = vmatpush1.bf16.msra.mxu0 0
      %7380 = vmatprep.subr.bf16.mxu0 0
      %7381 = vmatpush1.bf16.msra.mxu0 0
      %7382 = vmatprep.subr.bf16.mxu0 0
      %7383 = vmatpush1.bf16.msra.mxu0 0
      %7384 = vmatprep.subr.bf16.mxu0 0
      %7385 = vmatpush1.bf16.msra.mxu0 0
      %7386 = vmatprep.subr.bf16.mxu0 0
      %7387 = vmatpush1.bf16.msra.mxu0 0
      %7388 = vmatprep.subr.bf16.mxu0 0
      %7389 = vmatpush1.bf16.msra.mxu0 0
      %7390 = vmatprep.subr.bf16.mxu0 0
      %7391 = vmatpush1.bf16.msra.mxu0 0
      %7392 = vmatprep.subr.bf16.mxu0 0
      %7393 = vmatpush1.bf16.msra.mxu0 0
      %7394 = vmatprep.subr.bf16.mxu0 0
      %7395 = vmatpush1.bf16.msra.mxu0 0
      %7396 = vmatprep.subr.bf16.mxu0 0
      %7397 = vmatpush1.bf16.msra.mxu0 0
      %7398 = vmatprep.subr.bf16.mxu0 0
      %7399 = vmatpush1.bf16.msra.mxu0 0
      %7400 = vmatprep.subr.bf16.mxu0 0
      %7401 = vmatpush1.bf16.msra.mxu0 0
      %7402 = vmatprep.subr.bf16.mxu0 0
      %7403 = vmatpush1.bf16.msra.mxu0 0
      %7404 = vmatprep.subr.bf16.mxu0 0
      %7405 = vmatpush1.bf16.msra.mxu0 0
      %7406 = vmatprep.mubr.bf16.mxu0 0
      %7407 = vmatmul.mubr.bf16.gmra.mrb[0].mxu0 %v7342
      %v7408 = vpop.f32.mrb[0].mxu0
      %v7409 = vadd.f32 %v6629, %v7408
      %v7410 = vpop.f32.mrb[0].mxu0
      %v7411 = vpop.f32.mrb[0].mxu0
      %v7412 = vadd.f32 %v6632, %v7411
      %v7413 = vpop.f32.mrb[0].mxu0
      %7414 = vmatprep.mubr.bf16.mxu0 0
      %7415 = vmatmul.mubr.bf16.gmra.mrb[0].mxu0 %v7345
      %v7416 = vpop.f32.mrb[0].mxu0
      %v7417 = vadd.f32 %v6637, %v7416
      %v7418 = vpop.f32.mrb[0].mxu0
      %v7419 = vpop.f32.mrb[0].mxu0
      %v7420 = vadd.f32 %v6640, %v7419
      %v7421 = vpop.f32.mrb[0].mxu0
      %7422 = vmatprep.mubr.bf16.mxu0 0
      %7423 = vmatmul.mubr.bf16.gmra.mrb[0].mxu0 %v7348
      %v7424 = vpop.f32.mrb[0].mxu0
      %v7425 = vadd.f32 %v6645, %v7424
      %v7426 = vpop.f32.mrb[0].mxu0
      %v7427 = vpop.f32.mrb[0].mxu0
      %v7428 = vadd.f32 %v6648, %v7427
      %v7429 = vpop.f32.mrb[0].mxu0
      %7430 = vmatprep.mubr.bf16.mxu0 0
      %7431 = vmatmul.mubr.bf16.gmra.mrb[0].mxu0 %v7351
      %v7432 = vpop.f32.mrb[0].mxu0
      %v7433 = vadd.f32 %v6653, %v7432
      %v7434 = vpop.f32.mrb[0].mxu0
      %v7435 = vpop.f32.mrb[0].mxu0
      %v7436 = vadd.f32 %v6656, %v7435
      %v7437 = vpop.f32.mrb[0].mxu0
      %7438 = vmatprep.mubr.bf16.mxu0 0
      %7439 = vmatmul.mubr.bf16.gmra.mrb[0].mxu0 %v7354
      %v7440 = vpop.f32.mrb[0].mxu0
      %v7441 = vadd.f32 %v6661, %v7440
      %v7442 = vpop.f32.mrb[0].mxu0
      %v7443 = vpop.f32.mrb[0].mxu0
      %v7444 = vadd.f32 %v6664, %v7443
      %v7445 = vpop.f32.mrb[0].mxu0
      %7446 = vmatprep.mubr.bf16.mxu0 0
      %7447 = vmatmul.mubr.bf16.gmra.mrb[0].mxu0 %v7357
      %v7448 = vpop.f32.mrb[0].mxu0
      %v7449 = vadd.f32 %v6669, %v7448
      %v7450 = vpop.f32.mrb[0].mxu0
      %v7451 = vpop.f32.mrb[0].mxu0
      %v7452 = vadd.f32 %v6672, %v7451
      %v7453 = vpop.f32.mrb[0].mxu0
      %7454 = vmatprep.mubr.bf16.mxu0 0
      %7455 = vmatmul.mubr.bf16.gmra.mrb[0].mxu0 %v7360
      %v7456 = vpop.f32.mrb[0].mxu0
      %v7457 = vadd.f32 %v6677, %v7456
      %v7458 = vpop.f32.mrb[0].mxu0
      %v7459 = vpop.f32.mrb[0].mxu0
      %v7460 = vadd.f32 %v6680, %v7459
      %v7461 = vpop.f32.mrb[0].mxu0
      %7462 = vmatprep.mubr.bf16.mxu0 0
      %7463 = vmatmul.mubr.bf16.gmra.mrb[0].mxu0 %v7363
      %v7464 = vpop.f32.mrb[0].mxu0
      %v7465 = vadd.f32 %v6685, %v7464
      %v7466 = vpop.f32.mrb[0].mxu0
      %v7467 = vpop.f32.mrb[0].mxu0
      %v7468 = vadd.f32 %v6688, %v7467
      %v7469 = vpop.f32.mrb[0].mxu0
      %7470 = vmatprep.mubr.bf16.mxu0 0
      %7471 = vmatmul.mubr.bf16.gmra.mrb[0].mxu0 %v7366
      %v7472 = vpop.f32.mrb[0].mxu0
      %v7473 = vadd.f32 %v6693, %v7472
      %v7474 = vpop.f32.mrb[0].mxu0
      %v7475 = vpop.f32.mrb[0].mxu0
      %v7476 = vadd.f32 %v6696, %v7475
      %v7477 = vpop.f32.mrb[0].mxu0
      %7478 = vmatprep.mubr.bf16.mxu0 0
      %7479 = vmatmul.mubr.bf16.gmra.mrb[0].mxu0 %v7369
      %v7480 = vpop.f32.mrb[0].mxu0
      %v7481 = vadd.f32 %v6701, %v7480
      %v7482 = vpop.f32.mrb[0].mxu0
      %v7483 = vpop.f32.mrb[0].mxu0
      %v7484 = vadd.f32 %v6704, %v7483
      %v7485 = vpop.f32.mrb[0].mxu0
      %7486 = vmatprep.mubr.bf16.mxu0 0
      %7487 = vmatmul.mubr.bf16.gmra.mrb[0].mxu0 %v7372
      %v7488 = vpop.f32.mrb[0].mxu0
      %v7489 = vadd.f32 %v6709, %v7488
      %v7490 = vpop.f32.mrb[0].mxu0
      %v7491 = vpop.f32.mrb[0].mxu0
      %v7492 = vadd.f32 %v6712, %v7491
      %v7493 = vpop.f32.mrb[0].mxu0
      %7494 = vdwg.mxu0
      %s7495 = scalar_lea.vmem %s3, 32
      %v7496 = vld [vmem:[%s7495] sm:$0xf]
      %v7497 = vld [vmem:[%s7495 + $0x4] sm:$0xf]
      %v7498 = vld [vmem:[%s7495 + $0x8] sm:$0xf]
      %v7499 = vld [vmem:[%s7495 + $0xc] sm:$0xf]
      %v7500 = vpack.i.b16 %v5713, %v5712
      %v7501 = vpack.i.b16 %v5717, %v5714
      %v7502 = vpack.i.b16 %v5729, %v5728
      %v7503 = vpack.i.b16 %v5743, %v5742
      %v7504 = vpack.i.b16 %v5747, %v5744
      %v7505 = vpack.i.b16 %v5759, %v5758
      %v7506 = vpack.i.b16 %v5773, %v5772
      %v7507 = vpack.i.b16 %v5777, %v5774
      %v7508 = vpack.i.b16 %v5789, %v5788
      %v7509 = vpack.i.b16 %v5803, %v5802
      %v7510 = vpack.i.b16 %v5807, %v5804
      %v7511 = vpack.i.b16 %v5819, %v5818
      %v7512 = vpack.i.b16 %v5833, %v5832
      %v7513 = vpack.i.b16 %v5837, %v5834
      %v7514 = vpack.i.b16 %v5849, %v5848
      %v7515 = vpack.i.b16 %v5863, %v5862
      %v7516 = vpack.i.b16 %v5867, %v5864
      %v7517 = vpack.i.b16 %v5879, %v5878
      %v7518 = vpack.i.b16 %v5893, %v5892
      %v7520 = vcombine.low %v6716, %v6717
      %v7521 = vcombine.low %v6718, %v6719
      %v7522 = vcombine.low %v6720, %v7500
      %v7523 = vcombine.low %v7501, %v6723
      %v7525 = vunpack.c.l.s4 1966171168
      %v7526 = vunpack.c.0.s8 %v7525
      %v7527 = vlaneseq
      %v7528 = vshrl.u32 %v7527, 7
      %v7529 = vsub.s32 %v7526, %v7528
      %v7530 = vrot.slane %v7520, %v7529
      %v7532 = vunpack.c.l.s4 1966171168
      %v7533 = vunpack.c.0.s8 %v7532
      %v7534 = vlaneseq
      %v7535 = vshrl.u32 %v7534, 7
      %v7536 = vsub.s32 %v7533, %v7535
      %v7537 = vrot.slane %v7521, %v7536
      %v7539 = vunpack.c.l.s4 1966171168
      %v7540 = vunpack.c.0.s8 %v7539
      %v7541 = vlaneseq
      %v7542 = vshrl.u32 %v7541, 7
      %v7543 = vsub.s32 %v7540, %v7542
      %v7544 = vrot.slane %v7522, %v7543
      %v7546 = vunpack.c.l.s4 1966171168
      %v7547 = vunpack.c.0.s8 %v7546
      %v7548 = vlaneseq
      %v7549 = vshrl.u32 %v7548, 7
      %v7550 = vsub.s32 %v7547, %v7549
      %v7551 = vrot.slane %v7523, %v7550
      %v7552 = vcombine.low %v7530, %v7537
      %v7553 = vcombine.low %v7544, %v7551
      %v7555 = vunpack.c.l.s4 1966171168
      %v7556 = vunpack.c.0.s8 %v7555
      %v7557 = vlaneseq
      %v7558 = vshrl.u32 %v7557, 7
      %v7559 = vsub.s32 %v7556, %v7558
      %v7560 = vrot.slane %v7552, %v7559
      %v7562 = vunpack.c.l.s4 1966171168
      %v7563 = vunpack.c.0.s8 %v7562
      %v7564 = vlaneseq
      %v7565 = vshrl.u32 %v7564, 7
      %v7566 = vsub.s32 %v7563, %v7565
      %v7567 = vrot.slane %v7553, %v7566
      %v7568 = vcombine.low %v7560, %v7567
      %v7569 = vcombine.low %v6724, %v6725
      %v7570 = vcombine.low %v6726, %v6727
      %v7571 = vcombine.low %v7502, %v6729
      %v7572 = vcombine.low %v6730, %v6731
      %v7574 = vunpack.c.l.s4 1966171168
      %v7575 = vunpack.c.0.s8 %v7574
      %v7576 = vlaneseq
      %v7577 = vshrl.u32 %v7576, 7
      %v7578 = vsub.s32 %v7575, %v7577
      %v7579 = vrot.slane %v7569, %v7578
      %v7581 = vunpack.c.l.s4 1966171168
      %v7582 = vunpack.c.0.s8 %v7581
      %v7583 = vlaneseq
      %v7584 = vshrl.u32 %v7583, 7
      %v7585 = vsub.s32 %v7582, %v7584
      %v7586 = vrot.slane %v7570, %v7585
      %v7588 = vunpack.c.l.s4 1966171168
      %v7589 = vunpack.c.0.s8 %v7588
      %v7590 = vlaneseq
      %v7591 = vshrl.u32 %v7590, 7
      %v7592 = vsub.s32 %v7589, %v7591
      %v7593 = vrot.slane %v7571, %v7592
      %v7595 = vunpack.c.l.s4 1966171168
      %v7596 = vunpack.c.0.s8 %v7595
      %v7597 = vlaneseq
      %v7598 = vshrl.u32 %v7597, 7
      %v7599 = vsub.s32 %v7596, %v7598
      %v7600 = vrot.slane %v7572, %v7599
      %v7601 = vcombine.low %v7579, %v7586
      %v7602 = vcombine.low %v7593, %v7600
      %v7604 = vunpack.c.l.s4 1966171168
      %v7605 = vunpack.c.0.s8 %v7604
      %v7606 = vlaneseq
      %v7607 = vshrl.u32 %v7606, 7
      %v7608 = vsub.s32 %v7605, %v7607
      %v7609 = vrot.slane %v7601, %v7608
      %v7611 = vunpack.c.l.s4 1966171168
      %v7612 = vunpack.c.0.s8 %v7611
      %v7613 = vlaneseq
      %v7614 = vshrl.u32 %v7613, 7
      %v7615 = vsub.s32 %v7612, %v7614
      %v7616 = vrot.slane %v7602, %v7615
      %v7617 = vcombine.low %v7609, %v7616
      %v7618 = vcombine.low %v6732, %v6733
      %v7619 = vcombine.low %v7503, %v7504
      %v7620 = vcombine.low %v6736, %v6737
      %v7621 = vcombine.low %v6738, %v6739
      %v7623 = vunpack.c.l.s4 1966171168
      %v7624 = vunpack.c.0.s8 %v7623
      %v7625 = vlaneseq
      %v7626 = vshrl.u32 %v7625, 7
      %v7627 = vsub.s32 %v7624, %v7626
      %v7628 = vrot.slane %v7618, %v7627
      %v7630 = vunpack.c.l.s4 1966171168
      %v7631 = vunpack.c.0.s8 %v7630
      %v7632 = vlaneseq
      %v7633 = vshrl.u32 %v7632, 7
      %v7634 = vsub.s32 %v7631, %v7633
      %v7635 = vrot.slane %v7619, %v7634
      %v7637 = vunpack.c.l.s4 1966171168
      %v7638 = vunpack.c.0.s8 %v7637
      %v7639 = vlaneseq
      %v7640 = vshrl.u32 %v7639, 7
      %v7641 = vsub.s32 %v7638, %v7640
      %v7642 = vrot.slane %v7620, %v7641
      %v7644 = vunpack.c.l.s4 1966171168
      %v7645 = vunpack.c.0.s8 %v7644
      %v7646 = vlaneseq
      %v7647 = vshrl.u32 %v7646, 7
      %v7648 = vsub.s32 %v7645, %v7647
      %v7649 = vrot.slane %v7621, %v7648
      %v7650 = vcombine.low %v7628, %v7635
      %v7651 = vcombine.low %v7642, %v7649
      %v7653 = vunpack.c.l.s4 1966171168
      %v7654 = vunpack.c.0.s8 %v7653
      %v7655 = vlaneseq
      %v7656 = vshrl.u32 %v7655, 7
      %v7657 = vsub.s32 %v7654, %v7656
      %v7658 = vrot.slane %v7650, %v7657
      %v7660 = vunpack.c.l.s4 1966171168
      %v7661 = vunpack.c.0.s8 %v7660
      %v7662 = vlaneseq
      %v7663 = vshrl.u32 %v7662, 7
      %v7664 = vsub.s32 %v7661, %v7663
      %v7665 = vrot.slane %v7651, %v7664
      %v7666 = vcombine.low %v7658, %v7665
      %v7667 = vcombine.low %v6740, %v7505
      %v7668 = vcombine.low %v6742, %v6743
      %v7669 = vcombine.low %v6744, %v6745
      %v7670 = vcombine.low %v6746, %v7506
      %v7672 = vunpack.c.l.s4 1966171168
      %v7673 = vunpack.c.0.s8 %v7672
      %v7674 = vlaneseq
      %v7675 = vshrl.u32 %v7674, 7
      %v7676 = vsub.s32 %v7673, %v7675
      %v7677 = vrot.slane %v7667, %v7676
      %v7679 = vunpack.c.l.s4 1966171168
      %v7680 = vunpack.c.0.s8 %v7679
      %v7681 = vlaneseq
      %v7682 = vshrl.u32 %v7681, 7
      %v7683 = vsub.s32 %v7680, %v7682
      %v7684 = vrot.slane %v7668, %v7683
      %v7686 = vunpack.c.l.s4 1966171168
      %v7687 = vunpack.c.0.s8 %v7686
      %v7688 = vlaneseq
      %v7689 = vshrl.u32 %v7688, 7
      %v7690 = vsub.s32 %v7687, %v7689
      %v7691 = vrot.slane %v7669, %v7690
      %v7693 = vunpack.c.l.s4 1966171168
      %v7694 = vunpack.c.0.s8 %v7693
      %v7695 = vlaneseq
      %v7696 = vshrl.u32 %v7695, 7
      %v7697 = vsub.s32 %v7694, %v7696
      %v7698 = vrot.slane %v7670, %v7697
      %v7699 = vcombine.low %v7677, %v7684
      %v7700 = vcombine.low %v7691, %v7698
      %v7702 = vunpack.c.l.s4 1966171168
      %v7703 = vunpack.c.0.s8 %v7702
      %v7704 = vlaneseq
      %v7705 = vshrl.u32 %v7704, 7
      %v7706 = vsub.s32 %v7703, %v7705
      %v7707 = vrot.slane %v7699, %v7706
      %v7709 = vunpack.c.l.s4 1966171168
      %v7710 = vunpack.c.0.s8 %v7709
      %v7711 = vlaneseq
      %v7712 = vshrl.u32 %v7711, 7
      %v7713 = vsub.s32 %v7710, %v7712
      %v7714 = vrot.slane %v7700, %v7713
      %v7715 = vcombine.low %v7707, %v7714
      %v7716 = vcombine.low %v7507, %v6749
      %v7717 = vcombine.low %v6750, %v6751
      %v7718 = vcombine.low %v6752, %v6753
      %v7719 = vcombine.low %v7508, %v6755
      %v7721 = vunpack.c.l.s4 1966171168
      %v7722 = vunpack.c.0.s8 %v7721
      %v7723 = vlaneseq
      %v7724 = vshrl.u32 %v7723, 7
      %v7725 = vsub.s32 %v7722, %v7724
      %v7726 = vrot.slane %v7716, %v7725
      %v7728 = vunpack.c.l.s4 1966171168
      %v7729 = vunpack.c.0.s8 %v7728
      %v7730 = vlaneseq
      %v7731 = vshrl.u32 %v7730, 7
      %v7732 = vsub.s32 %v7729, %v7731
      %v7733 = vrot.slane %v7717, %v7732
      %v7735 = vunpack.c.l.s4 1966171168
      %v7736 = vunpack.c.0.s8 %v7735
      %v7737 = vlaneseq
      %v7738 = vshrl.u32 %v7737, 7
      %v7739 = vsub.s32 %v7736, %v7738
      %v7740 = vrot.slane %v7718, %v7739
      %v7742 = vunpack.c.l.s4 1966171168
      %v7743 = vunpack.c.0.s8 %v7742
      %v7744 = vlaneseq
      %v7745 = vshrl.u32 %v7744, 7
      %v7746 = vsub.s32 %v7743, %v7745
      %v7747 = vrot.slane %v7719, %v7746
      %v7748 = vcombine.low %v7726, %v7733
      %v7749 = vcombine.low %v7740, %v7747
      %v7751 = vunpack.c.l.s4 1966171168
      %v7752 = vunpack.c.0.s8 %v7751
      %v7753 = vlaneseq
      %v7754 = vshrl.u32 %v7753, 7
      %v7755 = vsub.s32 %v7752, %v7754
      %v7756 = vrot.slane %v7748, %v7755
      %v7758 = vunpack.c.l.s4 1966171168
      %v7759 = vunpack.c.0.s8 %v7758
      %v7760 = vlaneseq
      %v7761 = vshrl.u32 %v7760, 7
      %v7762 = vsub.s32 %v7759, %v7761
      %v7763 = vrot.slane %v7749, %v7762
      %v7764 = vcombine.low %v7756, %v7763
      %v7765 = vcombine.low %v6756, %v6757
      %v7766 = vcombine.low %v6758, %v6759
      %v7767 = vcombine.low %v7509, %v7510
      %v7768 = vcombine.low %v6762, %v6763
      %v7770 = vunpack.c.l.s4 1966171168
      %v7771 = vunpack.c.0.s8 %v7770
      %v7772 = vlaneseq
      %v7773 = vshrl.u32 %v7772, 7
      %v7774 = vsub.s32 %v7771, %v7773
      %v7775 = vrot.slane %v7765, %v7774
      %v7777 = vunpack.c.l.s4 1966171168
      %v7778 = vunpack.c.0.s8 %v7777
      %v7779 = vlaneseq
      %v7780 = vshrl.u32 %v7779, 7
      %v7781 = vsub.s32 %v7778, %v7780
      %v7782 = vrot.slane %v7766, %v7781
      %v7784 = vunpack.c.l.s4 1966171168
      %v7785 = vunpack.c.0.s8 %v7784
      %v7786 = vlaneseq
      %v7787 = vshrl.u32 %v7786, 7
      %v7788 = vsub.s32 %v7785, %v7787
      %v7789 = vrot.slane %v7767, %v7788
      %v7791 = vunpack.c.l.s4 1966171168
      %v7792 = vunpack.c.0.s8 %v7791
      %v7793 = vlaneseq
      %v7794 = vshrl.u32 %v7793, 7
      %v7795 = vsub.s32 %v7792, %v7794
      %v7796 = vrot.slane %v7768, %v7795
      %v7797 = vcombine.low %v7775, %v7782
      %v7798 = vcombine.low %v7789, %v7796
      %v7800 = vunpack.c.l.s4 1966171168
      %v7801 = vunpack.c.0.s8 %v7800
      %v7802 = vlaneseq
      %v7803 = vshrl.u32 %v7802, 7
      %v7804 = vsub.s32 %v7801, %v7803
      %v7805 = vrot.slane %v7797, %v7804
      %v7807 = vunpack.c.l.s4 1966171168
      %v7808 = vunpack.c.0.s8 %v7807
      %v7809 = vlaneseq
      %v7810 = vshrl.u32 %v7809, 7
      %v7811 = vsub.s32 %v7808, %v7810
      %v7812 = vrot.slane %v7798, %v7811
      %v7813 = vcombine.low %v7805, %v7812
      %v7814 = vcombine.low %v6764, %v6765
      %v7815 = vcombine.low %v6766, %v7511
      %v7816 = vcombine.low %v6768, %v6769
      %v7817 = vcombine.low %v6770, %v6771
      %v7819 = vunpack.c.l.s4 1966171168
      %v7820 = vunpack.c.0.s8 %v7819
      %v7821 = vlaneseq
      %v7822 = vshrl.u32 %v7821, 7
      %v7823 = vsub.s32 %v7820, %v7822
      %v7824 = vrot.slane %v7814, %v7823
      %v7826 = vunpack.c.l.s4 1966171168
      %v7827 = vunpack.c.0.s8 %v7826
      %v7828 = vlaneseq
      %v7829 = vshrl.u32 %v7828, 7
      %v7830 = vsub.s32 %v7827, %v7829
      %v7831 = vrot.slane %v7815, %v7830
      %v7833 = vunpack.c.l.s4 1966171168
      %v7834 = vunpack.c.0.s8 %v7833
      %v7835 = vlaneseq
      %v7836 = vshrl.u32 %v7835, 7
      %v7837 = vsub.s32 %v7834, %v7836
      %v7838 = vrot.slane %v7816, %v7837
      %v7840 = vunpack.c.l.s4 1966171168
      %v7841 = vunpack.c.0.s8 %v7840
      %v7842 = vlaneseq
      %v7843 = vshrl.u32 %v7842, 7
      %v7844 = vsub.s32 %v7841, %v7843
      %v7845 = vrot.slane %v7817, %v7844
      %v7846 = vcombine.low %v7824, %v7831
      %v7847 = vcombine.low %v7838, %v7845
      %v7849 = vunpack.c.l.s4 1966171168
      %v7850 = vunpack.c.0.s8 %v7849
      %v7851 = vlaneseq
      %v7852 = vshrl.u32 %v7851, 7
      %v7853 = vsub.s32 %v7850, %v7852
      %v7854 = vrot.slane %v7846, %v7853
      %v7856 = vunpack.c.l.s4 1966171168
      %v7857 = vunpack.c.0.s8 %v7856
      %v7858 = vlaneseq
      %v7859 = vshrl.u32 %v7858, 7
      %v7860 = vsub.s32 %v7857, %v7859
      %v7861 = vrot.slane %v7847, %v7860
      %v7862 = vcombine.low %v7854, %v7861
      %v7863 = vcombine.low %v6772, %v7512
      %v7864 = vcombine.low %v7513, %v6775
      %v7865 = vcombine.low %v6776, %v6777
      %v7866 = vcombine.low %v6778, %v6779
      %v7868 = vunpack.c.l.s4 1966171168
      %v7869 = vunpack.c.0.s8 %v7868
      %v7870 = vlaneseq
      %v7871 = vshrl.u32 %v7870, 7
      %v7872 = vsub.s32 %v7869, %v7871
      %v7873 = vrot.slane %v7863, %v7872
      %v7875 = vunpack.c.l.s4 1966171168
      %v7876 = vunpack.c.0.s8 %v7875
      %v7877 = vlaneseq
      %v7878 = vshrl.u32 %v7877, 7
      %v7879 = vsub.s32 %v7876, %v7878
      %v7880 = vrot.slane %v7864, %v7879
      %v7882 = vunpack.c.l.s4 1966171168
      %v7883 = vunpack.c.0.s8 %v7882
      %v7884 = vlaneseq
      %v7885 = vshrl.u32 %v7884, 7
      %v7886 = vsub.s32 %v7883, %v7885
      %v7887 = vrot.slane %v7865, %v7886
      %v7889 = vunpack.c.l.s4 1966171168
      %v7890 = vunpack.c.0.s8 %v7889
      %v7891 = vlaneseq
      %v7892 = vshrl.u32 %v7891, 7
      %v7893 = vsub.s32 %v7890, %v7892
      %v7894 = vrot.slane %v7866, %v7893
      %v7895 = vcombine.low %v7873, %v7880
      %v7896 = vcombine.low %v7887, %v7894
      %v7898 = vunpack.c.l.s4 1966171168
      %v7899 = vunpack.c.0.s8 %v7898
      %v7900 = vlaneseq
      %v7901 = vshrl.u32 %v7900, 7
      %v7902 = vsub.s32 %v7899, %v7901
      %v7903 = vrot.slane %v7895, %v7902
      %v7905 = vunpack.c.l.s4 1966171168
      %v7906 = vunpack.c.0.s8 %v7905
      %v7907 = vlaneseq
      %v7908 = vshrl.u32 %v7907, 7
      %v7909 = vsub.s32 %v7906, %v7908
      %v7910 = vrot.slane %v7896, %v7909
      %v7911 = vcombine.low %v7903, %v7910
      %v7912 = vcombine.low %v7514, %v6781
      %v7913 = vcombine.low %v6782, %v6783
      %v7914 = vcombine.low %v6784, %v6785
      %v7915 = vcombine.low %v7515, %v7516
      %v7917 = vunpack.c.l.s4 1966171168
      %v7918 = vunpack.c.0.s8 %v7917
      %v7919 = vlaneseq
      %v7920 = vshrl.u32 %v7919, 7
      %v7921 = vsub.s32 %v7918, %v7920
      %v7922 = vrot.slane %v7912, %v7921
      %v7924 = vunpack.c.l.s4 1966171168
      %v7925 = vunpack.c.0.s8 %v7924
      %v7926 = vlaneseq
      %v7927 = vshrl.u32 %v7926, 7
      %v7928 = vsub.s32 %v7925, %v7927
      %v7929 = vrot.slane %v7913, %v7928
      %v7931 = vunpack.c.l.s4 1966171168
      %v7932 = vunpack.c.0.s8 %v7931
      %v7933 = vlaneseq
      %v7934 = vshrl.u32 %v7933, 7
      %v7935 = vsub.s32 %v7932, %v7934
      %v7936 = vrot.slane %v7914, %v7935
      %v7938 = vunpack.c.l.s4 1966171168
      %v7939 = vunpack.c.0.s8 %v7938
      %v7940 = vlaneseq
      %v7941 = vshrl.u32 %v7940, 7
      %v7942 = vsub.s32 %v7939, %v7941
      %v7943 = vrot.slane %v7915, %v7942
      %v7944 = vcombine.low %v7922, %v7929
      %v7945 = vcombine.low %v7936, %v7943
      %v7947 = vunpack.c.l.s4 1966171168
      %v7948 = vunpack.c.0.s8 %v7947
      %v7949 = vlaneseq
      %v7950 = vshrl.u32 %v7949, 7
      %v7951 = vsub.s32 %v7948, %v7950
      %v7952 = vrot.slane %v7944, %v7951
      %v7954 = vunpack.c.l.s4 1966171168
      %v7955 = vunpack.c.0.s8 %v7954
      %v7956 = vlaneseq
      %v7957 = vshrl.u32 %v7956, 7
      %v7958 = vsub.s32 %v7955, %v7957
      %v7959 = vrot.slane %v7945, %v7958
      %v7960 = vcombine.low %v7952, %v7959
      %v7961 = vcombine.low %v6788, %v6789
      %v7962 = vcombine.low %v6790, %v6791
      %v7963 = vcombine.low %v6792, %v7517
      %v7964 = vcombine.low %v6794, %v6795
      %v7966 = vunpack.c.l.s4 1966171168
      %v7967 = vunpack.c.0.s8 %v7966
      %v7968 = vlaneseq
      %v7969 = vshrl.u32 %v7968, 7
      %v7970 = vsub.s32 %v7967, %v7969
      %v7971 = vrot.slane %v7961, %v7970
      %v7973 = vunpack.c.l.s4 1966171168
      %v7974 = vunpack.c.0.s8 %v7973
      %v7975 = vlaneseq
      %v7976 = vshrl.u32 %v7975, 7
      %v7977 = vsub.s32 %v7974, %v7976
      %v7978 = vrot.slane %v7962, %v7977
      %v7980 = vunpack.c.l.s4 1966171168
      %v7981 = vunpack.c.0.s8 %v7980
      %v7982 = vlaneseq
      %v7983 = vshrl.u32 %v7982, 7
      %v7984 = vsub.s32 %v7981, %v7983
      %v7985 = vrot.slane %v7963, %v7984
      %v7987 = vunpack.c.l.s4 1966171168
      %v7988 = vunpack.c.0.s8 %v7987
      %v7989 = vlaneseq
      %v7990 = vshrl.u32 %v7989, 7
      %v7991 = vsub.s32 %v7988, %v7990
      %v7992 = vrot.slane %v7964, %v7991
      %v7993 = vcombine.low %v7971, %v7978
      %v7994 = vcombine.low %v7985, %v7992
      %v7996 = vunpack.c.l.s4 1966171168
      %v7997 = vunpack.c.0.s8 %v7996
      %v7998 = vlaneseq
      %v7999 = vshrl.u32 %v7998, 7
      %v8000 = vsub.s32 %v7997, %v7999
      %v8001 = vrot.slane %v7993, %v8000
      %v8003 = vunpack.c.l.s4 1966171168
      %v8004 = vunpack.c.0.s8 %v8003
      %v8005 = vlaneseq
      %v8006 = vshrl.u32 %v8005, 7
      %v8007 = vsub.s32 %v8004, %v8006
      %v8008 = vrot.slane %v7994, %v8007
      %v8009 = vcombine.low %v8001, %v8008
      %v8010 = vcombine.low %v6796, %v6797
      %v8011 = vcombine.low %v6798, %v7518
      %v8013 = vunpack.c.l.s4 1966171168
      %v8014 = vunpack.c.0.s8 %v8013
      %v8015 = vlaneseq
      %v8016 = vshrl.u32 %v8015, 7
      %v8017 = vsub.s32 %v8014, %v8016
      %v8018 = vrot.slane %v8010, %v8017
      %v8020 = vunpack.c.l.s4 1966171168
      %v8021 = vunpack.c.0.s8 %v8020
      %v8022 = vlaneseq
      %v8023 = vshrl.u32 %v8022, 7
      %v8024 = vsub.s32 %v8021, %v8023
      %v8025 = vrot.slane %v8011, %v8024
      %v8027 = vunpack.c.l.s4 1966171168
      %v8028 = vunpack.c.0.s8 %v8027
      %v8029 = vlaneseq
      %v8030 = vshrl.u32 %v8029, 7
      %v8031 = vsub.s32 %v8028, %v8030
      %v8032 = vrot.slane %v5894, %v8031
      %v8033 = vcombine.low %v8018, %v8025
      %v8035 = vunpack.c.l.s4 1966171168
      %v8036 = vunpack.c.0.s8 %v8035
      %v8037 = vlaneseq
      %v8038 = vshrl.u32 %v8037, 7
      %v8039 = vsub.s32 %v8036, %v8038
      %v8040 = vrot.slane %v8033, %v8039
      %v8042 = vunpack.c.l.s4 1966171168
      %v8043 = vunpack.c.0.s8 %v8042
      %v8044 = vlaneseq
      %v8045 = vshrl.u32 %v8044, 7
      %v8046 = vsub.s32 %v8043, %v8045
      %v8047 = vrot.slane %v8032, %v8046
      %v8048 = vcombine.low %v8040, %v8047
      %v8053 = vunpack.c.l.b16 %v7496
      %v8054 = vunpack.c.l.b16 %v7497
      %v8055 = vunpack.c.l.b16 %v7498
      %v8056 = vunpack.c.l.b16 %v7499
      %v8057 = vpack.c.b16 %v8054, %v8053
      %v8058 = vpack.c.b16 %v8056, %v8055
      %v8062 = vsel %vm6560, %v7568, 0
      %v8065 = vsel %vm6560, %v7617, 0
      %v8068 = vsel %vm6560, %v7666, 0
      %v8071 = vsel %vm6560, %v7715, 0
      %v8074 = vsel %vm6560, %v7764, 0
      %v8077 = vsel %vm6560, %v7813, 0
      %v8080 = vsel %vm6560, %v7862, 0
      %v8083 = vsel %vm6560, %v7911, 0
      %v8086 = vsel %vm6560, %v7960, 0
      %v8089 = vsel %vm6560, %v8009, 0
      %v8092 = vsel %vm6560, %v8048, 0
      %8094 = vmatprep.subr.bf16.mxu0 0
      %8095 = vmatpush1.bf16.msra.mxu0 %v8057
      %8096 = vmatprep.subr.bf16.mxu0 0
      %8097 = vmatpush1.bf16.msra.mxu0 %v8058
      %8098 = vmatprep.subr.bf16.mxu0 0
      %8099 = vmatpush1.bf16.msra.mxu0 0
      %8100 = vmatprep.subr.bf16.mxu0 0
      %8101 = vmatpush1.bf16.msra.mxu0 0
      %8102 = vmatprep.subr.bf16.mxu0 0
      %8103 = vmatpush1.bf16.msra.mxu0 0
      %8104 = vmatprep.subr.bf16.mxu0 0
      %8105 = vmatpush1.bf16.msra.mxu0 0
      %8106 = vmatprep.subr.bf16.mxu0 0
      %8107 = vmatpush1.bf16.msra.mxu0 0
      %8108 = vmatprep.subr.bf16.mxu0 0
      %8109 = vmatpush1.bf16.msra.mxu0 0
      %8110 = vmatprep.subr.bf16.mxu0 0
      %8111 = vmatpush1.bf16.msra.mxu0 0
      %8112 = vmatprep.subr.bf16.mxu0 0
      %8113 = vmatpush1.bf16.msra.mxu0 0
      %8114 = vmatprep.subr.bf16.mxu0 0
      %8115 = vmatpush1.bf16.msra.mxu0 0
      %8116 = vmatprep.subr.bf16.mxu0 0
      %8117 = vmatpush1.bf16.msra.mxu0 0
      %8118 = vmatprep.subr.bf16.mxu0 0
      %8119 = vmatpush1.bf16.msra.mxu0 0
      %8120 = vmatprep.subr.bf16.mxu0 0
      %8121 = vmatpush1.bf16.msra.mxu0 0
      %8122 = vmatprep.subr.bf16.mxu0 0
      %8123 = vmatpush1.bf16.msra.mxu0 0
      %8124 = vmatprep.subr.bf16.mxu0 0
      %8125 = vmatpush1.bf16.msra.mxu0 0
      %8126 = vmatprep.mubr.bf16.mxu0 0
      %8127 = vmatmul.mubr.bf16.gmra.mrb[0].mxu0 %v8062
      %v8128 = vpop.f32.mrb[0].mxu0
      %v8129 = vadd.f32 0.0, %v8128
      %v8130 = vpop.f32.mrb[0].mxu0
      %v8131 = vpop.f32.mrb[0].mxu0
      %v8132 = vadd.f32 0.0, %v8131
      %v8133 = vpop.f32.mrb[0].mxu0
      %8134 = vmatprep.mubr.bf16.mxu0 0
      %8135 = vmatmul.mubr.bf16.gmra.mrb[0].mxu0 %v8065
      %v8136 = vpop.f32.mrb[0].mxu0
      %v8137 = vadd.f32 0.0, %v8136
      %v8138 = vpop.f32.mrb[0].mxu0
      %v8139 = vpop.f32.mrb[0].mxu0
      %v8140 = vadd.f32 0.0, %v8139
      %v8141 = vpop.f32.mrb[0].mxu0
      %8142 = vmatprep.mubr.bf16.mxu0 0
      %8143 = vmatmul.mubr.bf16.gmra.mrb[0].mxu0 %v8068
      %v8144 = vpop.f32.mrb[0].mxu0
      %v8145 = vadd.f32 0.0, %v8144
      %v8146 = vpop.f32.mrb[0].mxu0
      %v8147 = vpop.f32.mrb[0].mxu0
      %v8148 = vadd.f32 0.0, %v8147
      %v8149 = vpop.f32.mrb[0].mxu0
      %8150 = vmatprep.mubr.bf16.mxu0 0
      %8151 = vmatmul.mubr.bf16.gmra.mrb[0].mxu0 %v8071
      %v8152 = vpop.f32.mrb[0].mxu0
      %v8153 = vadd.f32 0.0, %v8152
      %v8154 = vpop.f32.mrb[0].mxu0
      %v8155 = vpop.f32.mrb[0].mxu0
      %v8156 = vadd.f32 0.0, %v8155
      %v8157 = vpop.f32.mrb[0].mxu0
      %8158 = vmatprep.mubr.bf16.mxu0 0
      %8159 = vmatmul.mubr.bf16.gmra.mrb[0].mxu0 %v8074
      %v8160 = vpop.f32.mrb[0].mxu0
      %v8161 = vadd.f32 0.0, %v8160
      %v8162 = vpop.f32.mrb[0].mxu0
      %v8163 = vpop.f32.mrb[0].mxu0
      %v8164 = vadd.f32 0.0, %v8163
      %v8165 = vpop.f32.mrb[0].mxu0
      %8166 = vmatprep.mubr.bf16.mxu0 0
      %8167 = vmatmul.mubr.bf16.gmra.mrb[0].mxu0 %v8077
      %v8168 = vpop.f32.mrb[0].mxu0
      %v8169 = vadd.f32 0.0, %v8168
      %v8170 = vpop.f32.mrb[0].mxu0
      %v8171 = vpop.f32.mrb[0].mxu0
      %v8172 = vadd.f32 0.0, %v8171
      %v8173 = vpop.f32.mrb[0].mxu0
      %8174 = vmatprep.mubr.bf16.mxu0 0
      %8175 = vmatmul.mubr.bf16.gmra.mrb[0].mxu0 %v8080
      %v8176 = vpop.f32.mrb[0].mxu0
      %v8177 = vadd.f32 0.0, %v8176
      %v8178 = vpop.f32.mrb[0].mxu0
      %v8179 = vpop.f32.mrb[0].mxu0
      %v8180 = vadd.f32 0.0, %v8179
      %v8181 = vpop.f32.mrb[0].mxu0
      %8182 = vmatprep.mubr.bf16.mxu0 0
      %8183 = vmatmul.mubr.bf16.gmra.mrb[0].mxu0 %v8083
      %v8184 = vpop.f32.mrb[0].mxu0
      %v8185 = vadd.f32 0.0, %v8184
      %v8186 = vpop.f32.mrb[0].mxu0
      %v8187 = vpop.f32.mrb[0].mxu0
      %v8188 = vadd.f32 0.0, %v8187
      %v8189 = vpop.f32.mrb[0].mxu0
      %8190 = vmatprep.mubr.bf16.mxu0 0
      %8191 = vmatmul.mubr.bf16.gmra.mrb[0].mxu0 %v8086
      %v8192 = vpop.f32.mrb[0].mxu0
      %v8193 = vadd.f32 0.0, %v8192
      %v8194 = vpop.f32.mrb[0].mxu0
      %v8195 = vpop.f32.mrb[0].mxu0
      %v8196 = vadd.f32 0.0, %v8195
      %v8197 = vpop.f32.mrb[0].mxu0
      %8198 = vmatprep.mubr.bf16.mxu0 0
      %8199 = vmatmul.mubr.bf16.gmra.mrb[0].mxu0 %v8089
      %v8200 = vpop.f32.mrb[0].mxu0
      %v8201 = vadd.f32 0.0, %v8200
      %v8202 = vpop.f32.mrb[0].mxu0
      %v8203 = vpop.f32.mrb[0].mxu0
      %v8204 = vadd.f32 0.0, %v8203
      %v8205 = vpop.f32.mrb[0].mxu0
      %8206 = vmatprep.mubr.bf16.mxu0 0
      %8207 = vmatmul.mubr.bf16.gmra.mrb[0].mxu0 %v8092
      %v8208 = vpop.f32.mrb[0].mxu0
      %v8209 = vadd.f32 0.0, %v8208
      %v8210 = vpop.f32.mrb[0].mxu0
      %v8211 = vpop.f32.mrb[0].mxu0
      %v8212 = vadd.f32 0.0, %v8211
      %v8213 = vpop.f32.mrb[0].mxu0
      %8214 = vdwg.mxu0
      %v8215 = vadd.f32 %v7409, %v8129
      %v8216 = vadd.f32 %v7412, %v8132
      %v8217 = vadd.f32 %v7417, %v8137
      %v8218 = vadd.f32 %v7420, %v8140
      %v8219 = vadd.f32 %v7425, %v8145
      %v8220 = vadd.f32 %v7428, %v8148
      %v8221 = vadd.f32 %v7433, %v8153
      %v8222 = vadd.f32 %v7436, %v8156
      %v8223 = vadd.f32 %v7441, %v8161
      %v8224 = vadd.f32 %v7444, %v8164
      %v8225 = vadd.f32 %v7449, %v8169
      %v8226 = vadd.f32 %v7452, %v8172
      %v8227 = vadd.f32 %v7457, %v8177
      %v8228 = vadd.f32 %v7460, %v8180
      %v8229 = vadd.f32 %v7465, %v8185
      %v8230 = vadd.f32 %v7468, %v8188
      %v8231 = vadd.f32 %v7473, %v8193
      %v8232 = vadd.f32 %v7476, %v8196
      %v8233 = vadd.f32 %v7481, %v8201
      %v8234 = vadd.f32 %v7484, %v8204
      %v8235 = vadd.f32 %v7489, %v8209
      %v8236 = vadd.f32 %v7492, %v8212
      %s8237 = scalar_lea.vmem %s3, 48
      %v8238 = vld [vmem:[%s8237] sm:$0xf]
      %v8239 = vld [vmem:[%s8237 + $0x4] sm:$0xf]
      %v8240 = vld [vmem:[%s8237 + $0x8] sm:$0xf]
      %v8241 = vld [vmem:[%s8237 + $0xc] sm:$0xf]
      %v8242 = vpack.i.b16 %v5716, %v5715
      %v8243 = vpack.i.b16 %v5730, %v5727
      %v8244 = vpack.i.b16 %v5746, %v5745
      %v8245 = vpack.i.b16 %v5760, %v5757
      %v8246 = vpack.i.b16 %v5776, %v5775
      %v8247 = vpack.i.b16 %v5790, %v5787
      %v8248 = vpack.i.b16 %v5806, %v5805
      %v8249 = vpack.i.b16 %v5820, %v5817
      %v8250 = vpack.i.b16 %v5836, %v5835
      %v8251 = vpack.i.b16 %v5850, %v5847
      %v8252 = vpack.i.b16 %v5866, %v5865
      %v8253 = vpack.i.b16 %v5880, %v5877
      %v8254 = vpack.i.b16 %v5896, %v5895
      %v8255 = vpack.i.b16 %v5898, %v5897
      %v8256 = vpack.i.b16 %v5900, %v5899
      %v8257 = vpack.i.b16 %v5902, %v5901
      %v8258 = vpack.i.b16 %v5904, %v5903
      %v8259 = vpack.i.b16 %v5906, %v5905
      %v8261 = vcombine.low %v8242, %v5941
      %v8262 = vcombine.low %v8243, %v5947
      %v8264 = vunpack.c.l.s4 1966171168
      %v8265 = vunpack.c.0.s8 %v8264
      %v8266 = vlaneseq
      %v8267 = vshrl.u32 %v8266, 7
      %v8268 = vsub.s32 %v8265, %v8267
      %v8269 = vrot.slane %v8261, %v8268
      %v8271 = vunpack.c.l.s4 1966171168
      %v8272 = vunpack.c.0.s8 %v8271
      %v8273 = vlaneseq
      %v8274 = vshrl.u32 %v8273, 7
      %v8275 = vsub.s32 %v8272, %v8274
      %v8276 = vrot.slane %v8262, %v8275
      %v8277 = vcombine.low %v8269, %v6078
      %v8278 = vcombine.low %v6085, %v8276
      %v8280 = vunpack.c.l.s4 1966171168
      %v8281 = vunpack.c.0.s8 %v8280
      %v8282 = vlaneseq
      %v8283 = vshrl.u32 %v8282, 7
      %v8284 = vsub.s32 %v8281, %v8283
      %v8285 = vrot.slane %v8277, %v8284
      %v8287 = vunpack.c.l.s4 1966171168
      %v8288 = vunpack.c.0.s8 %v8287
      %v8289 = vlaneseq
      %v8290 = vshrl.u32 %v8289, 7
      %v8291 = vsub.s32 %v8288, %v8290
      %v8292 = vrot.slane %v8278, %v8291
      %v8293 = vcombine.low %v8285, %v8292
      %v8294 = vcombine.low %v5952, %v8244
      %v8296 = vunpack.c.l.s4 1966171168
      %v8297 = vunpack.c.0.s8 %v8296
      %v8298 = vlaneseq
      %v8299 = vshrl.u32 %v8298, 7
      %v8300 = vsub.s32 %v8297, %v8299
      %v8301 = vrot.slane %v8294, %v8300
      %v8302 = vcombine.low %v6099, %v6127
      %v8303 = vcombine.low %v8301, %v6141
      %v8305 = vunpack.c.l.s4 1966171168
      %v8306 = vunpack.c.0.s8 %v8305
      %v8307 = vlaneseq
      %v8308 = vshrl.u32 %v8307, 7
      %v8309 = vsub.s32 %v8306, %v8308
      %v8310 = vrot.slane %v8302, %v8309
      %v8312 = vunpack.c.l.s4 1966171168
      %v8313 = vunpack.c.0.s8 %v8312
      %v8314 = vlaneseq
      %v8315 = vshrl.u32 %v8314, 7
      %v8316 = vsub.s32 %v8313, %v8315
      %v8317 = vrot.slane %v8303, %v8316
      %v8318 = vcombine.low %v8310, %v8317
      %v8319 = vcombine.low %v5958, %v8245
      %v8321 = vunpack.c.l.s4 1966171168
      %v8322 = vunpack.c.0.s8 %v8321
      %v8323 = vlaneseq
      %v8324 = vshrl.u32 %v8323, 7
      %v8325 = vsub.s32 %v8322, %v8324
      %v8326 = vrot.slane %v8319, %v8325
      %v8327 = vcombine.low %v6148, %v8326
      %v8328 = vcombine.low %v6183, %v6190
      %v8330 = vunpack.c.l.s4 1966171168
      %v8331 = vunpack.c.0.s8 %v8330
      %v8332 = vlaneseq
      %v8333 = vshrl.u32 %v8332, 7
      %v8334 = vsub.s32 %v8331, %v8333
      %v8335 = vrot.slane %v8327, %v8334
      %v8337 = vunpack.c.l.s4 1966171168
      %v8338 = vunpack.c.0.s8 %v8337
      %v8339 = vlaneseq
      %v8340 = vshrl.u32 %v8339, 7
      %v8341 = vsub.s32 %v8338, %v8340
      %v8342 = vrot.slane %v8328, %v8341
      %v8343 = vcombine.low %v8335, %v8342
      %v8344 = vcombine.low %v8246, %v5967
      %v8346 = vunpack.c.l.s4 1966171168
      %v8347 = vunpack.c.0.s8 %v8346
      %v8348 = vlaneseq
      %v8349 = vshrl.u32 %v8348, 7
      %v8350 = vsub.s32 %v8347, %v8349
      %v8351 = vrot.slane %v8344, %v8350
      %v8352 = vcombine.low %v6197, %v8351
      %v8353 = vcombine.low %v6232, %v6239
      %v8355 = vunpack.c.l.s4 1966171168
      %v8356 = vunpack.c.0.s8 %v8355
      %v8357 = vlaneseq
      %v8358 = vshrl.u32 %v8357, 7
      %v8359 = vsub.s32 %v8356, %v8358
      %v8360 = vrot.slane %v8352, %v8359
      %v8362 = vunpack.c.l.s4 1966171168
      %v8363 = vunpack.c.0.s8 %v8362
      %v8364 = vlaneseq
      %v8365 = vshrl.u32 %v8364, 7
      %v8366 = vsub.s32 %v8363, %v8365
      %v8367 = vrot.slane %v8353, %v8366
      %v8368 = vcombine.low %v8360, %v8367
      %v8369 = vcombine.low %v8247, %v5973
      %v8370 = vcombine.low %v5978, %v8248
      %v8372 = vunpack.c.l.s4 1966171168
      %v8373 = vunpack.c.0.s8 %v8372
      %v8374 = vlaneseq
      %v8375 = vshrl.u32 %v8374, 7
      %v8376 = vsub.s32 %v8373, %v8375
      %v8377 = vrot.slane %v8369, %v8376
      %v8379 = vunpack.c.l.s4 1966171168
      %v8380 = vunpack.c.0.s8 %v8379
      %v8381 = vlaneseq
      %v8382 = vshrl.u32 %v8381, 7
      %v8383 = vsub.s32 %v8380, %v8382
      %v8384 = vrot.slane %v8370, %v8383
      %v8385 = vcombine.low %v8377, %v6274
      %v8386 = vcombine.low %v6281, %v8384
      %v8388 = vunpack.c.l.s4 1966171168
      %v8389 = vunpack.c.0.s8 %v8388
      %v8390 = vlaneseq
      %v8391 = vshrl.u32 %v8390, 7
      %v8392 = vsub.s32 %v8389, %v8391
      %v8393 = vrot.slane %v8385, %v8392
      %v8395 = vunpack.c.l.s4 1966171168
      %v8396 = vunpack.c.0.s8 %v8395
      %v8397 = vlaneseq
      %v8398 = vshrl.u32 %v8397, 7
      %v8399 = vsub.s32 %v8396, %v8398
      %v8400 = vrot.slane %v8386, %v8399
      %v8401 = vcombine.low %v8393, %v8400
      %v8402 = vcombine.low %v5984, %v8249
      %v8404 = vunpack.c.l.s4 1966171168
      %v8405 = vunpack.c.0.s8 %v8404
      %v8406 = vlaneseq
      %v8407 = vshrl.u32 %v8406, 7
      %v8408 = vsub.s32 %v8405, %v8407
      %v8409 = vrot.slane %v8402, %v8408
      %v8410 = vcombine.low %v6295, %v6323
      %v8411 = vcombine.low %v8409, %v6337
      %v8413 = vunpack.c.l.s4 1966171168
      %v8414 = vunpack.c.0.s8 %v8413
      %v8415 = vlaneseq
      %v8416 = vshrl.u32 %v8415, 7
      %v8417 = vsub.s32 %v8414, %v8416
      %v8418 = vrot.slane %v8410, %v8417
      %v8420 = vunpack.c.l.s4 1966171168
      %v8421 = vunpack.c.0.s8 %v8420
      %v8422 = vlaneseq
      %v8423 = vshrl.u32 %v8422, 7
      %v8424 = vsub.s32 %v8421, %v8423
      %v8425 = vrot.slane %v8411, %v8424
      %v8426 = vcombine.low %v8418, %v8425
      %v8427 = vcombine.low %v8250, %v5993
      %v8429 = vunpack.c.l.s4 1966171168
      %v8430 = vunpack.c.0.s8 %v8429
      %v8431 = vlaneseq
      %v8432 = vshrl.u32 %v8431, 7
      %v8433 = vsub.s32 %v8430, %v8432
      %v8434 = vrot.slane %v8427, %v8433
      %v8435 = vcombine.low %v6344, %v6372
      %v8436 = vcombine.low %v8434, %v6386
      %v8438 = vunpack.c.l.s4 1966171168
      %v8439 = vunpack.c.0.s8 %v8438
      %v8440 = vlaneseq
      %v8441 = vshrl.u32 %v8440, 7
      %v8442 = vsub.s32 %v8439, %v8441
      %v8443 = vrot.slane %v8435, %v8442
      %v8445 = vunpack.c.l.s4 1966171168
      %v8446 = vunpack.c.0.s8 %v8445
      %v8447 = vlaneseq
      %v8448 = vshrl.u32 %v8447, 7
      %v8449 = vsub.s32 %v8446, %v8448
      %v8450 = vrot.slane %v8436, %v8449
      %v8451 = vcombine.low %v8443, %v8450
      %v8452 = vcombine.low %v8251, %v5999
      %v8454 = vunpack.c.l.s4 1966171168
      %v8455 = vunpack.c.0.s8 %v8454
      %v8456 = vlaneseq
      %v8457 = vshrl.u32 %v8456, 7
      %v8458 = vsub.s32 %v8455, %v8457
      %v8459 = vrot.slane %v8452, %v8458
      %v8460 = vcombine.low %v6393, %v8459
      %v8461 = vcombine.low %v6428, %v6435
      %v8463 = vunpack.c.l.s4 1966171168
      %v8464 = vunpack.c.0.s8 %v8463
      %v8465 = vlaneseq
      %v8466 = vshrl.u32 %v8465, 7
      %v8467 = vsub.s32 %v8464, %v8466
      %v8468 = vrot.slane %v8460, %v8467
      %v8470 = vunpack.c.l.s4 1966171168
      %v8471 = vunpack.c.0.s8 %v8470
      %v8472 = vlaneseq
      %v8473 = vshrl.u32 %v8472, 7
      %v8474 = vsub.s32 %v8471, %v8473
      %v8475 = vrot.slane %v8461, %v8474
      %v8476 = vcombine.low %v8468, %v8475
      %v8477 = vcombine.low %v6004, %v8252
      %v8478 = vcombine.low %v6010, %v8253
      %v8480 = vunpack.c.l.s4 1966171168
      %v8481 = vunpack.c.0.s8 %v8480
      %v8482 = vlaneseq
      %v8483 = vshrl.u32 %v8482, 7
      %v8484 = vsub.s32 %v8481, %v8483
      %v8485 = vrot.slane %v8477, %v8484
      %v8487 = vunpack.c.l.s4 1966171168
      %v8488 = vunpack.c.0.s8 %v8487
      %v8489 = vlaneseq
      %v8490 = vshrl.u32 %v8489, 7
      %v8491 = vsub.s32 %v8488, %v8490
      %v8492 = vrot.slane %v8478, %v8491
      %v8493 = vcombine.low %v8485, %v6470
      %v8494 = vcombine.low %v6477, %v8492
      %v8496 = vunpack.c.l.s4 1966171168
      %v8497 = vunpack.c.0.s8 %v8496
      %v8498 = vlaneseq
      %v8499 = vshrl.u32 %v8498, 7
      %v8500 = vsub.s32 %v8497, %v8499
      %v8501 = vrot.slane %v8493, %v8500
      %v8503 = vunpack.c.l.s4 1966171168
      %v8504 = vunpack.c.0.s8 %v8503
      %v8505 = vlaneseq
      %v8506 = vshrl.u32 %v8505, 7
      %v8507 = vsub.s32 %v8504, %v8506
      %v8508 = vrot.slane %v8494, %v8507
      %v8509 = vcombine.low %v8501, %v8508
      %v8510 = vcombine.low %v8254, %v8255
      %v8512 = vunpack.c.l.s4 1966171168
      %v8513 = vunpack.c.0.s8 %v8512
      %v8514 = vlaneseq
      %v8515 = vshrl.u32 %v8514, 7
      %v8516 = vsub.s32 %v8513, %v8515
      %v8517 = vrot.slane %v8510, %v8516
      %v8518 = vcombine.low %v6491, %v6517
      %v8519 = vcombine.low %v6524, %v8517
      %v8521 = vunpack.c.l.s4 1966171168
      %v8522 = vunpack.c.0.s8 %v8521
      %v8523 = vlaneseq
      %v8524 = vshrl.u32 %v8523, 7
      %v8525 = vsub.s32 %v8522, %v8524
      %v8526 = vrot.slane %v8518, %v8525
      %v8528 = vunpack.c.l.s4 1966171168
      %v8529 = vunpack.c.0.s8 %v8528
      %v8530 = vlaneseq
      %v8531 = vshrl.u32 %v8530, 7
      %v8532 = vsub.s32 %v8529, %v8531
      %v8533 = vrot.slane %v8519, %v8532
      %v8534 = vcombine.low %v8526, %v8533
      %v8535 = vcombine.low %v8256, %v8257
      %v8536 = vcombine.low %v8258, %v8259
      %v8538 = vunpack.c.l.s4 1966171168
      %v8539 = vunpack.c.0.s8 %v8538
      %v8540 = vlaneseq
      %v8541 = vshrl.u32 %v8540, 7
      %v8542 = vsub.s32 %v8539, %v8541
      %v8543 = vrot.slane %v8535, %v8542
      %v8545 = vunpack.c.l.s4 1966171168
      %v8546 = vunpack.c.0.s8 %v8545
      %v8547 = vlaneseq
      %v8548 = vshrl.u32 %v8547, 7
      %v8549 = vsub.s32 %v8546, %v8548
      %v8550 = vrot.slane %v8536, %v8549
      %v8552 = vunpack.c.l.s4 1966171168
      %v8553 = vunpack.c.0.s8 %v8552
      %v8554 = vlaneseq
      %v8555 = vshrl.u32 %v8554, 7
      %v8556 = vsub.s32 %v8553, %v8555
      %v8557 = vrot.slane %v5907, %v8556
      %v8558 = vcombine.low %v8543, %v8550
      %v8560 = vunpack.c.l.s4 1966171168
      %v8561 = vunpack.c.0.s8 %v8560
      %v8562 = vlaneseq
      %v8563 = vshrl.u32 %v8562, 7
      %v8564 = vsub.s32 %v8561, %v8563
      %v8565 = vrot.slane %v8558, %v8564
      %v8567 = vunpack.c.l.s4 1966171168
      %v8568 = vunpack.c.0.s8 %v8567
      %v8569 = vlaneseq
      %v8570 = vshrl.u32 %v8569, 7
      %v8571 = vsub.s32 %v8568, %v8570
      %v8572 = vrot.slane %v8557, %v8571
      %v8573 = vcombine.low %v8565, %v8572
      %v8578 = vunpack.c.l.b16 %v8238
      %v8579 = vunpack.c.l.b16 %v8239
      %v8580 = vunpack.c.l.b16 %v8240
      %v8581 = vunpack.c.l.b16 %v8241
      %v8582 = vpack.c.b16 %v8579, %v8578
      %v8583 = vpack.c.b16 %v8581, %v8580
      %v8587 = vsel %vm6560, %v8293, 0
      %v8590 = vsel %vm6560, %v8318, 0
      %v8593 = vsel %vm6560, %v8343, 0
      %v8596 = vsel %vm6560, %v8368, 0
      %v8599 = vsel %vm6560, %v8401, 0
      %v8602 = vsel %vm6560, %v8426, 0
      %v8605 = vsel %vm6560, %v8451, 0
      %v8608 = vsel %vm6560, %v8476, 0
      %v8611 = vsel %vm6560, %v8509, 0
      %v8614 = vsel %vm6560, %v8534, 0
      %v8617 = vsel %vm6560, %v8573, 0
      %8619 = vmatprep.subr.bf16.mxu0 0
      %8620 = vmatpush1.bf16.msra.mxu0 %v8582
      %8621 = vmatprep.subr.bf16.mxu0 0
      %8622 = vmatpush1.bf16.msra.mxu0 %v8583
      %8623 = vmatprep.subr.bf16.mxu0 0
      %8624 = vmatpush1.bf16.msra.mxu0 0
      %8625 = vmatprep.subr.bf16.mxu0 0
      %8626 = vmatpush1.bf16.msra.mxu0 0
      %8627 = vmatprep.subr.bf16.mxu0 0
      %8628 = vmatpush1.bf16.msra.mxu0 0
      %8629 = vmatprep.subr.bf16.mxu0 0
      %8630 = vmatpush1.bf16.msra.mxu0 0
      %8631 = vmatprep.subr.bf16.mxu0 0
      %8632 = vmatpush1.bf16.msra.mxu0 0
      %8633 = vmatprep.subr.bf16.mxu0 0
      %8634 = vmatpush1.bf16.msra.mxu0 0
      %8635 = vmatprep.subr.bf16.mxu0 0
      %8636 = vmatpush1.bf16.msra.mxu0 0
      %8637 = vmatprep.subr.bf16.mxu0 0
      %8638 = vmatpush1.bf16.msra.mxu0 0
      %8639 = vmatprep.subr.bf16.mxu0 0
      %8640 = vmatpush1.bf16.msra.mxu0 0
      %8641 = vmatprep.subr.bf16.mxu0 0
      %8642 = vmatpush1.bf16.msra.mxu0 0
      %8643 = vmatprep.subr.bf16.mxu0 0
      %8644 = vmatpush1.bf16.msra.mxu0 0
      %8645 = vmatprep.subr.bf16.mxu0 0
      %8646 = vmatpush1.bf16.msra.mxu0 0
      %8647 = vmatprep.subr.bf16.mxu0 0
      %8648 = vmatpush1.bf16.msra.mxu0 0
      %8649 = vmatprep.subr.bf16.mxu0 0
      %8650 = vmatpush1.bf16.msra.mxu0 0
      %8651 = vmatprep.mubr.bf16.mxu0 0
      %8652 = vmatmul.mubr.bf16.gmra.mrb[0].mxu0 %v8587
      %v8653 = vpop.f32.mrb[0].mxu0
      %v8654 = vadd.f32 0.0, %v8653
      %v8655 = vpop.f32.mrb[0].mxu0
      %v8656 = vpop.f32.mrb[0].mxu0
      %v8657 = vadd.f32 0.0, %v8656
      %v8658 = vpop.f32.mrb[0].mxu0
      %8659 = vmatprep.mubr.bf16.mxu0 0
      %8660 = vmatmul.mubr.bf16.gmra.mrb[0].mxu0 %v8590
      %v8661 = vpop.f32.mrb[0].mxu0
      %v8662 = vadd.f32 0.0, %v8661
      %v8663 = vpop.f32.mrb[0].mxu0
      %v8664 = vpop.f32.mrb[0].mxu0
      %v8665 = vadd.f32 0.0, %v8664
      %v8666 = vpop.f32.mrb[0].mxu0
      %8667 = vmatprep.mubr.bf16.mxu0 0
      %8668 = vmatmul.mubr.bf16.gmra.mrb[0].mxu0 %v8593
      %v8669 = vpop.f32.mrb[0].mxu0
      %v8670 = vadd.f32 0.0, %v8669
      %v8671 = vpop.f32.mrb[0].mxu0
      %v8672 = vpop.f32.mrb[0].mxu0
      %v8673 = vadd.f32 0.0, %v8672
      %v8674 = vpop.f32.mrb[0].mxu0
      %8675 = vmatprep.mubr.bf16.mxu0 0
      %8676 = vmatmul.mubr.bf16.gmra.mrb[0].mxu0 %v8596
      %v8677 = vpop.f32.mrb[0].mxu0
      %v8678 = vadd.f32 0.0, %v8677
      %v8679 = vpop.f32.mrb[0].mxu0
      %v8680 = vpop.f32.mrb[0].mxu0
      %v8681 = vadd.f32 0.0, %v8680
      %v8682 = vpop.f32.mrb[0].mxu0
      %8683 = vmatprep.mubr.bf16.mxu0 0
      %8684 = vmatmul.mubr.bf16.gmra.mrb[0].mxu0 %v8599
      %v8685 = vpop.f32.mrb[0].mxu0
      %v8686 = vadd.f32 0.0, %v8685
      %v8687 = vpop.f32.mrb[0].mxu0
      %v8688 = vpop.f32.mrb[0].mxu0
      %v8689 = vadd.f32 0.0, %v8688
      %v8690 = vpop.f32.mrb[0].mxu0
      %8691 = vmatprep.mubr.bf16.mxu0 0
      %8692 = vmatmul.mubr.bf16.gmra.mrb[0].mxu0 %v8602
      %v8693 = vpop.f32.mrb[0].mxu0
      %v8694 = vadd.f32 0.0, %v8693
      %v8695 = vpop.f32.mrb[0].mxu0
      %v8696 = vpop.f32.mrb[0].mxu0
      %v8697 = vadd.f32 0.0, %v8696
      %v8698 = vpop.f32.mrb[0].mxu0
      %8699 = vmatprep.mubr.bf16.mxu0 0
      %8700 = vmatmul.mubr.bf16.gmra.mrb[0].mxu0 %v8605
      %v8701 = vpop.f32.mrb[0].mxu0
      %v8702 = vadd.f32 0.0, %v8701
      %v8703 = vpop.f32.mrb[0].mxu0
      %v8704 = vpop.f32.mrb[0].mxu0
      %v8705 = vadd.f32 0.0, %v8704
      %v8706 = vpop.f32.mrb[0].mxu0
      %8707 = vmatprep.mubr.bf16.mxu0 0
      %8708 = vmatmul.mubr.bf16.gmra.mrb[0].mxu0 %v8608
      %v8709 = vpop.f32.mrb[0].mxu0
      %v8710 = vadd.f32 0.0, %v8709
      %v8711 = vpop.f32.mrb[0].mxu0
      %v8712 = vpop.f32.mrb[0].mxu0
      %v8713 = vadd.f32 0.0, %v8712
      %v8714 = vpop.f32.mrb[0].mxu0
      %8715 = vmatprep.mubr.bf16.mxu0 0
      %8716 = vmatmul.mubr.bf16.gmra.mrb[0].mxu0 %v8611
      %v8717 = vpop.f32.mrb[0].mxu0
      %v8718 = vadd.f32 0.0, %v8717
      %v8719 = vpop.f32.mrb[0].mxu0
      %v8720 = vpop.f32.mrb[0].mxu0
      %v8721 = vadd.f32 0.0, %v8720
      %v8722 = vpop.f32.mrb[0].mxu0
      %8723 = vmatprep.mubr.bf16.mxu0 0
      %8724 = vmatmul.mubr.bf16.gmra.mrb[0].mxu0 %v8614
      %v8725 = vpop.f32.mrb[0].mxu0
      %v8726 = vadd.f32 0.0, %v8725
      %v8727 = vpop.f32.mrb[0].mxu0
      %v8728 = vpop.f32.mrb[0].mxu0
      %v8729 = vadd.f32 0.0, %v8728
      %v8730 = vpop.f32.mrb[0].mxu0
      %8731 = vmatprep.mubr.bf16.mxu0 0
      %8732 = vmatmul.mubr.bf16.gmra.mrb[0].mxu0 %v8617
      %v8733 = vpop.f32.mrb[0].mxu0
      %v8734 = vadd.f32 0.0, %v8733
      %v8735 = vpop.f32.mrb[0].mxu0
      %v8736 = vpop.f32.mrb[0].mxu0
      %v8737 = vadd.f32 0.0, %v8736
      %v8738 = vpop.f32.mrb[0].mxu0
      %8739 = vdwg.mxu0
      %v8740 = vadd.f32 %v8215, %v8654
      %v8741 = vadd.f32 %v8216, %v8657
      %v8742 = vadd.f32 %v8217, %v8662
      %v8743 = vadd.f32 %v8218, %v8665
      %v8744 = vadd.f32 %v8219, %v8670
      %v8745 = vadd.f32 %v8220, %v8673
      %v8746 = vadd.f32 %v8221, %v8678
      %v8747 = vadd.f32 %v8222, %v8681
      %v8748 = vadd.f32 %v8223, %v8686
      %v8749 = vadd.f32 %v8224, %v8689
      %v8750 = vadd.f32 %v8225, %v8694
      %v8751 = vadd.f32 %v8226, %v8697
      %v8752 = vadd.f32 %v8227, %v8702
      %v8753 = vadd.f32 %v8228, %v8705
      %v8754 = vadd.f32 %v8229, %v8710
      %v8755 = vadd.f32 %v8230, %v8713
      %v8756 = vadd.f32 %v8231, %v8718
      %v8757 = vadd.f32 %v8232, %v8721
      %v8758 = vadd.f32 %v8233, %v8726
      %v8759 = vadd.f32 %v8234, %v8729
      %v8760 = vadd.f32 %v8235, %v8734
      %v8761 = vadd.f32 %v8236, %v8737
      %s8762 = scalar_lea.vmem %s3, 64
      %v8763 = vld [vmem:[%s8762] sm:$0xf]
      %v8764 = vld [vmem:[%s8762 + $0x4] sm:$0xf]
      %v8765 = vld [vmem:[%s8762 + $0x8] sm:$0xf]
      %v8766 = vld [vmem:[%s8762 + $0xc] sm:$0xf]
      %v8767 = vpack.i.b16 %v5731, %v5728
      %v8768 = vpack.i.b16 %v5761, %v5758
      %v8769 = vpack.i.b16 %v5791, %v5788
      %v8770 = vpack.i.b16 %v5821, %v5818
      %v8771 = vpack.i.b16 %v5851, %v5848
      %v8772 = vpack.i.b16 %v5881, %v5878
      %v8773 = vpack.i.b16 %v5897, %v5896
      %v8774 = vpack.i.b16 %v5899, %v5898
      %v8775 = vpack.i.b16 %v5901, %v5900
      %v8776 = vpack.i.b16 %v5903, %v5902
      %v8777 = vpack.i.b16 %v5905, %v5904
      %v8778 = vpack.i.b16 %v5907, %v5906
      %v8780 = vcombine.low %v6722, %v6723
      %v8781 = vcombine.low %v8767, %v6729
      %v8783 = vunpack.c.l.s4 1966171168
      %v8784 = vunpack.c.0.s8 %v8783
      %v8785 = vlaneseq
      %v8786 = vshrl.u32 %v8785, 7
      %v8787 = vsub.s32 %v8784, %v8786
      %v8788 = vrot.slane %v8780, %v8787
      %v8790 = vunpack.c.l.s4 1966171168
      %v8791 = vunpack.c.0.s8 %v8790
      %v8792 = vlaneseq
      %v8793 = vshrl.u32 %v8792, 7
      %v8794 = vsub.s32 %v8791, %v8793
      %v8795 = vrot.slane %v8781, %v8794
      %v8796 = vcombine.low %v8788, %v7579
      %v8797 = vcombine.low %v7586, %v8795
      %v8799 = vunpack.c.l.s4 1966171168
      %v8800 = vunpack.c.0.s8 %v8799
      %v8801 = vlaneseq
      %v8802 = vshrl.u32 %v8801, 7
      %v8803 = vsub.s32 %v8800, %v8802
      %v8804 = vrot.slane %v8796, %v8803
      %v8806 = vunpack.c.l.s4 1966171168
      %v8807 = vunpack.c.0.s8 %v8806
      %v8808 = vlaneseq
      %v8809 = vshrl.u32 %v8808, 7
      %v8810 = vsub.s32 %v8807, %v8809
      %v8811 = vrot.slane %v8797, %v8810
      %v8812 = vcombine.low %v8804, %v8811
      %v8813 = vcombine.low %v7503, %v6735
      %v8815 = vunpack.c.l.s4 1966171168
      %v8816 = vunpack.c.0.s8 %v8815
      %v8817 = vlaneseq
      %v8818 = vshrl.u32 %v8817, 7
      %v8819 = vsub.s32 %v8816, %v8818
      %v8820 = vrot.slane %v8813, %v8819
      %v8821 = vcombine.low %v7600, %v7628
      %v8822 = vcombine.low %v8820, %v7642
      %v8824 = vunpack.c.l.s4 1966171168
      %v8825 = vunpack.c.0.s8 %v8824
      %v8826 = vlaneseq
      %v8827 = vshrl.u32 %v8826, 7
      %v8828 = vsub.s32 %v8825, %v8827
      %v8829 = vrot.slane %v8821, %v8828
      %v8831 = vunpack.c.l.s4 1966171168
      %v8832 = vunpack.c.0.s8 %v8831
      %v8833 = vlaneseq
      %v8834 = vshrl.u32 %v8833, 7
      %v8835 = vsub.s32 %v8832, %v8834
      %v8836 = vrot.slane %v8822, %v8835
      %v8837 = vcombine.low %v8829, %v8836
      %v8838 = vcombine.low %v6740, %v8768
      %v8840 = vunpack.c.l.s4 1966171168
      %v8841 = vunpack.c.0.s8 %v8840
      %v8842 = vlaneseq
      %v8843 = vshrl.u32 %v8842, 7
      %v8844 = vsub.s32 %v8841, %v8843
      %v8845 = vrot.slane %v8838, %v8844
      %v8846 = vcombine.low %v7649, %v8845
      %v8847 = vcombine.low %v7684, %v7691
      %v8849 = vunpack.c.l.s4 1966171168
      %v8850 = vunpack.c.0.s8 %v8849
      %v8851 = vlaneseq
      %v8852 = vshrl.u32 %v8851, 7
      %v8853 = vsub.s32 %v8850, %v8852
      %v8854 = vrot.slane %v8846, %v8853
      %v8856 = vunpack.c.l.s4 1966171168
      %v8857 = vunpack.c.0.s8 %v8856
      %v8858 = vlaneseq
      %v8859 = vshrl.u32 %v8858, 7
      %v8860 = vsub.s32 %v8857, %v8859
      %v8861 = vrot.slane %v8847, %v8860
      %v8862 = vcombine.low %v8854, %v8861
      %v8863 = vcombine.low %v6748, %v6749
      %v8865 = vunpack.c.l.s4 1966171168
      %v8866 = vunpack.c.0.s8 %v8865
      %v8867 = vlaneseq
      %v8868 = vshrl.u32 %v8867, 7
      %v8869 = vsub.s32 %v8866, %v8868
      %v8870 = vrot.slane %v8863, %v8869
      %v8871 = vcombine.low %v7698, %v8870
      %v8872 = vcombine.low %v7733, %v7740
      %v8874 = vunpack.c.l.s4 1966171168
      %v8875 = vunpack.c.0.s8 %v8874
      %v8876 = vlaneseq
      %v8877 = vshrl.u32 %v8876, 7
      %v8878 = vsub.s32 %v8875, %v8877
      %v8879 = vrot.slane %v8871, %v8878
      %v8881 = vunpack.c.l.s4 1966171168
      %v8882 = vunpack.c.0.s8 %v8881
      %v8883 = vlaneseq
      %v8884 = vshrl.u32 %v8883, 7
      %v8885 = vsub.s32 %v8882, %v8884
      %v8886 = vrot.slane %v8872, %v8885
      %v8887 = vcombine.low %v8879, %v8886
      %v8888 = vcombine.low %v8769, %v6755
      %v8889 = vcombine.low %v7509, %v6761
      %v8891 = vunpack.c.l.s4 1966171168
      %v8892 = vunpack.c.0.s8 %v8891
      %v8893 = vlaneseq
      %v8894 = vshrl.u32 %v8893, 7
      %v8895 = vsub.s32 %v8892, %v8894
      %v8896 = vrot.slane %v8888, %v8895
      %v8898 = vunpack.c.l.s4 1966171168
      %v8899 = vunpack.c.0.s8 %v8898
      %v8900 = vlaneseq
      %v8901 = vshrl.u32 %v8900, 7
      %v8902 = vsub.s32 %v8899, %v8901
      %v8903 = vrot.slane %v8889, %v8902
      %v8904 = vcombine.low %v8896, %v7775
      %v8905 = vcombine.low %v7782, %v8903
      %v8907 = vunpack.c.l.s4 1966171168
      %v8908 = vunpack.c.0.s8 %v8907
      %v8909 = vlaneseq
      %v8910 = vshrl.u32 %v8909, 7
      %v8911 = vsub.s32 %v8908, %v8910
      %v8912 = vrot.slane %v8904, %v8911
      %v8914 = vunpack.c.l.s4 1966171168
      %v8915 = vunpack.c.0.s8 %v8914
      %v8916 = vlaneseq
      %v8917 = vshrl.u32 %v8916, 7
      %v8918 = vsub.s32 %v8915, %v8917
      %v8919 = vrot.slane %v8905, %v8918
      %v8920 = vcombine.low %v8912, %v8919
      %v8921 = vcombine.low %v6766, %v8770
      %v8923 = vunpack.c.l.s4 1966171168
      %v8924 = vunpack.c.0.s8 %v8923
      %v8925 = vlaneseq
      %v8926 = vshrl.u32 %v8925, 7
      %v8927 = vsub.s32 %v8924, %v8926
      %v8928 = vrot.slane %v8921, %v8927
      %v8929 = vcombine.low %v7796, %v7824
      %v8930 = vcombine.low %v8928, %v7838
      %v8932 = vunpack.c.l.s4 1966171168
      %v8933 = vunpack.c.0.s8 %v8932
      %v8934 = vlaneseq
      %v8935 = vshrl.u32 %v8934, 7
      %v8936 = vsub.s32 %v8933, %v8935
      %v8937 = vrot.slane %v8929, %v8936
      %v8939 = vunpack.c.l.s4 1966171168
      %v8940 = vunpack.c.0.s8 %v8939
      %v8941 = vlaneseq
      %v8942 = vshrl.u32 %v8941, 7
      %v8943 = vsub.s32 %v8940, %v8942
      %v8944 = vrot.slane %v8930, %v8943
      %v8945 = vcombine.low %v8937, %v8944
      %v8946 = vcombine.low %v6774, %v6775
      %v8948 = vunpack.c.l.s4 1966171168
      %v8949 = vunpack.c.0.s8 %v8948
      %v8950 = vlaneseq
      %v8951 = vshrl.u32 %v8950, 7
      %v8952 = vsub.s32 %v8949, %v8951
      %v8953 = vrot.slane %v8946, %v8952
      %v8954 = vcombine.low %v7845, %v7873
      %v8955 = vcombine.low %v8953, %v7887
      %v8957 = vunpack.c.l.s4 1966171168
      %v8958 = vunpack.c.0.s8 %v8957
      %v8959 = vlaneseq
      %v8960 = vshrl.u32 %v8959, 7
      %v8961 = vsub.s32 %v8958, %v8960
      %v8962 = vrot.slane %v8954, %v8961
      %v8964 = vunpack.c.l.s4 1966171168
      %v8965 = vunpack.c.0.s8 %v8964
      %v8966 = vlaneseq
      %v8967 = vshrl.u32 %v8966, 7
      %v8968 = vsub.s32 %v8965, %v8967
      %v8969 = vrot.slane %v8955, %v8968
      %v8970 = vcombine.low %v8962, %v8969
      %v8971 = vcombine.low %v8771, %v6781
      %v8973 = vunpack.c.l.s4 1966171168
      %v8974 = vunpack.c.0.s8 %v8973
      %v8975 = vlaneseq
      %v8976 = vshrl.u32 %v8975, 7
      %v8977 = vsub.s32 %v8974, %v8976
      %v8978 = vrot.slane %v8971, %v8977
      %v8979 = vcombine.low %v7894, %v8978
      %v8980 = vcombine.low %v7929, %v7936
      %v8982 = vunpack.c.l.s4 1966171168
      %v8983 = vunpack.c.0.s8 %v8982
      %v8984 = vlaneseq
      %v8985 = vshrl.u32 %v8984, 7
      %v8986 = vsub.s32 %v8983, %v8985
      %v8987 = vrot.slane %v8979, %v8986
      %v8989 = vunpack.c.l.s4 1966171168
      %v8990 = vunpack.c.0.s8 %v8989
      %v8991 = vlaneseq
      %v8992 = vshrl.u32 %v8991, 7
      %v8993 = vsub.s32 %v8990, %v8992
      %v8994 = vrot.slane %v8980, %v8993
      %v8995 = vcombine.low %v8987, %v8994
      %v8996 = vcombine.low %v7515, %v6787
      %v8997 = vcombine.low %v6792, %v8772
      %v8999 = vunpack.c.l.s4 1966171168
      %v9000 = vunpack.c.0.s8 %v8999
      %v9001 = vlaneseq
      %v9002 = vshrl.u32 %v9001, 7
      %v9003 = vsub.s32 %v9000, %v9002
      %v9004 = vrot.slane %v8996, %v9003
      %v9006 = vunpack.c.l.s4 1966171168
      %v9007 = vunpack.c.0.s8 %v9006
      %v9008 = vlaneseq
      %v9009 = vshrl.u32 %v9008, 7
      %v9010 = vsub.s32 %v9007, %v9009
      %v9011 = vrot.slane %v8997, %v9010
      %v9012 = vcombine.low %v9004, %v7971
      %v9013 = vcombine.low %v7978, %v9011
      %v9015 = vunpack.c.l.s4 1966171168
      %v9016 = vunpack.c.0.s8 %v9015
      %v9017 = vlaneseq
      %v9018 = vshrl.u32 %v9017, 7
      %v9019 = vsub.s32 %v9016, %v9018
      %v9020 = vrot.slane %v9012, %v9019
      %v9022 = vunpack.c.l.s4 1966171168
      %v9023 = vunpack.c.0.s8 %v9022
      %v9024 = vlaneseq
      %v9025 = vshrl.u32 %v9024, 7
      %v9026 = vsub.s32 %v9023, %v9025
      %v9027 = vrot.slane %v9013, %v9026
      %v9028 = vcombine.low %v9020, %v9027
      %v9029 = vcombine.low %v8773, %v8774
      %v9031 = vunpack.c.l.s4 1966171168
      %v9032 = vunpack.c.0.s8 %v9031
      %v9033 = vlaneseq
      %v9034 = vshrl.u32 %v9033, 7
      %v9035 = vsub.s32 %v9032, %v9034
      %v9036 = vrot.slane %v9029, %v9035
      %v9037 = vcombine.low %v7992, %v8018
      %v9038 = vcombine.low %v8025, %v9036
      %v9040 = vunpack.c.l.s4 1966171168
      %v9041 = vunpack.c.0.s8 %v9040
      %v9042 = vlaneseq
      %v9043 = vshrl.u32 %v9042, 7
      %v9044 = vsub.s32 %v9041, %v9043
      %v9045 = vrot.slane %v9037, %v9044
      %v9047 = vunpack.c.l.s4 1966171168
      %v9048 = vunpack.c.0.s8 %v9047
      %v9049 = vlaneseq
      %v9050 = vshrl.u32 %v9049, 7
      %v9051 = vsub.s32 %v9048, %v9050
      %v9052 = vrot.slane %v9038, %v9051
      %v9053 = vcombine.low %v9045, %v9052
      %v9054 = vcombine.low %v8775, %v8776
      %v9055 = vcombine.low %v8777, %v8778
      %v9057 = vunpack.c.l.s4 1966171168
      %v9058 = vunpack.c.0.s8 %v9057
      %v9059 = vlaneseq
      %v9060 = vshrl.u32 %v9059, 7
      %v9061 = vsub.s32 %v9058, %v9060
      %v9062 = vrot.slane %v9054, %v9061
      %v9064 = vunpack.c.l.s4 1966171168
      %v9065 = vunpack.c.0.s8 %v9064
      %v9066 = vlaneseq
      %v9067 = vshrl.u32 %v9066, 7
      %v9068 = vsub.s32 %v9065, %v9067
      %v9069 = vrot.slane %v9055, %v9068
      %v9071 = vunpack.c.l.s4 1966171168
      %v9072 = vunpack.c.0.s8 %v9071
      %v9073 = vlaneseq
      %v9074 = vshrl.u32 %v9073, 7
      %v9075 = vsub.s32 %v9072, %v9074
      %v9076 = vrot.slane %v5908, %v9075
      %v9077 = vcombine.low %v9062, %v9069
      %v9079 = vunpack.c.l.s4 1966171168
      %v9080 = vunpack.c.0.s8 %v9079
      %v9081 = vlaneseq
      %v9082 = vshrl.u32 %v9081, 7
      %v9083 = vsub.s32 %v9080, %v9082
      %v9084 = vrot.slane %v9077, %v9083
      %v9086 = vunpack.c.l.s4 1966171168
      %v9087 = vunpack.c.0.s8 %v9086
      %v9088 = vlaneseq
      %v9089 = vshrl.u32 %v9088, 7
      %v9090 = vsub.s32 %v9087, %v9089
      %v9091 = vrot.slane %v9076, %v9090
      %v9092 = vcombine.low %v9084, %v9091
      %v9097 = vunpack.c.l.b16 %v8763
      %v9098 = vunpack.c.l.b16 %v8764
      %v9099 = vunpack.c.l.b16 %v8765
      %v9100 = vunpack.c.l.b16 %v8766
      %v9101 = vpack.c.b16 %v9098, %v9097
      %v9102 = vpack.c.b16 %v9100, %v9099
      %v9106 = vsel %vm6560, %v8812, 0
      %v9109 = vsel %vm6560, %v8837, 0
      %v9112 = vsel %vm6560, %v8862, 0
      %v9115 = vsel %vm6560, %v8887, 0
      %v9118 = vsel %vm6560, %v8920, 0
      %v9121 = vsel %vm6560, %v8945, 0
      %v9124 = vsel %vm6560, %v8970, 0
      %v9127 = vsel %vm6560, %v8995, 0
      %v9130 = vsel %vm6560, %v9028, 0
      %v9133 = vsel %vm6560, %v9053, 0
      %v9136 = vsel %vm6560, %v9092, 0
      %9138 = vmatprep.subr.bf16.mxu0 0
      %9139 = vmatpush1.bf16.msra.mxu0 %v9101
      %9140 = vmatprep.subr.bf16.mxu0 0
      %9141 = vmatpush1.bf16.msra.mxu0 %v9102
      %9142 = vmatprep.subr.bf16.mxu0 0
      %9143 = vmatpush1.bf16.msra.mxu0 0
      %9144 = vmatprep.subr.bf16.mxu0 0
      %9145 = vmatpush1.bf16.msra.mxu0 0
      %9146 = vmatprep.subr.bf16.mxu0 0
      %9147 = vmatpush1.bf16.msra.mxu0 0
      %9148 = vmatprep.subr.bf16.mxu0 0
      %9149 = vmatpush1.bf16.msra.mxu0 0
      %9150 = vmatprep.subr.bf16.mxu0 0
      %9151 = vmatpush1.bf16.msra.mxu0 0
      %9152 = vmatprep.subr.bf16.mxu0 0
      %9153 = vmatpush1.bf16.msra.mxu0 0
      %9154 = vmatprep.subr.bf16.mxu0 0
      %9155 = vmatpush1.bf16.msra.mxu0 0
      %9156 = vmatprep.subr.bf16.mxu0 0
      %9157 = vmatpush1.bf16.msra.mxu0 0
      %9158 = vmatprep.subr.bf16.mxu0 0
      %9159 = vmatpush1.bf16.msra.mxu0 0
      %9160 = vmatprep.subr.bf16.mxu0 0
      %9161 = vmatpush1.bf16.msra.mxu0 0
      %9162 = vmatprep.subr.bf16.mxu0 0
      %9163 = vmatpush1.bf16.msra.mxu0 0
      %9164 = vmatprep.subr.bf16.mxu0 0
      %9165 = vmatpush1.bf16.msra.mxu0 0
      %9166 = vmatprep.subr.bf16.mxu0 0
      %9167 = vmatpush1.bf16.msra.mxu0 0
      %9168 = vmatprep.subr.bf16.mxu0 0
      %9169 = vmatpush1.bf16.msra.mxu0 0
      %9170 = vmatprep.mubr.bf16.mxu0 0
      %9171 = vmatmul.mubr.bf16.gmra.mrb[0].mxu0 %v9106
      %v9172 = vpop.f32.mrb[0].mxu0
      %v9173 = vadd.f32 0.0, %v9172
      %v9174 = vpop.f32.mrb[0].mxu0
      %v9175 = vpop.f32.mrb[0].mxu0
      %v9176 = vadd.f32 0.0, %v9175
      %v9177 = vpop.f32.mrb[0].mxu0
      %9178 = vmatprep.mubr.bf16.mxu0 0
      %9179 = vmatmul.mubr.bf16.gmra.mrb[0].mxu0 %v9109
      %v9180 = vpop.f32.mrb[0].mxu0
      %v9181 = vadd.f32 0.0, %v9180
      %v9182 = vpop.f32.mrb[0].mxu0
      %v9183 = vpop.f32.mrb[0].mxu0
      %v9184 = vadd.f32 0.0, %v9183
      %v9185 = vpop.f32.mrb[0].mxu0
      %9186 = vmatprep.mubr.bf16.mxu0 0
      %9187 = vmatmul.mubr.bf16.gmra.mrb[0].mxu0 %v9112
      %v9188 = vpop.f32.mrb[0].mxu0
      %v9189 = vadd.f32 0.0, %v9188
      %v9190 = vpop.f32.mrb[0].mxu0
      %v9191 = vpop.f32.mrb[0].mxu0
      %v9192 = vadd.f32 0.0, %v9191
      %v9193 = vpop.f32.mrb[0].mxu0
      %9194 = vmatprep.mubr.bf16.mxu0 0
      %9195 = vmatmul.mubr.bf16.gmra.mrb[0].mxu0 %v9115
      %v9196 = vpop.f32.mrb[0].mxu0
      %v9197 = vadd.f32 0.0, %v9196
      %v9198 = vpop.f32.mrb[0].mxu0
      %v9199 = vpop.f32.mrb[0].mxu0
      %v9200 = vadd.f32 0.0, %v9199
      %v9201 = vpop.f32.mrb[0].mxu0
      %9202 = vmatprep.mubr.bf16.mxu0 0
      %9203 = vmatmul.mubr.bf16.gmra.mrb[0].mxu0 %v9118
      %v9204 = vpop.f32.mrb[0].mxu0
      %v9205 = vadd.f32 0.0, %v9204
      %v9206 = vpop.f32.mrb[0].mxu0
      %v9207 = vpop.f32.mrb[0].mxu0
      %v9208 = vadd.f32 0.0, %v9207
      %v9209 = vpop.f32.mrb[0].mxu0
      %9210 = vmatprep.mubr.bf16.mxu0 0
      %9211 = vmatmul.mubr.bf16.gmra.mrb[0].mxu0 %v9121
      %v9212 = vpop.f32.mrb[0].mxu0
      %v9213 = vadd.f32 0.0, %v9212
      %v9214 = vpop.f32.mrb[0].mxu0
      %v9215 = vpop.f32.mrb[0].mxu0
      %v9216 = vadd.f32 0.0, %v9215
      %v9217 = vpop.f32.mrb[0].mxu0
      %9218 = vmatprep.mubr.bf16.mxu0 0
      %9219 = vmatmul.mubr.bf16.gmra.mrb[0].mxu0 %v9124
      %v9220 = vpop.f32.mrb[0].mxu0
      %v9221 = vadd.f32 0.0, %v9220
      %v9222 = vpop.f32.mrb[0].mxu0
      %v9223 = vpop.f32.mrb[0].mxu0
      %v9224 = vadd.f32 0.0, %v9223
      %v9225 = vpop.f32.mrb[0].mxu0
      %9226 = vmatprep.mubr.bf16.mxu0 0
      %9227 = vmatmul.mubr.bf16.gmra.mrb[0].mxu0 %v9127
      %v9228 = vpop.f32.mrb[0].mxu0
      %v9229 = vadd.f32 0.0, %v9228
      %v9230 = vpop.f32.mrb[0].mxu0
      %v9231 = vpop.f32.mrb[0].mxu0
      %v9232 = vadd.f32 0.0, %v9231
      %v9233 = vpop.f32.mrb[0].mxu0
      %9234 = vmatprep.mubr.bf16.mxu0 0
      %9235 = vmatmul.mubr.bf16.gmra.mrb[0].mxu0 %v9130
      %v9236 = vpop.f32.mrb[0].mxu0
      %v9237 = vadd.f32 0.0, %v9236
      %v9238 = vpop.f32.mrb[0].mxu0
      %v9239 = vpop.f32.mrb[0].mxu0
      %v9240 = vadd.f32 0.0, %v9239
      %v9241 = vpop.f32.mrb[0].mxu0
      %9242 = vmatprep.mubr.bf16.mxu0 0
      %9243 = vmatmul.mubr.bf16.gmra.mrb[0].mxu0 %v9133
      %v9244 = vpop.f32.mrb[0].mxu0
      %v9245 = vadd.f32 0.0, %v9244
      %v9246 = vpop.f32.mrb[0].mxu0
      %v9247 = vpop.f32.mrb[0].mxu0
      %v9248 = vadd.f32 0.0, %v9247
      %v9249 = vpop.f32.mrb[0].mxu0
      %9250 = vmatprep.mubr.bf16.mxu0 0
      %9251 = vmatmul.mubr.bf16.gmra.mrb[0].mxu0 %v9136
      %v9252 = vpop.f32.mrb[0].mxu0
      %v9253 = vadd.f32 0.0, %v9252
      %v9254 = vpop.f32.mrb[0].mxu0
      %v9255 = vpop.f32.mrb[0].mxu0
      %v9256 = vadd.f32 0.0, %v9255
      %v9257 = vpop.f32.mrb[0].mxu0
      %9258 = vdwg.mxu0
      %v9259 = vadd.f32 %v8740, %v9173
      %v9260 = vadd.f32 %v8741, %v9176
      %v9261 = vadd.f32 %v8742, %v9181
      %v9262 = vadd.f32 %v8743, %v9184
      %v9263 = vadd.f32 %v8744, %v9189
      %v9264 = vadd.f32 %v8745, %v9192
      %v9265 = vadd.f32 %v8746, %v9197
      %v9266 = vadd.f32 %v8747, %v9200
      %v9267 = vadd.f32 %v8748, %v9205
      %v9268 = vadd.f32 %v8749, %v9208
      %v9269 = vadd.f32 %v8750, %v9213
      %v9270 = vadd.f32 %v8751, %v9216
      %v9271 = vadd.f32 %v8752, %v9221
      %v9272 = vadd.f32 %v8753, %v9224
      %v9273 = vadd.f32 %v8754, %v9229
      %v9274 = vadd.f32 %v8755, %v9232
      %v9275 = vadd.f32 %v8756, %v9237
      %v9276 = vadd.f32 %v8757, %v9240
      %v9277 = vadd.f32 %v8758, %v9245
      %v9278 = vadd.f32 %v8759, %v9248
      %v9279 = vadd.f32 %v8760, %v9253
      %v9280 = vadd.f32 %v8761, %v9256
      %s9281 = scalar_lea.vmem %s3, 80
      %v9282 = vld [vmem:[%s9281] sm:$0xf]
      %v9283 = vld [vmem:[%s9281 + $0x4] sm:$0xf]
      %v9284 = vld [vmem:[%s9281 + $0x8] sm:$0xf]
      %v9285 = vld [vmem:[%s9281 + $0xc] sm:$0xf]
      %v9286 = vpack.i.b16 %v5732, %v5729
      %v9287 = vpack.i.b16 %v5744, %v5743
      %v9288 = vpack.i.b16 %v5762, %v5759
      %v9289 = vpack.i.b16 %v5774, %v5773
      %v9290 = vpack.i.b16 %v5792, %v5789
      %v9291 = vpack.i.b16 %v5804, %v5803
      %v9292 = vpack.i.b16 %v5822, %v5819
      %v9293 = vpack.i.b16 %v5834, %v5833
      %v9294 = vpack.i.b16 %v5852, %v5849
      %v9295 = vpack.i.b16 %v5864, %v5863
      %v9296 = vpack.i.b16 %v5882, %v5879
      %v9297 = vpack.i.b16 %v5894, %v5893
      %v9298 = vpack.i.b16 %v5908, %v5907
      %v9300 = vcombine.low %v5941, %v5942
      %v9301 = vcombine.low %v5943, %v5944
      %v9302 = vcombine.low %v5945, %v5946
      %v9303 = vcombine.low %v9286, %v5948
      %v9305 = vunpack.c.l.s4 1966171168
      %v9306 = vunpack.c.0.s8 %v9305
      %v9307 = vlaneseq
      %v9308 = vshrl.u32 %v9307, 7
      %v9309 = vsub.s32 %v9306, %v9308
      %v9310 = vrot.slane %v9300, %v9309
      %v9312 = vunpack.c.l.s4 1966171168
      %v9313 = vunpack.c.0.s8 %v9312
      %v9314 = vlaneseq
      %v9315 = vshrl.u32 %v9314, 7
      %v9316 = vsub.s32 %v9313, %v9315
      %v9317 = vrot.slane %v9301, %v9316
      %v9319 = vunpack.c.l.s4 1966171168
      %v9320 = vunpack.c.0.s8 %v9319
      %v9321 = vlaneseq
      %v9322 = vshrl.u32 %v9321, 7
      %v9323 = vsub.s32 %v9320, %v9322
      %v9324 = vrot.slane %v9302, %v9323
      %v9326 = vunpack.c.l.s4 1966171168
      %v9327 = vunpack.c.0.s8 %v9326
      %v9328 = vlaneseq
      %v9329 = vshrl.u32 %v9328, 7
      %v9330 = vsub.s32 %v9327, %v9329
      %v9331 = vrot.slane %v9303, %v9330
      %v9332 = vcombine.low %v9310, %v9317
      %v9333 = vcombine.low %v9324, %v9331
      %v9335 = vunpack.c.l.s4 1966171168
      %v9336 = vunpack.c.0.s8 %v9335
      %v9337 = vlaneseq
      %v9338 = vshrl.u32 %v9337, 7
      %v9339 = vsub.s32 %v9336, %v9338
      %v9340 = vrot.slane %v9332, %v9339
      %v9342 = vunpack.c.l.s4 1966171168
      %v9343 = vunpack.c.0.s8 %v9342
      %v9344 = vlaneseq
      %v9345 = vshrl.u32 %v9344, 7
      %v9346 = vsub.s32 %v9343, %v9345
      %v9347 = vrot.slane %v9333, %v9346
      %v9348 = vcombine.low %v9340, %v9347
      %v9349 = vcombine.low %v5949, %v5950
      %v9350 = vcombine.low %v5951, %v5952
      %v9351 = vcombine.low %v9287, %v5954
      %v9352 = vcombine.low %v5955, %v5956
      %v9354 = vunpack.c.l.s4 1966171168
      %v9355 = vunpack.c.0.s8 %v9354
      %v9356 = vlaneseq
      %v9357 = vshrl.u32 %v9356, 7
      %v9358 = vsub.s32 %v9355, %v9357
      %v9359 = vrot.slane %v9349, %v9358
      %v9361 = vunpack.c.l.s4 1966171168
      %v9362 = vunpack.c.0.s8 %v9361
      %v9363 = vlaneseq
      %v9364 = vshrl.u32 %v9363, 7
      %v9365 = vsub.s32 %v9362, %v9364
      %v9366 = vrot.slane %v9350, %v9365
      %v9368 = vunpack.c.l.s4 1966171168
      %v9369 = vunpack.c.0.s8 %v9368
      %v9370 = vlaneseq
      %v9371 = vshrl.u32 %v9370, 7
      %v9372 = vsub.s32 %v9369, %v9371
      %v9373 = vrot.slane %v9351, %v9372
      %v9375 = vunpack.c.l.s4 1966171168
      %v9376 = vunpack.c.0.s8 %v9375
      %v9377 = vlaneseq
      %v9378 = vshrl.u32 %v9377, 7
      %v9379 = vsub.s32 %v9376, %v9378
      %v9380 = vrot.slane %v9352, %v9379
      %v9381 = vcombine.low %v9359, %v9366
      %v9382 = vcombine.low %v9373, %v9380
      %v9384 = vunpack.c.l.s4 1966171168
      %v9385 = vunpack.c.0.s8 %v9384
      %v9386 = vlaneseq
      %v9387 = vshrl.u32 %v9386, 7
      %v9388 = vsub.s32 %v9385, %v9387
      %v9389 = vrot.slane %v9381, %v9388
      %v9391 = vunpack.c.l.s4 1966171168
      %v9392 = vunpack.c.0.s8 %v9391
      %v9393 = vlaneseq
      %v9394 = vshrl.u32 %v9393, 7
      %v9395 = vsub.s32 %v9392, %v9394
      %v9396 = vrot.slane %v9382, %v9395
      %v9397 = vcombine.low %v9389, %v9396
      %v9398 = vcombine.low %v5957, %v5958
      %v9399 = vcombine.low %v5959, %v9288
      %v9400 = vcombine.low %v5961, %v5962
      %v9401 = vcombine.low %v5963, %v5964
      %v9403 = vunpack.c.l.s4 1966171168
      %v9404 = vunpack.c.0.s8 %v9403
      %v9405 = vlaneseq
      %v9406 = vshrl.u32 %v9405, 7
      %v9407 = vsub.s32 %v9404, %v9406
      %v9408 = vrot.slane %v9398, %v9407
      %v9410 = vunpack.c.l.s4 1966171168
      %v9411 = vunpack.c.0.s8 %v9410
      %v9412 = vlaneseq
      %v9413 = vshrl.u32 %v9412, 7
      %v9414 = vsub.s32 %v9411, %v9413
      %v9415 = vrot.slane %v9399, %v9414
      %v9417 = vunpack.c.l.s4 1966171168
      %v9418 = vunpack.c.0.s8 %v9417
      %v9419 = vlaneseq
      %v9420 = vshrl.u32 %v9419, 7
      %v9421 = vsub.s32 %v9418, %v9420
      %v9422 = vrot.slane %v9400, %v9421
      %v9424 = vunpack.c.l.s4 1966171168
      %v9425 = vunpack.c.0.s8 %v9424
      %v9426 = vlaneseq
      %v9427 = vshrl.u32 %v9426, 7
      %v9428 = vsub.s32 %v9425, %v9427
      %v9429 = vrot.slane %v9401, %v9428
      %v9430 = vcombine.low %v9408, %v9415
      %v9431 = vcombine.low %v9422, %v9429
      %v9433 = vunpack.c.l.s4 1966171168
      %v9434 = vunpack.c.0.s8 %v9433
      %v9435 = vlaneseq
      %v9436 = vshrl.u32 %v9435, 7
      %v9437 = vsub.s32 %v9434, %v9436
      %v9438 = vrot.slane %v9430, %v9437
      %v9440 = vunpack.c.l.s4 1966171168
      %v9441 = vunpack.c.0.s8 %v9440
      %v9442 = vlaneseq
      %v9443 = vshrl.u32 %v9442, 7
      %v9444 = vsub.s32 %v9441, %v9443
      %v9445 = vrot.slane %v9431, %v9444
      %v9446 = vcombine.low %v9438, %v9445
      %v9447 = vcombine.low %v5965, %v9289
      %v9448 = vcombine.low %v5967, %v5968
      %v9449 = vcombine.low %v5969, %v5970
      %v9450 = vcombine.low %v5971, %v5972
      %v9452 = vunpack.c.l.s4 1966171168
      %v9453 = vunpack.c.0.s8 %v9452
      %v9454 = vlaneseq
      %v9455 = vshrl.u32 %v9454, 7
      %v9456 = vsub.s32 %v9453, %v9455
      %v9457 = vrot.slane %v9447, %v9456
      %v9459 = vunpack.c.l.s4 1966171168
      %v9460 = vunpack.c.0.s8 %v9459
      %v9461 = vlaneseq
      %v9462 = vshrl.u32 %v9461, 7
      %v9463 = vsub.s32 %v9460, %v9462
      %v9464 = vrot.slane %v9448, %v9463
      %v9466 = vunpack.c.l.s4 1966171168
      %v9467 = vunpack.c.0.s8 %v9466
      %v9468 = vlaneseq
      %v9469 = vshrl.u32 %v9468, 7
      %v9470 = vsub.s32 %v9467, %v9469
      %v9471 = vrot.slane %v9449, %v9470
      %v9473 = vunpack.c.l.s4 1966171168
      %v9474 = vunpack.c.0.s8 %v9473
      %v9475 = vlaneseq
      %v9476 = vshrl.u32 %v9475, 7
      %v9477 = vsub.s32 %v9474, %v9476
      %v9478 = vrot.slane %v9450, %v9477
      %v9479 = vcombine.low %v9457, %v9464
      %v9480 = vcombine.low %v9471, %v9478
      %v9482 = vunpack.c.l.s4 1966171168
      %v9483 = vunpack.c.0.s8 %v9482
      %v9484 = vlaneseq
      %v9485 = vshrl.u32 %v9484, 7
      %v9486 = vsub.s32 %v9483, %v9485
      %v9487 = vrot.slane %v9479, %v9486
      %v9489 = vunpack.c.l.s4 1966171168
      %v9490 = vunpack.c.0.s8 %v9489
      %v9491 = vlaneseq
      %v9492 = vshrl.u32 %v9491, 7
      %v9493 = vsub.s32 %v9490, %v9492
      %v9494 = vrot.slane %v9480, %v9493
      %v9495 = vcombine.low %v9487, %v9494
      %v9496 = vcombine.low %v9290, %v5974
      %v9497 = vcombine.low %v5975, %v5976
      %v9498 = vcombine.low %v5977, %v5978
      %v9499 = vcombine.low %v9291, %v5980
      %v9501 = vunpack.c.l.s4 1966171168
      %v9502 = vunpack.c.0.s8 %v9501
      %v9503 = vlaneseq
      %v9504 = vshrl.u32 %v9503, 7
      %v9505 = vsub.s32 %v9502, %v9504
      %v9506 = vrot.slane %v9496, %v9505
      %v9508 = vunpack.c.l.s4 1966171168
      %v9509 = vunpack.c.0.s8 %v9508
      %v9510 = vlaneseq
      %v9511 = vshrl.u32 %v9510, 7
      %v9512 = vsub.s32 %v9509, %v9511
      %v9513 = vrot.slane %v9497, %v9512
      %v9515 = vunpack.c.l.s4 1966171168
      %v9516 = vunpack.c.0.s8 %v9515
      %v9517 = vlaneseq
      %v9518 = vshrl.u32 %v9517, 7
      %v9519 = vsub.s32 %v9516, %v9518
      %v9520 = vrot.slane %v9498, %v9519
      %v9522 = vunpack.c.l.s4 1966171168
      %v9523 = vunpack.c.0.s8 %v9522
      %v9524 = vlaneseq
      %v9525 = vshrl.u32 %v9524, 7
      %v9526 = vsub.s32 %v9523, %v9525
      %v9527 = vrot.slane %v9499, %v9526
      %v9528 = vcombine.low %v9506, %v9513
      %v9529 = vcombine.low %v9520, %v9527
      %v9531 = vunpack.c.l.s4 1966171168
      %v9532 = vunpack.c.0.s8 %v9531
      %v9533 = vlaneseq
      %v9534 = vshrl.u32 %v9533, 7
      %v9535 = vsub.s32 %v9532, %v9534
      %v9536 = vrot.slane %v9528, %v9535
      %v9538 = vunpack.c.l.s4 1966171168
      %v9539 = vunpack.c.0.s8 %v9538
      %v9540 = vlaneseq
      %v9541 = vshrl.u32 %v9540, 7
      %v9542 = vsub.s32 %v9539, %v9541
      %v9543 = vrot.slane %v9529, %v9542
      %v9544 = vcombine.low %v9536, %v9543
      %v9545 = vcombine.low %v5981, %v5982
      %v9546 = vcombine.low %v5983, %v5984
      %v9547 = vcombine.low %v5985, %v9292
      %v9548 = vcombine.low %v5987, %v5988
      %v9550 = vunpack.c.l.s4 1966171168
      %v9551 = vunpack.c.0.s8 %v9550
      %v9552 = vlaneseq
      %v9553 = vshrl.u32 %v9552, 7
      %v9554 = vsub.s32 %v9551, %v9553
      %v9555 = vrot.slane %v9545, %v9554
      %v9557 = vunpack.c.l.s4 1966171168
      %v9558 = vunpack.c.0.s8 %v9557
      %v9559 = vlaneseq
      %v9560 = vshrl.u32 %v9559, 7
      %v9561 = vsub.s32 %v9558, %v9560
      %v9562 = vrot.slane %v9546, %v9561
      %v9564 = vunpack.c.l.s4 1966171168
      %v9565 = vunpack.c.0.s8 %v9564
      %v9566 = vlaneseq
      %v9567 = vshrl.u32 %v9566, 7
      %v9568 = vsub.s32 %v9565, %v9567
      %v9569 = vrot.slane %v9547, %v9568
      %v9571 = vunpack.c.l.s4 1966171168
      %v9572 = vunpack.c.0.s8 %v9571
      %v9573 = vlaneseq
      %v9574 = vshrl.u32 %v9573, 7
      %v9575 = vsub.s32 %v9572, %v9574
      %v9576 = vrot.slane %v9548, %v9575
      %v9577 = vcombine.low %v9555, %v9562
      %v9578 = vcombine.low %v9569, %v9576
      %v9580 = vunpack.c.l.s4 1966171168
      %v9581 = vunpack.c.0.s8 %v9580
      %v9582 = vlaneseq
      %v9583 = vshrl.u32 %v9582, 7
      %v9584 = vsub.s32 %v9581, %v9583
      %v9585 = vrot.slane %v9577, %v9584
      %v9587 = vunpack.c.l.s4 1966171168
      %v9588 = vunpack.c.0.s8 %v9587
      %v9589 = vlaneseq
      %v9590 = vshrl.u32 %v9589, 7
      %v9591 = vsub.s32 %v9588, %v9590
      %v9592 = vrot.slane %v9578, %v9591
      %v9593 = vcombine.low %v9585, %v9592
      %v9594 = vcombine.low %v5989, %v5990
      %v9595 = vcombine.low %v5991, %v9293
      %v9596 = vcombine.low %v5993, %v5994
      %v9597 = vcombine.low %v5995, %v5996
      %v9599 = vunpack.c.l.s4 1966171168
      %v9600 = vunpack.c.0.s8 %v9599
      %v9601 = vlaneseq
      %v9602 = vshrl.u32 %v9601, 7
      %v9603 = vsub.s32 %v9600, %v9602
      %v9604 = vrot.slane %v9594, %v9603
      %v9606 = vunpack.c.l.s4 1966171168
      %v9607 = vunpack.c.0.s8 %v9606
      %v9608 = vlaneseq
      %v9609 = vshrl.u32 %v9608, 7
      %v9610 = vsub.s32 %v9607, %v9609
      %v9611 = vrot.slane %v9595, %v9610
      %v9613 = vunpack.c.l.s4 1966171168
      %v9614 = vunpack.c.0.s8 %v9613
      %v9615 = vlaneseq
      %v9616 = vshrl.u32 %v9615, 7
      %v9617 = vsub.s32 %v9614, %v9616
      %v9618 = vrot.slane %v9596, %v9617
      %v9620 = vunpack.c.l.s4 1966171168
      %v9621 = vunpack.c.0.s8 %v9620
      %v9622 = vlaneseq
      %v9623 = vshrl.u32 %v9622, 7
      %v9624 = vsub.s32 %v9621, %v9623
      %v9625 = vrot.slane %v9597, %v9624
      %v9626 = vcombine.low %v9604, %v9611
      %v9627 = vcombine.low %v9618, %v9625
      %v9629 = vunpack.c.l.s4 1966171168
      %v9630 = vunpack.c.0.s8 %v9629
      %v9631 = vlaneseq
      %v9632 = vshrl.u32 %v9631, 7
      %v9633 = vsub.s32 %v9630, %v9632
      %v9634 = vrot.slane %v9626, %v9633
      %v9636 = vunpack.c.l.s4 1966171168
      %v9637 = vunpack.c.0.s8 %v9636
      %v9638 = vlaneseq
      %v9639 = vshrl.u32 %v9638, 7
      %v9640 = vsub.s32 %v9637, %v9639
      %v9641 = vrot.slane %v9627, %v9640
      %v9642 = vcombine.low %v9634, %v9641
      %v9643 = vcombine.low %v5997, %v5998
      %v9644 = vcombine.low %v9294, %v6000
      %v9645 = vcombine.low %v6001, %v6002
      %v9646 = vcombine.low %v6003, %v6004
      %v9648 = vunpack.c.l.s4 1966171168
      %v9649 = vunpack.c.0.s8 %v9648
      %v9650 = vlaneseq
      %v9651 = vshrl.u32 %v9650, 7
      %v9652 = vsub.s32 %v9649, %v9651
      %v9653 = vrot.slane %v9643, %v9652
      %v9655 = vunpack.c.l.s4 1966171168
      %v9656 = vunpack.c.0.s8 %v9655
      %v9657 = vlaneseq
      %v9658 = vshrl.u32 %v9657, 7
      %v9659 = vsub.s32 %v9656, %v9658
      %v9660 = vrot.slane %v9644, %v9659
      %v9662 = vunpack.c.l.s4 1966171168
      %v9663 = vunpack.c.0.s8 %v9662
      %v9664 = vlaneseq
      %v9665 = vshrl.u32 %v9664, 7
      %v9666 = vsub.s32 %v9663, %v9665
      %v9667 = vrot.slane %v9645, %v9666
      %v9669 = vunpack.c.l.s4 1966171168
      %v9670 = vunpack.c.0.s8 %v9669
      %v9671 = vlaneseq
      %v9672 = vshrl.u32 %v9671, 7
      %v9673 = vsub.s32 %v9670, %v9672
      %v9674 = vrot.slane %v9646, %v9673
      %v9675 = vcombine.low %v9653, %v9660
      %v9676 = vcombine.low %v9667, %v9674
      %v9678 = vunpack.c.l.s4 1966171168
      %v9679 = vunpack.c.0.s8 %v9678
      %v9680 = vlaneseq
      %v9681 = vshrl.u32 %v9680, 7
      %v9682 = vsub.s32 %v9679, %v9681
      %v9683 = vrot.slane %v9675, %v9682
      %v9685 = vunpack.c.l.s4 1966171168
      %v9686 = vunpack.c.0.s8 %v9685
      %v9687 = vlaneseq
      %v9688 = vshrl.u32 %v9687, 7
      %v9689 = vsub.s32 %v9686, %v9688
      %v9690 = vrot.slane %v9676, %v9689
      %v9691 = vcombine.low %v9683, %v9690
      %v9692 = vcombine.low %v9295, %v6006
      %v9693 = vcombine.low %v6007, %v6008
      %v9694 = vcombine.low %v6009, %v6010
      %v9695 = vcombine.low %v6011, %v9296
      %v9697 = vunpack.c.l.s4 1966171168
      %v9698 = vunpack.c.0.s8 %v9697
      %v9699 = vlaneseq
      %v9700 = vshrl.u32 %v9699, 7
      %v9701 = vsub.s32 %v9698, %v9700
      %v9702 = vrot.slane %v9692, %v9701
      %v9704 = vunpack.c.l.s4 1966171168
      %v9705 = vunpack.c.0.s8 %v9704
      %v9706 = vlaneseq
      %v9707 = vshrl.u32 %v9706, 7
      %v9708 = vsub.s32 %v9705, %v9707
      %v9709 = vrot.slane %v9693, %v9708
      %v9711 = vunpack.c.l.s4 1966171168
      %v9712 = vunpack.c.0.s8 %v9711
      %v9713 = vlaneseq
      %v9714 = vshrl.u32 %v9713, 7
      %v9715 = vsub.s32 %v9712, %v9714
      %v9716 = vrot.slane %v9694, %v9715
      %v9718 = vunpack.c.l.s4 1966171168
      %v9719 = vunpack.c.0.s8 %v9718
      %v9720 = vlaneseq
      %v9721 = vshrl.u32 %v9720, 7
      %v9722 = vsub.s32 %v9719, %v9721
      %v9723 = vrot.slane %v9695, %v9722
      %v9724 = vcombine.low %v9702, %v9709
      %v9725 = vcombine.low %v9716, %v9723
      %v9727 = vunpack.c.l.s4 1966171168
      %v9728 = vunpack.c.0.s8 %v9727
      %v9729 = vlaneseq
      %v9730 = vshrl.u32 %v9729, 7
      %v9731 = vsub.s32 %v9728, %v9730
      %v9732 = vrot.slane %v9724, %v9731
      %v9734 = vunpack.c.l.s4 1966171168
      %v9735 = vunpack.c.0.s8 %v9734
      %v9736 = vlaneseq
      %v9737 = vshrl.u32 %v9736, 7
      %v9738 = vsub.s32 %v9735, %v9737
      %v9739 = vrot.slane %v9725, %v9738
      %v9740 = vcombine.low %v9732, %v9739
      %v9741 = vcombine.low %v6013, %v6014
      %v9742 = vcombine.low %v6015, %v6016
      %v9743 = vcombine.low %v6017, %v9297
      %v9744 = vcombine.low %v8255, %v8256
      %v9746 = vunpack.c.l.s4 1966171168
      %v9747 = vunpack.c.0.s8 %v9746
      %v9748 = vlaneseq
      %v9749 = vshrl.u32 %v9748, 7
      %v9750 = vsub.s32 %v9747, %v9749
      %v9751 = vrot.slane %v9741, %v9750
      %v9753 = vunpack.c.l.s4 1966171168
      %v9754 = vunpack.c.0.s8 %v9753
      %v9755 = vlaneseq
      %v9756 = vshrl.u32 %v9755, 7
      %v9757 = vsub.s32 %v9754, %v9756
      %v9758 = vrot.slane %v9742, %v9757
      %v9760 = vunpack.c.l.s4 1966171168
      %v9761 = vunpack.c.0.s8 %v9760
      %v9762 = vlaneseq
      %v9763 = vshrl.u32 %v9762, 7
      %v9764 = vsub.s32 %v9761, %v9763
      %v9765 = vrot.slane %v9743, %v9764
      %v9767 = vunpack.c.l.s4 1966171168
      %v9768 = vunpack.c.0.s8 %v9767
      %v9769 = vlaneseq
      %v9770 = vshrl.u32 %v9769, 7
      %v9771 = vsub.s32 %v9768, %v9770
      %v9772 = vrot.slane %v9744, %v9771
      %v9773 = vcombine.low %v9751, %v9758
      %v9774 = vcombine.low %v9765, %v9772
      %v9776 = vunpack.c.l.s4 1966171168
      %v9777 = vunpack.c.0.s8 %v9776
      %v9778 = vlaneseq
      %v9779 = vshrl.u32 %v9778, 7
      %v9780 = vsub.s32 %v9777, %v9779
      %v9781 = vrot.slane %v9773, %v9780
      %v9783 = vunpack.c.l.s4 1966171168
      %v9784 = vunpack.c.0.s8 %v9783
      %v9785 = vlaneseq
      %v9786 = vshrl.u32 %v9785, 7
      %v9787 = vsub.s32 %v9784, %v9786
      %v9788 = vrot.slane %v9774, %v9787
      %v9789 = vcombine.low %v9781, %v9788
      %v9790 = vcombine.low %v8257, %v8258
      %v9791 = vcombine.low %v8259, %v9298
      %v9793 = vunpack.c.l.s4 1966171168
      %v9794 = vunpack.c.0.s8 %v9793
      %v9795 = vlaneseq
      %v9796 = vshrl.u32 %v9795, 7
      %v9797 = vsub.s32 %v9794, %v9796
      %v9798 = vrot.slane %v9790, %v9797
      %v9800 = vunpack.c.l.s4 1966171168
      %v9801 = vunpack.c.0.s8 %v9800
      %v9802 = vlaneseq
      %v9803 = vshrl.u32 %v9802, 7
      %v9804 = vsub.s32 %v9801, %v9803
      %v9805 = vrot.slane %v9791, %v9804
      %v9807 = vunpack.c.l.s4 1966171168
      %v9808 = vunpack.c.0.s8 %v9807
      %v9809 = vlaneseq
      %v9810 = vshrl.u32 %v9809, 7
      %v9811 = vsub.s32 %v9808, %v9810
      %v9812 = vrot.slane %v5909, %v9811
      %v9813 = vcombine.low %v9798, %v9805
      %v9815 = vunpack.c.l.s4 1966171168
      %v9816 = vunpack.c.0.s8 %v9815
      %v9817 = vlaneseq
      %v9818 = vshrl.u32 %v9817, 7
      %v9819 = vsub.s32 %v9816, %v9818
      %v9820 = vrot.slane %v9813, %v9819
      %v9822 = vunpack.c.l.s4 1966171168
      %v9823 = vunpack.c.0.s8 %v9822
      %v9824 = vlaneseq
      %v9825 = vshrl.u32 %v9824, 7
      %v9826 = vsub.s32 %v9823, %v9825
      %v9827 = vrot.slane %v9812, %v9826
      %v9828 = vcombine.low %v9820, %v9827
      %v9833 = vunpack.c.l.b16 %v9282
      %v9834 = vunpack.c.l.b16 %v9283
      %v9835 = vunpack.c.l.b16 %v9284
      %v9836 = vunpack.c.l.b16 %v9285
      %v9837 = vpack.c.b16 %v9834, %v9833
      %v9838 = vpack.c.b16 %v9836, %v9835
      %v9842 = vsel %vm6560, %v9348, 0
      %v9845 = vsel %vm6560, %v9397, 0
      %v9848 = vsel %vm6560, %v9446, 0
      %v9851 = vsel %vm6560, %v9495, 0
      %v9854 = vsel %vm6560, %v9544, 0
      %v9857 = vsel %vm6560, %v9593, 0
      %v9860 = vsel %vm6560, %v9642, 0
      %v9863 = vsel %vm6560, %v9691, 0
      %v9866 = vsel %vm6560, %v9740, 0
      %v9869 = vsel %vm6560, %v9789, 0
      %v9872 = vsel %vm6560, %v9828, 0
      %9874 = vmatprep.subr.bf16.mxu0 0
      %9875 = vmatpush1.bf16.msra.mxu0 %v9837
      %9876 = vmatprep.subr.bf16.mxu0 0
      %9877 = vmatpush1.bf16.msra.mxu0 %v9838
      %9878 = vmatprep.subr.bf16.mxu0 0
      %9879 = vmatpush1.bf16.msra.mxu0 0
      %9880 = vmatprep.subr.bf16.mxu0 0
      %9881 = vmatpush1.bf16.msra.mxu0 0
      %9882 = vmatprep.subr.bf16.mxu0 0
      %9883 = vmatpush1.bf16.msra.mxu0 0
      %9884 = vmatprep.subr.bf16.mxu0 0
      %9885 = vmatpush1.bf16.msra.mxu0 0
      %9886 = vmatprep.subr.bf16.mxu0 0
      %9887 = vmatpush1.bf16.msra.mxu0 0
      %9888 = vmatprep.subr.bf16.mxu0 0
      %9889 = vmatpush1.bf16.msra.mxu0 0
      %9890 = vmatprep.subr.bf16.mxu0 0
      %9891 = vmatpush1.bf16.msra.mxu0 0
      %9892 = vmatprep.subr.bf16.mxu0 0
      %9893 = vmatpush1.bf16.msra.mxu0 0
      %9894 = vmatprep.subr.bf16.mxu0 0
      %9895 = vmatpush1.bf16.msra.mxu0 0
      %9896 = vmatprep.subr.bf16.mxu0 0
      %9897 = vmatpush1.bf16.msra.mxu0 0
      %9898 = vmatprep.subr.bf16.mxu0 0
      %9899 = vmatpush1.bf16.msra.mxu0 0
      %9900 = vmatprep.subr.bf16.mxu0 0
      %9901 = vmatpush1.bf16.msra.mxu0 0
      %9902 = vmatprep.subr.bf16.mxu0 0
      %9903 = vmatpush1.bf16.msra.mxu0 0
      %9904 = vmatprep.subr.bf16.mxu0 0
      %9905 = vmatpush1.bf16.msra.mxu0 0
      %9906 = vmatprep.mubr.bf16.mxu0 0
      %9907 = vmatmul.mubr.bf16.gmra.mrb[0].mxu0 %v9842
      %v9908 = vpop.f32.mrb[0].mxu0
      %v9909 = vadd.f32 0.0, %v9908
      %v9910 = vpop.f32.mrb[0].mxu0
      %v9911 = vpop.f32.mrb[0].mxu0
      %v9912 = vadd.f32 0.0, %v9911
      %v9913 = vpop.f32.mrb[0].mxu0
      %9914 = vmatprep.mubr.bf16.mxu0 0
      %9915 = vmatmul.mubr.bf16.gmra.mrb[0].mxu0 %v9845
      %v9916 = vpop.f32.mrb[0].mxu0
      %v9917 = vadd.f32 0.0, %v9916
      %v9918 = vpop.f32.mrb[0].mxu0
      %v9919 = vpop.f32.mrb[0].mxu0
      %v9920 = vadd.f32 0.0, %v9919
      %v9921 = vpop.f32.mrb[0].mxu0
      %9922 = vmatprep.mubr.bf16.mxu0 0
      %9923 = vmatmul.mubr.bf16.gmra.mrb[0].mxu0 %v9848
      %v9924 = vpop.f32.mrb[0].mxu0
      %v9925 = vadd.f32 0.0, %v9924
      %v9926 = vpop.f32.mrb[0].mxu0
      %v9927 = vpop.f32.mrb[0].mxu0
      %v9928 = vadd.f32 0.0, %v9927
      %v9929 = vpop.f32.mrb[0].mxu0
      %9930 = vmatprep.mubr.bf16.mxu0 0
      %9931 = vmatmul.mubr.bf16.gmra.mrb[0].mxu0 %v9851
      %v9932 = vpop.f32.mrb[0].mxu0
      %v9933 = vadd.f32 0.0, %v9932
      %v9934 = vpop.f32.mrb[0].mxu0
      %v9935 = vpop.f32.mrb[0].mxu0
      %v9936 = vadd.f32 0.0, %v9935
      %v9937 = vpop.f32.mrb[0].mxu0
      %9938 = vmatprep.mubr.bf16.mxu0 0
      %9939 = vmatmul.mubr.bf16.gmra.mrb[0].mxu0 %v9854
      %v9940 = vpop.f32.mrb[0].mxu0
      %v9941 = vadd.f32 0.0, %v9940
      %v9942 = vpop.f32.mrb[0].mxu0
      %v9943 = vpop.f32.mrb[0].mxu0
      %v9944 = vadd.f32 0.0, %v9943
      %v9945 = vpop.f32.mrb[0].mxu0
      %9946 = vmatprep.mubr.bf16.mxu0 0
      %9947 = vmatmul.mubr.bf16.gmra.mrb[0].mxu0 %v9857
      %v9948 = vpop.f32.mrb[0].mxu0
      %v9949 = vadd.f32 0.0, %v9948
      %v9950 = vpop.f32.mrb[0].mxu0
      %v9951 = vpop.f32.mrb[0].mxu0
      %v9952 = vadd.f32 0.0, %v9951
      %v9953 = vpop.f32.mrb[0].mxu0
      %9954 = vmatprep.mubr.bf16.mxu0 0
      %9955 = vmatmul.mubr.bf16.gmra.mrb[0].mxu0 %v9860
      %v9956 = vpop.f32.mrb[0].mxu0
      %v9957 = vadd.f32 0.0, %v9956
      %v9958 = vpop.f32.mrb[0].mxu0
      %v9959 = vpop.f32.mrb[0].mxu0
      %v9960 = vadd.f32 0.0, %v9959
      %v9961 = vpop.f32.mrb[0].mxu0
      %9962 = vmatprep.mubr.bf16.mxu0 0
      %9963 = vmatmul.mubr.bf16.gmra.mrb[0].mxu0 %v9863
      %v9964 = vpop.f32.mrb[0].mxu0
      %v9965 = vadd.f32 0.0, %v9964
      %v9966 = vpop.f32.mrb[0].mxu0
      %v9967 = vpop.f32.mrb[0].mxu0
      %v9968 = vadd.f32 0.0, %v9967
      %v9969 = vpop.f32.mrb[0].mxu0
      %9970 = vmatprep.mubr.bf16.mxu0 0
      %9971 = vmatmul.mubr.bf16.gmra.mrb[0].mxu0 %v9866
      %v9972 = vpop.f32.mrb[0].mxu0
      %v9973 = vadd.f32 0.0, %v9972
      %v9974 = vpop.f32.mrb[0].mxu0
      %v9975 = vpop.f32.mrb[0].mxu0
      %v9976 = vadd.f32 0.0, %v9975
      %v9977 = vpop.f32.mrb[0].mxu0
      %9978 = vmatprep.mubr.bf16.mxu0 0
      %9979 = vmatmul.mubr.bf16.gmra.mrb[0].mxu0 %v9869
      %v9980 = vpop.f32.mrb[0].mxu0
      %v9981 = vadd.f32 0.0, %v9980
      %v9982 = vpop.f32.mrb[0].mxu0
      %v9983 = vpop.f32.mrb[0].mxu0
      %v9984 = vadd.f32 0.0, %v9983
      %v9985 = vpop.f32.mrb[0].mxu0
      %9986 = vmatprep.mubr.bf16.mxu0 0
      %9987 = vmatmul.mubr.bf16.gmra.mrb[0].mxu0 %v9872
      %v9988 = vpop.f32.mrb[0].mxu0
      %v9989 = vadd.f32 0.0, %v9988
      %v9990 = vpop.f32.mrb[0].mxu0
      %v9991 = vpop.f32.mrb[0].mxu0
      %v9992 = vadd.f32 0.0, %v9991
      %v9993 = vpop.f32.mrb[0].mxu0
      %9994 = vdwg.mxu0
      %v9995 = vadd.f32 %v9259, %v9909
      %v9996 = vadd.f32 %v9260, %v9912
      %v9997 = vadd.f32 %v9261, %v9917
      %v9998 = vadd.f32 %v9262, %v9920
      %v9999 = vadd.f32 %v9263, %v9925
      %v10000 = vadd.f32 %v9264, %v9928
      %v10001 = vadd.f32 %v9265, %v9933
      %v10002 = vadd.f32 %v9266, %v9936
      %v10003 = vadd.f32 %v9267, %v9941
      %v10004 = vadd.f32 %v9268, %v9944
      %v10005 = vadd.f32 %v9269, %v9949
      %v10006 = vadd.f32 %v9270, %v9952
      %v10007 = vadd.f32 %v9271, %v9957
      %v10008 = vadd.f32 %v9272, %v9960
      %v10009 = vadd.f32 %v9273, %v9965
      %v10010 = vadd.f32 %v9274, %v9968
      %v10011 = vadd.f32 %v9275, %v9973
      %v10012 = vadd.f32 %v9276, %v9976
      %v10013 = vadd.f32 %v9277, %v9981
      %v10014 = vadd.f32 %v9278, %v9984
      %v10015 = vadd.f32 %v9279, %v9989
      %v10016 = vadd.f32 %v9280, %v9992
      %s10017 = scalar_lea.vmem %s3, 96
      %v10018 = vld [vmem:[%s10017] sm:$0xf]
      %v10019 = vld [vmem:[%s10017 + $0x4] sm:$0xf]
      %v10020 = vld [vmem:[%s10017 + $0x8] sm:$0xf]
      %v10021 = vld [vmem:[%s10017 + $0xc] sm:$0xf]
      %v10022 = vpack.i.b16 %v5895, %v5892
      %v10023 = vpack.i.b16 %v5911, %v5910
      %v10024 = vpack.i.b16 %v5913, %v5912
      %v10025 = vpack.i.b16 %v5915, %v5914
      %v10026 = vpack.i.b16 %v5917, %v5916
      %v10027 = vpack.i.b16 %v5919, %v5918
      %v10028 = vpack.i.b16 %v5921, %v5920
      %v10030 = vcombine.low %v6728, %v6729
      %v10031 = vcombine.low %v6734, %v6735
      %v10033 = vunpack.c.l.s4 1966171168
      %v10034 = vunpack.c.0.s8 %v10033
      %v10035 = vlaneseq
      %v10036 = vshrl.u32 %v10035, 7
      %v10037 = vsub.s32 %v10034, %v10036
      %v10038 = vrot.slane %v10030, %v10037
      %v10040 = vunpack.c.l.s4 1966171168
      %v10041 = vunpack.c.0.s8 %v10040
      %v10042 = vlaneseq
      %v10043 = vshrl.u32 %v10042, 7
      %v10044 = vsub.s32 %v10041, %v10043
      %v10045 = vrot.slane %v10031, %v10044
      %v10046 = vcombine.low %v10038, %v7600
      %v10047 = vcombine.low %v7628, %v10045
      %v10049 = vunpack.c.l.s4 1966171168
      %v10050 = vunpack.c.0.s8 %v10049
      %v10051 = vlaneseq
      %v10052 = vshrl.u32 %v10051, 7
      %v10053 = vsub.s32 %v10050, %v10052
      %v10054 = vrot.slane %v10046, %v10053
      %v10056 = vunpack.c.l.s4 1966171168
      %v10057 = vunpack.c.0.s8 %v10056
      %v10058 = vlaneseq
      %v10059 = vshrl.u32 %v10058, 7
      %v10060 = vsub.s32 %v10057, %v10059
      %v10061 = vrot.slane %v10047, %v10060
      %v10062 = vcombine.low %v10054, %v10061
      %v10063 = vcombine.low %v6740, %v6741
      %v10065 = vunpack.c.l.s4 1966171168
      %v10066 = vunpack.c.0.s8 %v10065
      %v10067 = vlaneseq
      %v10068 = vshrl.u32 %v10067, 7
      %v10069 = vsub.s32 %v10066, %v10068
      %v10070 = vrot.slane %v10063, %v10069
      %v10071 = vcombine.low %v10070, %v7684
      %v10073 = vunpack.c.l.s4 1966171168
      %v10074 = vunpack.c.0.s8 %v10073
      %v10075 = vlaneseq
      %v10076 = vshrl.u32 %v10075, 7
      %v10077 = vsub.s32 %v10074, %v10076
      %v10078 = vrot.slane %v10071, %v10077
      %v10079 = vcombine.low %v7665, %v10078
      %v10080 = vcombine.low %v6746, %v6747
      %v10082 = vunpack.c.l.s4 1966171168
      %v10083 = vunpack.c.0.s8 %v10082
      %v10084 = vlaneseq
      %v10085 = vshrl.u32 %v10084, 7
      %v10086 = vsub.s32 %v10083, %v10085
      %v10087 = vrot.slane %v10080, %v10086
      %v10088 = vcombine.low %v7691, %v10087
      %v10089 = vcombine.low %v8870, %v7733
      %v10091 = vunpack.c.l.s4 1966171168
      %v10092 = vunpack.c.0.s8 %v10091
      %v10093 = vlaneseq
      %v10094 = vshrl.u32 %v10093, 7
      %v10095 = vsub.s32 %v10092, %v10094
      %v10096 = vrot.slane %v10088, %v10095
      %v10098 = vunpack.c.l.s4 1966171168
      %v10099 = vunpack.c.0.s8 %v10098
      %v10100 = vlaneseq
      %v10101 = vshrl.u32 %v10100, 7
      %v10102 = vsub.s32 %v10099, %v10101
      %v10103 = vrot.slane %v10089, %v10102
      %v10104 = vcombine.low %v10096, %v10103
      %v10105 = vcombine.low %v6754, %v6755
      %v10107 = vunpack.c.l.s4 1966171168
      %v10108 = vunpack.c.0.s8 %v10107
      %v10109 = vlaneseq
      %v10110 = vshrl.u32 %v10109, 7
      %v10111 = vsub.s32 %v10108, %v10110
      %v10112 = vrot.slane %v10105, %v10111
      %v10113 = vcombine.low %v7740, %v10112
      %v10115 = vunpack.c.l.s4 1966171168
      %v10116 = vunpack.c.0.s8 %v10115
      %v10117 = vlaneseq
      %v10118 = vshrl.u32 %v10117, 7
      %v10119 = vsub.s32 %v10116, %v10118
      %v10120 = vrot.slane %v10113, %v10119
      %v10121 = vcombine.low %v10120, %v7805
      %v10122 = vcombine.low %v6760, %v6761
      %v10123 = vcombine.low %v6766, %v6767
      %v10125 = vunpack.c.l.s4 1966171168
      %v10126 = vunpack.c.0.s8 %v10125
      %v10127 = vlaneseq
      %v10128 = vshrl.u32 %v10127, 7
      %v10129 = vsub.s32 %v10126, %v10128
      %v10130 = vrot.slane %v10122, %v10129
      %v10132 = vunpack.c.l.s4 1966171168
      %v10133 = vunpack.c.0.s8 %v10132
      %v10134 = vlaneseq
      %v10135 = vshrl.u32 %v10134, 7
      %v10136 = vsub.s32 %v10133, %v10135
      %v10137 = vrot.slane %v10123, %v10136
      %v10138 = vcombine.low %v10130, %v7796
      %v10139 = vcombine.low %v7824, %v10137
      %v10141 = vunpack.c.l.s4 1966171168
      %v10142 = vunpack.c.0.s8 %v10141
      %v10143 = vlaneseq
      %v10144 = vshrl.u32 %v10143, 7
      %v10145 = vsub.s32 %v10142, %v10144
      %v10146 = vrot.slane %v10138, %v10145
      %v10148 = vunpack.c.l.s4 1966171168
      %v10149 = vunpack.c.0.s8 %v10148
      %v10150 = vlaneseq
      %v10151 = vshrl.u32 %v10150, 7
      %v10152 = vsub.s32 %v10149, %v10151
      %v10153 = vrot.slane %v10139, %v10152
      %v10154 = vcombine.low %v10146, %v10153
      %v10155 = vcombine.low %v6772, %v6773
      %v10157 = vunpack.c.l.s4 1966171168
      %v10158 = vunpack.c.0.s8 %v10157
      %v10159 = vlaneseq
      %v10160 = vshrl.u32 %v10159, 7
      %v10161 = vsub.s32 %v10158, %v10160
      %v10162 = vrot.slane %v10155, %v10161
      %v10163 = vcombine.low %v10162, %v8953
      %v10165 = vunpack.c.l.s4 1966171168
      %v10166 = vunpack.c.0.s8 %v10165
      %v10167 = vlaneseq
      %v10168 = vshrl.u32 %v10167, 7
      %v10169 = vsub.s32 %v10166, %v10168
      %v10170 = vrot.slane %v10163, %v10169
      %v10171 = vcombine.low %v7861, %v10170
      %v10172 = vcombine.low %v6780, %v6781
      %v10174 = vunpack.c.l.s4 1966171168
      %v10175 = vunpack.c.0.s8 %v10174
      %v10176 = vlaneseq
      %v10177 = vshrl.u32 %v10176, 7
      %v10178 = vsub.s32 %v10175, %v10177
      %v10179 = vrot.slane %v10172, %v10178
      %v10180 = vcombine.low %v10179, %v7929
      %v10182 = vunpack.c.l.s4 1966171168
      %v10183 = vunpack.c.0.s8 %v10182
      %v10184 = vlaneseq
      %v10185 = vshrl.u32 %v10184, 7
      %v10186 = vsub.s32 %v10183, %v10185
      %v10187 = vrot.slane %v10180, %v10186
      %v10188 = vcombine.low %v7910, %v10187
      %v10189 = vcombine.low %v6786, %v6787
      %v10191 = vunpack.c.l.s4 1966171168
      %v10192 = vunpack.c.0.s8 %v10191
      %v10193 = vlaneseq
      %v10194 = vshrl.u32 %v10193, 7
      %v10195 = vsub.s32 %v10192, %v10194
      %v10196 = vrot.slane %v10189, %v10195
      %v10197 = vcombine.low %v7936, %v10196
      %v10199 = vunpack.c.l.s4 1966171168
      %v10200 = vunpack.c.0.s8 %v10199
      %v10201 = vlaneseq
      %v10202 = vshrl.u32 %v10201, 7
      %v10203 = vsub.s32 %v10200, %v10202
      %v10204 = vrot.slane %v10197, %v10203
      %v10205 = vcombine.low %v10204, %v8001
      %v10206 = vcombine.low %v6792, %v6793
      %v10207 = vcombine.low %v6798, %v10022
      %v10209 = vunpack.c.l.s4 1966171168
      %v10210 = vunpack.c.0.s8 %v10209
      %v10211 = vlaneseq
      %v10212 = vshrl.u32 %v10211, 7
      %v10213 = vsub.s32 %v10210, %v10212
      %v10214 = vrot.slane %v10206, %v10213
      %v10216 = vunpack.c.l.s4 1966171168
      %v10217 = vunpack.c.0.s8 %v10216
      %v10218 = vlaneseq
      %v10219 = vshrl.u32 %v10218, 7
      %v10220 = vsub.s32 %v10217, %v10219
      %v10221 = vrot.slane %v10207, %v10220
      %v10222 = vcombine.low %v10214, %v7992
      %v10223 = vcombine.low %v8018, %v10221
      %v10225 = vunpack.c.l.s4 1966171168
      %v10226 = vunpack.c.0.s8 %v10225
      %v10227 = vlaneseq
      %v10228 = vshrl.u32 %v10227, 7
      %v10229 = vsub.s32 %v10226, %v10228
      %v10230 = vrot.slane %v10222, %v10229
      %v10232 = vunpack.c.l.s4 1966171168
      %v10233 = vunpack.c.0.s8 %v10232
      %v10234 = vlaneseq
      %v10235 = vshrl.u32 %v10234, 7
      %v10236 = vsub.s32 %v10233, %v10235
      %v10237 = vrot.slane %v10223, %v10236
      %v10238 = vcombine.low %v10230, %v10237
      %v10239 = vcombine.low %v10023, %v10024
      %v10241 = vunpack.c.l.s4 1966171168
      %v10242 = vunpack.c.0.s8 %v10241
      %v10243 = vlaneseq
      %v10244 = vshrl.u32 %v10243, 7
      %v10245 = vsub.s32 %v10242, %v10244
      %v10246 = vrot.slane %v10239, %v10245
      %v10247 = vcombine.low %v9036, %v9062
      %v10248 = vcombine.low %v9069, %v10246
      %v10250 = vunpack.c.l.s4 1966171168
      %v10251 = vunpack.c.0.s8 %v10250
      %v10252 = vlaneseq
      %v10253 = vshrl.u32 %v10252, 7
      %v10254 = vsub.s32 %v10251, %v10253
      %v10255 = vrot.slane %v10247, %v10254
      %v10257 = vunpack.c.l.s4 1966171168
      %v10258 = vunpack.c.0.s8 %v10257
      %v10259 = vlaneseq
      %v10260 = vshrl.u32 %v10259, 7
      %v10261 = vsub.s32 %v10258, %v10260
      %v10262 = vrot.slane %v10248, %v10261
      %v10263 = vcombine.low %v10255, %v10262
      %v10264 = vcombine.low %v10025, %v10026
      %v10265 = vcombine.low %v10027, %v10028
      %v10267 = vunpack.c.l.s4 1966171168
      %v10268 = vunpack.c.0.s8 %v10267
      %v10269 = vlaneseq
      %v10270 = vshrl.u32 %v10269, 7
      %v10271 = vsub.s32 %v10268, %v10270
      %v10272 = vrot.slane %v10264, %v10271
      %v10274 = vunpack.c.l.s4 1966171168
      %v10275 = vunpack.c.0.s8 %v10274
      %v10276 = vlaneseq
      %v10277 = vshrl.u32 %v10276, 7
      %v10278 = vsub.s32 %v10275, %v10277
      %v10279 = vrot.slane %v10265, %v10278
      %v10281 = vunpack.c.l.s4 1966171168
      %v10282 = vunpack.c.0.s8 %v10281
      %v10283 = vlaneseq
      %v10284 = vshrl.u32 %v10283, 7
      %v10285 = vsub.s32 %v10282, %v10284
      %v10286 = vrot.slane %v5922, %v10285
      %v10287 = vcombine.low %v10272, %v10279
      %v10289 = vunpack.c.l.s4 1966171168
      %v10290 = vunpack.c.0.s8 %v10289
      %v10291 = vlaneseq
      %v10292 = vshrl.u32 %v10291, 7
      %v10293 = vsub.s32 %v10290, %v10292
      %v10294 = vrot.slane %v10287, %v10293
      %v10296 = vunpack.c.l.s4 1966171168
      %v10297 = vunpack.c.0.s8 %v10296
      %v10298 = vlaneseq
      %v10299 = vshrl.u32 %v10298, 7
      %v10300 = vsub.s32 %v10297, %v10299
      %v10301 = vrot.slane %v10286, %v10300
      %v10302 = vcombine.low %v10294, %v10301
      %v10307 = vunpack.c.l.b16 %v10018
      %v10308 = vunpack.c.l.b16 %v10019
      %v10309 = vunpack.c.l.b16 %v10020
      %v10310 = vunpack.c.l.b16 %v10021
      %v10311 = vpack.c.b16 %v10308, %v10307
      %v10312 = vpack.c.b16 %v10310, %v10309
      %v10316 = vsel %vm6560, %v10062, 0
      %v10319 = vsel %vm6560, %v10079, 0
      %v10322 = vsel %vm6560, %v10104, 0
      %v10325 = vsel %vm6560, %v10121, 0
      %v10328 = vsel %vm6560, %v10154, 0
      %v10331 = vsel %vm6560, %v10171, 0
      %v10334 = vsel %vm6560, %v10188, 0
      %v10337 = vsel %vm6560, %v10205, 0
      %v10340 = vsel %vm6560, %v10238, 0
      %v10343 = vsel %vm6560, %v10263, 0
      %v10346 = vsel %vm6560, %v10302, 0
      %10348 = vmatprep.subr.bf16.mxu0 0
      %10349 = vmatpush1.bf16.msra.mxu0 %v10311
      %10350 = vmatprep.subr.bf16.mxu0 0
      %10351 = vmatpush1.bf16.msra.mxu0 %v10312
      %10352 = vmatprep.subr.bf16.mxu0 0
      %10353 = vmatpush1.bf16.msra.mxu0 0
      %10354 = vmatprep.subr.bf16.mxu0 0
      %10355 = vmatpush1.bf16.msra.mxu0 0
      %10356 = vmatprep.subr.bf16.mxu0 0
      %10357 = vmatpush1.bf16.msra.mxu0 0
      %10358 = vmatprep.subr.bf16.mxu0 0
      %10359 = vmatpush1.bf16.msra.mxu0 0
      %10360 = vmatprep.subr.bf16.mxu0 0
      %10361 = vmatpush1.bf16.msra.mxu0 0
      %10362 = vmatprep.subr.bf16.mxu0 0
      %10363 = vmatpush1.bf16.msra.mxu0 0
      %10364 = vmatprep.subr.bf16.mxu0 0
      %10365 = vmatpush1.bf16.msra.mxu0 0
      %10366 = vmatprep.subr.bf16.mxu0 0
      %10367 = vmatpush1.bf16.msra.mxu0 0
      %10368 = vmatprep.subr.bf16.mxu0 0
      %10369 = vmatpush1.bf16.msra.mxu0 0
      %10370 = vmatprep.subr.bf16.mxu0 0
      %10371 = vmatpush1.bf16.msra.mxu0 0
      %10372 = vmatprep.subr.bf16.mxu0 0
      %10373 = vmatpush1.bf16.msra.mxu0 0
      %10374 = vmatprep.subr.bf16.mxu0 0
      %10375 = vmatpush1.bf16.msra.mxu0 0
      %10376 = vmatprep.subr.bf16.mxu0 0
      %10377 = vmatpush1.bf16.msra.mxu0 0
      %10378 = vmatprep.subr.bf16.mxu0 0
      %10379 = vmatpush1.bf16.msra.mxu0 0
      %10380 = vmatprep.mubr.bf16.mxu0 0
      %10381 = vmatmul.mubr.bf16.gmra.mrb[0].mxu0 %v10316
      %v10382 = vpop.f32.mrb[0].mxu0
      %v10383 = vadd.f32 0.0, %v10382
      %v10384 = vpop.f32.mrb[0].mxu0
      %v10385 = vpop.f32.mrb[0].mxu0
      %v10386 = vadd.f32 0.0, %v10385
      %v10387 = vpop.f32.mrb[0].mxu0
      %10388 = vmatprep.mubr.bf16.mxu0 0
      %10389 = vmatmul.mubr.bf16.gmra.mrb[0].mxu0 %v10319
      %v10390 = vpop.f32.mrb[0].mxu0
      %v10391 = vadd.f32 0.0, %v10390
      %v10392 = vpop.f32.mrb[0].mxu0
      %v10393 = vpop.f32.mrb[0].mxu0
      %v10394 = vadd.f32 0.0, %v10393
      %v10395 = vpop.f32.mrb[0].mxu0
      %10396 = vmatprep.mubr.bf16.mxu0 0
      %10397 = vmatmul.mubr.bf16.gmra.mrb[0].mxu0 %v10322
      %v10398 = vpop.f32.mrb[0].mxu0
      %v10399 = vadd.f32 0.0, %v10398
      %v10400 = vpop.f32.mrb[0].mxu0
      %v10401 = vpop.f32.mrb[0].mxu0
      %v10402 = vadd.f32 0.0, %v10401
      %v10403 = vpop.f32.mrb[0].mxu0
      %10404 = vmatprep.mubr.bf16.mxu0 0
      %10405 = vmatmul.mubr.bf16.gmra.mrb[0].mxu0 %v10325
      %v10406 = vpop.f32.mrb[0].mxu0
      %v10407 = vadd.f32 0.0, %v10406
      %v10408 = vpop.f32.mrb[0].mxu0
      %v10409 = vpop.f32.mrb[0].mxu0
      %v10410 = vadd.f32 0.0, %v10409
      %v10411 = vpop.f32.mrb[0].mxu0
      %10412 = vmatprep.mubr.bf16.mxu0 0
      %10413 = vmatmul.mubr.bf16.gmra.mrb[0].mxu0 %v10328
      %v10414 = vpop.f32.mrb[0].mxu0
      %v10415 = vadd.f32 0.0, %v10414
      %v10416 = vpop.f32.mrb[0].mxu0
      %v10417 = vpop.f32.mrb[0].mxu0
      %v10418 = vadd.f32 0.0, %v10417
      %v10419 = vpop.f32.mrb[0].mxu0
      %10420 = vmatprep.mubr.bf16.mxu0 0
      %10421 = vmatmul.mubr.bf16.gmra.mrb[0].mxu0 %v10331
      %v10422 = vpop.f32.mrb[0].mxu0
      %v10423 = vadd.f32 0.0, %v10422
      %v10424 = vpop.f32.mrb[0].mxu0
      %v10425 = vpop.f32.mrb[0].mxu0
      %v10426 = vadd.f32 0.0, %v10425
      %v10427 = vpop.f32.mrb[0].mxu0
      %10428 = vmatprep.mubr.bf16.mxu0 0
      %10429 = vmatmul.mubr.bf16.gmra.mrb[0].mxu0 %v10334
      %v10430 = vpop.f32.mrb[0].mxu0
      %v10431 = vadd.f32 0.0, %v10430
      %v10432 = vpop.f32.mrb[0].mxu0
      %v10433 = vpop.f32.mrb[0].mxu0
      %v10434 = vadd.f32 0.0, %v10433
      %v10435 = vpop.f32.mrb[0].mxu0
      %10436 = vmatprep.mubr.bf16.mxu0 0
      %10437 = vmatmul.mubr.bf16.gmra.mrb[0].mxu0 %v10337
      %v10438 = vpop.f32.mrb[0].mxu0
      %v10439 = vadd.f32 0.0, %v10438
      %v10440 = vpop.f32.mrb[0].mxu0
      %v10441 = vpop.f32.mrb[0].mxu0
      %v10442 = vadd.f32 0.0, %v10441
      %v10443 = vpop.f32.mrb[0].mxu0
      %10444 = vmatprep.mubr.bf16.mxu0 0
      %10445 = vmatmul.mubr.bf16.gmra.mrb[0].mxu0 %v10340
      %v10446 = vpop.f32.mrb[0].mxu0
      %v10447 = vadd.f32 0.0, %v10446
      %v10448 = vpop.f32.mrb[0].mxu0
      %v10449 = vpop.f32.mrb[0].mxu0
      %v10450 = vadd.f32 0.0, %v10449
      %v10451 = vpop.f32.mrb[0].mxu0
      %10452 = vmatprep.mubr.bf16.mxu0 0
      %10453 = vmatmul.mubr.bf16.gmra.mrb[0].mxu0 %v10343
      %v10454 = vpop.f32.mrb[0].mxu0
      %v10455 = vadd.f32 0.0, %v10454
      %v10456 = vpop.f32.mrb[0].mxu0
      %v10457 = vpop.f32.mrb[0].mxu0
      %v10458 = vadd.f32 0.0, %v10457
      %v10459 = vpop.f32.mrb[0].mxu0
      %10460 = vmatprep.mubr.bf16.mxu0 0
      %10461 = vmatmul.mubr.bf16.gmra.mrb[0].mxu0 %v10346
      %v10462 = vpop.f32.mrb[0].mxu0
      %v10463 = vadd.f32 0.0, %v10462
      %v10464 = vpop.f32.mrb[0].mxu0
      %v10465 = vpop.f32.mrb[0].mxu0
      %v10466 = vadd.f32 0.0, %v10465
      %v10467 = vpop.f32.mrb[0].mxu0
      %10468 = vdwg.mxu0
      %v10469 = vadd.f32 %v9995, %v10383
      %v10470 = vadd.f32 %v9996, %v10386
      %v10471 = vadd.f32 %v9997, %v10391
      %v10472 = vadd.f32 %v9998, %v10394
      %v10473 = vadd.f32 %v9999, %v10399
      %v10474 = vadd.f32 %v10000, %v10402
      %v10475 = vadd.f32 %v10001, %v10407
      %v10476 = vadd.f32 %v10002, %v10410
      %v10477 = vadd.f32 %v10003, %v10415
      %v10478 = vadd.f32 %v10004, %v10418
      %v10479 = vadd.f32 %v10005, %v10423
      %v10480 = vadd.f32 %v10006, %v10426
      %v10481 = vadd.f32 %v10007, %v10431
      %v10482 = vadd.f32 %v10008, %v10434
      %v10483 = vadd.f32 %v10009, %v10439
      %v10484 = vadd.f32 %v10010, %v10442
      %v10485 = vadd.f32 %v10011, %v10447
      %v10486 = vadd.f32 %v10012, %v10450
      %v10487 = vadd.f32 %v10013, %v10455
      %v10488 = vadd.f32 %v10014, %v10458
      %v10489 = vadd.f32 %v10015, %v10463
      %v10490 = vadd.f32 %v10016, %v10466
      %s10491 = scalar_lea.vmem %s3, 112
      %v10492 = vld [vmem:[%s10491] sm:$0xf]
      %v10493 = vld [vmem:[%s10491 + $0x4] sm:$0xf]
      %v10494 = vld [vmem:[%s10491 + $0x8] sm:$0xf]
      %v10495 = vld [vmem:[%s10491 + $0xc] sm:$0xf]
      %v10496 = vpack.i.b16 %v5896, %v5893
      %v10497 = vpack.i.b16 %v5912, %v5911
      %v10498 = vpack.i.b16 %v5914, %v5913
      %v10499 = vpack.i.b16 %v5916, %v5915
      %v10500 = vpack.i.b16 %v5918, %v5917
      %v10501 = vpack.i.b16 %v5920, %v5919
      %v10502 = vpack.i.b16 %v5922, %v5921
      %v10504 = vcombine.low %v5947, %v5948
      %v10505 = vcombine.low %v5953, %v5954
      %v10507 = vunpack.c.l.s4 1966171168
      %v10508 = vunpack.c.0.s8 %v10507
      %v10509 = vlaneseq
      %v10510 = vshrl.u32 %v10509, 7
      %v10511 = vsub.s32 %v10508, %v10510
      %v10512 = vrot.slane %v10504, %v10511
      %v10514 = vunpack.c.l.s4 1966171168
      %v10515 = vunpack.c.0.s8 %v10514
      %v10516 = vlaneseq
      %v10517 = vshrl.u32 %v10516, 7
      %v10518 = vsub.s32 %v10515, %v10517
      %v10519 = vrot.slane %v10505, %v10518
      %v10520 = vcombine.low %v10512, %v9359
      %v10521 = vcombine.low %v9366, %v10519
      %v10523 = vunpack.c.l.s4 1966171168
      %v10524 = vunpack.c.0.s8 %v10523
      %v10525 = vlaneseq
      %v10526 = vshrl.u32 %v10525, 7
      %v10527 = vsub.s32 %v10524, %v10526
      %v10528 = vrot.slane %v10520, %v10527
      %v10530 = vunpack.c.l.s4 1966171168
      %v10531 = vunpack.c.0.s8 %v10530
      %v10532 = vlaneseq
      %v10533 = vshrl.u32 %v10532, 7
      %v10534 = vsub.s32 %v10531, %v10533
      %v10535 = vrot.slane %v10521, %v10534
      %v10536 = vcombine.low %v10528, %v10535
      %v10537 = vcombine.low %v5959, %v5960
      %v10539 = vunpack.c.l.s4 1966171168
      %v10540 = vunpack.c.0.s8 %v10539
      %v10541 = vlaneseq
      %v10542 = vshrl.u32 %v10541, 7
      %v10543 = vsub.s32 %v10540, %v10542
      %v10544 = vrot.slane %v10537, %v10543
      %v10545 = vcombine.low %v9380, %v9408
      %v10546 = vcombine.low %v10544, %v9422
      %v10548 = vunpack.c.l.s4 1966171168
      %v10549 = vunpack.c.0.s8 %v10548
      %v10550 = vlaneseq
      %v10551 = vshrl.u32 %v10550, 7
      %v10552 = vsub.s32 %v10549, %v10551
      %v10553 = vrot.slane %v10545, %v10552
      %v10555 = vunpack.c.l.s4 1966171168
      %v10556 = vunpack.c.0.s8 %v10555
      %v10557 = vlaneseq
      %v10558 = vshrl.u32 %v10557, 7
      %v10559 = vsub.s32 %v10556, %v10558
      %v10560 = vrot.slane %v10546, %v10559
      %v10561 = vcombine.low %v10553, %v10560
      %v10562 = vcombine.low %v5965, %v5966
      %v10564 = vunpack.c.l.s4 1966171168
      %v10565 = vunpack.c.0.s8 %v10564
      %v10566 = vlaneseq
      %v10567 = vshrl.u32 %v10566, 7
      %v10568 = vsub.s32 %v10565, %v10567
      %v10569 = vrot.slane %v10562, %v10568
      %v10570 = vcombine.low %v9429, %v10569
      %v10571 = vcombine.low %v9464, %v9471
      %v10573 = vunpack.c.l.s4 1966171168
      %v10574 = vunpack.c.0.s8 %v10573
      %v10575 = vlaneseq
      %v10576 = vshrl.u32 %v10575, 7
      %v10577 = vsub.s32 %v10574, %v10576
      %v10578 = vrot.slane %v10570, %v10577
      %v10580 = vunpack.c.l.s4 1966171168
      %v10581 = vunpack.c.0.s8 %v10580
      %v10582 = vlaneseq
      %v10583 = vshrl.u32 %v10582, 7
      %v10584 = vsub.s32 %v10581, %v10583
      %v10585 = vrot.slane %v10571, %v10584
      %v10586 = vcombine.low %v10578, %v10585
      %v10587 = vcombine.low %v5973, %v5974
      %v10589 = vunpack.c.l.s4 1966171168
      %v10590 = vunpack.c.0.s8 %v10589
      %v10591 = vlaneseq
      %v10592 = vshrl.u32 %v10591, 7
      %v10593 = vsub.s32 %v10590, %v10592
      %v10594 = vrot.slane %v10587, %v10593
      %v10595 = vcombine.low %v9478, %v10594
      %v10596 = vcombine.low %v9513, %v9520
      %v10598 = vunpack.c.l.s4 1966171168
      %v10599 = vunpack.c.0.s8 %v10598
      %v10600 = vlaneseq
      %v10601 = vshrl.u32 %v10600, 7
      %v10602 = vsub.s32 %v10599, %v10601
      %v10603 = vrot.slane %v10595, %v10602
      %v10605 = vunpack.c.l.s4 1966171168
      %v10606 = vunpack.c.0.s8 %v10605
      %v10607 = vlaneseq
      %v10608 = vshrl.u32 %v10607, 7
      %v10609 = vsub.s32 %v10606, %v10608
      %v10610 = vrot.slane %v10596, %v10609
      %v10611 = vcombine.low %v10603, %v10610
      %v10612 = vcombine.low %v5979, %v5980
      %v10613 = vcombine.low %v5985, %v5986
      %v10615 = vunpack.c.l.s4 1966171168
      %v10616 = vunpack.c.0.s8 %v10615
      %v10617 = vlaneseq
      %v10618 = vshrl.u32 %v10617, 7
      %v10619 = vsub.s32 %v10616, %v10618
      %v10620 = vrot.slane %v10612, %v10619
      %v10622 = vunpack.c.l.s4 1966171168
      %v10623 = vunpack.c.0.s8 %v10622
      %v10624 = vlaneseq
      %v10625 = vshrl.u32 %v10624, 7
      %v10626 = vsub.s32 %v10623, %v10625
      %v10627 = vrot.slane %v10613, %v10626
      %v10628 = vcombine.low %v10620, %v9555
      %v10629 = vcombine.low %v9562, %v10627
      %v10631 = vunpack.c.l.s4 1966171168
      %v10632 = vunpack.c.0.s8 %v10631
      %v10633 = vlaneseq
      %v10634 = vshrl.u32 %v10633, 7
      %v10635 = vsub.s32 %v10632, %v10634
      %v10636 = vrot.slane %v10628, %v10635
      %v10638 = vunpack.c.l.s4 1966171168
      %v10639 = vunpack.c.0.s8 %v10638
      %v10640 = vlaneseq
      %v10641 = vshrl.u32 %v10640, 7
      %v10642 = vsub.s32 %v10639, %v10641
      %v10643 = vrot.slane %v10629, %v10642
      %v10644 = vcombine.low %v10636, %v10643
      %v10645 = vcombine.low %v5991, %v5992
      %v10647 = vunpack.c.l.s4 1966171168
      %v10648 = vunpack.c.0.s8 %v10647
      %v10649 = vlaneseq
      %v10650 = vshrl.u32 %v10649, 7
      %v10651 = vsub.s32 %v10648, %v10650
      %v10652 = vrot.slane %v10645, %v10651
      %v10653 = vcombine.low %v9576, %v9604
      %v10654 = vcombine.low %v10652, %v9618
      %v10656 = vunpack.c.l.s4 1966171168
      %v10657 = vunpack.c.0.s8 %v10656
      %v10658 = vlaneseq
      %v10659 = vshrl.u32 %v10658, 7
      %v10660 = vsub.s32 %v10657, %v10659
      %v10661 = vrot.slane %v10653, %v10660
      %v10663 = vunpack.c.l.s4 1966171168
      %v10664 = vunpack.c.0.s8 %v10663
      %v10665 = vlaneseq
      %v10666 = vshrl.u32 %v10665, 7
      %v10667 = vsub.s32 %v10664, %v10666
      %v10668 = vrot.slane %v10654, %v10667
      %v10669 = vcombine.low %v10661, %v10668
      %v10670 = vcombine.low %v5999, %v6000
      %v10672 = vunpack.c.l.s4 1966171168
      %v10673 = vunpack.c.0.s8 %v10672
      %v10674 = vlaneseq
      %v10675 = vshrl.u32 %v10674, 7
      %v10676 = vsub.s32 %v10673, %v10675
      %v10677 = vrot.slane %v10670, %v10676
      %v10678 = vcombine.low %v9625, %v9653
      %v10679 = vcombine.low %v10677, %v9667
      %v10681 = vunpack.c.l.s4 1966171168
      %v10682 = vunpack.c.0.s8 %v10681
      %v10683 = vlaneseq
      %v10684 = vshrl.u32 %v10683, 7
      %v10685 = vsub.s32 %v10682, %v10684
      %v10686 = vrot.slane %v10678, %v10685
      %v10688 = vunpack.c.l.s4 1966171168
      %v10689 = vunpack.c.0.s8 %v10688
      %v10690 = vlaneseq
      %v10691 = vshrl.u32 %v10690, 7
      %v10692 = vsub.s32 %v10689, %v10691
      %v10693 = vrot.slane %v10679, %v10692
      %v10694 = vcombine.low %v10686, %v10693
      %v10695 = vcombine.low %v6005, %v6006
      %v10697 = vunpack.c.l.s4 1966171168
      %v10698 = vunpack.c.0.s8 %v10697
      %v10699 = vlaneseq
      %v10700 = vshrl.u32 %v10699, 7
      %v10701 = vsub.s32 %v10698, %v10700
      %v10702 = vrot.slane %v10695, %v10701
      %v10703 = vcombine.low %v9674, %v10702
      %v10704 = vcombine.low %v9709, %v9716
      %v10706 = vunpack.c.l.s4 1966171168
      %v10707 = vunpack.c.0.s8 %v10706
      %v10708 = vlaneseq
      %v10709 = vshrl.u32 %v10708, 7
      %v10710 = vsub.s32 %v10707, %v10709
      %v10711 = vrot.slane %v10703, %v10710
      %v10713 = vunpack.c.l.s4 1966171168
      %v10714 = vunpack.c.0.s8 %v10713
      %v10715 = vlaneseq
      %v10716 = vshrl.u32 %v10715, 7
      %v10717 = vsub.s32 %v10714, %v10716
      %v10718 = vrot.slane %v10704, %v10717
      %v10719 = vcombine.low %v10711, %v10718
      %v10720 = vcombine.low %v6011, %v6012
      %v10721 = vcombine.low %v6017, %v10496
      %v10723 = vunpack.c.l.s4 1966171168
      %v10724 = vunpack.c.0.s8 %v10723
      %v10725 = vlaneseq
      %v10726 = vshrl.u32 %v10725, 7
      %v10727 = vsub.s32 %v10724, %v10726
      %v10728 = vrot.slane %v10720, %v10727
      %v10730 = vunpack.c.l.s4 1966171168
      %v10731 = vunpack.c.0.s8 %v10730
      %v10732 = vlaneseq
      %v10733 = vshrl.u32 %v10732, 7
      %v10734 = vsub.s32 %v10731, %v10733
      %v10735 = vrot.slane %v10721, %v10734
      %v10736 = vcombine.low %v10728, %v9751
      %v10737 = vcombine.low %v9758, %v10735
      %v10739 = vunpack.c.l.s4 1966171168
      %v10740 = vunpack.c.0.s8 %v10739
      %v10741 = vlaneseq
      %v10742 = vshrl.u32 %v10741, 7
      %v10743 = vsub.s32 %v10740, %v10742
      %v10744 = vrot.slane %v10736, %v10743
      %v10746 = vunpack.c.l.s4 1966171168
      %v10747 = vunpack.c.0.s8 %v10746
      %v10748 = vlaneseq
      %v10749 = vshrl.u32 %v10748, 7
      %v10750 = vsub.s32 %v10747, %v10749
      %v10751 = vrot.slane %v10737, %v10750
      %v10752 = vcombine.low %v10744, %v10751
      %v10753 = vcombine.low %v10497, %v10498
      %v10755 = vunpack.c.l.s4 1966171168
      %v10756 = vunpack.c.0.s8 %v10755
      %v10757 = vlaneseq
      %v10758 = vshrl.u32 %v10757, 7
      %v10759 = vsub.s32 %v10756, %v10758
      %v10760 = vrot.slane %v10753, %v10759
      %v10761 = vcombine.low %v9772, %v9798
      %v10762 = vcombine.low %v9805, %v10760
      %v10764 = vunpack.c.l.s4 1966171168
      %v10765 = vunpack.c.0.s8 %v10764
      %v10766 = vlaneseq
      %v10767 = vshrl.u32 %v10766, 7
      %v10768 = vsub.s32 %v10765, %v10767
      %v10769 = vrot.slane %v10761, %v10768
      %v10771 = vunpack.c.l.s4 1966171168
      %v10772 = vunpack.c.0.s8 %v10771
      %v10773 = vlaneseq
      %v10774 = vshrl.u32 %v10773, 7
      %v10775 = vsub.s32 %v10772, %v10774
      %v10776 = vrot.slane %v10762, %v10775
      %v10777 = vcombine.low %v10769, %v10776
      %v10778 = vcombine.low %v10499, %v10500
      %v10779 = vcombine.low %v10501, %v10502
      %v10781 = vunpack.c.l.s4 1966171168
      %v10782 = vunpack.c.0.s8 %v10781
      %v10783 = vlaneseq
      %v10784 = vshrl.u32 %v10783, 7
      %v10785 = vsub.s32 %v10782, %v10784
      %v10786 = vrot.slane %v10778, %v10785
      %v10788 = vunpack.c.l.s4 1966171168
      %v10789 = vunpack.c.0.s8 %v10788
      %v10790 = vlaneseq
      %v10791 = vshrl.u32 %v10790, 7
      %v10792 = vsub.s32 %v10789, %v10791
      %v10793 = vrot.slane %v10779, %v10792
      %v10795 = vunpack.c.l.s4 1966171168
      %v10796 = vunpack.c.0.s8 %v10795
      %v10797 = vlaneseq
      %v10798 = vshrl.u32 %v10797, 7
      %v10799 = vsub.s32 %v10796, %v10798
      %v10800 = vrot.slane %v5923, %v10799
      %v10801 = vcombine.low %v10786, %v10793
      %v10803 = vunpack.c.l.s4 1966171168
      %v10804 = vunpack.c.0.s8 %v10803
      %v10805 = vlaneseq
      %v10806 = vshrl.u32 %v10805, 7
      %v10807 = vsub.s32 %v10804, %v10806
      %v10808 = vrot.slane %v10801, %v10807
      %v10810 = vunpack.c.l.s4 1966171168
      %v10811 = vunpack.c.0.s8 %v10810
      %v10812 = vlaneseq
      %v10813 = vshrl.u32 %v10812, 7
      %v10814 = vsub.s32 %v10811, %v10813
      %v10815 = vrot.slane %v10800, %v10814
      %v10816 = vcombine.low %v10808, %v10815
      %v10821 = vunpack.c.l.b16 %v10492
      %v10822 = vunpack.c.l.b16 %v10493
      %v10823 = vunpack.c.l.b16 %v10494
      %v10824 = vunpack.c.l.b16 %v10495
      %v10825 = vpack.c.b16 %v10822, %v10821
      %v10826 = vpack.c.b16 %v10824, %v10823
      %v10830 = vsel %vm6560, %v10536, 0
      %v10833 = vsel %vm6560, %v10561, 0
      %v10836 = vsel %vm6560, %v10586, 0
      %v10839 = vsel %vm6560, %v10611, 0
      %v10842 = vsel %vm6560, %v10644, 0
      %v10845 = vsel %vm6560, %v10669, 0
      %v10848 = vsel %vm6560, %v10694, 0
      %v10851 = vsel %vm6560, %v10719, 0
      %v10854 = vsel %vm6560, %v10752, 0
      %v10857 = vsel %vm6560, %v10777, 0
      %v10860 = vsel %vm6560, %v10816, 0
      %10862 = vmatprep.subr.bf16.mxu0 0
      %10863 = vmatpush1.bf16.msra.mxu0 %v10825
      %10864 = vmatprep.subr.bf16.mxu0 0
      %10865 = vmatpush1.bf16.msra.mxu0 %v10826
      %10866 = vmatprep.subr.bf16.mxu0 0
      %10867 = vmatpush1.bf16.msra.mxu0 0
      %10868 = vmatprep.subr.bf16.mxu0 0
      %10869 = vmatpush1.bf16.msra.mxu0 0
      %10870 = vmatprep.subr.bf16.mxu0 0
      %10871 = vmatpush1.bf16.msra.mxu0 0
      %10872 = vmatprep.subr.bf16.mxu0 0
      %10873 = vmatpush1.bf16.msra.mxu0 0
      %10874 = vmatprep.subr.bf16.mxu0 0
      %10875 = vmatpush1.bf16.msra.mxu0 0
      %10876 = vmatprep.subr.bf16.mxu0 0
      %10877 = vmatpush1.bf16.msra.mxu0 0
      %10878 = vmatprep.subr.bf16.mxu0 0
      %10879 = vmatpush1.bf16.msra.mxu0 0
      %10880 = vmatprep.subr.bf16.mxu0 0
      %10881 = vmatpush1.bf16.msra.mxu0 0
      %10882 = vmatprep.subr.bf16.mxu0 0
      %10883 = vmatpush1.bf16.msra.mxu0 0
      %10884 = vmatprep.subr.bf16.mxu0 0
      %10885 = vmatpush1.bf16.msra.mxu0 0
      %10886 = vmatprep.subr.bf16.mxu0 0
      %10887 = vmatpush1.bf16.msra.mxu0 0
      %10888 = vmatprep.subr.bf16.mxu0 0
      %10889 = vmatpush1.bf16.msra.mxu0 0
      %10890 = vmatprep.subr.bf16.mxu0 0
      %10891 = vmatpush1.bf16.msra.mxu0 0
      %10892 = vmatprep.subr.bf16.mxu0 0
      %10893 = vmatpush1.bf16.msra.mxu0 0
      %10894 = vmatprep.mubr.bf16.mxu0 0
      %10895 = vmatmul.mubr.bf16.gmra.mrb[0].mxu0 %v10830
      %v10896 = vpop.f32.mrb[0].mxu0
      %v10897 = vadd.f32 0.0, %v10896
      %v10898 = vpop.f32.mrb[0].mxu0
      %v10899 = vpop.f32.mrb[0].mxu0
      %v10900 = vadd.f32 0.0, %v10899
      %v10901 = vpop.f32.mrb[0].mxu0
      %10902 = vmatprep.mubr.bf16.mxu0 0
      %10903 = vmatmul.mubr.bf16.gmra.mrb[0].mxu0 %v10833
      %v10904 = vpop.f32.mrb[0].mxu0
      %v10905 = vadd.f32 0.0, %v10904
      %v10906 = vpop.f32.mrb[0].mxu0
      %v10907 = vpop.f32.mrb[0].mxu0
      %v10908 = vadd.f32 0.0, %v10907
      %v10909 = vpop.f32.mrb[0].mxu0
      %10910 = vmatprep.mubr.bf16.mxu0 0
      %10911 = vmatmul.mubr.bf16.gmra.mrb[0].mxu0 %v10836
      %v10912 = vpop.f32.mrb[0].mxu0
      %v10913 = vadd.f32 0.0, %v10912
      %v10914 = vpop.f32.mrb[0].mxu0
      %v10915 = vpop.f32.mrb[0].mxu0
      %v10916 = vadd.f32 0.0, %v10915
      %v10917 = vpop.f32.mrb[0].mxu0
      %10918 = vmatprep.mubr.bf16.mxu0 0
      %10919 = vmatmul.mubr.bf16.gmra.mrb[0].mxu0 %v10839
      %v10920 = vpop.f32.mrb[0].mxu0
      %v10921 = vadd.f32 0.0, %v10920
      %v10922 = vpop.f32.mrb[0].mxu0
      %v10923 = vpop.f32.mrb[0].mxu0
      %v10924 = vadd.f32 0.0, %v10923
      %v10925 = vpop.f32.mrb[0].mxu0
      %10926 = vmatprep.mubr.bf16.mxu0 0
      %10927 = vmatmul.mubr.bf16.gmra.mrb[0].mxu0 %v10842
      %v10928 = vpop.f32.mrb[0].mxu0
      %v10929 = vadd.f32 0.0, %v10928
      %v10930 = vpop.f32.mrb[0].mxu0
      %v10931 = vpop.f32.mrb[0].mxu0
      %v10932 = vadd.f32 0.0, %v10931
      %v10933 = vpop.f32.mrb[0].mxu0
      %10934 = vmatprep.mubr.bf16.mxu0 0
      %10935 = vmatmul.mubr.bf16.gmra.mrb[0].mxu0 %v10845
      %v10936 = vpop.f32.mrb[0].mxu0
      %v10937 = vadd.f32 0.0, %v10936
      %v10938 = vpop.f32.mrb[0].mxu0
      %v10939 = vpop.f32.mrb[0].mxu0
      %v10940 = vadd.f32 0.0, %v10939
      %v10941 = vpop.f32.mrb[0].mxu0
      %10942 = vmatprep.mubr.bf16.mxu0 0
      %10943 = vmatmul.mubr.bf16.gmra.mrb[0].mxu0 %v10848
      %v10944 = vpop.f32.mrb[0].mxu0
      %v10945 = vadd.f32 0.0, %v10944
      %v10946 = vpop.f32.mrb[0].mxu0
      %v10947 = vpop.f32.mrb[0].mxu0
      %v10948 = vadd.f32 0.0, %v10947
      %v10949 = vpop.f32.mrb[0].mxu0
      %10950 = vmatprep.mubr.bf16.mxu0 0
      %10951 = vmatmul.mubr.bf16.gmra.mrb[0].mxu0 %v10851
      %v10952 = vpop.f32.mrb[0].mxu0
      %v10953 = vadd.f32 0.0, %v10952
      %v10954 = vpop.f32.mrb[0].mxu0
      %v10955 = vpop.f32.mrb[0].mxu0
      %v10956 = vadd.f32 0.0, %v10955
      %v10957 = vpop.f32.mrb[0].mxu0
      %10958 = vmatprep.mubr.bf16.mxu0 0
      %10959 = vmatmul.mubr.bf16.gmra.mrb[0].mxu0 %v10854
      %v10960 = vpop.f32.mrb[0].mxu0
      %v10961 = vadd.f32 0.0, %v10960
      %v10962 = vpop.f32.mrb[0].mxu0
      %v10963 = vpop.f32.mrb[0].mxu0
      %v10964 = vadd.f32 0.0, %v10963
      %v10965 = vpop.f32.mrb[0].mxu0
      %10966 = vmatprep.mubr.bf16.mxu0 0
      %10967 = vmatmul.mubr.bf16.gmra.mrb[0].mxu0 %v10857
      %v10968 = vpop.f32.mrb[0].mxu0
      %v10969 = vadd.f32 0.0, %v10968
      %v10970 = vpop.f32.mrb[0].mxu0
      %v10971 = vpop.f32.mrb[0].mxu0
      %v10972 = vadd.f32 0.0, %v10971
      %v10973 = vpop.f32.mrb[0].mxu0
      %10974 = vmatprep.mubr.bf16.mxu0 0
      %10975 = vmatmul.mubr.bf16.gmra.mrb[0].mxu0 %v10860
      %v10976 = vpop.f32.mrb[0].mxu0
      %v10977 = vadd.f32 0.0, %v10976
      %v10978 = vpop.f32.mrb[0].mxu0
      %v10979 = vpop.f32.mrb[0].mxu0
      %v10980 = vadd.f32 0.0, %v10979
      %v10981 = vpop.f32.mrb[0].mxu0
      %10982 = vdwg.mxu0
      %v10983 = vadd.f32 %v10469, %v10897
      %v10984 = vadd.f32 %v10470, %v10900
      %v10985 = vadd.f32 %v10471, %v10905
      %v10986 = vadd.f32 %v10472, %v10908
      %v10987 = vadd.f32 %v10473, %v10913
      %v10988 = vadd.f32 %v10474, %v10916
      %v10989 = vadd.f32 %v10475, %v10921
      %v10990 = vadd.f32 %v10476, %v10924
      %v10991 = vadd.f32 %v10477, %v10929
      %v10992 = vadd.f32 %v10478, %v10932
      %v10993 = vadd.f32 %v10479, %v10937
      %v10994 = vadd.f32 %v10480, %v10940
      %v10995 = vadd.f32 %v10481, %v10945
      %v10996 = vadd.f32 %v10482, %v10948
      %v10997 = vadd.f32 %v10483, %v10953
      %v10998 = vadd.f32 %v10484, %v10956
      %v10999 = vadd.f32 %v10485, %v10961
      %v11000 = vadd.f32 %v10486, %v10964
      %v11001 = vadd.f32 %v10487, %v10969
      %v11002 = vadd.f32 %v10488, %v10972
      %v11003 = vadd.f32 %v10489, %v10977
      %v11004 = vadd.f32 %v10490, %v10980
      %s11005 = scalar_lea.vmem %s3, 128
      %v11006 = vld [vmem:[%s11005] sm:$0xf]
      %v11007 = vld [vmem:[%s11005 + $0x4] sm:$0xf]
      %v11008 = vld [vmem:[%s11005 + $0x8] sm:$0xf]
      %v11009 = vld [vmem:[%s11005 + $0xc] sm:$0xf]
      %v11010 = vpack.i.b16 %v5897, %v5894
      %v11011 = vpack.i.b16 %v5909, %v5908
      %v11012 = vpack.i.b16 %v5923, %v5922
      %v11014 = vcombine.low %v6733, %v7503
      %v11015 = vcombine.low %v7504, %v6736
      %v11017 = vunpack.c.l.s4 1966171168
      %v11018 = vunpack.c.0.s8 %v11017
      %v11019 = vlaneseq
      %v11020 = vshrl.u32 %v11019, 7
      %v11021 = vsub.s32 %v11018, %v11020
      %v11022 = vrot.slane %v11014, %v11021
      %v11024 = vunpack.c.l.s4 1966171168
      %v11025 = vunpack.c.0.s8 %v11024
      %v11026 = vlaneseq
      %v11027 = vshrl.u32 %v11026, 7
      %v11028 = vsub.s32 %v11025, %v11027
      %v11029 = vrot.slane %v11015, %v11028
      %v11030 = vcombine.low %v6880, %v6908
      %v11031 = vcombine.low %v11022, %v11029
      %v11033 = vunpack.c.l.s4 1966171168
      %v11034 = vunpack.c.0.s8 %v11033
      %v11035 = vlaneseq
      %v11036 = vshrl.u32 %v11035, 7
      %v11037 = vsub.s32 %v11034, %v11036
      %v11038 = vrot.slane %v11030, %v11037
      %v11040 = vunpack.c.l.s4 1966171168
      %v11041 = vunpack.c.0.s8 %v11040
      %v11042 = vlaneseq
      %v11043 = vshrl.u32 %v11042, 7
      %v11044 = vsub.s32 %v11041, %v11043
      %v11045 = vrot.slane %v11031, %v11044
      %v11046 = vcombine.low %v11038, %v11045
      %v11047 = vcombine.low %v7505, %v6742
      %v11049 = vunpack.c.l.s4 1966171168
      %v11050 = vunpack.c.0.s8 %v11049
      %v11051 = vlaneseq
      %v11052 = vshrl.u32 %v11051, 7
      %v11053 = vsub.s32 %v11050, %v11052
      %v11054 = vrot.slane %v11047, %v11053
      %v11055 = vcombine.low %v6929, %v6957
      %v11056 = vcombine.low %v11054, %v6971
      %v11058 = vunpack.c.l.s4 1966171168
      %v11059 = vunpack.c.0.s8 %v11058
      %v11060 = vlaneseq
      %v11061 = vshrl.u32 %v11060, 7
      %v11062 = vsub.s32 %v11059, %v11061
      %v11063 = vrot.slane %v11055, %v11062
      %v11065 = vunpack.c.l.s4 1966171168
      %v11066 = vunpack.c.0.s8 %v11065
      %v11067 = vlaneseq
      %v11068 = vshrl.u32 %v11067, 7
      %v11069 = vsub.s32 %v11066, %v11068
      %v11070 = vrot.slane %v11056, %v11069
      %v11071 = vcombine.low %v11063, %v11070
      %v11072 = vcombine.low %v7506, %v7507
      %v11074 = vunpack.c.l.s4 1966171168
      %v11075 = vunpack.c.0.s8 %v11074
      %v11076 = vlaneseq
      %v11077 = vshrl.u32 %v11076, 7
      %v11078 = vsub.s32 %v11075, %v11077
      %v11079 = vrot.slane %v11072, %v11078
      %v11080 = vcombine.low %v6978, %v11079
      %v11081 = vcombine.low %v7013, %v7020
      %v11083 = vunpack.c.l.s4 1966171168
      %v11084 = vunpack.c.0.s8 %v11083
      %v11085 = vlaneseq
      %v11086 = vshrl.u32 %v11085, 7
      %v11087 = vsub.s32 %v11084, %v11086
      %v11088 = vrot.slane %v11080, %v11087
      %v11090 = vunpack.c.l.s4 1966171168
      %v11091 = vunpack.c.0.s8 %v11090
      %v11092 = vlaneseq
      %v11093 = vshrl.u32 %v11092, 7
      %v11094 = vsub.s32 %v11091, %v11093
      %v11095 = vrot.slane %v11081, %v11094
      %v11096 = vcombine.low %v11088, %v11095
      %v11097 = vcombine.low %v6753, %v7508
      %v11098 = vcombine.low %v6759, %v7509
      %v11100 = vunpack.c.l.s4 1966171168
      %v11101 = vunpack.c.0.s8 %v11100
      %v11102 = vlaneseq
      %v11103 = vshrl.u32 %v11102, 7
      %v11104 = vsub.s32 %v11101, %v11103
      %v11105 = vrot.slane %v11097, %v11104
      %v11107 = vunpack.c.l.s4 1966171168
      %v11108 = vunpack.c.0.s8 %v11107
      %v11109 = vlaneseq
      %v11110 = vshrl.u32 %v11109, 7
      %v11111 = vsub.s32 %v11108, %v11110
      %v11112 = vrot.slane %v11098, %v11111
      %v11113 = vcombine.low %v11105, %v7055
      %v11114 = vcombine.low %v7062, %v11112
      %v11116 = vunpack.c.l.s4 1966171168
      %v11117 = vunpack.c.0.s8 %v11116
      %v11118 = vlaneseq
      %v11119 = vshrl.u32 %v11118, 7
      %v11120 = vsub.s32 %v11117, %v11119
      %v11121 = vrot.slane %v11113, %v11120
      %v11123 = vunpack.c.l.s4 1966171168
      %v11124 = vunpack.c.0.s8 %v11123
      %v11125 = vlaneseq
      %v11126 = vshrl.u32 %v11125, 7
      %v11127 = vsub.s32 %v11124, %v11126
      %v11128 = vrot.slane %v11114, %v11127
      %v11129 = vcombine.low %v11121, %v11128
      %v11130 = vcombine.low %v7510, %v6762
      %v11131 = vcombine.low %v7511, %v6768
      %v11133 = vunpack.c.l.s4 1966171168
      %v11134 = vunpack.c.0.s8 %v11133
      %v11135 = vlaneseq
      %v11136 = vshrl.u32 %v11135, 7
      %v11137 = vsub.s32 %v11134, %v11136
      %v11138 = vrot.slane %v11130, %v11137
      %v11140 = vunpack.c.l.s4 1966171168
      %v11141 = vunpack.c.0.s8 %v11140
      %v11142 = vlaneseq
      %v11143 = vshrl.u32 %v11142, 7
      %v11144 = vsub.s32 %v11141, %v11143
      %v11145 = vrot.slane %v11131, %v11144
      %v11146 = vcombine.low %v11138, %v7104
      %v11147 = vcombine.low %v7111, %v11145
      %v11149 = vunpack.c.l.s4 1966171168
      %v11150 = vunpack.c.0.s8 %v11149
      %v11151 = vlaneseq
      %v11152 = vshrl.u32 %v11151, 7
      %v11153 = vsub.s32 %v11150, %v11152
      %v11154 = vrot.slane %v11146, %v11153
      %v11156 = vunpack.c.l.s4 1966171168
      %v11157 = vunpack.c.0.s8 %v11156
      %v11158 = vlaneseq
      %v11159 = vshrl.u32 %v11158, 7
      %v11160 = vsub.s32 %v11157, %v11159
      %v11161 = vrot.slane %v11147, %v11160
      %v11162 = vcombine.low %v11154, %v11161
      %v11163 = vcombine.low %v7512, %v7513
      %v11165 = vunpack.c.l.s4 1966171168
      %v11166 = vunpack.c.0.s8 %v11165
      %v11167 = vlaneseq
      %v11168 = vshrl.u32 %v11167, 7
      %v11169 = vsub.s32 %v11166, %v11168
      %v11170 = vrot.slane %v11163, %v11169
      %v11171 = vcombine.low %v7125, %v7153
      %v11172 = vcombine.low %v11170, %v7167
      %v11174 = vunpack.c.l.s4 1966171168
      %v11175 = vunpack.c.0.s8 %v11174
      %v11176 = vlaneseq
      %v11177 = vshrl.u32 %v11176, 7
      %v11178 = vsub.s32 %v11175, %v11177
      %v11179 = vrot.slane %v11171, %v11178
      %v11181 = vunpack.c.l.s4 1966171168
      %v11182 = vunpack.c.0.s8 %v11181
      %v11183 = vlaneseq
      %v11184 = vshrl.u32 %v11183, 7
      %v11185 = vsub.s32 %v11182, %v11184
      %v11186 = vrot.slane %v11172, %v11185
      %v11187 = vcombine.low %v11179, %v11186
      %v11188 = vcombine.low %v6779, %v7514
      %v11190 = vunpack.c.l.s4 1966171168
      %v11191 = vunpack.c.0.s8 %v11190
      %v11192 = vlaneseq
      %v11193 = vshrl.u32 %v11192, 7
      %v11194 = vsub.s32 %v11191, %v11193
      %v11195 = vrot.slane %v11188, %v11194
      %v11196 = vcombine.low %v7174, %v11195
      %v11197 = vcombine.low %v7209, %v7216
      %v11199 = vunpack.c.l.s4 1966171168
      %v11200 = vunpack.c.0.s8 %v11199
      %v11201 = vlaneseq
      %v11202 = vshrl.u32 %v11201, 7
      %v11203 = vsub.s32 %v11200, %v11202
      %v11204 = vrot.slane %v11196, %v11203
      %v11206 = vunpack.c.l.s4 1966171168
      %v11207 = vunpack.c.0.s8 %v11206
      %v11208 = vlaneseq
      %v11209 = vshrl.u32 %v11208, 7
      %v11210 = vsub.s32 %v11207, %v11209
      %v11211 = vrot.slane %v11197, %v11210
      %v11212 = vcombine.low %v11204, %v11211
      %v11213 = vcombine.low %v6785, %v7515
      %v11214 = vcombine.low %v7516, %v6788
      %v11216 = vunpack.c.l.s4 1966171168
      %v11217 = vunpack.c.0.s8 %v11216
      %v11218 = vlaneseq
      %v11219 = vshrl.u32 %v11218, 7
      %v11220 = vsub.s32 %v11217, %v11219
      %v11221 = vrot.slane %v11213, %v11220
      %v11223 = vunpack.c.l.s4 1966171168
      %v11224 = vunpack.c.0.s8 %v11223
      %v11225 = vlaneseq
      %v11226 = vshrl.u32 %v11225, 7
      %v11227 = vsub.s32 %v11224, %v11226
      %v11228 = vrot.slane %v11214, %v11227
      %v11229 = vcombine.low %v11221, %v11228
      %v11230 = vcombine.low %v7258, %v7265
      %v11232 = vunpack.c.l.s4 1966171168
      %v11233 = vunpack.c.0.s8 %v11232
      %v11234 = vlaneseq
      %v11235 = vshrl.u32 %v11234, 7
      %v11236 = vsub.s32 %v11233, %v11235
      %v11237 = vrot.slane %v11229, %v11236
      %v11239 = vunpack.c.l.s4 1966171168
      %v11240 = vunpack.c.0.s8 %v11239
      %v11241 = vlaneseq
      %v11242 = vshrl.u32 %v11241, 7
      %v11243 = vsub.s32 %v11240, %v11242
      %v11244 = vrot.slane %v11230, %v11243
      %v11245 = vcombine.low %v11237, %v11244
      %v11246 = vcombine.low %v7517, %v6794
      %v11247 = vcombine.low %v7518, %v11010
      %v11249 = vunpack.c.l.s4 1966171168
      %v11250 = vunpack.c.0.s8 %v11249
      %v11251 = vlaneseq
      %v11252 = vshrl.u32 %v11251, 7
      %v11253 = vsub.s32 %v11250, %v11252
      %v11254 = vrot.slane %v11246, %v11253
      %v11256 = vunpack.c.l.s4 1966171168
      %v11257 = vunpack.c.0.s8 %v11256
      %v11258 = vlaneseq
      %v11259 = vshrl.u32 %v11258, 7
      %v11260 = vsub.s32 %v11257, %v11259
      %v11261 = vrot.slane %v11247, %v11260
      %v11262 = vcombine.low %v11254, %v7298
      %v11263 = vcombine.low %v7305, %v11261
      %v11265 = vunpack.c.l.s4 1966171168
      %v11266 = vunpack.c.0.s8 %v11265
      %v11267 = vlaneseq
      %v11268 = vshrl.u32 %v11267, 7
      %v11269 = vsub.s32 %v11266, %v11268
      %v11270 = vrot.slane %v11262, %v11269
      %v11272 = vunpack.c.l.s4 1966171168
      %v11273 = vunpack.c.0.s8 %v11272
      %v11274 = vlaneseq
      %v11275 = vshrl.u32 %v11274, 7
      %v11276 = vsub.s32 %v11273, %v11275
      %v11277 = vrot.slane %v11263, %v11276
      %v11278 = vcombine.low %v11270, %v11277
      %v11279 = vcombine.low %v8774, %v8775
      %v11280 = vcombine.low %v8776, %v8777
      %v11281 = vcombine.low %v8778, %v11011
      %v11282 = vcombine.low %v10024, %v10025
      %v11284 = vunpack.c.l.s4 1966171168
      %v11285 = vunpack.c.0.s8 %v11284
      %v11286 = vlaneseq
      %v11287 = vshrl.u32 %v11286, 7
      %v11288 = vsub.s32 %v11285, %v11287
      %v11289 = vrot.slane %v11279, %v11288
      %v11291 = vunpack.c.l.s4 1966171168
      %v11292 = vunpack.c.0.s8 %v11291
      %v11293 = vlaneseq
      %v11294 = vshrl.u32 %v11293, 7
      %v11295 = vsub.s32 %v11292, %v11294
      %v11296 = vrot.slane %v11280, %v11295
      %v11298 = vunpack.c.l.s4 1966171168
      %v11299 = vunpack.c.0.s8 %v11298
      %v11300 = vlaneseq
      %v11301 = vshrl.u32 %v11300, 7
      %v11302 = vsub.s32 %v11299, %v11301
      %v11303 = vrot.slane %v11281, %v11302
      %v11305 = vunpack.c.l.s4 1966171168
      %v11306 = vunpack.c.0.s8 %v11305
      %v11307 = vlaneseq
      %v11308 = vshrl.u32 %v11307, 7
      %v11309 = vsub.s32 %v11306, %v11308
      %v11310 = vrot.slane %v11282, %v11309
      %v11311 = vcombine.low %v11289, %v11296
      %v11312 = vcombine.low %v11303, %v11310
      %v11314 = vunpack.c.l.s4 1966171168
      %v11315 = vunpack.c.0.s8 %v11314
      %v11316 = vlaneseq
      %v11317 = vshrl.u32 %v11316, 7
      %v11318 = vsub.s32 %v11315, %v11317
      %v11319 = vrot.slane %v11311, %v11318
      %v11321 = vunpack.c.l.s4 1966171168
      %v11322 = vunpack.c.0.s8 %v11321
      %v11323 = vlaneseq
      %v11324 = vshrl.u32 %v11323, 7
      %v11325 = vsub.s32 %v11322, %v11324
      %v11326 = vrot.slane %v11312, %v11325
      %v11327 = vcombine.low %v11319, %v11326
      %v11328 = vcombine.low %v10026, %v10027
      %v11329 = vcombine.low %v10028, %v11012
      %v11331 = vunpack.c.l.s4 1966171168
      %v11332 = vunpack.c.0.s8 %v11331
      %v11333 = vlaneseq
      %v11334 = vshrl.u32 %v11333, 7
      %v11335 = vsub.s32 %v11332, %v11334
      %v11336 = vrot.slane %v11328, %v11335
      %v11338 = vunpack.c.l.s4 1966171168
      %v11339 = vunpack.c.0.s8 %v11338
      %v11340 = vlaneseq
      %v11341 = vshrl.u32 %v11340, 7
      %v11342 = vsub.s32 %v11339, %v11341
      %v11343 = vrot.slane %v11329, %v11342
      %v11345 = vunpack.c.l.s4 1966171168
      %v11346 = vunpack.c.0.s8 %v11345
      %v11347 = vlaneseq
      %v11348 = vshrl.u32 %v11347, 7
      %v11349 = vsub.s32 %v11346, %v11348
      %v11350 = vrot.slane %v5924, %v11349
      %v11351 = vcombine.low %v11336, %v11343
      %v11353 = vunpack.c.l.s4 1966171168
      %v11354 = vunpack.c.0.s8 %v11353
      %v11355 = vlaneseq
      %v11356 = vshrl.u32 %v11355, 7
      %v11357 = vsub.s32 %v11354, %v11356
      %v11358 = vrot.slane %v11351, %v11357
      %v11360 = vunpack.c.l.s4 1966171168
      %v11361 = vunpack.c.0.s8 %v11360
      %v11362 = vlaneseq
      %v11363 = vshrl.u32 %v11362, 7
      %v11364 = vsub.s32 %v11361, %v11363
      %v11365 = vrot.slane %v11350, %v11364
      %v11366 = vcombine.low %v11358, %v11365
      %v11371 = vunpack.c.l.b16 %v11006
      %v11372 = vunpack.c.l.b16 %v11007
      %v11373 = vunpack.c.l.b16 %v11008
      %v11374 = vunpack.c.l.b16 %v11009
      %v11375 = vpack.c.b16 %v11372, %v11371
      %v11376 = vpack.c.b16 %v11374, %v11373
      %v11380 = vsel %vm6560, %v11046, 0
      %v11383 = vsel %vm6560, %v11071, 0
      %v11386 = vsel %vm6560, %v11096, 0
      %v11389 = vsel %vm6560, %v11129, 0
      %v11392 = vsel %vm6560, %v11162, 0
      %v11395 = vsel %vm6560, %v11187, 0
      %v11398 = vsel %vm6560, %v11212, 0
      %v11401 = vsel %vm6560, %v11245, 0
      %v11404 = vsel %vm6560, %v11278, 0
      %v11407 = vsel %vm6560, %v11327, 0
      %v11410 = vsel %vm6560, %v11366, 0
      %11412 = vmatprep.subr.bf16.mxu0 0
      %11413 = vmatpush1.bf16.msra.mxu0 %v11375
      %11414 = vmatprep.subr.bf16.mxu0 0
      %11415 = vmatpush1.bf16.msra.mxu0 %v11376
      %11416 = vmatprep.subr.bf16.mxu0 0
      %11417 = vmatpush1.bf16.msra.mxu0 0
      %11418 = vmatprep.subr.bf16.mxu0 0
      %11419 = vmatpush1.bf16.msra.mxu0 0
      %11420 = vmatprep.subr.bf16.mxu0 0
      %11421 = vmatpush1.bf16.msra.mxu0 0
      %11422 = vmatprep.subr.bf16.mxu0 0
      %11423 = vmatpush1.bf16.msra.mxu0 0
      %11424 = vmatprep.subr.bf16.mxu0 0
      %11425 = vmatpush1.bf16.msra.mxu0 0
      %11426 = vmatprep.subr.bf16.mxu0 0
      %11427 = vmatpush1.bf16.msra.mxu0 0
      %11428 = vmatprep.subr.bf16.mxu0 0
      %11429 = vmatpush1.bf16.msra.mxu0 0
      %11430 = vmatprep.subr.bf16.mxu0 0
      %11431 = vmatpush1.bf16.msra.mxu0 0
      %11432 = vmatprep.subr.bf16.mxu0 0
      %11433 = vmatpush1.bf16.msra.mxu0 0
      %11434 = vmatprep.subr.bf16.mxu0 0
      %11435 = vmatpush1.bf16.msra.mxu0 0
      %11436 = vmatprep.subr.bf16.mxu0 0
      %11437 = vmatpush1.bf16.msra.mxu0 0
      %11438 = vmatprep.subr.bf16.mxu0 0
      %11439 = vmatpush1.bf16.msra.mxu0 0
      %11440 = vmatprep.subr.bf16.mxu0 0
      %11441 = vmatpush1.bf16.msra.mxu0 0
      %11442 = vmatprep.subr.bf16.mxu0 0
      %11443 = vmatpush1.bf16.msra.mxu0 0
      %11444 = vmatprep.mubr.bf16.mxu0 0
      %11445 = vmatmul.mubr.bf16.gmra.mrb[0].mxu0 %v11380
      %v11446 = vpop.f32.mrb[0].mxu0
      %v11447 = vadd.f32 0.0, %v11446
      %v11448 = vpop.f32.mrb[0].mxu0
      %v11449 = vpop.f32.mrb[0].mxu0
      %v11450 = vadd.f32 0.0, %v11449
      %v11451 = vpop.f32.mrb[0].mxu0
      %11452 = vmatprep.mubr.bf16.mxu0 0
      %11453 = vmatmul.mubr.bf16.gmra.mrb[0].mxu0 %v11383
      %v11454 = vpop.f32.mrb[0].mxu0
      %v11455 = vadd.f32 0.0, %v11454
      %v11456 = vpop.f32.mrb[0].mxu0
      %v11457 = vpop.f32.mrb[0].mxu0
      %v11458 = vadd.f32 0.0, %v11457
      %v11459 = vpop.f32.mrb[0].mxu0
      %11460 = vmatprep.mubr.bf16.mxu0 0
      %11461 = vmatmul.mubr.bf16.gmra.mrb[0].mxu0 %v11386
      %v11462 = vpop.f32.mrb[0].mxu0
      %v11463 = vadd.f32 0.0, %v11462
      %v11464 = vpop.f32.mrb[0].mxu0
      %v11465 = vpop.f32.mrb[0].mxu0
      %v11466 = vadd.f32 0.0, %v11465
      %v11467 = vpop.f32.mrb[0].mxu0
      %11468 = vmatprep.mubr.bf16.mxu0 0
      %11469 = vmatmul.mubr.bf16.gmra.mrb[0].mxu0 %v11389
      %v11470 = vpop.f32.mrb[0].mxu0
      %v11471 = vadd.f32 0.0, %v11470
      %v11472 = vpop.f32.mrb[0].mxu0
      %v11473 = vpop.f32.mrb[0].mxu0
      %v11474 = vadd.f32 0.0, %v11473
      %v11475 = vpop.f32.mrb[0].mxu0
      %11476 = vmatprep.mubr.bf16.mxu0 0
      %11477 = vmatmul.mubr.bf16.gmra.mrb[0].mxu0 %v11392
      %v11478 = vpop.f32.mrb[0].mxu0
      %v11479 = vadd.f32 0.0, %v11478
      %v11480 = vpop.f32.mrb[0].mxu0
      %v11481 = vpop.f32.mrb[0].mxu0
      %v11482 = vadd.f32 0.0, %v11481
      %v11483 = vpop.f32.mrb[0].mxu0
      %11484 = vmatprep.mubr.bf16.mxu0 0
      %11485 = vmatmul.mubr.bf16.gmra.mrb[0].mxu0 %v11395
      %v11486 = vpop.f32.mrb[0].mxu0
      %v11487 = vadd.f32 0.0, %v11486
      %v11488 = vpop.f32.mrb[0].mxu0
      %v11489 = vpop.f32.mrb[0].mxu0
      %v11490 = vadd.f32 0.0, %v11489
      %v11491 = vpop.f32.mrb[0].mxu0
      %11492 = vmatprep.mubr.bf16.mxu0 0
      %11493 = vmatmul.mubr.bf16.gmra.mrb[0].mxu0 %v11398
      %v11494 = vpop.f32.mrb[0].mxu0
      %v11495 = vadd.f32 0.0, %v11494
      %v11496 = vpop.f32.mrb[0].mxu0
      %v11497 = vpop.f32.mrb[0].mxu0
      %v11498 = vadd.f32 0.0, %v11497
      %v11499 = vpop.f32.mrb[0].mxu0
      %11500 = vmatprep.mubr.bf16.mxu0 0
      %11501 = vmatmul.mubr.bf16.gmra.mrb[0].mxu0 %v11401
      %v11502 = vpop.f32.mrb[0].mxu0
      %v11503 = vadd.f32 0.0, %v11502
      %v11504 = vpop.f32.mrb[0].mxu0
      %v11505 = vpop.f32.mrb[0].mxu0
      %v11506 = vadd.f32 0.0, %v11505
      %v11507 = vpop.f32.mrb[0].mxu0
      %11508 = vmatprep.mubr.bf16.mxu0 0
      %11509 = vmatmul.mubr.bf16.gmra.mrb[0].mxu0 %v11404
      %v11510 = vpop.f32.mrb[0].mxu0
      %v11511 = vadd.f32 0.0, %v11510
      %v11512 = vpop.f32.mrb[0].mxu0
      %v11513 = vpop.f32.mrb[0].mxu0
      %v11514 = vadd.f32 0.0, %v11513
      %v11515 = vpop.f32.mrb[0].mxu0
      %11516 = vmatprep.mubr.bf16.mxu0 0
      %11517 = vmatmul.mubr.bf16.gmra.mrb[0].mxu0 %v11407
      %v11518 = vpop.f32.mrb[0].mxu0
      %v11519 = vadd.f32 0.0, %v11518
      %v11520 = vpop.f32.mrb[0].mxu0
      %v11521 = vpop.f32.mrb[0].mxu0
      %v11522 = vadd.f32 0.0, %v11521
      %v11523 = vpop.f32.mrb[0].mxu0
      %11524 = vmatprep.mubr.bf16.mxu0 0
      %11525 = vmatmul.mubr.bf16.gmra.mrb[0].mxu0 %v11410
      %v11526 = vpop.f32.mrb[0].mxu0
      %v11527 = vadd.f32 0.0, %v11526
      %v11528 = vpop.f32.mrb[0].mxu0
      %v11529 = vpop.f32.mrb[0].mxu0
      %v11530 = vadd.f32 0.0, %v11529
      %v11531 = vpop.f32.mrb[0].mxu0
      %11532 = vdwg.mxu0
      %v11533 = vadd.f32 %v10983, %v11447
      %v11534 = vadd.f32 %v10984, %v11450
      %v11535 = vadd.f32 %v10985, %v11455
      %v11536 = vadd.f32 %v10986, %v11458
      %v11537 = vadd.f32 %v10987, %v11463
      %v11538 = vadd.f32 %v10988, %v11466
      %v11539 = vadd.f32 %v10989, %v11471
      %v11540 = vadd.f32 %v10990, %v11474
      %v11541 = vadd.f32 %v10991, %v11479
      %v11542 = vadd.f32 %v10992, %v11482
      %v11543 = vadd.f32 %v10993, %v11487
      %v11544 = vadd.f32 %v10994, %v11490
      %v11545 = vadd.f32 %v10995, %v11495
      %v11546 = vadd.f32 %v10996, %v11498
      %v11547 = vadd.f32 %v10997, %v11503
      %v11548 = vadd.f32 %v10998, %v11506
      %v11549 = vadd.f32 %v10999, %v11511
      %v11550 = vadd.f32 %v11000, %v11514
      %v11551 = vadd.f32 %v11001, %v11519
      %v11552 = vadd.f32 %v11002, %v11522
      %v11553 = vadd.f32 %v11003, %v11527
      %v11554 = vadd.f32 %v11004, %v11530
      %v11555 = vld [vmem:[%s4] sm:$0x1]
      %v11557 = vlaneseq
      %v11558 = vshrl.u32 %v11557, 7
      %v11559 = vsub.s32 0, %v11558
      %v11560 = vrot.slane %v11555, %v11559
      %v11562 = vadd.f32 %v11533, %v11560
      %v11563 = vadd.f32 %v11534, %v11560
      %v11564 = vadd.f32 %v11535, %v11560
      %v11565 = vadd.f32 %v11536, %v11560
      %v11566 = vadd.f32 %v11537, %v11560
      %v11567 = vadd.f32 %v11538, %v11560
      %v11568 = vadd.f32 %v11539, %v11560
      %v11569 = vadd.f32 %v11540, %v11560
      %v11570 = vadd.f32 %v11541, %v11560
      %v11571 = vadd.f32 %v11542, %v11560
      %v11572 = vadd.f32 %v11543, %v11560
      %v11573 = vadd.f32 %v11544, %v11560
      %v11574 = vadd.f32 %v11545, %v11560
      %v11575 = vadd.f32 %v11546, %v11560
      %v11576 = vadd.f32 %v11547, %v11560
      %v11577 = vadd.f32 %v11548, %v11560
      %v11578 = vadd.f32 %v11549, %v11560
      %v11579 = vadd.f32 %v11550, %v11560
      %v11580 = vadd.f32 %v11551, %v11560
      %v11581 = vadd.f32 %v11552, %v11560
      %v11582 = vadd.f32 %v11553, %v11560
      %v11583 = vadd.f32 %v11554, %v11560
      %v11584 = vmax.f32 %v11562, 0.0
      %v11585 = vmax.f32 %v11563, 0.0
      %v11586 = vmax.f32 %v11564, 0.0
      %v11587 = vmax.f32 %v11565, 0.0
      %v11588 = vmax.f32 %v11566, 0.0
      %v11589 = vmax.f32 %v11567, 0.0
      %v11590 = vmax.f32 %v11568, 0.0
      %v11591 = vmax.f32 %v11569, 0.0
      %v11592 = vmax.f32 %v11570, 0.0
      %v11593 = vmax.f32 %v11571, 0.0
      %v11594 = vmax.f32 %v11572, 0.0
      %v11595 = vmax.f32 %v11573, 0.0
      %v11596 = vmax.f32 %v11574, 0.0
      %v11597 = vmax.f32 %v11575, 0.0
      %v11598 = vmax.f32 %v11576, 0.0
      %v11599 = vmax.f32 %v11577, 0.0
      %v11600 = vmax.f32 %v11578, 0.0
      %v11601 = vmax.f32 %v11579, 0.0
      %v11602 = vmax.f32 %v11580, 0.0
      %v11603 = vmax.f32 %v11581, 0.0
      %v11604 = vmax.f32 %v11582, 0.0
      %v11605 = vmax.f32 %v11583, 0.0
      %v11606 = vpack.c.bf16 %v11585, %v11584
      %v11607 = vpack.c.bf16 %v11587, %v11586
      %v11608 = vpack.c.bf16 %v11589, %v11588
      %v11609 = vpack.c.bf16 %v11591, %v11590
      %v11610 = vpack.c.bf16 %v11593, %v11592
      %v11611 = vpack.c.bf16 %v11595, %v11594
      %v11612 = vpack.c.bf16 %v11597, %v11596
      %v11613 = vpack.c.bf16 %v11599, %v11598
      %v11614 = vpack.c.bf16 %v11601, %v11600
      %v11615 = vpack.c.bf16 %v11603, %v11602
      %v11616 = vpack.c.bf16 %v11605, %v11604
      %v11619 = vsel %vm6560, %v11606, 4286644096
      %v11622 = vsel %vm6560, %v11607, 4286644096
      %v11625 = vsel %vm6560, %v11608, 4286644096
      %v11628 = vsel %vm6560, %v11609, 4286644096
      %v11631 = vsel %vm6560, %v11610, 4286644096
      %v11633 = vmax.bf16 %v11619, %v11631
      %v11635 = vsel %vm6560, %v11611, 4286644096
      %v11637 = vmax.bf16 %v11622, %v11635
      %v11639 = vsel %vm6560, %v11612, 4286644096
      %v11641 = vmax.bf16 %v11625, %v11639
      %v11643 = vsel %vm6560, %v11613, 4286644096
      %v11645 = vmax.bf16 %v11628, %v11643
      %v11647 = vsel %vm6560, %v11614, 4286644096
      %v11649 = vmax.bf16 %v11633, %v11647
      %v11651 = vsel %vm6560, %v11615, 4286644096
      %v11653 = vmax.bf16 %v11637, %v11651
      %vm11654 = vcmask 258048
      %vm11655 = vsmask.f32 4352
      %vm11656 = vmand %vm11654, %vm11655
      %v11657 = vsel %vm11656, %v11616, 4286644096
      %v11658 = vmax.bf16 %v11641, %v11657
      %v11659 = vmax.bf16 %v11649, %v11653
      %v11660 = vmax.bf16 %v11658, %v11645
      %v11661 = vmax.bf16 %v11659, %v11660
      %v11662 = vunpack.i.l.bf16 %v11661
      %v11663 = vunpack.i.h.bf16 %v11661
      %v11664 = vmax.f32 %v11662, %v11663
      %v11665 = vrot.slane %v11664, 4
      %v11666 = vmax.f32 %v11664, %v11665
      %v11667 = vrot.slane %v11666, 2
      %v11668 = vmax.f32 %v11666, %v11667
      %v11669 = vrot.slane %v11668, 1
      %v11670 = vmax.f32 %v11668, %v11669
      %v11671 = vpack.i.bf16 %v11670, %v11670
      %v11672 = vld [vmem:[%s5] sm:$0xf]
      %v11673 = vld [vmem:[%s5 + $0x4] sm:$0xf]
      %v11674 = vld [vmem:[%s5 + $0x8] sm:$0xf]
      %v11675 = vld [vmem:[%s5 + $0xc] sm:$0xf]
      %v11676 = vld [vmem:[%s6] sm:$0x1]
      %v11681 = vunpack.c.l.b16 %v11672
      %v11682 = vunpack.c.l.b16 %v11673
      %v11683 = vunpack.c.l.b16 %v11674
      %v11684 = vunpack.c.l.b16 %v11675
      %v11685 = vpack.c.b16 %v11682, %v11681
      %v11686 = vpack.c.b16 %v11684, %v11683
      %v11690 = vsel %vm6560, %v11671, 0
      %11692 = vmatprep.subr.bf16.mxu0 0
      %11693 = vmatpush1.bf16.msra.mxu0 %v11685
      %11694 = vmatprep.subr.bf16.mxu0 0
      %11695 = vmatpush1.bf16.msra.mxu0 %v11686
      %11696 = vmatprep.subr.bf16.mxu0 0
      %11697 = vmatpush1.bf16.msra.mxu0 0
      %11698 = vmatprep.subr.bf16.mxu0 0
      %11699 = vmatpush1.bf16.msra.mxu0 0
      %11700 = vmatprep.subr.bf16.mxu0 0
      %11701 = vmatpush1.bf16.msra.mxu0 0
      %11702 = vmatprep.subr.bf16.mxu0 0
      %11703 = vmatpush1.bf16.msra.mxu0 0
      %11704 = vmatprep.subr.bf16.mxu0 0
      %11705 = vmatpush1.bf16.msra.mxu0 0
      %11706 = vmatprep.subr.bf16.mxu0 0
      %11707 = vmatpush1.bf16.msra.mxu0 0
      %11708 = vmatprep.subr.bf16.mxu0 0
      %11709 = vmatpush1.bf16.msra.mxu0 0
      %11710 = vmatprep.subr.bf16.mxu0 0
      %11711 = vmatpush1.bf16.msra.mxu0 0
      %11712 = vmatprep.subr.bf16.mxu0 0
      %11713 = vmatpush1.bf16.msra.mxu0 0
      %11714 = vmatprep.subr.bf16.mxu0 0
      %11715 = vmatpush1.bf16.msra.mxu0 0
      %11716 = vmatprep.subr.bf16.mxu0 0
      %11717 = vmatpush1.bf16.msra.mxu0 0
      %11718 = vmatprep.subr.bf16.mxu0 0
      %11719 = vmatpush1.bf16.msra.mxu0 0
      %11720 = vmatprep.subr.bf16.mxu0 0
      %11721 = vmatpush1.bf16.msra.mxu0 0
      %11722 = vmatprep.subr.bf16.mxu0 0
      %11723 = vmatpush1.bf16.msra.mxu0 0
      %11724 = vmatprep.mubr.bf16.mxu0 0
      %11725 = vmatmul.mubr.bf16.gmra.mrb[0].mxu0 %v11690
      %v11726 = vpop.f32.mrb[0].mxu0
      %v11727 = vadd.f32 %v11676, %v11726
      %v11728 = vpop.f32.mrb[0].mxu0
      %v11729 = vpop.f32.mrb[0].mxu0
      %v11730 = vpop.f32.mrb[0].mxu0
      %11731 = vdwg.mxu0
      %v11732 = vlaneseq
      %v11733 = vand.u32 %v11732, 127
      %vm11734 = vcmp.lt.s32.totalorder %v11733, 4
      %v11735 = vsel %vm11734, %v11727, -1e+30
      %v11736 = vsel %vm2177, %v11735, -inf
      %11737 = vmax.xlane.f32.xlu0 %v11736
      %v11738 = vpop.xlane.xlu0 %11737
      %v11739 = vsub.f32 %v11735, %v11738
      %v11740 = vmul.f32 %v11739, 1.442695
      %v11741 = vpow.pop %v11740
      %v11742 = vsel %vm2177, %v11741, 0.0
      %11743 = vadd.xlane.f32.xlu0 %v11742
      %v11744 = vpop.xlane.xlu0 %11743
      %v11745 = vrcp.pop %v11744
      %v11746 = vmul.f32 %v11741, %v11745
      %v11747 = vsel %vm11734, %v11746, %v11727
      %11748 = vst [vmem:[%s274] sm:$0x1] %v11747
      %p11749 = scmp.lt.s32.totalorder %s18, 1
      %s11750 = scalar_select %p11749, %s18, 1
      %s11751 = scalar_lea.vmem %s7, %s11750
      // Predicated region
      $region49: #{a2c_forward.1} parent=47 // pred_check
        %p11752 = pneg %p188
      $region50: #{a2c_forward.1} parent=47 // pred_check_branch
        %11754 = sbr.rel (%p11752) target = $region52
      $region51: #{a2c_forward.1} parent=47 // pred_region
        _
      $region52: #{a2c_forward.1} parent=47 // pred_fallthru
        _
    $region48: #{a2c_forward.1} parent=5 // pred_fallthru
      _
    %p11755 = scmp.le.s32.totalorder 2, %s13
    // Predicated region
    $region53: #{a2c_forward.1} parent=5 // pred_check
      %p11756 = pneg %p11755
    $region54: #{a2c_forward.1} parent=5 // pred_check_branch
      %11758 = sbr.rel (%p11756) target = $region56
    $region55: #{a2c_forward.1} parent=5 // pred_region
      %s11759 = ssub.s32 %s13, 2
      // Predicated region
      $region57: #{a2c_forward.1} parent=55 // pred_check
        %p11760 = pneg %p194
      $region58: #{a2c_forward.1} parent=55 // pred_check_branch
        %11762 = sbr.rel (%p11760) target = $region60
      $region59: #{a2c_forward.1} parent=55 // pred_region
        %p11763 = scmp.lt.s32.totalorder %s19, 1
        %s11764 = scalar_select %p11763, %s19, 1
        %s11765 = scalar_lea.vmem %s7, %s11764
      $region60: #{a2c_forward.1} parent=55 // pred_fallthru
        _
    $region56: #{a2c_forward.1} parent=5 // pred_fallthru
      _
  $region6: #{a2c_forward.1} parent=0 // loop_footer
    %s17 = sadd.s32 1, %s13
  $region7: #{a2c_forward.1} parent=0 // loop_footer_branch
    %12 = sbr.rel target = $region3
  $region8: #{a2c_forward.1} parent=0 // loop_exit
    _

</llo_original>
